<compile_context>
chip_gen: v5e
topology: v5e:2x2
jax: 0.10.0
libtpu: 0.0.40
codegen_flags: <defaults>
</compile_context>

<pallas_src>
import functools

import jax
import jax.numpy as jnp
from jax.experimental import pallas as pl
from jax.experimental.pallas import tpu as pltpu


# ----------------------------------------------------------------------------
# helpers
# ----------------------------------------------------------------------------
def _round_up(x, m):
    return (x + m - 1) // m * m


def _swish(v):
    # swish(x) = x * sigmoid(x) = x / (1 + exp(-x))
    return v / (1.0 + jnp.exp(-v))


# ----------------------------------------------------------------------------
# kernel bodies
# ----------------------------------------------------------------------------
def _pw_conv_kernel(x_ref, w_ref, b_ref, o_ref):
    """1x1 conv (+ folded BN) + swish on a (tm, Cin) row tile."""
    acc = jnp.dot(x_ref[...], w_ref[...], preferred_element_type=jnp.float32)
    acc = acc + b_ref[...]
    o_ref[...] = _swish(acc).astype(o_ref.dtype)


def _pw_pair_conv_kernel(a_ref, c_ref, wa_ref, wc_ref, b_ref, o_ref):
    """Fused concat([a, c], channel) -> 1x1 conv (+ folded BN) + swish."""
    acc = jnp.dot(a_ref[...], wa_ref[...], preferred_element_type=jnp.float32)
    acc = acc + jnp.dot(c_ref[...], wc_ref[...], preferred_element_type=jnp.float32)
    acc = acc + b_ref[...]
    o_ref[...] = _swish(acc).astype(o_ref.dtype)


def _conv3x3_kernel(x_ref, w_ref, b_ref, o_ref, *, H, W):
    """3x3 stride-1 pad-1 conv (+ folded BN) + swish for one batch image.

    x_ref: (1, H+2, W+2, Cin) spatially pre-padded NHWC input
    w_ref: (9, Cin, Cout)     tap-major weights (tap index = dy*3 + dx)
    b_ref: (1, Cout)
    o_ref: (1, H*W, Cout)
    """
    Cin = x_ref.shape[-1]
    acc = None
    for dy in range(3):
        for dx in range(3):
            tap = x_ref[0, dy:dy + H, dx:dx + W, :]          # (H, W, Cin)
            tap2d = tap.reshape(H * W, Cin)
            p = jnp.dot(tap2d, w_ref[dy * 3 + dx],
                        preferred_element_type=jnp.float32)
            acc = p if acc is None else acc + p
    acc = acc + b_ref[...]
    o_ref[0] = _swish(acc).astype(o_ref.dtype)


# ----------------------------------------------------------------------------
# pallas_call wrappers
# ----------------------------------------------------------------------------
def _pointwise(x2d, w, b, *, tile_m=256):
    M, Cin = x2d.shape
    Cout = w.shape[1]
    tm = min(tile_m, _round_up(M, 8))
    Mp = _round_up(M, tm)
    if Mp != M:
        x2d = jnp.pad(x2d, ((0, Mp - M), (0, 0)))
    out = pl.pallas_call(
        _pw_conv_kernel,
        out_shape=jax.ShapeDtypeStruct((Mp, Cout), x2d.dtype),
        grid_spec=pltpu.PrefetchScalarGridSpec(
            num_scalar_prefetch=0,
            grid=(Mp // tm,),
            in_specs=[pl.BlockSpec((tm, Cin), lambda i: (i, 0)),
                      pl.BlockSpec((Cin, Cout), lambda i: (0, 0)),
                      pl.BlockSpec((1, Cout), lambda i: (0, 0))],
            out_specs=pl.BlockSpec((tm, Cout), lambda i: (i, 0))),
        compiler_params=pltpu.CompilerParams(
            dimension_semantics=("parallel",)),
    )(x2d, w, b)
    return out[:M] if Mp != M else out


def _pointwise_pair(a2d, c2d, wa, wc, b, *, tile_m=256):
    M, Ca = a2d.shape
    Cc = c2d.shape[1]
    Cout = wa.shape[1]
    tm = min(tile_m, _round_up(M, 8))
    Mp = _round_up(M, tm)
    if Mp != M:
        a2d = jnp.pad(a2d, ((0, Mp - M), (0, 0)))
        c2d = jnp.pad(c2d, ((0, Mp - M), (0, 0)))
    out = pl.pallas_call(
        _pw_pair_conv_kernel,
        out_shape=jax.ShapeDtypeStruct((Mp, Cout), a2d.dtype),
        grid_spec=pltpu.PrefetchScalarGridSpec(
            num_scalar_prefetch=0,
            grid=(Mp // tm,),
            in_specs=[pl.BlockSpec((tm, Ca), lambda i: (i, 0)),
                      pl.BlockSpec((tm, Cc), lambda i: (i, 0)),
                      pl.BlockSpec((Ca, Cout), lambda i: (0, 0)),
                      pl.BlockSpec((Cc, Cout), lambda i: (0, 0)),
                      pl.BlockSpec((1, Cout), lambda i: (0, 0))],
            out_specs=pl.BlockSpec((tm, Cout), lambda i: (i, 0))),
        compiler_params=pltpu.CompilerParams(
            dimension_semantics=("parallel",)),
    )(a2d, c2d, wa, wc, b)
    return out[:M] if Mp != M else out


def _conv3x3(x_nhwc, w9, b):
    B, H, W, Cin = x_nhwc.shape
    Cout = w9.shape[-1]
    xp = jnp.pad(x_nhwc, ((0, 0), (1, 1), (1, 1), (0, 0)))
    kernel = functools.partial(_conv3x3_kernel, H=H, W=W)
    out = pl.pallas_call(
        kernel,
        out_shape=jax.ShapeDtypeStruct((B, H * W, Cout), x_nhwc.dtype),
        grid_spec=pltpu.PrefetchScalarGridSpec(
            num_scalar_prefetch=0,
            grid=(B,),
            in_specs=[pl.BlockSpec((1, H + 2, W + 2, Cin),
                                   lambda bi: (bi, 0, 0, 0)),
                      pl.BlockSpec((9, Cin, Cout), lambda bi: (0, 0, 0)),
                      pl.BlockSpec((1, Cout), lambda bi: (0, 0))],
            out_specs=pl.BlockSpec((1, H * W, Cout), lambda bi: (bi, 0, 0))),
        compiler_params=pltpu.CompilerParams(
            dimension_semantics=("parallel",)),
    )(xp, w9, b)
    return out.reshape(B, H, W, Cout)


# ----------------------------------------------------------------------------
# CSPStage forward (NCHW in / NCHW out)
# ----------------------------------------------------------------------------
def csp_stage_forward(x_nchw, params):
    B, C, H, W = x_nchw.shape
    x2d = jnp.transpose(x_nchw, (0, 2, 3, 1)).reshape(B * H * W, C)

    y1 = _pointwise(x2d, params['conv1_w'], params['conv1_b'])
    y2 = _pointwise(x2d, params['conv2_w'], params['conv2_b'])
    cm = y1.shape[-1]

    for blk in params['blocks']:
        y2 = _conv3x3(y2.reshape(B, H, W, cm), blk['w1'], blk['b1'])
        y2 = _conv3x3(y2, blk['w2'], blk['b2'])
        y2 = y2.reshape(B * H * W, cm)
        # (shortcut=False in CSPStage, so no residual add)

    y = _pointwise_pair(y1, y2, params['conv3_wa'], params['conv3_wb'],
                        params['conv3_b'])
    cout = y.shape[-1]
    return jnp.transpose(y.reshape(B, H, W, cout), (0, 3, 1, 2))


# ----------------------------------------------------------------------------
# parameter construction (conv weight + BN folded into scale/bias)
# ----------------------------------------------------------------------------
def _make_conv_bn(key, cin, cout, ksize, eps=1e-5):
    kw, kg, kb, km, kv = jax.random.split(key, 5)
    fan_in = cin * ksize * ksize
    w = jax.random.normal(kw, (ksize * ksize, cin, cout), jnp.float32) / jnp.sqrt(fan_in)
    gamma = jax.random.uniform(kg, (cout,), jnp.float32, 0.5, 1.5)
    beta = 0.1 * jax.random.normal(kb, (cout,), jnp.float32)
    mean = 0.1 * jax.random.normal(km, (cout,), jnp.float32)
    var = jax.random.uniform(kv, (cout,), jnp.float32, 0.5, 1.5)
    s = gamma / jnp.sqrt(var + eps)
    wf = w * s                      # scale per output channel (last axis)
    bf = beta - mean * s
    if ksize == 1:
        wf = wf[0]                  # (cin, cout)
    return wf, bf.reshape(1, cout)


def make_csp_stage_params(key, ch_in, ch_out, n):
    ch_mid = ch_out // 2
    keys = jax.random.split(key, 3 + 2 * n)
    p = {}
    p['conv1_w'], p['conv1_b'] = _make_conv_bn(keys[0], ch_in, ch_mid, 1)
    p['conv2_w'], p['conv2_b'] = _make_conv_bn(keys[1], ch_in, ch_mid, 1)
    blocks = []
    for i in range(n):
        w1, b1 = _make_conv_bn(keys[2 + 2 * i], ch_mid, ch_mid, 3)
        w2, b2 = _make_conv_bn(keys[3 + 2 * i], ch_mid, ch_mid, 3)
        blocks.append({'w1': w1, 'b1': b1, 'w2': w2, 'b2': b2})
    p['blocks'] = blocks
    w3, b3 = _make_conv_bn(keys[2 + 2 * n], 2 * ch_mid, ch_out, 1)
    p['conv3_wa'] = w3[:ch_mid]     # rows multiplying y1 channels
    p['conv3_wb'] = w3[ch_mid:]     # rows multiplying y2 channels
    p['conv3_b'] = b3
    return p


# ----------------------------------------------------------------------------
# pure-JAX reference (lax.conv) for validation
# ----------------------------------------------------------------------------
def _ref_conv(x_nchw, w, b, ksize):
    cin = x_nchw.shape[1]
    if ksize == 1:
        w_oihw = jnp.transpose(w, (1, 0))[:, :, None, None]
        pad = ((0, 0), (0, 0))
    else:
        cout = w.shape[-1]
        w_oihw = jnp.transpose(w.reshape(3, 3, cin, cout), (3, 2, 0, 1))
        pad = ((1, 1), (1, 1))
    y = jax.lax.conv_general_dilated(
        x_nchw, w_oihw, (1, 1), pad,
        dimension_numbers=('NCHW', 'OIHW', 'NCHW'),
        precision=jax.lax.Precision.HIGHEST)
    return _swish(y + b.reshape(1, -1, 1, 1))


def csp_stage_reference(x, params):
    y1 = _ref_conv(x, params['conv1_w'], params['conv1_b'], 1)
    y2 = _ref_conv(x, params['conv2_w'], params['conv2_b'], 1)
    for blk in params['blocks']:
        y2 = _ref_conv(y2, blk['w1'], blk['b1'], 3)
        y2 = _ref_conv(y2, blk['w2'], blk['b2'], 3)
    yc = jnp.concatenate([y1, y2], axis=1)
    w3 = jnp.concatenate([params['conv3_wa'], params['conv3_wb']], axis=0)
    return _ref_conv(yc, w3, params['conv3_b'], 1)


# ----------------------------------------------------------------------------
if __name__ == "__main__":
    B, CH_IN, CH_OUT, H, W, N_BLOCKS = 2, 32, 32, 16, 16, 1

    key = jax.random.PRNGKey(0)
    kx, kp = jax.random.split(key)
    x = jax.random.normal(kx, (B, CH_IN, H, W), dtype=jnp.float32)
    params = make_csp_stage_params(kp, CH_IN, CH_OUT, N_BLOCKS)

    fwd = jax.jit(csp_stage_forward)
    y = jax.block_until_ready(fwd(x, params))

    assert y.shape == (B, CH_OUT, H, W)
    assert y.dtype == x.dtype
    assert bool(jnp.all(jnp.isfinite(y)))

    y_ref = csp_stage_reference(x, params)
    err = float(jnp.max(jnp.abs(y - y_ref)))
    assert err < 5e-2, f"max abs error vs reference: {err}"

    print("KERNEL_OK")
</pallas_src>

<mosaic_0001>
module attributes {stable_mosaic.version = 11 : i64} {
  func.func @_pw_conv_kernel(%arg0: i32, %arg1: memref<256x32xf32, #tpu.memory_space<vmem>>, %arg2: memref<32x16xf32, #tpu.memory_space<vmem>>, %arg3: memref<1x16xf32, #tpu.memory_space<vmem>>, %arg4: memref<256x16xf32, #tpu.memory_space<vmem>>) attributes {dimension_semantics = [#tpu.dimension_semantics<parallel>], iteration_bounds = array<i64: 2>, scalar_prefetch = 0 : i64, scratch_operands = 0 : i64, tpu.core_type = #tpu.core_type<tc>, window_params = [{transform_indices = @transform_0, window_bounds = array<i64: 256, 32>}, {pipeline_mode = #tpu.pipeline_mode<synchronous>, transform_indices = @transform_1, window_bounds = array<i64: 32, 16>}, {pipeline_mode = #tpu.pipeline_mode<synchronous>, transform_indices = @transform_2, window_bounds = array<i64: 1, 16>}, {transform_indices = @transform_3, window_bounds = array<i64: 256, 16>}]} {
    %c0 = arith.constant 0 : index
    %c0_0 = arith.constant 0 : index
    %0 = vector.load %arg1[%c0, %c0_0] : memref<256x32xf32, #tpu.memory_space<vmem>>, vector<256x32xf32>
    %c0_1 = arith.constant 0 : index
    %c0_2 = arith.constant 0 : index
    %1 = vector.load %arg2[%c0_1, %c0_2] : memref<32x16xf32, #tpu.memory_space<vmem>>, vector<32x16xf32>
    %cst = arith.constant dense<0.000000e+00> : vector<256x16xf32>
    %2 = tpu.matmul %0, %1, %cst {dimension_numbers = #tpu.dot_dimension_numbers<[1], [0], [0], [1], [0, 0, 1, 1], [], []>} : vector<256x32xf32>, vector<32x16xf32>, vector<256x16xf32> -> vector<256x16xf32>
    %c0_3 = arith.constant 0 : index
    %c0_4 = arith.constant 0 : index
    %3 = vector.load %arg3[%c0_3, %c0_4] : memref<1x16xf32, #tpu.memory_space<vmem>>, vector<1x16xf32>
    %4 = vector.broadcast %3 : vector<1x16xf32> to vector<256x16xf32>
    %5 = arith.addf %2, %4 : vector<256x16xf32>
    %cst_5 = arith.constant 0.000000e+00 : f32
    %6 = vector.broadcast %cst_5 : f32 to vector<256x16xf32>
    %7 = arith.subf %6, %5 : vector<256x16xf32>
    %8 = math.exp %7 : vector<256x16xf32>
    %cst_6 = arith.constant 1.000000e+00 : f32
    %9 = vector.broadcast %cst_6 : f32 to vector<256x16xf32>
    %10 = arith.addf %9, %8 : vector<256x16xf32>
    %11 = arith.divf %5, %10 : vector<256x16xf32>
    %c0_7 = arith.constant 0 : index
    %c0_8 = arith.constant 0 : index
    %12 = vector.load %arg4[%c0_7, %c0_8] : memref<256x16xf32, #tpu.memory_space<vmem>>, vector<256x16xf32>
    tpu.vector_store %arg4[%c0_7, %c0_8], %11 {strides = array<i32>} : memref<256x16xf32, #tpu.memory_space<vmem>>, vector<256x16xf32>,
    return
  }
  func.func @transform_0(%arg0: i32) -> (i32, i32) {
    %c0_i32 = arith.constant 0 : i32
    %c0_i32_0 = arith.constant 0 : i32
    return %arg0, %c0_i32 : i32, i32
  }
  func.func @transform_1(%arg0: i32) -> (i32, i32) {
    %c0_i32 = arith.constant 0 : i32
    %c0_i32_0 = arith.constant 0 : i32
    %c0_i32_1 = arith.constant 0 : i32
    return %c0_i32, %c0_i32_0 : i32, i32
  }
  func.func @transform_2(%arg0: i32) -> (i32, i32) {
    %c0_i32 = arith.constant 0 : i32
    %c0_i32_0 = arith.constant 0 : i32
    %c0_i32_1 = arith.constant 0 : i32
    return %c0_i32, %c0_i32_0 : i32, i32
  }
  func.func @transform_3(%arg0: i32) -> (i32, i32) {
    %c0_i32 = arith.constant 0 : i32
    %c0_i32_0 = arith.constant 0 : i32
    return %arg0, %c0_i32 : i32, i32
  }
}

module attributes {stable_mosaic.version = 11 : i64} {
  func.func @_pw_pair_conv_kernel(%arg0: i32, %arg1: memref<256x16xf32, #tpu.memory_space<vmem>>, %arg2: memref<256x16xf32, #tpu.memory_space<vmem>>, %arg3: memref<16x32xf32, #tpu.memory_space<vmem>>, %arg4: memref<16x32xf32, #tpu.memory_space<vmem>>, %arg5: memref<1x32xf32, #tpu.memory_space<vmem>>, %arg6: memref<256x32xf32, #tpu.memory_space<vmem>>) attributes {dimension_semantics = [#tpu.dimension_semantics<parallel>], iteration_bounds = array<i64: 2>, scalar_prefetch = 0 : i64, scratch_operands = 0 : i64, tpu.core_type = #tpu.core_type<tc>, window_params = [{transform_indices = @transform_0, window_bounds = array<i64: 256, 16>}, {transform_indices = @transform_1, window_bounds = array<i64: 256, 16>}, {pipeline_mode = #tpu.pipeline_mode<synchronous>, transform_indices = @transform_2, window_bounds = array<i64: 16, 32>}, {pipeline_mode = #tpu.pipeline_mode<synchronous>, transform_indices = @transform_3, window_bounds = array<i64: 16, 32>}, {pipeline_mode = #tpu.pipeline_mode<synchronous>, transform_indices = @transform_4, window_bounds = array<i64: 1, 32>}, {transform_indices = @transform_5, window_bounds = array<i64: 256, 32>}]} {
    %c0 = arith.constant 0 : index
    %c0_0 = arith.constant 0 : index
    %0 = vector.load %arg1[%c0, %c0_0] : memref<256x16xf32, #tpu.memory_space<vmem>>, vector<256x16xf32>
    %c0_1 = arith.constant 0 : index
    %c0_2 = arith.constant 0 : index
    %1 = vector.load %arg3[%c0_1, %c0_2] : memref<16x32xf32, #tpu.memory_space<vmem>>, vector<16x32xf32>
    %cst = arith.constant dense<0.000000e+00> : vector<256x32xf32>
    %2 = tpu.matmul %0, %1, %cst {dimension_numbers = #tpu.dot_dimension_numbers<[1], [0], [0], [1], [0, 0, 1, 1], [], []>} : vector<256x16xf32>, vector<16x32xf32>, vector<256x32xf32> -> vector<256x32xf32>
    %c0_3 = arith.constant 0 : index
    %c0_4 = arith.constant 0 : index
    %3 = vector.load %arg2[%c0_3, %c0_4] : memref<256x16xf32, #tpu.memory_space<vmem>>, vector<256x16xf32>
    %c0_5 = arith.constant 0 : index
    %c0_6 = arith.constant 0 : index
    %4 = vector.load %arg4[%c0_5, %c0_6] : memref<16x32xf32, #tpu.memory_space<vmem>>, vector<16x32xf32>
    %cst_7 = arith.constant dense<0.000000e+00> : vector<256x32xf32>
    %5 = tpu.matmul %3, %4, %cst_7 {dimension_numbers = #tpu.dot_dimension_numbers<[1], [0], [0], [1], [0, 0, 1, 1], [], []>} : vector<256x16xf32>, vector<16x32xf32>, vector<256x32xf32> -> vector<256x32xf32>
    %6 = arith.addf %2, %5 : vector<256x32xf32>
    %c0_8 = arith.constant 0 : index
    %c0_9 = arith.constant 0 : index
    %7 = vector.load %arg5[%c0_8, %c0_9] : memref<1x32xf32, #tpu.memory_space<vmem>>, vector<1x32xf32>
    %8 = vector.broadcast %7 : vector<1x32xf32> to vector<256x32xf32>
    %9 = arith.addf %6, %8 : vector<256x32xf32>
    %cst_10 = arith.constant 0.000000e+00 : f32
    %10 = vector.broadcast %cst_10 : f32 to vector<256x32xf32>
    %11 = arith.subf %10, %9 : vector<256x32xf32>
    %12 = math.exp %11 : vector<256x32xf32>
    %cst_11 = arith.constant 1.000000e+00 : f32
    %13 = vector.broadcast %cst_11 : f32 to vector<256x32xf32>
    %14 = arith.addf %13, %12 : vector<256x32xf32>
    %15 = arith.divf %9, %14 : vector<256x32xf32>
    %c0_12 = arith.constant 0 : index
    %c0_13 = arith.constant 0 : index
    %16 = vector.load %arg6[%c0_12, %c0_13] : memref<256x32xf32, #tpu.memory_space<vmem>>, vector<256x32xf32>
    tpu.vector_store %arg6[%c0_12, %c0_13], %15 {strides = array<i32>} : memref<256x32xf32, #tpu.memory_space<vmem>>, vector<256x32xf32>,
    return
  }
  func.func @transform_0(%arg0: i32) -> (i32, i32) {
    %c0_i32 = arith.constant 0 : i32
    %c0_i32_0 = arith.constant 0 : i32
    return %arg0, %c0_i32 : i32, i32
  }
  func.func @transform_1(%arg0: i32) -> (i32, i32) {
    %c0_i32 = arith.constant 0 : i32
    %c0_i32_0 = arith.constant 0 : i32
    return %arg0, %c0_i32 : i32, i32
  }
  func.func @transform_2(%arg0: i32) -> (i32, i32) {
    %c0_i32 = arith.constant 0 : i32
    %c0_i32_0 = arith.constant 0 : i32
    %c0_i32_1 = arith.constant 0 : i32
    return %c0_i32, %c0_i32_0 : i32, i32
  }
  func.func @transform_3(%arg0: i32) -> (i32, i32) {
    %c0_i32 = arith.constant 0 : i32
    %c0_i32_0 = arith.constant 0 : i32
    %c0_i32_1 = arith.constant 0 : i32
    return %c0_i32, %c0_i32_0 : i32, i32
  }
  func.func @transform_4(%arg0: i32) -> (i32, i32) {
    %c0_i32 = arith.constant 0 : i32
    %c0_i32_0 = arith.constant 0 : i32
    %c0_i32_1 = arith.constant 0 : i32
    return %c0_i32, %c0_i32_0 : i32, i32
  }
  func.func @transform_5(%arg0: i32) -> (i32, i32) {
    %c0_i32 = arith.constant 0 : i32
    %c0_i32_0 = arith.constant 0 : i32
    return %arg0, %c0_i32 : i32, i32
  }
}

module attributes {stable_mosaic.version = 11 : i64} {
  func.func @_conv3x3_kernel(%arg0: i32, %arg1: memref<1x18x18x16xf32, #tpu.memory_space<vmem>>, %arg2: memref<9x16x16xf32, #tpu.memory_space<vmem>>, %arg3: memref<1x16xf32, #tpu.memory_space<vmem>>, %arg4: memref<1x256x16xf32, #tpu.memory_space<vmem>>) attributes {dimension_semantics = [#tpu.dimension_semantics<parallel>], iteration_bounds = array<i64: 2>, scalar_prefetch = 0 : i64, scratch_operands = 0 : i64, tpu.core_type = #tpu.core_type<tc>, window_params = [{transform_indices = @transform_0, window_bounds = array<i64: 1, 18, 18, 16>}, {pipeline_mode = #tpu.pipeline_mode<synchronous>, transform_indices = @transform_1, window_bounds = array<i64: 9, 16, 16>}, {pipeline_mode = #tpu.pipeline_mode<synchronous>, transform_indices = @transform_2, window_bounds = array<i64: 1, 16>}, {transform_indices = @transform_3, window_bounds = array<i64: 1, 256, 16>}]} {
    %c0 = arith.constant 0 : index
    %c0_0 = arith.constant 0 : index
    %c0_1 = arith.constant 0 : index
    %c0_2 = arith.constant 0 : index
    %0 = vector.load %arg1[%c0, %c0_0, %c0_1, %c0_2] : memref<1x18x18x16xf32, #tpu.memory_space<vmem>>, vector<1x16x16x16xf32>
    %1 = vector.shape_cast %0 : vector<1x16x16x16xf32> to vector<16x16x16xf32>
    %2 = vector.shape_cast %1 : vector<16x16x16xf32> to vector<256x16xf32>
    %c0_3 = arith.constant 0 : index
    %c0_4 = arith.constant 0 : index
    %c0_5 = arith.constant 0 : index
    %3 = vector.load %arg2[%c0_3, %c0_4, %c0_5] : memref<9x16x16xf32, #tpu.memory_space<vmem>>, vector<1x16x16xf32>
    %4 = vector.shape_cast %3 : vector<1x16x16xf32> to vector<16x16xf32>
    %cst = arith.constant dense<0.000000e+00> : vector<256x16xf32>
    %5 = tpu.matmul %2, %4, %cst {dimension_numbers = #tpu.dot_dimension_numbers<[1], [0], [0], [1], [0, 0, 1, 1], [], []>} : vector<256x16xf32>, vector<16x16xf32>, vector<256x16xf32> -> vector<256x16xf32>
    %c0_6 = arith.constant 0 : index
    %c0_7 = arith.constant 0 : index
    %c1 = arith.constant 1 : index
    %c0_8 = arith.constant 0 : index
    %6 = vector.load %arg1[%c0_6, %c0_7, %c1, %c0_8] : memref<1x18x18x16xf32, #tpu.memory_space<vmem>>, vector<1x16x16x16xf32>
    %7 = vector.shape_cast %6 : vector<1x16x16x16xf32> to vector<16x16x16xf32>
    %8 = vector.shape_cast %7 : vector<16x16x16xf32> to vector<256x16xf32>
    %c1_9 = arith.constant 1 : index
    %c0_10 = arith.constant 0 : index
    %c0_11 = arith.constant 0 : index
    %9 = vector.load %arg2[%c1_9, %c0_10, %c0_11] : memref<9x16x16xf32, #tpu.memory_space<vmem>>, vector<1x16x16xf32>
    %10 = vector.shape_cast %9 : vector<1x16x16xf32> to vector<16x16xf32>
    %cst_12 = arith.constant dense<0.000000e+00> : vector<256x16xf32>
    %11 = tpu.matmul %8, %10, %cst_12 {dimension_numbers = #tpu.dot_dimension_numbers<[1], [0], [0], [1], [0, 0, 1, 1], [], []>} : vector<256x16xf32>, vector<16x16xf32>, vector<256x16xf32> -> vector<256x16xf32>
    %12 = arith.addf %5, %11 : vector<256x16xf32>
    %c0_13 = arith.constant 0 : index
    %c0_14 = arith.constant 0 : index
    %c2 = arith.constant 2 : index
    %c0_15 = arith.constant 0 : index
    %13 = vector.load %arg1[%c0_13, %c0_14, %c2, %c0_15] : memref<1x18x18x16xf32, #tpu.memory_space<vmem>>, vector<1x16x16x16xf32>
    %14 = vector.shape_cast %13 : vector<1x16x16x16xf32> to vector<16x16x16xf32>
    %15 = vector.shape_cast %14 : vector<16x16x16xf32> to vector<256x16xf32>
    %c2_16 = arith.constant 2 : index
    %c0_17 = arith.constant 0 : index
    %c0_18 = arith.constant 0 : index
    %16 = vector.load %arg2[%c2_16, %c0_17, %c0_18] : memref<9x16x16xf32, #tpu.memory_space<vmem>>, vector<1x16x16xf32>
    %17 = vector.shape_cast %16 : vector<1x16x16xf32> to vector<16x16xf32>
    %cst_19 = arith.constant dense<0.000000e+00> : vector<256x16xf32>
    %18 = tpu.matmul %15, %17, %cst_19 {dimension_numbers = #tpu.dot_dimension_numbers<[1], [0], [0], [1], [0, 0, 1, 1], [], []>} : vector<256x16xf32>, vector<16x16xf32>, vector<256x16xf32> -> vector<256x16xf32>
    %19 = arith.addf %12, %18 : vector<256x16xf32>
    %c0_20 = arith.constant 0 : index
    %c1_21 = arith.constant 1 : index
    %c0_22 = arith.constant 0 : index
    %c0_23 = arith.constant 0 : index
    %20 = vector.load %arg1[%c0_20, %c1_21, %c0_22, %c0_23] : memref<1x18x18x16xf32, #tpu.memory_space<vmem>>, vector<1x16x16x16xf32>
    %21 = vector.shape_cast %20 : vector<1x16x16x16xf32> to vector<16x16x16xf32>
    %22 = vector.shape_cast %21 : vector<16x16x16xf32> to vector<256x16xf32>
    %c3 = arith.constant 3 : index
    %c0_24 = arith.constant 0 : index
    %c0_25 = arith.constant 0 : index
    %23 = vector.load %arg2[%c3, %c0_24, %c0_25] : memref<9x16x16xf32, #tpu.memory_space<vmem>>, vector<1x16x16xf32>
    %24 = vector.shape_cast %23 : vector<1x16x16xf32> to vector<16x16xf32>
    %cst_26 = arith.constant dense<0.000000e+00> : vector<256x16xf32>
    %25 = tpu.matmul %22, %24, %cst_26 {dimension_numbers = #tpu.dot_dimension_numbers<[1], [0], [0], [1], [0, 0, 1, 1], [], []>} : vector<256x16xf32>, vector<16x16xf32>, vector<256x16xf32> -> vector<256x16xf32>
    %26 = arith.addf %19, %25 : vector<256x16xf32>
    %c0_27 = arith.constant 0 : index
    %c1_28 = arith.constant 1 : index
    %c1_29 = arith.constant 1 : index
    %c0_30 = arith.constant 0 : index
    %27 = vector.load %arg1[%c0_27, %c1_28, %c1_29, %c0_30] : memref<1x18x18x16xf32, #tpu.memory_space<vmem>>, vector<1x16x16x16xf32>
    %28 = vector.shape_cast %27 : vector<1x16x16x16xf32> to vector<16x16x16xf32>
    %29 = vector.shape_cast %28 : vector<16x16x16xf32> to vector<256x16xf32>
    %c4 = arith.constant 4 : index
    %c0_31 = arith.constant 0 : index
    %c0_32 = arith.constant 0 : index
    %30 = vector.load %arg2[%c4, %c0_31, %c0_32] : memref<9x16x16xf32, #tpu.memory_space<vmem>>, vector<1x16x16xf32>
    %31 = vector.shape_cast %30 : vector<1x16x16xf32> to vector<16x16xf32>
    %cst_33 = arith.constant dense<0.000000e+00> : vector<256x16xf32>
    %32 = tpu.matmul %29, %31, %cst_33 {dimension_numbers = #tpu.dot_dimension_numbers<[1], [0], [0], [1], [0, 0, 1, 1], [], []>} : vector<256x16xf32>, vector<16x16xf32>, vector<256x16xf32> -> vector<256x16xf32>
    %33 = arith.addf %26, %32 : vector<256x16xf32>
    %c0_34 = arith.constant 0 : index
    %c1_35 = arith.constant 1 : index
    %c2_36 = arith.constant 2 : index
    %c0_37 = arith.constant 0 : index
    %34 = vector.load %arg1[%c0_34, %c1_35, %c2_36, %c0_37] : memref<1x18x18x16xf32, #tpu.memory_space<vmem>>, vector<1x16x16x16xf32>
    %35 = vector.shape_cast %34 : vector<1x16x16x16xf32> to vector<16x16x16xf32>
    %36 = vector.shape_cast %35 : vector<16x16x16xf32> to vector<256x16xf32>
    %c5 = arith.constant 5 : index
    %c0_38 = arith.constant 0 : index
    %c0_39 = arith.constant 0 : index
    %37 = vector.load %arg2[%c5, %c0_38, %c0_39] : memref<9x16x16xf32, #tpu.memory_space<vmem>>, vector<1x16x16xf32>
    %38 = vector.shape_cast %37 : vector<1x16x16xf32> to vector<16x16xf32>
    %cst_40 = arith.constant dense<0.000000e+00> : vector<256x16xf32>
    %39 = tpu.matmul %36, %38, %cst_40 {dimension_numbers = #tpu.dot_dimension_numbers<[1], [0], [0], [1], [0, 0, 1, 1], [], []>} : vector<256x16xf32>, vector<16x16xf32>, vector<256x16xf32> -> vector<256x16xf32>
    %40 = arith.addf %33, %39 : vector<256x16xf32>
    %c0_41 = arith.constant 0 : index
    %c2_42 = arith.constant 2 : index
    %c0_43 = arith.constant 0 : index
    %c0_44 = arith.constant 0 : index
    %41 = vector.load %arg1[%c0_41, %c2_42, %c0_43, %c0_44] : memref<1x18x18x16xf32, #tpu.memory_space<vmem>>, vector<1x16x16x16xf32>
    %42 = vector.shape_cast %41 : vector<1x16x16x16xf32> to vector<16x16x16xf32>
    %43 = vector.shape_cast %42 : vector<16x16x16xf32> to vector<256x16xf32>
    %c6 = arith.constant 6 : index
    %c0_45 = arith.constant 0 : index
    %c0_46 = arith.constant 0 : index
    %44 = vector.load %arg2[%c6, %c0_45, %c0_46] : memref<9x16x16xf32, #tpu.memory_space<vmem>>, vector<1x16x16xf32>
    %45 = vector.shape_cast %44 : vector<1x16x16xf32> to vector<16x16xf32>
    %cst_47 = arith.constant dense<0.000000e+00> : vector<256x16xf32>
    %46 = tpu.matmul %43, %45, %cst_47 {dimension_numbers = #tpu.dot_dimension_numbers<[1], [0], [0], [1], [0, 0, 1, 1], [], []>} : vector<256x16xf32>, vector<16x16xf32>, vector<256x16xf32> -> vector<256x16xf32>
    %47 = arith.addf %40, %46 : vector<256x16xf32>
    %c0_48 = arith.constant 0 : index
    %c2_49 = arith.constant 2 : index
    %c1_50 = arith.constant 1 : index
    %c0_51 = arith.constant 0 : index
    %48 = vector.load %arg1[%c0_48, %c2_49, %c1_50, %c0_51] : memref<1x18x18x16xf32, #tpu.memory_space<vmem>>, vector<1x16x16x16xf32>
    %49 = vector.shape_cast %48 : vector<1x16x16x16xf32> to vector<16x16x16xf32>
    %50 = vector.shape_cast %49 : vector<16x16x16xf32> to vector<256x16xf32>
    %c7 = arith.constant 7 : index
    %c0_52 = arith.constant 0 : index
    %c0_53 = arith.constant 0 : index
    %51 = vector.load %arg2[%c7, %c0_52, %c0_53] : memref<9x16x16xf32, #tpu.memory_space<vmem>>, vector<1x16x16xf32>
    %52 = vector.shape_cast %51 : vector<1x16x16xf32> to vector<16x16xf32>
    %cst_54 = arith.constant dense<0.000000e+00> : vector<256x16xf32>
    %53 = tpu.matmul %50, %52, %cst_54 {dimension_numbers = #tpu.dot_dimension_numbers<[1], [0], [0], [1], [0, 0, 1, 1], [], []>} : vector<256x16xf32>, vector<16x16xf32>, vector<256x16xf32> -> vector<256x16xf32>
    %54 = arith.addf %47, %53 : vector<256x16xf32>
    %c0_55 = arith.constant 0 : index
    %c2_56 = arith.constant 2 : index
    %c2_57 = arith.constant 2 : index
    %c0_58 = arith.constant 0 : index
    %55 = vector.load %arg1[%c0_55, %c2_56, %c2_57, %c0_58] : memref<1x18x18x16xf32, #tpu.memory_space<vmem>>, vector<1x16x16x16xf32>
    %56 = vector.shape_cast %55 : vector<1x16x16x16xf32> to vector<16x16x16xf32>
    %57 = vector.shape_cast %56 : vector<16x16x16xf32> to vector<256x16xf32>
    %c8 = arith.constant 8 : index
    %c0_59 = arith.constant 0 : index
    %c0_60 = arith.constant 0 : index
    %58 = vector.load %arg2[%c8, %c0_59, %c0_60] : memref<9x16x16xf32, #tpu.memory_space<vmem>>, vector<1x16x16xf32>
    %59 = vector.shape_cast %58 : vector<1x16x16xf32> to vector<16x16xf32>
    %cst_61 = arith.constant dense<0.000000e+00> : vector<256x16xf32>
    %60 = tpu.matmul %57, %59, %cst_61 {dimension_numbers = #tpu.dot_dimension_numbers<[1], [0], [0], [1], [0, 0, 1, 1], [], []>} : vector<256x16xf32>, vector<16x16xf32>, vector<256x16xf32> -> vector<256x16xf32>
    %61 = arith.addf %54, %60 : vector<256x16xf32>
    %c0_62 = arith.constant 0 : index
    %c0_63 = arith.constant 0 : index
    %62 = vector.load %arg3[%c0_62, %c0_63] : memref<1x16xf32, #tpu.memory_space<vmem>>, vector<1x16xf32>
    %63 = vector.broadcast %62 : vector<1x16xf32> to vector<256x16xf32>
    %64 = arith.addf %61, %63 : vector<256x16xf32>
    %cst_64 = arith.constant 0.000000e+00 : f32
    %65 = vector.broadcast %cst_64 : f32 to vector<256x16xf32>
    %66 = arith.subf %65, %64 : vector<256x16xf32>
    %67 = math.exp %66 : vector<256x16xf32>
    %cst_65 = arith.constant 1.000000e+00 : f32
    %68 = vector.broadcast %cst_65 : f32 to vector<256x16xf32>
    %69 = arith.addf %68, %67 : vector<256x16xf32>
    %70 = arith.divf %64, %69 : vector<256x16xf32>
    %c0_66 = arith.constant 0 : index
    %c0_67 = arith.constant 0 : index
    %c0_68 = arith.constant 0 : index
    %71 = vector.load %arg4[%c0_66, %c0_67, %c0_68] : memref<1x256x16xf32, #tpu.memory_space<vmem>>, vector<1x256x16xf32>
    %72 = vector.shape_cast %71 : vector<1x256x16xf32> to vector<256x16xf32>
    %73 = vector.shape_cast %70 : vector<256x16xf32> to vector<1x256x16xf32>
    tpu.vector_store %arg4[%c0_66, %c0_67, %c0_68], %73 {strides = array<i32>} : memref<1x256x16xf32, #tpu.memory_space<vmem>>, vector<1x256x16xf32>,
    return
  }
  func.func @transform_0(%arg0: i32) -> (i32, i32, i32, i32) {
    %c0_i32 = arith.constant 0 : i32
    %c0_i32_0 = arith.constant 0 : i32
    %c0_i32_1 = arith.constant 0 : i32
    %c0_i32_2 = arith.constant 0 : i32
    return %arg0, %c0_i32, %c0_i32_0, %c0_i32_1 : i32, i32, i32, i32
  }
  func.func @transform_1(%arg0: i32) -> (i32, i32, i32) {
    %c0_i32 = arith.constant 0 : i32
    %c0_i32_0 = arith.constant 0 : i32
    %c0_i32_1 = arith.constant 0 : i32
    %c0_i32_2 = arith.constant 0 : i32
    return %c0_i32, %c0_i32_0, %c0_i32_1 : i32, i32, i32
  }
  func.func @transform_2(%arg0: i32) -> (i32, i32) {
    %c0_i32 = arith.constant 0 : i32
    %c0_i32_0 = arith.constant 0 : i32
    %c0_i32_1 = arith.constant 0 : i32
    return %c0_i32, %c0_i32_0 : i32, i32
  }
  func.func @transform_3(%arg0: i32) -> (i32, i32, i32) {
    %c0_i32 = arith.constant 0 : i32
    %c0_i32_0 = arith.constant 0 : i32
    %c0_i32_1 = arith.constant 0 : i32
    return %arg0, %c0_i32, %c0_i32_0 : i32, i32, i32
  }
}

module attributes {stable_mosaic.version = 11 : i64} {
  func.func @_pw_conv_kernel(%arg0: i32, %arg1: memref<256x32xf32, #tpu.memory_space<vmem>>, %arg2: memref<32x16xf32, #tpu.memory_space<vmem>>, %arg3: memref<1x16xf32, #tpu.memory_space<vmem>>, %arg4: memref<256x16xf32, #tpu.memory_space<vmem>>) attributes {dimension_semantics = [#tpu.dimension_semantics<parallel>], iteration_bounds = array<i64: 2>, scalar_prefetch = 0 : i64, scratch_operands = 0 : i64, tpu.core_type = #tpu.core_type<tc>, window_params = [{transform_indices = @transform_0, window_bounds = array<i64: 256, 32>}, {pipeline_mode = #tpu.pipeline_mode<synchronous>, transform_indices = @transform_1, window_bounds = array<i64: 32, 16>}, {pipeline_mode = #tpu.pipeline_mode<synchronous>, transform_indices = @transform_2, window_bounds = array<i64: 1, 16>}, {transform_indices = @transform_3, window_bounds = array<i64: 256, 16>}]} {
    %c0 = arith.constant 0 : index
    %c0_0 = arith.constant 0 : index
    %0 = vector.load %arg1[%c0, %c0_0] : memref<256x32xf32, #tpu.memory_space<vmem>>, vector<256x32xf32>
    %c0_1 = arith.constant 0 : index
    %c0_2 = arith.constant 0 : index
    %1 = vector.load %arg2[%c0_1, %c0_2] : memref<32x16xf32, #tpu.memory_space<vmem>>, vector<32x16xf32>
    %cst = arith.constant dense<0.000000e+00> : vector<256x16xf32>
    %2 = tpu.matmul %0, %1, %cst {dimension_numbers = #tpu.dot_dimension_numbers<[1], [0], [0], [1], [0, 0, 1, 1], [], []>} : vector<256x32xf32>, vector<32x16xf32>, vector<256x16xf32> -> vector<256x16xf32>
    %c0_3 = arith.constant 0 : index
    %c0_4 = arith.constant 0 : index
    %3 = vector.load %arg3[%c0_3, %c0_4] : memref<1x16xf32, #tpu.memory_space<vmem>>, vector<1x16xf32>
    %4 = vector.broadcast %3 : vector<1x16xf32> to vector<256x16xf32>
    %5 = arith.addf %2, %4 : vector<256x16xf32>
    %cst_5 = arith.constant 0.000000e+00 : f32
    %6 = vector.broadcast %cst_5 : f32 to vector<256x16xf32>
    %7 = arith.subf %6, %5 : vector<256x16xf32>
    %8 = math.exp %7 : vector<256x16xf32>
    %cst_6 = arith.constant 1.000000e+00 : f32
    %9 = vector.broadcast %cst_6 : f32 to vector<256x16xf32>
    %10 = arith.addf %9, %8 : vector<256x16xf32>
    %11 = arith.divf %5, %10 : vector<256x16xf32>
    %c0_7 = arith.constant 0 : index
    %c0_8 = arith.constant 0 : index
    %12 = vector.load %arg4[%c0_7, %c0_8] : memref<256x16xf32, #tpu.memory_space<vmem>>, vector<256x16xf32>
    tpu.vector_store %arg4[%c0_7, %c0_8], %11 {strides = array<i32>} : memref<256x16xf32, #tpu.memory_space<vmem>>, vector<256x16xf32>,
    return
  }
  func.func @transform_0(%arg0: i32) -> (i32, i32) {
    %c0_i32 = arith.constant 0 : i32
    %c0_i32_0 = arith.constant 0 : i32
    return %arg0, %c0_i32 : i32, i32
  }
  func.func @transform_1(%arg0: i32) -> (i32, i32) {
    %c0_i32 = arith.constant 0 : i32
    %c0_i32_0 = arith.constant 0 : i32
    %c0_i32_1 = arith.constant 0 : i32
    return %c0_i32, %c0_i32_0 : i32, i32
  }
  func.func @transform_2(%arg0: i32) -> (i32, i32) {
    %c0_i32 = arith.constant 0 : i32
    %c0_i32_0 = arith.constant 0 : i32
    %c0_i32_1 = arith.constant 0 : i32
    return %c0_i32, %c0_i32_0 : i32, i32
  }
  func.func @transform_3(%arg0: i32) -> (i32, i32) {
    %c0_i32 = arith.constant 0 : i32
    %c0_i32_0 = arith.constant 0 : i32
    return %arg0, %c0_i32 : i32, i32
  }
}

</mosaic_0001>

<llo_original>
// kernel: csp_stage_forward.6
$region0: #{csp_stage_forward.6}
  #allocation0 [shape = 'u32[]', space=smem, size = 0x4, offset = 0x4, fixed_abs, tag = 'smem constant byte address 0x4 - core index']
  #allocation1 [shape = 'u32[72,128]{1,0:T(1,128)}', space=vmem, size = 0x9000, scoped, tag = 'internal scratch']
  %s0 = inlined_call_operand.hbm [shape: f32[512,32], index: 0, kind: input, shape index: {}]
  %s1 = inlined_call_operand.vmem [shape: f32[32,16], index: 1, kind: input, shape index: {}]
  %s2 = inlined_call_operand.vmem [shape: f32[1,16], index: 2, kind: input, shape index: {}]
  %s3 = inlined_call_operand.vmem [shape: f32[512,16], index: 3, kind: output, shape index: {}]
  %s4 = sld [smem:[#allocation0]]
  $region49: #{csp_stage_forward.6} parent=0
    _
  %s6 = ssub.s32 1, %s4
  %s7 = scalar_select 0, %s6, %s4
  $region1: #{csp_stage_forward.6} parent=0
    #allocation2 [shape = 'u8[262144]{0}', space=vmem, size = 0x40000, scoped, tag = 'input window, operand 0']
    #allocation3 [shape = 's32[2]{0}', space=sflag, size = 0x8, scoped, tag = 'scoped memory for csp_stage_forward.6']
    %8 = vsyncpa [#allocation3], 0
    %s9 = scalar_lea.sflag [#allocation3], 1
    %10 = vsyncpa %s9, 0
    loop: start=0, step=1, limit=4
    $region2: #{csp_stage_forward.6} parent=1 // loop_pre_header
      _
    $region3: #{csp_stage_forward.6} parent=1 // loop_header
      %s12 = sphi 0, %s16
      %p13 = scmp.ge.s32.totalorder %s12, 4
      %s22 = sphi 0, %s24
      %s25 = sphi 0, %s22
      %s26 = sphi 0, %s25
      %s42 = sphi 0, %s26
      %s46 = sphi 0, %s46
      %s48 = sphi 0, %s46
      %s49 = sphi 0, %s48
      %s63 = sphi 0, %s49
      %s67 = sphi 0, %s67
      %s69 = sphi 0, %s67
      %s70 = sphi 0, %s69
      %s84 = sphi 0, %s70
      %s90 = sphi 0, %s92
      %s93 = sphi 0, %s90
      %s94 = sphi 0, %s93
      %s110 = sphi 0, %s94
    $region4: #{csp_stage_forward.6} parent=1 // loop_header_branch
      %15 = sbr.rel (%p13) target = $region8
    $region5: #{csp_stage_forward.6} parent=1 // loop_body
      %s17 = ssub.s32 %s12, 1
      %s18 = ssub.s32 %s12, 2
      %s19 = sadd.s32 %s12, 1
      %s20 = ssub.s32 %s12, %s19
      %p21 = scmp.eq.s32.totalorder %s20, 0
      %s23 = sadd.s32 %s22, 1
      %s24 = scalar_select %p21, %s22, %s23
      %p27 = pneg %p21
      %p28 = scmp.eq.s32.totalorder %s12, 1
      %p29 = por %p27, %p28
      %p30 = scmp.ne.s32.totalorder %s22, %s25
      %p31 = scmp.eq.s32.totalorder %s12, 0
      %p32 = por %p30, %p31
      %p33 = scmp.ne.s32.totalorder %s22, %s25
      %p34 = scmp.eq.s32.totalorder %s17, 1
      %p35 = por %p33, %p34
      %p36 = scmp.ne.s32.totalorder %s25, %s26
      %p37 = scmp.eq.s32.totalorder %s17, 0
      %p38 = por %p36, %p37
      %p39 = scmp.ne.s32.totalorder %s25, %s26
      %p40 = scmp.eq.s32.totalorder %s18, 1
      %p41 = por %p39, %p40
      %p43 = scmp.ne.s32.totalorder %s26, %s42
      %p44 = scmp.eq.s32.totalorder %s18, 0
      %p45 = por %p43, %p44
      %s47 = sadd.s32 %s46, 1
      %p50 = scmp.eq.s32.totalorder %s12, 1
      %p51 = scmp.ne.s32.totalorder %s46, %s48
      %p52 = scmp.eq.s32.totalorder %s12, 0
      %p53 = por %p51, %p52
      %p54 = scmp.ne.s32.totalorder %s46, %s48
      %p55 = scmp.eq.s32.totalorder %s17, 1
      %p56 = por %p54, %p55
      %p57 = scmp.ne.s32.totalorder %s48, %s49
      %p58 = scmp.eq.s32.totalorder %s17, 0
      %p59 = por %p57, %p58
      %p60 = scmp.ne.s32.totalorder %s48, %s49
      %p61 = scmp.eq.s32.totalorder %s18, 1
      %p62 = por %p60, %p61
      %p64 = scmp.ne.s32.totalorder %s49, %s63
      %p65 = scmp.eq.s32.totalorder %s18, 0
      %p66 = por %p64, %p65
      %s68 = sadd.s32 %s67, 1
      %p71 = scmp.eq.s32.totalorder %s12, 1
      %p72 = scmp.ne.s32.totalorder %s67, %s69
      %p73 = scmp.eq.s32.totalorder %s12, 0
      %p74 = por %p72, %p73
      %p75 = scmp.ne.s32.totalorder %s67, %s69
      %p76 = scmp.eq.s32.totalorder %s17, 1
      %p77 = por %p75, %p76
      %p78 = scmp.ne.s32.totalorder %s69, %s70
      %p79 = scmp.eq.s32.totalorder %s17, 0
      %p80 = por %p78, %p79
      %p81 = scmp.ne.s32.totalorder %s69, %s70
      %p82 = scmp.eq.s32.totalorder %s18, 1
      %p83 = por %p81, %p82
      %p85 = scmp.ne.s32.totalorder %s70, %s84
      %p86 = scmp.eq.s32.totalorder %s18, 0
      %p87 = por %p85, %p86
      %s88 = ssub.s32 %s12, %s19
      %p89 = scmp.eq.s32.totalorder %s88, 0
      %s91 = sadd.s32 %s90, 1
      %s92 = scalar_select %p89, %s90, %s91
      %p95 = pneg %p89
      %p96 = scmp.eq.s32.totalorder %s12, 1
      %p97 = por %p95, %p96
      %p98 = scmp.ne.s32.totalorder %s90, %s93
      %p99 = scmp.eq.s32.totalorder %s12, 0
      %p100 = por %p98, %p99
      %p101 = scmp.ne.s32.totalorder %s90, %s93
      %p102 = scmp.eq.s32.totalorder %s17, 1
      %p103 = por %p101, %p102
      %p104 = scmp.ne.s32.totalorder %s93, %s94
      %p105 = scmp.eq.s32.totalorder %s17, 0
      %p106 = por %p104, %p105
      %p107 = scmp.ne.s32.totalorder %s93, %s94
      %p108 = scmp.eq.s32.totalorder %s18, 1
      %p109 = por %p107, %p108
      %p111 = scmp.ne.s32.totalorder %s94, %s110
      %p112 = scmp.eq.s32.totalorder %s18, 0
      %p113 = por %p111, %p112
      %p114 = scmp.le.s32.totalorder 1, %s12
      %p115 = scmp.lt.s32.totalorder %s12, 3
      %p116 = pnand %p114, %p115
      %p117 = pneg %p116
      // Predicated region
      $region9: #{csp_stage_forward.6} parent=5 // pred_check
        _
      $region10: #{csp_stage_forward.6} parent=5 // pred_check_branch
        %119 = sbr.rel (%p116) target = $region12
      $region11: #{csp_stage_forward.6} parent=5 // pred_region
        %s120 = ssub.s32 %s12, 1
        // Predicated region
        $region13: #{csp_stage_forward.6} parent=11 // pred_check
          %p121 = pneg %p59
        $region14: #{csp_stage_forward.6} parent=11 // pred_check_branch
          %123 = sbr.rel (%p121) target = $region16
        $region15: #{csp_stage_forward.6} parent=11 // pred_region
          _
        $region16: #{csp_stage_forward.6} parent=11 // pred_fallthru
          _
        // Predicated region
        $region17: #{csp_stage_forward.6} parent=11 // pred_check
          %p124 = pneg %p80
        $region18: #{csp_stage_forward.6} parent=11 // pred_check_branch
          %126 = sbr.rel (%p124) target = $region20
        $region19: #{csp_stage_forward.6} parent=11 // pred_region
          _
        $region20: #{csp_stage_forward.6} parent=11 // pred_fallthru
          _
      $region12: #{csp_stage_forward.6} parent=5 // pred_fallthru
        _
      %p127 = scmp.lt.s32.totalorder %s12, 2
      // Predicated region
      $region21: #{csp_stage_forward.6} parent=5 // pred_check
        %p128 = pneg %p127
      $region22: #{csp_stage_forward.6} parent=5 // pred_check_branch
        %130 = sbr.rel (%p128) target = $region24
      $region23: #{csp_stage_forward.6} parent=5 // pred_region
        // Predicated region
        $region25: #{csp_stage_forward.6} parent=23 // pred_check
          %p131 = pneg %p32
        $region26: #{csp_stage_forward.6} parent=23 // pred_check_branch
          %133 = sbr.rel (%p131) target = $region28
        $region27: #{csp_stage_forward.6} parent=23 // pred_region
          %s134 = sand.u32 %s22, 1
          %s135 = scalar_lea.sflag [#allocation3], %s134
          %s136 = sand.u32 %s22, 1
          %s137 = smul.addr %s136, 256
          %s138 = scalar_lea.vmem [#allocation2], %s137
          %s139 = smul.u32 32, %s12
          %141 = vsyncadd %s135, 0
          %s142 = smul.addr %s139, 8
          %s143 = scalar_lea.hbm %s0, %s142
          %s144 = sshll.u32 %s143, 4
          %s145 = int_to_ptr.hbm [resolvable:$true] %s144
          %s146 = sshll.u32 %s138, 4
          %s147 = int_to_ptr.vmem [resolvable:$true] %s146
          %152 = dma.hbm_to_vmem [thread:$0]  %s145, 4096, %s147, %s135, 128, 128, 8
        $region28: #{csp_stage_forward.6} parent=23 // pred_fallthru
          _
      $region24: #{csp_stage_forward.6} parent=5 // pred_fallthru
        _
      %p153 = scmp.le.s32.totalorder 1, %s12
      %p154 = scmp.lt.s32.totalorder %s12, 3
      %p155 = pnand %p153, %p154
      %p156 = pneg %p155
      // Predicated region
      $region29: #{csp_stage_forward.6} parent=5 // pred_check
        _
      $region30: #{csp_stage_forward.6} parent=5 // pred_check_branch
        %158 = sbr.rel (%p155) target = $region32
      $region31: #{csp_stage_forward.6} parent=5 // pred_region
        %s159 = ssub.s32 %s12, 1
        %s160 = sand.u32 %s25, 1
        %s161 = scalar_lea.sflag [#allocation3], %s160
        %s162 = sand.u32 %s25, 1
        %s163 = smul.addr %s162, 256
        %s164 = scalar_lea.vmem [#allocation2], %s163
        // Predicated region
        $region33: #{csp_stage_forward.6} parent=31 // pred_check
          %p165 = pneg %p38
        $region34: #{csp_stage_forward.6} parent=31 // pred_check_branch
          %167 = sbr.rel (%p165) target = $region36
        $region35: #{csp_stage_forward.6} parent=31 // pred_region
          %169 = dma.done %s161, 4096
        $region36: #{csp_stage_forward.6} parent=31 // pred_fallthru
          _
        %s170 = sand.u32 %s25, 1
        %s171 = scalar_lea.sflag [#allocation3], %s170
        %s172 = sand.u32 %s25, 1
        %s173 = smul.addr %s172, 256
        %s174 = scalar_lea.vmem [#allocation2], %s173
        %p175 = pneg %p38
        %p176 = pneg %p35
        %p177 = pneg %p59
        %p178 = pneg %p56
        %p179 = pneg %p80
        %p180 = pneg %p77
        %p181 = pneg %p106
        %p182 = pneg %p103
        %s183 = smul.u32 32, %s17
        %p184 = scmp.lt.s32.totalorder %s183, 63
        %s185 = scalar_select %p184, %s183, 63
        %s186 = smul.addr %s185, 8
        %s187 = scalar_lea.vmem %s3, %s186
        %s188 = smul.u32 32, %s17
        %s189 = smul.u32 32, %s17
        %p190 = scmp.lt.s32.totalorder %s189, 63
        %s191 = scalar_select %p190, %s189, 63
        %s192 = smul.addr %s191, 8
        %s193 = scalar_lea.vmem %s3, %s192
        %s194 = smul.u32 32, %s17
        %v195 = vld [vmem:[%s164] sm:$0xff]
        %v196 = vld [vmem:[%s164 + $0x8] sm:$0xff]
        %v197 = vld [vmem:[%s164 + $0x10] sm:$0xff]
        %v198 = vld [vmem:[%s164 + $0x18] sm:$0xff]
        %v199 = vld [vmem:[%s164 + $0x20] sm:$0xff]
        %v200 = vld [vmem:[%s164 + $0x28] sm:$0xff]
        %v201 = vld [vmem:[%s164 + $0x30] sm:$0xff]
        %v202 = vld [vmem:[%s164 + $0x38] sm:$0xff]
        %v203 = vld [vmem:[%s164 + $0x40] sm:$0xff]
        %v204 = vld [vmem:[%s164 + $0x48] sm:$0xff]
        %v205 = vld [vmem:[%s164 + $0x50] sm:$0xff]
        %v206 = vld [vmem:[%s164 + $0x58] sm:$0xff]
        %v207 = vld [vmem:[%s164 + $0x60] sm:$0xff]
        %v208 = vld [vmem:[%s164 + $0x68] sm:$0xff]
        %v209 = vld [vmem:[%s164 + $0x70] sm:$0xff]
        %v210 = vld [vmem:[%s164 + $0x78] sm:$0xff]
        %v211 = vld [vmem:[%s164 + $0x80] sm:$0xff]
        %v212 = vld [vmem:[%s164 + $0x88] sm:$0xff]
        %v213 = vld [vmem:[%s164 + $0x90] sm:$0xff]
        %v214 = vld [vmem:[%s164 + $0x98] sm:$0xff]
        %v215 = vld [vmem:[%s164 + $0xa0] sm:$0xff]
        %v216 = vld [vmem:[%s164 + $0xa8] sm:$0xff]
        %v217 = vld [vmem:[%s164 + $0xb0] sm:$0xff]
        %v218 = vld [vmem:[%s164 + $0xb8] sm:$0xff]
        %v219 = vld [vmem:[%s164 + $0xc0] sm:$0xff]
        %v220 = vld [vmem:[%s164 + $0xc8] sm:$0xff]
        %v221 = vld [vmem:[%s164 + $0xd0] sm:$0xff]
        %v222 = vld [vmem:[%s164 + $0xd8] sm:$0xff]
        %v223 = vld [vmem:[%s164 + $0xe0] sm:$0xff]
        %v224 = vld [vmem:[%s164 + $0xe8] sm:$0xff]
        %v225 = vld [vmem:[%s164 + $0xf0] sm:$0xff]
        %v226 = vld [vmem:[%s164 + $0xf8] sm:$0xff]
        %v227 = vld [vmem:[%s1] sm:$0xff]
        %v228 = vld [vmem:[%s1 + $0x8] sm:$0xff]
        %v229 = vld [vmem:[%s1 + $0x10] sm:$0xff]
        %v230 = vld [vmem:[%s1 + $0x18] sm:$0xff]
        %v231 = vld [vmem:[%s2] sm:$0x1]
        %v233 = vperm.slane %v231, 0
        %vm235 = vcmask 261120
        %v237 = vsel %vm235, %v195, 0
        %v240 = vsel %vm235, %v196, 0
        %v243 = vsel %vm235, %v197, 0
        %v246 = vsel %vm235, %v198, 0
        %v249 = vsel %vm235, %v199, 0
        %v252 = vsel %vm235, %v200, 0
        %v255 = vsel %vm235, %v201, 0
        %v258 = vsel %vm235, %v202, 0
        %v261 = vsel %vm235, %v203, 0
        %v264 = vsel %vm235, %v204, 0
        %v267 = vsel %vm235, %v205, 0
        %v270 = vsel %vm235, %v206, 0
        %v273 = vsel %vm235, %v207, 0
        %v276 = vsel %vm235, %v208, 0
        %v279 = vsel %vm235, %v209, 0
        %v282 = vsel %vm235, %v210, 0
        %v285 = vsel %vm235, %v211, 0
        %v288 = vsel %vm235, %v212, 0
        %v291 = vsel %vm235, %v213, 0
        %v294 = vsel %vm235, %v214, 0
        %v297 = vsel %vm235, %v215, 0
        %v300 = vsel %vm235, %v216, 0
        %v303 = vsel %vm235, %v217, 0
        %v306 = vsel %vm235, %v218, 0
        %v309 = vsel %vm235, %v219, 0
        %v312 = vsel %vm235, %v220, 0
        %v315 = vsel %vm235, %v221, 0
        %v318 = vsel %vm235, %v222, 0
        %v321 = vsel %vm235, %v223, 0
        %v324 = vsel %vm235, %v224, 0
        %v327 = vsel %vm235, %v225, 0
        %v330 = vsel %vm235, %v226, 0
        %332 = vmatpush.msra.mxu0 0.0
        %333 = vmatpush.msra.mxu0 0.0
        %334 = vmatpush.msra.mxu0 0.0
        %335 = vmatpush.msra.mxu0 0.0
        %336 = vmatpush.msra.mxu0 0.0
        %337 = vmatpush.msra.mxu0 0.0
        %338 = vmatpush.msra.mxu0 0.0
        %339 = vmatpush.msra.mxu0 0.0
        %340 = vmatpush.msra.mxu0 0.0
        %341 = vmatpush.msra.mxu0 0.0
        %342 = vmatpush.msra.mxu0 0.0
        %343 = vmatpush.msra.mxu0 0.0
        %344 = vmatpush.msra.mxu0 %v230
        %345 = vmatpush.msra.mxu0 %v229
        %346 = vmatpush.msra.mxu0 %v228
        %347 = vmatpush.msra.mxu0 %v227
        %348 = vmatmul.f32.gmra.mxu0 %v237
        %v349 = vpop.f32.mrf.mxu0
        %v350 = vadd.f32 %v233, %v349
        %351 = vmatmul.f32.gmra.mxu0 %v240
        %v352 = vpop.f32.mrf.mxu0
        %v353 = vadd.f32 %v233, %v352
        %354 = vmatmul.f32.gmra.mxu0 %v243
        %v355 = vpop.f32.mrf.mxu0
        %v356 = vadd.f32 %v233, %v355
        %357 = vmatmul.f32.gmra.mxu0 %v246
        %v358 = vpop.f32.mrf.mxu0
        %v359 = vadd.f32 %v233, %v358
        %360 = vmatmul.f32.gmra.mxu0 %v249
        %v361 = vpop.f32.mrf.mxu0
        %v362 = vadd.f32 %v233, %v361
        %363 = vmatmul.f32.gmra.mxu0 %v252
        %v364 = vpop.f32.mrf.mxu0
        %v365 = vadd.f32 %v233, %v364
        %366 = vmatmul.f32.gmra.mxu0 %v255
        %v367 = vpop.f32.mrf.mxu0
        %v368 = vadd.f32 %v233, %v367
        %369 = vmatmul.f32.gmra.mxu0 %v258
        %v370 = vpop.f32.mrf.mxu0
        %v371 = vadd.f32 %v233, %v370
        %372 = vmatmul.f32.gmra.mxu0 %v261
        %v373 = vpop.f32.mrf.mxu0
        %v374 = vadd.f32 %v233, %v373
        %375 = vmatmul.f32.gmra.mxu0 %v264
        %v376 = vpop.f32.mrf.mxu0
        %v377 = vadd.f32 %v233, %v376
        %378 = vmatmul.f32.gmra.mxu0 %v267
        %v379 = vpop.f32.mrf.mxu0
        %v380 = vadd.f32 %v233, %v379
        %381 = vmatmul.f32.gmra.mxu0 %v270
        %v382 = vpop.f32.mrf.mxu0
        %v383 = vadd.f32 %v233, %v382
        %384 = vmatmul.f32.gmra.mxu0 %v273
        %v385 = vpop.f32.mrf.mxu0
        %v386 = vadd.f32 %v233, %v385
        %387 = vmatmul.f32.gmra.mxu0 %v276
        %v388 = vpop.f32.mrf.mxu0
        %v389 = vadd.f32 %v233, %v388
        %390 = vmatmul.f32.gmra.mxu0 %v279
        %v391 = vpop.f32.mrf.mxu0
        %v392 = vadd.f32 %v233, %v391
        %393 = vmatmul.f32.gmra.mxu0 %v282
        %v394 = vpop.f32.mrf.mxu0
        %v395 = vadd.f32 %v233, %v394
        %396 = vmatmul.f32.gmra.mxu0 %v285
        %v397 = vpop.f32.mrf.mxu0
        %v398 = vadd.f32 %v233, %v397
        %399 = vmatmul.f32.gmra.mxu0 %v288
        %v400 = vpop.f32.mrf.mxu0
        %v401 = vadd.f32 %v233, %v400
        %402 = vmatmul.f32.gmra.mxu0 %v291
        %v403 = vpop.f32.mrf.mxu0
        %v404 = vadd.f32 %v233, %v403
        %405 = vmatmul.f32.gmra.mxu0 %v294
        %v406 = vpop.f32.mrf.mxu0
        %v407 = vadd.f32 %v233, %v406
        %408 = vmatmul.f32.gmra.mxu0 %v297
        %v409 = vpop.f32.mrf.mxu0
        %v410 = vadd.f32 %v233, %v409
        %411 = vmatmul.f32.gmra.mxu0 %v300
        %v412 = vpop.f32.mrf.mxu0
        %v413 = vadd.f32 %v233, %v412
        %414 = vmatmul.f32.gmra.mxu0 %v303
        %v415 = vpop.f32.mrf.mxu0
        %v416 = vadd.f32 %v233, %v415
        %417 = vmatmul.f32.gmra.mxu0 %v306
        %v418 = vpop.f32.mrf.mxu0
        %v419 = vadd.f32 %v233, %v418
        %420 = vmatmul.f32.gmra.mxu0 %v309
        %v421 = vpop.f32.mrf.mxu0
        %v422 = vadd.f32 %v233, %v421
        %423 = vmatmul.f32.gmra.mxu0 %v312
        %v424 = vpop.f32.mrf.mxu0
        %v425 = vadd.f32 %v233, %v424
        %426 = vmatmul.f32.gmra.mxu0 %v315
        %v427 = vpop.f32.mrf.mxu0
        %v428 = vadd.f32 %v233, %v427
        %429 = vmatmul.f32.gmra.mxu0 %v318
        %v430 = vpop.f32.mrf.mxu0
        %v431 = vadd.f32 %v233, %v430
        %432 = vmatmul.f32.gmra.mxu0 %v321
        %v433 = vpop.f32.mrf.mxu0
        %v434 = vadd.f32 %v233, %v433
        %435 = vmatmul.f32.gmra.mxu0 %v324
        %v436 = vpop.f32.mrf.mxu0
        %v437 = vadd.f32 %v233, %v436
        %438 = vmatmul.f32.gmra.mxu0 %v327
        %v439 = vpop.f32.mrf.mxu0
        %v440 = vadd.f32 %v233, %v439
        %441 = vmatmul.f32.gmra.mxu0 %v330
        %v442 = vpop.f32.mrf.mxu0
        %v443 = vadd.f32 %v233, %v442
        %444 = vdwg.mxu0
        %v445 = vsub.f32 0.0, %v350
        %v446 = vsub.f32 0.0, %v353
        %v447 = vsub.f32 0.0, %v356
        %v448 = vsub.f32 0.0, %v359
        %v449 = vsub.f32 0.0, %v362
        %v450 = vsub.f32 0.0, %v365
        %v451 = vsub.f32 0.0, %v368
        %v452 = vsub.f32 0.0, %v371
        %v453 = vsub.f32 0.0, %v374
        %v454 = vsub.f32 0.0, %v377
        %v455 = vsub.f32 0.0, %v380
        %v456 = vsub.f32 0.0, %v383
        %v457 = vsub.f32 0.0, %v386
        %v458 = vsub.f32 0.0, %v389
        %v459 = vsub.f32 0.0, %v392
        %v460 = vsub.f32 0.0, %v395
        %v461 = vsub.f32 0.0, %v398
        %v462 = vsub.f32 0.0, %v401
        %v463 = vsub.f32 0.0, %v404
        %v464 = vsub.f32 0.0, %v407
        %v465 = vsub.f32 0.0, %v410
        %v466 = vsub.f32 0.0, %v413
        %v467 = vsub.f32 0.0, %v416
        %v468 = vsub.f32 0.0, %v419
        %v469 = vsub.f32 0.0, %v422
        %v470 = vsub.f32 0.0, %v425
        %v471 = vsub.f32 0.0, %v428
        %v472 = vsub.f32 0.0, %v431
        %v473 = vsub.f32 0.0, %v434
        %v474 = vsub.f32 0.0, %v437
        %v475 = vsub.f32 0.0, %v440
        %v476 = vsub.f32 0.0, %v443
        %v477 = vmul.f32 %v445, 1.442695
        %v478 = vpow.pop %v477
        %v479 = vmul.f32 %v446, 1.442695
        %v480 = vpow.pop %v479
        %v481 = vmul.f32 %v447, 1.442695
        %v482 = vpow.pop %v481
        %v483 = vmul.f32 %v448, 1.442695
        %v484 = vpow.pop %v483
        %v485 = vmul.f32 %v449, 1.442695
        %v486 = vpow.pop %v485
        %v487 = vmul.f32 %v450, 1.442695
        %v488 = vpow.pop %v487
        %v489 = vmul.f32 %v451, 1.442695
        %v490 = vpow.pop %v489
        %v491 = vmul.f32 %v452, 1.442695
        %v492 = vpow.pop %v491
        %v493 = vmul.f32 %v453, 1.442695
        %v494 = vpow.pop %v493
        %v495 = vmul.f32 %v454, 1.442695
        %v496 = vpow.pop %v495
        %v497 = vmul.f32 %v455, 1.442695
        %v498 = vpow.pop %v497
        %v499 = vmul.f32 %v456, 1.442695
        %v500 = vpow.pop %v499
        %v501 = vmul.f32 %v457, 1.442695
        %v502 = vpow.pop %v501
        %v503 = vmul.f32 %v458, 1.442695
        %v504 = vpow.pop %v503
        %v505 = vmul.f32 %v459, 1.442695
        %v506 = vpow.pop %v505
        %v507 = vmul.f32 %v460, 1.442695
        %v508 = vpow.pop %v507
        %v509 = vmul.f32 %v461, 1.442695
        %v510 = vpow.pop %v509
        %v511 = vmul.f32 %v462, 1.442695
        %v512 = vpow.pop %v511
        %v513 = vmul.f32 %v463, 1.442695
        %v514 = vpow.pop %v513
        %v515 = vmul.f32 %v464, 1.442695
        %v516 = vpow.pop %v515
        %v517 = vmul.f32 %v465, 1.442695
        %v518 = vpow.pop %v517
        %v519 = vmul.f32 %v466, 1.442695
        %v520 = vpow.pop %v519
        %v521 = vmul.f32 %v467, 1.442695
        %v522 = vpow.pop %v521
        %v523 = vmul.f32 %v468, 1.442695
        %v524 = vpow.pop %v523
        %v525 = vmul.f32 %v469, 1.442695
        %v526 = vpow.pop %v525
        %v527 = vmul.f32 %v470, 1.442695
        %v528 = vpow.pop %v527
        %v529 = vmul.f32 %v471, 1.442695
        %v530 = vpow.pop %v529
        %v531 = vmul.f32 %v472, 1.442695
        %v532 = vpow.pop %v531
        %v533 = vmul.f32 %v473, 1.442695
        %v534 = vpow.pop %v533
        %v535 = vmul.f32 %v474, 1.442695
        %v536 = vpow.pop %v535
        %v537 = vmul.f32 %v475, 1.442695
        %v538 = vpow.pop %v537
        %v539 = vmul.f32 %v476, 1.442695
        %v540 = vpow.pop %v539
        %v541 = vadd.f32 %v478, 1.0
        %v542 = vadd.f32 %v480, 1.0
        %v543 = vadd.f32 %v482, 1.0
        %v544 = vadd.f32 %v484, 1.0
        %v545 = vadd.f32 %v486, 1.0
        %v546 = vadd.f32 %v488, 1.0
        %v547 = vadd.f32 %v490, 1.0
        %v548 = vadd.f32 %v492, 1.0
        %v549 = vadd.f32 %v494, 1.0
        %v550 = vadd.f32 %v496, 1.0
        %v551 = vadd.f32 %v498, 1.0
        %v552 = vadd.f32 %v500, 1.0
        %v553 = vadd.f32 %v502, 1.0
        %v554 = vadd.f32 %v504, 1.0
        %v555 = vadd.f32 %v506, 1.0
        %v556 = vadd.f32 %v508, 1.0
        %v557 = vadd.f32 %v510, 1.0
        %v558 = vadd.f32 %v512, 1.0
        %v559 = vadd.f32 %v514, 1.0
        %v560 = vadd.f32 %v516, 1.0
        %v561 = vadd.f32 %v518, 1.0
        %v562 = vadd.f32 %v520, 1.0
        %v563 = vadd.f32 %v522, 1.0
        %v564 = vadd.f32 %v524, 1.0
        %v565 = vadd.f32 %v526, 1.0
        %v566 = vadd.f32 %v528, 1.0
        %v567 = vadd.f32 %v530, 1.0
        %v568 = vadd.f32 %v532, 1.0
        %v569 = vadd.f32 %v534, 1.0
        %v570 = vadd.f32 %v536, 1.0
        %v571 = vadd.f32 %v538, 1.0
        %v572 = vadd.f32 %v540, 1.0
        %v573 = vrcp.pop %v541
        %v574 = vmul.f32 %v541, %v573
        %v575 = vsub.f32 1.0, %v574
        %v576 = vmul.f32 %v573, %v575
        %v577 = vadd.f32 %v573, %v576
        %vm578 = vweird.f32 %v541
        %vm579 = vweird.f32 %v573
        %vm580 = vmor %vm578, %vm579
        %v581 = vsel %vm580, %v573, %v577
        %v582 = vand.u32 2147483647, %v541
        %vm583 = vcmp.eq.f32.partialorder %v582, 8.507059e+37
        %v584 = vand.u32 %v541, 2147483648
        %v585 = vor.u32 1.1754944e-38, %v584
        %v586 = vsel %vm583, %v585, %v581
        %v587 = vmul.f32 %v350, %v586
        %v588 = vrcp.pop %v542
        %v589 = vmul.f32 %v542, %v588
        %v590 = vsub.f32 1.0, %v589
        %v591 = vmul.f32 %v588, %v590
        %v592 = vadd.f32 %v588, %v591
        %vm593 = vweird.f32 %v542
        %vm594 = vweird.f32 %v588
        %vm595 = vmor %vm593, %vm594
        %v596 = vsel %vm595, %v588, %v592
        %v597 = vand.u32 2147483647, %v542
        %vm598 = vcmp.eq.f32.partialorder %v597, 8.507059e+37
        %v599 = vand.u32 %v542, 2147483648
        %v600 = vor.u32 1.1754944e-38, %v599
        %v601 = vsel %vm598, %v600, %v596
        %v602 = vmul.f32 %v353, %v601
        %v603 = vrcp.pop %v543
        %v604 = vmul.f32 %v543, %v603
        %v605 = vsub.f32 1.0, %v604
        %v606 = vmul.f32 %v603, %v605
        %v607 = vadd.f32 %v603, %v606
        %vm608 = vweird.f32 %v543
        %vm609 = vweird.f32 %v603
        %vm610 = vmor %vm608, %vm609
        %v611 = vsel %vm610, %v603, %v607
        %v612 = vand.u32 2147483647, %v543
        %vm613 = vcmp.eq.f32.partialorder %v612, 8.507059e+37
        %v614 = vand.u32 %v543, 2147483648
        %v615 = vor.u32 1.1754944e-38, %v614
        %v616 = vsel %vm613, %v615, %v611
        %v617 = vmul.f32 %v356, %v616
        %v618 = vrcp.pop %v544
        %v619 = vmul.f32 %v544, %v618
        %v620 = vsub.f32 1.0, %v619
        %v621 = vmul.f32 %v618, %v620
        %v622 = vadd.f32 %v618, %v621
        %vm623 = vweird.f32 %v544
        %vm624 = vweird.f32 %v618
        %vm625 = vmor %vm623, %vm624
        %v626 = vsel %vm625, %v618, %v622
        %v627 = vand.u32 2147483647, %v544
        %vm628 = vcmp.eq.f32.partialorder %v627, 8.507059e+37
        %v629 = vand.u32 %v544, 2147483648
        %v630 = vor.u32 1.1754944e-38, %v629
        %v631 = vsel %vm628, %v630, %v626
        %v632 = vmul.f32 %v359, %v631
        %v633 = vrcp.pop %v545
        %v634 = vmul.f32 %v545, %v633
        %v635 = vsub.f32 1.0, %v634
        %v636 = vmul.f32 %v633, %v635
        %v637 = vadd.f32 %v633, %v636
        %vm638 = vweird.f32 %v545
        %vm639 = vweird.f32 %v633
        %vm640 = vmor %vm638, %vm639
        %v641 = vsel %vm640, %v633, %v637
        %v642 = vand.u32 2147483647, %v545
        %vm643 = vcmp.eq.f32.partialorder %v642, 8.507059e+37
        %v644 = vand.u32 %v545, 2147483648
        %v645 = vor.u32 1.1754944e-38, %v644
        %v646 = vsel %vm643, %v645, %v641
        %v647 = vmul.f32 %v362, %v646
        %v648 = vrcp.pop %v546
        %v649 = vmul.f32 %v546, %v648
        %v650 = vsub.f32 1.0, %v649
        %v651 = vmul.f32 %v648, %v650
        %v652 = vadd.f32 %v648, %v651
        %vm653 = vweird.f32 %v546
        %vm654 = vweird.f32 %v648
        %vm655 = vmor %vm653, %vm654
        %v656 = vsel %vm655, %v648, %v652
        %v657 = vand.u32 2147483647, %v546
        %vm658 = vcmp.eq.f32.partialorder %v657, 8.507059e+37
        %v659 = vand.u32 %v546, 2147483648
        %v660 = vor.u32 1.1754944e-38, %v659
        %v661 = vsel %vm658, %v660, %v656
        %v662 = vmul.f32 %v365, %v661
        %v663 = vrcp.pop %v547
        %v664 = vmul.f32 %v547, %v663
        %v665 = vsub.f32 1.0, %v664
        %v666 = vmul.f32 %v663, %v665
        %v667 = vadd.f32 %v663, %v666
        %vm668 = vweird.f32 %v547
        %vm669 = vweird.f32 %v663
        %vm670 = vmor %vm668, %vm669
        %v671 = vsel %vm670, %v663, %v667
        %v672 = vand.u32 2147483647, %v547
        %vm673 = vcmp.eq.f32.partialorder %v672, 8.507059e+37
        %v674 = vand.u32 %v547, 2147483648
        %v675 = vor.u32 1.1754944e-38, %v674
        %v676 = vsel %vm673, %v675, %v671
        %v677 = vmul.f32 %v368, %v676
        %v678 = vrcp.pop %v548
        %v679 = vmul.f32 %v548, %v678
        %v680 = vsub.f32 1.0, %v679
        %v681 = vmul.f32 %v678, %v680
        %v682 = vadd.f32 %v678, %v681
        %vm683 = vweird.f32 %v548
        %vm684 = vweird.f32 %v678
        %vm685 = vmor %vm683, %vm684
        %v686 = vsel %vm685, %v678, %v682
        %v687 = vand.u32 2147483647, %v548
        %vm688 = vcmp.eq.f32.partialorder %v687, 8.507059e+37
        %v689 = vand.u32 %v548, 2147483648
        %v690 = vor.u32 1.1754944e-38, %v689
        %v691 = vsel %vm688, %v690, %v686
        %v692 = vmul.f32 %v371, %v691
        %v693 = vrcp.pop %v549
        %v694 = vmul.f32 %v549, %v693
        %v695 = vsub.f32 1.0, %v694
        %v696 = vmul.f32 %v693, %v695
        %v697 = vadd.f32 %v693, %v696
        %vm698 = vweird.f32 %v549
        %vm699 = vweird.f32 %v693
        %vm700 = vmor %vm698, %vm699
        %v701 = vsel %vm700, %v693, %v697
        %v702 = vand.u32 2147483647, %v549
        %vm703 = vcmp.eq.f32.partialorder %v702, 8.507059e+37
        %v704 = vand.u32 %v549, 2147483648
        %v705 = vor.u32 1.1754944e-38, %v704
        %v706 = vsel %vm703, %v705, %v701
        %v707 = vmul.f32 %v374, %v706
        %v708 = vrcp.pop %v550
        %v709 = vmul.f32 %v550, %v708
        %v710 = vsub.f32 1.0, %v709
        %v711 = vmul.f32 %v708, %v710
        %v712 = vadd.f32 %v708, %v711
        %vm713 = vweird.f32 %v550
        %vm714 = vweird.f32 %v708
        %vm715 = vmor %vm713, %vm714
        %v716 = vsel %vm715, %v708, %v712
        %v717 = vand.u32 2147483647, %v550
        %vm718 = vcmp.eq.f32.partialorder %v717, 8.507059e+37
        %v719 = vand.u32 %v550, 2147483648
        %v720 = vor.u32 1.1754944e-38, %v719
        %v721 = vsel %vm718, %v720, %v716
        %v722 = vmul.f32 %v377, %v721
        %v723 = vrcp.pop %v551
        %v724 = vmul.f32 %v551, %v723
        %v725 = vsub.f32 1.0, %v724
        %v726 = vmul.f32 %v723, %v725
        %v727 = vadd.f32 %v723, %v726
        %vm728 = vweird.f32 %v551
        %vm729 = vweird.f32 %v723
        %vm730 = vmor %vm728, %vm729
        %v731 = vsel %vm730, %v723, %v727
        %v732 = vand.u32 2147483647, %v551
        %vm733 = vcmp.eq.f32.partialorder %v732, 8.507059e+37
        %v734 = vand.u32 %v551, 2147483648
        %v735 = vor.u32 1.1754944e-38, %v734
        %v736 = vsel %vm733, %v735, %v731
        %v737 = vmul.f32 %v380, %v736
        %v738 = vrcp.pop %v552
        %v739 = vmul.f32 %v552, %v738
        %v740 = vsub.f32 1.0, %v739
        %v741 = vmul.f32 %v738, %v740
        %v742 = vadd.f32 %v738, %v741
        %vm743 = vweird.f32 %v552
        %vm744 = vweird.f32 %v738
        %vm745 = vmor %vm743, %vm744
        %v746 = vsel %vm745, %v738, %v742
        %v747 = vand.u32 2147483647, %v552
        %vm748 = vcmp.eq.f32.partialorder %v747, 8.507059e+37
        %v749 = vand.u32 %v552, 2147483648
        %v750 = vor.u32 1.1754944e-38, %v749
        %v751 = vsel %vm748, %v750, %v746
        %v752 = vmul.f32 %v383, %v751
        %v753 = vrcp.pop %v553
        %v754 = vmul.f32 %v553, %v753
        %v755 = vsub.f32 1.0, %v754
        %v756 = vmul.f32 %v753, %v755
        %v757 = vadd.f32 %v753, %v756
        %vm758 = vweird.f32 %v553
        %vm759 = vweird.f32 %v753
        %vm760 = vmor %vm758, %vm759
        %v761 = vsel %vm760, %v753, %v757
        %v762 = vand.u32 2147483647, %v553
        %vm763 = vcmp.eq.f32.partialorder %v762, 8.507059e+37
        %v764 = vand.u32 %v553, 2147483648
        %v765 = vor.u32 1.1754944e-38, %v764
        %v766 = vsel %vm763, %v765, %v761
        %v767 = vmul.f32 %v386, %v766
        %v768 = vrcp.pop %v554
        %v769 = vmul.f32 %v554, %v768
        %v770 = vsub.f32 1.0, %v769
        %v771 = vmul.f32 %v768, %v770
        %v772 = vadd.f32 %v768, %v771
        %vm773 = vweird.f32 %v554
        %vm774 = vweird.f32 %v768
        %vm775 = vmor %vm773, %vm774
        %v776 = vsel %vm775, %v768, %v772
        %v777 = vand.u32 2147483647, %v554
        %vm778 = vcmp.eq.f32.partialorder %v777, 8.507059e+37
        %v779 = vand.u32 %v554, 2147483648
        %v780 = vor.u32 1.1754944e-38, %v779
        %v781 = vsel %vm778, %v780, %v776
        %v782 = vmul.f32 %v389, %v781
        %v783 = vrcp.pop %v555
        %v784 = vmul.f32 %v555, %v783
        %v785 = vsub.f32 1.0, %v784
        %v786 = vmul.f32 %v783, %v785
        %v787 = vadd.f32 %v783, %v786
        %vm788 = vweird.f32 %v555
        %vm789 = vweird.f32 %v783
        %vm790 = vmor %vm788, %vm789
        %v791 = vsel %vm790, %v783, %v787
        %v792 = vand.u32 2147483647, %v555
        %vm793 = vcmp.eq.f32.partialorder %v792, 8.507059e+37
        %v794 = vand.u32 %v555, 2147483648
        %v795 = vor.u32 1.1754944e-38, %v794
        %v796 = vsel %vm793, %v795, %v791
        %v797 = vmul.f32 %v392, %v796
        %v798 = vrcp.pop %v556
        %v799 = vmul.f32 %v556, %v798
        %v800 = vsub.f32 1.0, %v799
        %v801 = vmul.f32 %v798, %v800
        %v802 = vadd.f32 %v798, %v801
        %vm803 = vweird.f32 %v556
        %vm804 = vweird.f32 %v798
        %vm805 = vmor %vm803, %vm804
        %v806 = vsel %vm805, %v798, %v802
        %v807 = vand.u32 2147483647, %v556
        %vm808 = vcmp.eq.f32.partialorder %v807, 8.507059e+37
        %v809 = vand.u32 %v556, 2147483648
        %v810 = vor.u32 1.1754944e-38, %v809
        %v811 = vsel %vm808, %v810, %v806
        %v812 = vmul.f32 %v395, %v811
        %v813 = vrcp.pop %v557
        %v814 = vmul.f32 %v557, %v813
        %v815 = vsub.f32 1.0, %v814
        %v816 = vmul.f32 %v813, %v815
        %v817 = vadd.f32 %v813, %v816
        %vm818 = vweird.f32 %v557
        %vm819 = vweird.f32 %v813
        %vm820 = vmor %vm818, %vm819
        %v821 = vsel %vm820, %v813, %v817
        %v822 = vand.u32 2147483647, %v557
        %vm823 = vcmp.eq.f32.partialorder %v822, 8.507059e+37
        %v824 = vand.u32 %v557, 2147483648
        %v825 = vor.u32 1.1754944e-38, %v824
        %v826 = vsel %vm823, %v825, %v821
        %v827 = vmul.f32 %v398, %v826
        %v828 = vrcp.pop %v558
        %v829 = vmul.f32 %v558, %v828
        %v830 = vsub.f32 1.0, %v829
        %v831 = vmul.f32 %v828, %v830
        %v832 = vadd.f32 %v828, %v831
        %vm833 = vweird.f32 %v558
        %vm834 = vweird.f32 %v828
        %vm835 = vmor %vm833, %vm834
        %v836 = vsel %vm835, %v828, %v832
        %v837 = vand.u32 2147483647, %v558
        %vm838 = vcmp.eq.f32.partialorder %v837, 8.507059e+37
        %v839 = vand.u32 %v558, 2147483648
        %v840 = vor.u32 1.1754944e-38, %v839
        %v841 = vsel %vm838, %v840, %v836
        %v842 = vmul.f32 %v401, %v841
        %v843 = vrcp.pop %v559
        %v844 = vmul.f32 %v559, %v843
        %v845 = vsub.f32 1.0, %v844
        %v846 = vmul.f32 %v843, %v845
        %v847 = vadd.f32 %v843, %v846
        %vm848 = vweird.f32 %v559
        %vm849 = vweird.f32 %v843
        %vm850 = vmor %vm848, %vm849
        %v851 = vsel %vm850, %v843, %v847
        %v852 = vand.u32 2147483647, %v559
        %vm853 = vcmp.eq.f32.partialorder %v852, 8.507059e+37
        %v854 = vand.u32 %v559, 2147483648
        %v855 = vor.u32 1.1754944e-38, %v854
        %v856 = vsel %vm853, %v855, %v851
        %v857 = vmul.f32 %v404, %v856
        %v858 = vrcp.pop %v560
        %v859 = vmul.f32 %v560, %v858
        %v860 = vsub.f32 1.0, %v859
        %v861 = vmul.f32 %v858, %v860
        %v862 = vadd.f32 %v858, %v861
        %vm863 = vweird.f32 %v560
        %vm864 = vweird.f32 %v858
        %vm865 = vmor %vm863, %vm864
        %v866 = vsel %vm865, %v858, %v862
        %v867 = vand.u32 2147483647, %v560
        %vm868 = vcmp.eq.f32.partialorder %v867, 8.507059e+37
        %v869 = vand.u32 %v560, 2147483648
        %v870 = vor.u32 1.1754944e-38, %v869
        %v871 = vsel %vm868, %v870, %v866
        %v872 = vmul.f32 %v407, %v871
        %v873 = vrcp.pop %v561
        %v874 = vmul.f32 %v561, %v873
        %v875 = vsub.f32 1.0, %v874
        %v876 = vmul.f32 %v873, %v875
        %v877 = vadd.f32 %v873, %v876
        %vm878 = vweird.f32 %v561
        %vm879 = vweird.f32 %v873
        %vm880 = vmor %vm878, %vm879
        %v881 = vsel %vm880, %v873, %v877
        %v882 = vand.u32 2147483647, %v561
        %vm883 = vcmp.eq.f32.partialorder %v882, 8.507059e+37
        %v884 = vand.u32 %v561, 2147483648
        %v885 = vor.u32 1.1754944e-38, %v884
        %v886 = vsel %vm883, %v885, %v881
        %v887 = vmul.f32 %v410, %v886
        %v888 = vrcp.pop %v562
        %v889 = vmul.f32 %v562, %v888
        %v890 = vsub.f32 1.0, %v889
        %v891 = vmul.f32 %v888, %v890
        %v892 = vadd.f32 %v888, %v891
        %vm893 = vweird.f32 %v562
        %vm894 = vweird.f32 %v888
        %vm895 = vmor %vm893, %vm894
        %v896 = vsel %vm895, %v888, %v892
        %v897 = vand.u32 2147483647, %v562
        %vm898 = vcmp.eq.f32.partialorder %v897, 8.507059e+37
        %v899 = vand.u32 %v562, 2147483648
        %v900 = vor.u32 1.1754944e-38, %v899
        %v901 = vsel %vm898, %v900, %v896
        %v902 = vmul.f32 %v413, %v901
        %v903 = vrcp.pop %v563
        %v904 = vmul.f32 %v563, %v903
        %v905 = vsub.f32 1.0, %v904
        %v906 = vmul.f32 %v903, %v905
        %v907 = vadd.f32 %v903, %v906
        %vm908 = vweird.f32 %v563
        %vm909 = vweird.f32 %v903
        %vm910 = vmor %vm908, %vm909
        %v911 = vsel %vm910, %v903, %v907
        %v912 = vand.u32 2147483647, %v563
        %vm913 = vcmp.eq.f32.partialorder %v912, 8.507059e+37
        %v914 = vand.u32 %v563, 2147483648
        %v915 = vor.u32 1.1754944e-38, %v914
        %v916 = vsel %vm913, %v915, %v911
        %v917 = vmul.f32 %v416, %v916
        %v918 = vrcp.pop %v564
        %v919 = vmul.f32 %v564, %v918
        %v920 = vsub.f32 1.0, %v919
        %v921 = vmul.f32 %v918, %v920
        %v922 = vadd.f32 %v918, %v921
        %vm923 = vweird.f32 %v564
        %vm924 = vweird.f32 %v918
        %vm925 = vmor %vm923, %vm924
        %v926 = vsel %vm925, %v918, %v922
        %v927 = vand.u32 2147483647, %v564
        %vm928 = vcmp.eq.f32.partialorder %v927, 8.507059e+37
        %v929 = vand.u32 %v564, 2147483648
        %v930 = vor.u32 1.1754944e-38, %v929
        %v931 = vsel %vm928, %v930, %v926
        %v932 = vmul.f32 %v419, %v931
        %v933 = vrcp.pop %v565
        %v934 = vmul.f32 %v565, %v933
        %v935 = vsub.f32 1.0, %v934
        %v936 = vmul.f32 %v933, %v935
        %v937 = vadd.f32 %v933, %v936
        %vm938 = vweird.f32 %v565
        %vm939 = vweird.f32 %v933
        %vm940 = vmor %vm938, %vm939
        %v941 = vsel %vm940, %v933, %v937
        %v942 = vand.u32 2147483647, %v565
        %vm943 = vcmp.eq.f32.partialorder %v942, 8.507059e+37
        %v944 = vand.u32 %v565, 2147483648
        %v945 = vor.u32 1.1754944e-38, %v944
        %v946 = vsel %vm943, %v945, %v941
        %v947 = vmul.f32 %v422, %v946
        %v948 = vrcp.pop %v566
        %v949 = vmul.f32 %v566, %v948
        %v950 = vsub.f32 1.0, %v949
        %v951 = vmul.f32 %v948, %v950
        %v952 = vadd.f32 %v948, %v951
        %vm953 = vweird.f32 %v566
        %vm954 = vweird.f32 %v948
        %vm955 = vmor %vm953, %vm954
        %v956 = vsel %vm955, %v948, %v952
        %v957 = vand.u32 2147483647, %v566
        %vm958 = vcmp.eq.f32.partialorder %v957, 8.507059e+37
        %v959 = vand.u32 %v566, 2147483648
        %v960 = vor.u32 1.1754944e-38, %v959
        %v961 = vsel %vm958, %v960, %v956
        %v962 = vmul.f32 %v425, %v961
        %v963 = vrcp.pop %v567
        %v964 = vmul.f32 %v567, %v963
        %v965 = vsub.f32 1.0, %v964
        %v966 = vmul.f32 %v963, %v965
        %v967 = vadd.f32 %v963, %v966
        %vm968 = vweird.f32 %v567
        %vm969 = vweird.f32 %v963
        %vm970 = vmor %vm968, %vm969
        %v971 = vsel %vm970, %v963, %v967
        %v972 = vand.u32 2147483647, %v567
        %vm973 = vcmp.eq.f32.partialorder %v972, 8.507059e+37
        %v974 = vand.u32 %v567, 2147483648
        %v975 = vor.u32 1.1754944e-38, %v974
        %v976 = vsel %vm973, %v975, %v971
        %v977 = vmul.f32 %v428, %v976
        %v978 = vrcp.pop %v568
        %v979 = vmul.f32 %v568, %v978
        %v980 = vsub.f32 1.0, %v979
        %v981 = vmul.f32 %v978, %v980
        %v982 = vadd.f32 %v978, %v981
        %vm983 = vweird.f32 %v568
        %vm984 = vweird.f32 %v978
        %vm985 = vmor %vm983, %vm984
        %v986 = vsel %vm985, %v978, %v982
        %v987 = vand.u32 2147483647, %v568
        %vm988 = vcmp.eq.f32.partialorder %v987, 8.507059e+37
        %v989 = vand.u32 %v568, 2147483648
        %v990 = vor.u32 1.1754944e-38, %v989
        %v991 = vsel %vm988, %v990, %v986
        %v992 = vmul.f32 %v431, %v991
        %v993 = vrcp.pop %v569
        %v994 = vmul.f32 %v569, %v993
        %v995 = vsub.f32 1.0, %v994
        %v996 = vmul.f32 %v993, %v995
        %v997 = vadd.f32 %v993, %v996
        %vm998 = vweird.f32 %v569
        %vm999 = vweird.f32 %v993
        %vm1000 = vmor %vm998, %vm999
        %v1001 = vsel %vm1000, %v993, %v997
        %v1002 = vand.u32 2147483647, %v569
        %vm1003 = vcmp.eq.f32.partialorder %v1002, 8.507059e+37
        %v1004 = vand.u32 %v569, 2147483648
        %v1005 = vor.u32 1.1754944e-38, %v1004
        %v1006 = vsel %vm1003, %v1005, %v1001
        %v1007 = vmul.f32 %v434, %v1006
        %v1008 = vrcp.pop %v570
        %v1009 = vmul.f32 %v570, %v1008
        %v1010 = vsub.f32 1.0, %v1009
        %v1011 = vmul.f32 %v1008, %v1010
        %v1012 = vadd.f32 %v1008, %v1011
        %vm1013 = vweird.f32 %v570
        %vm1014 = vweird.f32 %v1008
        %vm1015 = vmor %vm1013, %vm1014
        %v1016 = vsel %vm1015, %v1008, %v1012
        %v1017 = vand.u32 2147483647, %v570
        %vm1018 = vcmp.eq.f32.partialorder %v1017, 8.507059e+37
        %v1019 = vand.u32 %v570, 2147483648
        %v1020 = vor.u32 1.1754944e-38, %v1019
        %v1021 = vsel %vm1018, %v1020, %v1016
        %v1022 = vmul.f32 %v437, %v1021
        %v1023 = vrcp.pop %v571
        %v1024 = vmul.f32 %v571, %v1023
        %v1025 = vsub.f32 1.0, %v1024
        %v1026 = vmul.f32 %v1023, %v1025
        %v1027 = vadd.f32 %v1023, %v1026
        %vm1028 = vweird.f32 %v571
        %vm1029 = vweird.f32 %v1023
        %vm1030 = vmor %vm1028, %vm1029
        %v1031 = vsel %vm1030, %v1023, %v1027
        %v1032 = vand.u32 2147483647, %v571
        %vm1033 = vcmp.eq.f32.partialorder %v1032, 8.507059e+37
        %v1034 = vand.u32 %v571, 2147483648
        %v1035 = vor.u32 1.1754944e-38, %v1034
        %v1036 = vsel %vm1033, %v1035, %v1031
        %v1037 = vmul.f32 %v440, %v1036
        %v1038 = vrcp.pop %v572
        %v1039 = vmul.f32 %v572, %v1038
        %v1040 = vsub.f32 1.0, %v1039
        %v1041 = vmul.f32 %v1038, %v1040
        %v1042 = vadd.f32 %v1038, %v1041
        %vm1043 = vweird.f32 %v572
        %vm1044 = vweird.f32 %v1038
        %vm1045 = vmor %vm1043, %vm1044
        %v1046 = vsel %vm1045, %v1038, %v1042
        %v1047 = vand.u32 2147483647, %v572
        %vm1048 = vcmp.eq.f32.partialorder %v1047, 8.507059e+37
        %v1049 = vand.u32 %v572, 2147483648
        %v1050 = vor.u32 1.1754944e-38, %v1049
        %v1051 = vsel %vm1048, %v1050, %v1046
        %v1052 = vmul.f32 %v443, %v1051
        %vm1053 = vcmask 130048
        %1054 = vst.msk [vmem:[%s193] sm:$0xff] %vm1053, %v587
        %1055 = vst.msk [vmem:[%s193 + $0x8] sm:$0xff] %vm1053, %v602
        %1056 = vst.msk [vmem:[%s193 + $0x10] sm:$0xff] %vm1053, %v617
        %1057 = vst.msk [vmem:[%s193 + $0x18] sm:$0xff] %vm1053, %v632
        %1058 = vst.msk [vmem:[%s193 + $0x20] sm:$0xff] %vm1053, %v647
        %1059 = vst.msk [vmem:[%s193 + $0x28] sm:$0xff] %vm1053, %v662
        %1060 = vst.msk [vmem:[%s193 + $0x30] sm:$0xff] %vm1053, %v677
        %1061 = vst.msk [vmem:[%s193 + $0x38] sm:$0xff] %vm1053, %v692
        %1062 = vst.msk [vmem:[%s193 + $0x40] sm:$0xff] %vm1053, %v707
        %1063 = vst.msk [vmem:[%s193 + $0x48] sm:$0xff] %vm1053, %v722
        %1064 = vst.msk [vmem:[%s193 + $0x50] sm:$0xff] %vm1053, %v737
        %1065 = vst.msk [vmem:[%s193 + $0x58] sm:$0xff] %vm1053, %v752
        %1066 = vst.msk [vmem:[%s193 + $0x60] sm:$0xff] %vm1053, %v767
        %1067 = vst.msk [vmem:[%s193 + $0x68] sm:$0xff] %vm1053, %v782
        %1068 = vst.msk [vmem:[%s193 + $0x70] sm:$0xff] %vm1053, %v797
        %1069 = vst.msk [vmem:[%s193 + $0x78] sm:$0xff] %vm1053, %v812
        %1070 = vst.msk [vmem:[%s193 + $0x80] sm:$0xff] %vm1053, %v827
        %1071 = vst.msk [vmem:[%s193 + $0x88] sm:$0xff] %vm1053, %v842
        %1072 = vst.msk [vmem:[%s193 + $0x90] sm:$0xff] %vm1053, %v857
        %1073 = vst.msk [vmem:[%s193 + $0x98] sm:$0xff] %vm1053, %v872
        %1074 = vst.msk [vmem:[%s193 + $0xa0] sm:$0xff] %vm1053, %v887
        %1075 = vst.msk [vmem:[%s193 + $0xa8] sm:$0xff] %vm1053, %v902
        %1076 = vst.msk [vmem:[%s193 + $0xb0] sm:$0xff] %vm1053, %v917
        %1077 = vst.msk [vmem:[%s193 + $0xb8] sm:$0xff] %vm1053, %v932
        %1078 = vst.msk [vmem:[%s193 + $0xc0] sm:$0xff] %vm1053, %v947
        %1079 = vst.msk [vmem:[%s193 + $0xc8] sm:$0xff] %vm1053, %v962
        %1080 = vst.msk [vmem:[%s193 + $0xd0] sm:$0xff] %vm1053, %v977
        %1081 = vst.msk [vmem:[%s193 + $0xd8] sm:$0xff] %vm1053, %v992
        %1082 = vst.msk [vmem:[%s193 + $0xe0] sm:$0xff] %vm1053, %v1007
        %1083 = vst.msk [vmem:[%s193 + $0xe8] sm:$0xff] %vm1053, %v1022
        %1084 = vst.msk [vmem:[%s193 + $0xf0] sm:$0xff] %vm1053, %v1037
        %1085 = vst.msk [vmem:[%s193 + $0xf8] sm:$0xff] %vm1053, %v1052
        %s1086 = smul.u32 32, %s17
        %p1087 = scmp.lt.s32.totalorder %s1086, 63
        %s1088 = scalar_select %p1087, %s1086, 63
        %s1089 = smul.addr %s1088, 8
        %s1090 = scalar_lea.vmem %s3, %s1089
        // Predicated region
        $region37: #{csp_stage_forward.6} parent=31 // pred_check
          %p1091 = pneg %p103
        $region38: #{csp_stage_forward.6} parent=31 // pred_check_branch
          %1093 = sbr.rel (%p1091) target = $region40
        $region39: #{csp_stage_forward.6} parent=31 // pred_region
          %s1094 = smul.u32 32, %s17
        $region40: #{csp_stage_forward.6} parent=31 // pred_fallthru
          _
      $region32: #{csp_stage_forward.6} parent=5 // pred_fallthru
        _
      %p1095 = scmp.le.s32.totalorder 2, %s12
      // Predicated region
      $region41: #{csp_stage_forward.6} parent=5 // pred_check
        %p1096 = pneg %p1095
      $region42: #{csp_stage_forward.6} parent=5 // pred_check_branch
        %1098 = sbr.rel (%p1096) target = $region44
      $region43: #{csp_stage_forward.6} parent=5 // pred_region
        %s1099 = ssub.s32 %s12, 2
        // Predicated region
        $region45: #{csp_stage_forward.6} parent=43 // pred_check
          %p1100 = pneg %p109
        $region46: #{csp_stage_forward.6} parent=43 // pred_check_branch
          %1102 = sbr.rel (%p1100) target = $region48
        $region47: #{csp_stage_forward.6} parent=43 // pred_region
          %s1103 = smul.u32 32, %s18
          %p1104 = scmp.lt.s32.totalorder %s1103, 63
          %s1105 = scalar_select %p1104, %s1103, 63
          %s1106 = smul.addr %s1105, 8
          %s1107 = scalar_lea.vmem %s3, %s1106
        $region48: #{csp_stage_forward.6} parent=43 // pred_fallthru
          _
      $region44: #{csp_stage_forward.6} parent=5 // pred_fallthru
        _
    $region6: #{csp_stage_forward.6} parent=1 // loop_footer
      %s16 = sadd.s32 1, %s12
    $region7: #{csp_stage_forward.6} parent=1 // loop_footer_branch
      %11 = sbr.rel target = $region3
    $region8: #{csp_stage_forward.6} parent=1 // loop_exit
      _
    %1108 = vsyncpa [#allocation3], 1
    %s1109 = scalar_lea.sflag [#allocation3], 1
    %1110 = vsyncpa %s1109, 1

// kernel: csp_stage_forward.9
$region0: #{csp_stage_forward.9}
  #allocation0 [shape = 'u32[]', space=smem, size = 0x4, offset = 0x4, fixed_abs, tag = 'smem constant byte address 0x4 - core index']
  #allocation1 [shape = 'u32[72,128]{1,0:T(1,128)}', space=vmem, size = 0x9000, scoped, tag = 'internal scratch']
  %s0 = inlined_call_operand.vmem [shape: f32[512,16], index: 0, kind: input, shape index: {}]
  %s1 = inlined_call_operand.vmem [shape: f32[512,16], index: 1, kind: input, shape index: {}]
  %s2 = inlined_call_operand.vmem [shape: f32[16,32], index: 2, kind: input, shape index: {}]
  %s3 = inlined_call_operand.vmem [shape: f32[16,32], index: 3, kind: input, shape index: {}]
  %s4 = inlined_call_operand.vmem [shape: f32[1,32], index: 4, kind: input, shape index: {}]
  %s5 = inlined_call_operand.hbm [shape: f32[512,32], index: 5, kind: output, shape index: {}]
  %s6 = sld [smem:[#allocation0]]
  $region53: #{csp_stage_forward.9} parent=0
    _
  %s8 = ssub.s32 1, %s6
  %s9 = scalar_select 0, %s8, %s6
  $region1: #{csp_stage_forward.9} parent=0
    #allocation2 [shape = 'u8[262144]{0}', space=vmem, size = 0x40000, scoped, tag = 'output window, operand 0']
    #allocation3 [shape = 's32[2]{0}', space=sflag, size = 0x8, scoped, tag = 'scoped memory for csp_stage_forward.9']
    %10 = vsyncpa [#allocation3], 0
    %s11 = scalar_lea.sflag [#allocation3], 1
    %12 = vsyncpa %s11, 0
    loop: start=0, step=1, limit=4
    $region2: #{csp_stage_forward.9} parent=1 // loop_pre_header
      _
    $region3: #{csp_stage_forward.9} parent=1 // loop_header
      %s14 = sphi 0, %s18
      %p15 = scmp.ge.s32.totalorder %s14, 4
      %s24 = sphi 0, %s26
      %s27 = sphi 0, %s24
      %s28 = sphi 0, %s27
      %s44 = sphi 0, %s28
      %s50 = sphi 0, %s52
      %s53 = sphi 0, %s50
      %s54 = sphi 0, %s53
      %s70 = sphi 0, %s54
      %s74 = sphi 0, %s74
      %s76 = sphi 0, %s74
      %s77 = sphi 0, %s76
      %s91 = sphi 0, %s77
      %s95 = sphi 0, %s95
      %s97 = sphi 0, %s95
      %s98 = sphi 0, %s97
      %s112 = sphi 0, %s98
      %s116 = sphi 0, %s116
      %s118 = sphi 0, %s116
      %s119 = sphi 0, %s118
      %s133 = sphi 0, %s119
      %s139 = sphi 0, %s141
      %s142 = sphi 0, %s139
      %s143 = sphi 0, %s142
      %s159 = sphi 0, %s143
    $region4: #{csp_stage_forward.9} parent=1 // loop_header_branch
      %17 = sbr.rel (%p15) target = $region8
    $region5: #{csp_stage_forward.9} parent=1 // loop_body
      %s19 = ssub.s32 %s14, 1
      %s20 = ssub.s32 %s14, 2
      %s21 = sadd.s32 %s14, 1
      %s22 = ssub.s32 %s14, %s21
      %p23 = scmp.eq.s32.totalorder %s22, 0
      %s25 = sadd.s32 %s24, 1
      %s26 = scalar_select %p23, %s24, %s25
      %p29 = pneg %p23
      %p30 = scmp.eq.s32.totalorder %s14, 1
      %p31 = por %p29, %p30
      %p32 = scmp.ne.s32.totalorder %s24, %s27
      %p33 = scmp.eq.s32.totalorder %s14, 0
      %p34 = por %p32, %p33
      %p35 = scmp.ne.s32.totalorder %s24, %s27
      %p36 = scmp.eq.s32.totalorder %s19, 1
      %p37 = por %p35, %p36
      %p38 = scmp.ne.s32.totalorder %s27, %s28
      %p39 = scmp.eq.s32.totalorder %s19, 0
      %p40 = por %p38, %p39
      %p41 = scmp.ne.s32.totalorder %s27, %s28
      %p42 = scmp.eq.s32.totalorder %s20, 1
      %p43 = por %p41, %p42
      %p45 = scmp.ne.s32.totalorder %s28, %s44
      %p46 = scmp.eq.s32.totalorder %s20, 0
      %p47 = por %p45, %p46
      %s48 = ssub.s32 %s14, %s21
      %p49 = scmp.eq.s32.totalorder %s48, 0
      %s51 = sadd.s32 %s50, 1
      %s52 = scalar_select %p49, %s50, %s51
      %p55 = pneg %p49
      %p56 = scmp.eq.s32.totalorder %s14, 1
      %p57 = por %p55, %p56
      %p58 = scmp.ne.s32.totalorder %s50, %s53
      %p59 = scmp.eq.s32.totalorder %s14, 0
      %p60 = por %p58, %p59
      %p61 = scmp.ne.s32.totalorder %s50, %s53
      %p62 = scmp.eq.s32.totalorder %s19, 1
      %p63 = por %p61, %p62
      %p64 = scmp.ne.s32.totalorder %s53, %s54
      %p65 = scmp.eq.s32.totalorder %s19, 0
      %p66 = por %p64, %p65
      %p67 = scmp.ne.s32.totalorder %s53, %s54
      %p68 = scmp.eq.s32.totalorder %s20, 1
      %p69 = por %p67, %p68
      %p71 = scmp.ne.s32.totalorder %s54, %s70
      %p72 = scmp.eq.s32.totalorder %s20, 0
      %p73 = por %p71, %p72
      %s75 = sadd.s32 %s74, 1
      %p78 = scmp.eq.s32.totalorder %s14, 1
      %p79 = scmp.ne.s32.totalorder %s74, %s76
      %p80 = scmp.eq.s32.totalorder %s14, 0
      %p81 = por %p79, %p80
      %p82 = scmp.ne.s32.totalorder %s74, %s76
      %p83 = scmp.eq.s32.totalorder %s19, 1
      %p84 = por %p82, %p83
      %p85 = scmp.ne.s32.totalorder %s76, %s77
      %p86 = scmp.eq.s32.totalorder %s19, 0
      %p87 = por %p85, %p86
      %p88 = scmp.ne.s32.totalorder %s76, %s77
      %p89 = scmp.eq.s32.totalorder %s20, 1
      %p90 = por %p88, %p89
      %p92 = scmp.ne.s32.totalorder %s77, %s91
      %p93 = scmp.eq.s32.totalorder %s20, 0
      %p94 = por %p92, %p93
      %s96 = sadd.s32 %s95, 1
      %p99 = scmp.eq.s32.totalorder %s14, 1
      %p100 = scmp.ne.s32.totalorder %s95, %s97
      %p101 = scmp.eq.s32.totalorder %s14, 0
      %p102 = por %p100, %p101
      %p103 = scmp.ne.s32.totalorder %s95, %s97
      %p104 = scmp.eq.s32.totalorder %s19, 1
      %p105 = por %p103, %p104
      %p106 = scmp.ne.s32.totalorder %s97, %s98
      %p107 = scmp.eq.s32.totalorder %s19, 0
      %p108 = por %p106, %p107
      %p109 = scmp.ne.s32.totalorder %s97, %s98
      %p110 = scmp.eq.s32.totalorder %s20, 1
      %p111 = por %p109, %p110
      %p113 = scmp.ne.s32.totalorder %s98, %s112
      %p114 = scmp.eq.s32.totalorder %s20, 0
      %p115 = por %p113, %p114
      %s117 = sadd.s32 %s116, 1
      %p120 = scmp.eq.s32.totalorder %s14, 1
      %p121 = scmp.ne.s32.totalorder %s116, %s118
      %p122 = scmp.eq.s32.totalorder %s14, 0
      %p123 = por %p121, %p122
      %p124 = scmp.ne.s32.totalorder %s116, %s118
      %p125 = scmp.eq.s32.totalorder %s19, 1
      %p126 = por %p124, %p125
      %p127 = scmp.ne.s32.totalorder %s118, %s119
      %p128 = scmp.eq.s32.totalorder %s19, 0
      %p129 = por %p127, %p128
      %p130 = scmp.ne.s32.totalorder %s118, %s119
      %p131 = scmp.eq.s32.totalorder %s20, 1
      %p132 = por %p130, %p131
      %p134 = scmp.ne.s32.totalorder %s119, %s133
      %p135 = scmp.eq.s32.totalorder %s20, 0
      %p136 = por %p134, %p135
      %s137 = ssub.s32 %s14, %s21
      %p138 = scmp.eq.s32.totalorder %s137, 0
      %s140 = sadd.s32 %s139, 1
      %s141 = scalar_select %p138, %s139, %s140
      %p144 = pneg %p138
      %p145 = scmp.eq.s32.totalorder %s14, 1
      %p146 = por %p144, %p145
      %p147 = scmp.ne.s32.totalorder %s139, %s142
      %p148 = scmp.eq.s32.totalorder %s14, 0
      %p149 = por %p147, %p148
      %p150 = scmp.ne.s32.totalorder %s139, %s142
      %p151 = scmp.eq.s32.totalorder %s19, 1
      %p152 = por %p150, %p151
      %p153 = scmp.ne.s32.totalorder %s142, %s143
      %p154 = scmp.eq.s32.totalorder %s19, 0
      %p155 = por %p153, %p154
      %p156 = scmp.ne.s32.totalorder %s142, %s143
      %p157 = scmp.eq.s32.totalorder %s20, 1
      %p158 = por %p156, %p157
      %p160 = scmp.ne.s32.totalorder %s143, %s159
      %p161 = scmp.eq.s32.totalorder %s20, 0
      %p162 = por %p160, %p161
      %p163 = scmp.le.s32.totalorder 1, %s14
      %p164 = scmp.lt.s32.totalorder %s14, 3
      %p165 = pnand %p163, %p164
      %p166 = pneg %p165
      // Predicated region
      $region9: #{csp_stage_forward.9} parent=5 // pred_check
        _
      $region10: #{csp_stage_forward.9} parent=5 // pred_check_branch
        %168 = sbr.rel (%p165) target = $region12
      $region11: #{csp_stage_forward.9} parent=5 // pred_region
        %s169 = ssub.s32 %s14, 1
        // Predicated region
        $region13: #{csp_stage_forward.9} parent=11 // pred_check
          %p170 = pneg %p87
        $region14: #{csp_stage_forward.9} parent=11 // pred_check_branch
          %172 = sbr.rel (%p170) target = $region16
        $region15: #{csp_stage_forward.9} parent=11 // pred_region
          _
        $region16: #{csp_stage_forward.9} parent=11 // pred_fallthru
          _
        // Predicated region
        $region17: #{csp_stage_forward.9} parent=11 // pred_check
          %p173 = pneg %p108
        $region18: #{csp_stage_forward.9} parent=11 // pred_check_branch
          %175 = sbr.rel (%p173) target = $region20
        $region19: #{csp_stage_forward.9} parent=11 // pred_region
          _
        $region20: #{csp_stage_forward.9} parent=11 // pred_fallthru
          _
        // Predicated region
        $region21: #{csp_stage_forward.9} parent=11 // pred_check
          %p176 = pneg %p129
        $region22: #{csp_stage_forward.9} parent=11 // pred_check_branch
          %178 = sbr.rel (%p176) target = $region24
        $region23: #{csp_stage_forward.9} parent=11 // pred_region
          _
        $region24: #{csp_stage_forward.9} parent=11 // pred_fallthru
          _
      $region12: #{csp_stage_forward.9} parent=5 // pred_fallthru
        _
      %p179 = scmp.lt.s32.totalorder %s14, 2
      // Predicated region
      $region25: #{csp_stage_forward.9} parent=5 // pred_check
        %p180 = pneg %p179
      $region26: #{csp_stage_forward.9} parent=5 // pred_check_branch
        %182 = sbr.rel (%p180) target = $region28
      $region27: #{csp_stage_forward.9} parent=5 // pred_region
        // Predicated region
        $region29: #{csp_stage_forward.9} parent=27 // pred_check
          %p183 = pneg %p34
        $region30: #{csp_stage_forward.9} parent=27 // pred_check_branch
          %185 = sbr.rel (%p183) target = $region32
        $region31: #{csp_stage_forward.9} parent=27 // pred_region
          %s186 = smul.u32 32, %s14
          %p187 = scmp.lt.s32.totalorder %s186, 63
          %s188 = scalar_select %p187, %s186, 63
          %s189 = smul.addr %s188, 8
          %s190 = scalar_lea.vmem %s0, %s189
          %s191 = smul.u32 32, %s14
        $region32: #{csp_stage_forward.9} parent=27 // pred_fallthru
          _
        // Predicated region
        $region33: #{csp_stage_forward.9} parent=27 // pred_check
          %p192 = pneg %p60
        $region34: #{csp_stage_forward.9} parent=27 // pred_check_branch
          %194 = sbr.rel (%p192) target = $region36
        $region35: #{csp_stage_forward.9} parent=27 // pred_region
          %s195 = smul.u32 32, %s14
          %p196 = scmp.lt.s32.totalorder %s195, 63
          %s197 = scalar_select %p196, %s195, 63
          %s198 = smul.addr %s197, 8
          %s199 = scalar_lea.vmem %s1, %s198
          %s200 = smul.u32 32, %s14
        $region36: #{csp_stage_forward.9} parent=27 // pred_fallthru
          _
      $region28: #{csp_stage_forward.9} parent=5 // pred_fallthru
        _
      %p201 = scmp.le.s32.totalorder 1, %s14
      %p202 = scmp.lt.s32.totalorder %s14, 3
      %p203 = pnand %p201, %p202
      %p204 = pneg %p203
      // Predicated region
      $region37: #{csp_stage_forward.9} parent=5 // pred_check
        _
      $region38: #{csp_stage_forward.9} parent=5 // pred_check_branch
        %206 = sbr.rel (%p203) target = $region40
      $region39: #{csp_stage_forward.9} parent=5 // pred_region
        %s207 = ssub.s32 %s14, 1
        %s208 = smul.u32 32, %s19
        %p209 = scmp.lt.s32.totalorder %s208, 63
        %s210 = scalar_select %p209, %s208, 63
        %s211 = smul.addr %s210, 8
        %s212 = scalar_lea.vmem %s0, %s211
        %p213 = pneg %p40
        %p214 = pneg %p37
        %s215 = smul.u32 32, %s19
        %p216 = scmp.lt.s32.totalorder %s215, 63
        %s217 = scalar_select %p216, %s215, 63
        %s218 = smul.addr %s217, 8
        %s219 = scalar_lea.vmem %s1, %s218
        %p220 = pneg %p66
        %p221 = pneg %p63
        %p222 = pneg %p87
        %p223 = pneg %p84
        %p224 = pneg %p108
        %p225 = pneg %p105
        %p226 = pneg %p129
        %p227 = pneg %p126
        %p228 = pneg %p155
        %p229 = pneg %p152
        %s230 = sand.u32 %s142, 1
        %s231 = scalar_lea.sflag [#allocation3], %s230
        %s232 = sand.u32 %s142, 1
        %s233 = smul.addr %s232, 256
        %s234 = scalar_lea.vmem [#allocation2], %s233
        %s235 = smul.u32 32, %s19
        %p236 = scmp.lt.s32.totalorder %s235, 63
        %s237 = scalar_select %p236, %s235, 63
        %s238 = smul.addr %s237, 8
        %s239 = scalar_lea.vmem %s0, %s238
        %s240 = smul.u32 32, %s19
        %s241 = smul.u32 32, %s19
        %p242 = scmp.lt.s32.totalorder %s241, 63
        %s243 = scalar_select %p242, %s241, 63
        %s244 = smul.addr %s243, 8
        %s245 = scalar_lea.vmem %s1, %s244
        %s246 = smul.u32 32, %s19
        %s247 = smul.u32 32, %s19
        %v248 = vld [vmem:[%s239] sm:$0xff]
        %v249 = vld [vmem:[%s239 + $0x8] sm:$0xff]
        %v250 = vld [vmem:[%s239 + $0x10] sm:$0xff]
        %v251 = vld [vmem:[%s239 + $0x18] sm:$0xff]
        %v252 = vld [vmem:[%s239 + $0x20] sm:$0xff]
        %v253 = vld [vmem:[%s239 + $0x28] sm:$0xff]
        %v254 = vld [vmem:[%s239 + $0x30] sm:$0xff]
        %v255 = vld [vmem:[%s239 + $0x38] sm:$0xff]
        %v256 = vld [vmem:[%s239 + $0x40] sm:$0xff]
        %v257 = vld [vmem:[%s239 + $0x48] sm:$0xff]
        %v258 = vld [vmem:[%s239 + $0x50] sm:$0xff]
        %v259 = vld [vmem:[%s239 + $0x58] sm:$0xff]
        %v260 = vld [vmem:[%s239 + $0x60] sm:$0xff]
        %v261 = vld [vmem:[%s239 + $0x68] sm:$0xff]
        %v262 = vld [vmem:[%s239 + $0x70] sm:$0xff]
        %v263 = vld [vmem:[%s239 + $0x78] sm:$0xff]
        %v264 = vld [vmem:[%s239 + $0x80] sm:$0xff]
        %v265 = vld [vmem:[%s239 + $0x88] sm:$0xff]
        %v266 = vld [vmem:[%s239 + $0x90] sm:$0xff]
        %v267 = vld [vmem:[%s239 + $0x98] sm:$0xff]
        %v268 = vld [vmem:[%s239 + $0xa0] sm:$0xff]
        %v269 = vld [vmem:[%s239 + $0xa8] sm:$0xff]
        %v270 = vld [vmem:[%s239 + $0xb0] sm:$0xff]
        %v271 = vld [vmem:[%s239 + $0xb8] sm:$0xff]
        %v272 = vld [vmem:[%s239 + $0xc0] sm:$0xff]
        %v273 = vld [vmem:[%s239 + $0xc8] sm:$0xff]
        %v274 = vld [vmem:[%s239 + $0xd0] sm:$0xff]
        %v275 = vld [vmem:[%s239 + $0xd8] sm:$0xff]
        %v276 = vld [vmem:[%s239 + $0xe0] sm:$0xff]
        %v277 = vld [vmem:[%s239 + $0xe8] sm:$0xff]
        %v278 = vld [vmem:[%s239 + $0xf0] sm:$0xff]
        %v279 = vld [vmem:[%s239 + $0xf8] sm:$0xff]
        %v280 = vld [vmem:[%s2] sm:$0xff]
        %v281 = vld [vmem:[%s2 + $0x8] sm:$0xff]
        %v282 = vld [vmem:[%s245] sm:$0xff]
        %v283 = vld [vmem:[%s245 + $0x8] sm:$0xff]
        %v284 = vld [vmem:[%s245 + $0x10] sm:$0xff]
        %v285 = vld [vmem:[%s245 + $0x18] sm:$0xff]
        %v286 = vld [vmem:[%s245 + $0x20] sm:$0xff]
        %v287 = vld [vmem:[%s245 + $0x28] sm:$0xff]
        %v288 = vld [vmem:[%s245 + $0x30] sm:$0xff]
        %v289 = vld [vmem:[%s245 + $0x38] sm:$0xff]
        %v290 = vld [vmem:[%s245 + $0x40] sm:$0xff]
        %v291 = vld [vmem:[%s245 + $0x48] sm:$0xff]
        %v292 = vld [vmem:[%s245 + $0x50] sm:$0xff]
        %v293 = vld [vmem:[%s245 + $0x58] sm:$0xff]
        %v294 = vld [vmem:[%s245 + $0x60] sm:$0xff]
        %v295 = vld [vmem:[%s245 + $0x68] sm:$0xff]
        %v296 = vld [vmem:[%s245 + $0x70] sm:$0xff]
        %v297 = vld [vmem:[%s245 + $0x78] sm:$0xff]
        %v298 = vld [vmem:[%s245 + $0x80] sm:$0xff]
        %v299 = vld [vmem:[%s245 + $0x88] sm:$0xff]
        %v300 = vld [vmem:[%s245 + $0x90] sm:$0xff]
        %v301 = vld [vmem:[%s245 + $0x98] sm:$0xff]
        %v302 = vld [vmem:[%s245 + $0xa0] sm:$0xff]
        %v303 = vld [vmem:[%s245 + $0xa8] sm:$0xff]
        %v304 = vld [vmem:[%s245 + $0xb0] sm:$0xff]
        %v305 = vld [vmem:[%s245 + $0xb8] sm:$0xff]
        %v306 = vld [vmem:[%s245 + $0xc0] sm:$0xff]
        %v307 = vld [vmem:[%s245 + $0xc8] sm:$0xff]
        %v308 = vld [vmem:[%s245 + $0xd0] sm:$0xff]
        %v309 = vld [vmem:[%s245 + $0xd8] sm:$0xff]
        %v310 = vld [vmem:[%s245 + $0xe0] sm:$0xff]
        %v311 = vld [vmem:[%s245 + $0xe8] sm:$0xff]
        %v312 = vld [vmem:[%s245 + $0xf0] sm:$0xff]
        %v313 = vld [vmem:[%s245 + $0xf8] sm:$0xff]
        %v314 = vld [vmem:[%s3] sm:$0xff]
        %v315 = vld [vmem:[%s3 + $0x8] sm:$0xff]
        %vm316 = vcmask 130048
        %v318 = vsel %vm316, %v282, 0
        %v321 = vsel %vm316, %v283, 0
        %v324 = vsel %vm316, %v284, 0
        %v327 = vsel %vm316, %v285, 0
        %v330 = vsel %vm316, %v286, 0
        %v333 = vsel %vm316, %v287, 0
        %v336 = vsel %vm316, %v288, 0
        %v339 = vsel %vm316, %v289, 0
        %v342 = vsel %vm316, %v290, 0
        %v345 = vsel %vm316, %v291, 0
        %v348 = vsel %vm316, %v292, 0
        %v351 = vsel %vm316, %v293, 0
        %v354 = vsel %vm316, %v294, 0
        %v357 = vsel %vm316, %v295, 0
        %v360 = vsel %vm316, %v296, 0
        %v363 = vsel %vm316, %v297, 0
        %v366 = vsel %vm316, %v298, 0
        %v369 = vsel %vm316, %v299, 0
        %v372 = vsel %vm316, %v300, 0
        %v375 = vsel %vm316, %v301, 0
        %v378 = vsel %vm316, %v302, 0
        %v381 = vsel %vm316, %v303, 0
        %v384 = vsel %vm316, %v304, 0
        %v387 = vsel %vm316, %v305, 0
        %v390 = vsel %vm316, %v306, 0
        %v393 = vsel %vm316, %v307, 0
        %v396 = vsel %vm316, %v308, 0
        %v399 = vsel %vm316, %v309, 0
        %v402 = vsel %vm316, %v310, 0
        %v405 = vsel %vm316, %v311, 0
        %v408 = vsel %vm316, %v312, 0
        %v411 = vsel %vm316, %v313, 0
        %413 = vmatpush.msra.mxu0 0.0
        %414 = vmatpush.msra.mxu0 0.0
        %415 = vmatpush.msra.mxu0 0.0
        %416 = vmatpush.msra.mxu0 0.0
        %417 = vmatpush.msra.mxu0 0.0
        %418 = vmatpush.msra.mxu0 0.0
        %419 = vmatpush.msra.mxu0 0.0
        %420 = vmatpush.msra.mxu0 0.0
        %421 = vmatpush.msra.mxu0 0.0
        %422 = vmatpush.msra.mxu0 0.0
        %423 = vmatpush.msra.mxu0 0.0
        %424 = vmatpush.msra.mxu0 0.0
        %425 = vmatpush.msra.mxu0 0.0
        %426 = vmatpush.msra.mxu0 0.0
        %427 = vmatpush.msra.mxu0 %v315
        %428 = vmatpush.msra.mxu0 %v314
        %429 = vmatmul.f32.gmra.mxu0 %v318
        %v430 = vpop.f32.mrf.mxu0
        %v431 = vadd.f32 0.0, %v430
        %432 = vmatmul.f32.gmra.mxu0 %v321
        %v433 = vpop.f32.mrf.mxu0
        %v434 = vadd.f32 0.0, %v433
        %435 = vmatmul.f32.gmra.mxu0 %v324
        %v436 = vpop.f32.mrf.mxu0
        %v437 = vadd.f32 0.0, %v436
        %438 = vmatmul.f32.gmra.mxu0 %v327
        %v439 = vpop.f32.mrf.mxu0
        %v440 = vadd.f32 0.0, %v439
        %441 = vmatmul.f32.gmra.mxu0 %v330
        %v442 = vpop.f32.mrf.mxu0
        %v443 = vadd.f32 0.0, %v442
        %444 = vmatmul.f32.gmra.mxu0 %v333
        %v445 = vpop.f32.mrf.mxu0
        %v446 = vadd.f32 0.0, %v445
        %447 = vmatmul.f32.gmra.mxu0 %v336
        %v448 = vpop.f32.mrf.mxu0
        %v449 = vadd.f32 0.0, %v448
        %450 = vmatmul.f32.gmra.mxu0 %v339
        %v451 = vpop.f32.mrf.mxu0
        %v452 = vadd.f32 0.0, %v451
        %453 = vmatmul.f32.gmra.mxu0 %v342
        %v454 = vpop.f32.mrf.mxu0
        %v455 = vadd.f32 0.0, %v454
        %456 = vmatmul.f32.gmra.mxu0 %v345
        %v457 = vpop.f32.mrf.mxu0
        %v458 = vadd.f32 0.0, %v457
        %459 = vmatmul.f32.gmra.mxu0 %v348
        %v460 = vpop.f32.mrf.mxu0
        %v461 = vadd.f32 0.0, %v460
        %462 = vmatmul.f32.gmra.mxu0 %v351
        %v463 = vpop.f32.mrf.mxu0
        %v464 = vadd.f32 0.0, %v463
        %465 = vmatmul.f32.gmra.mxu0 %v354
        %v466 = vpop.f32.mrf.mxu0
        %v467 = vadd.f32 0.0, %v466
        %468 = vmatmul.f32.gmra.mxu0 %v357
        %v469 = vpop.f32.mrf.mxu0
        %v470 = vadd.f32 0.0, %v469
        %471 = vmatmul.f32.gmra.mxu0 %v360
        %v472 = vpop.f32.mrf.mxu0
        %v473 = vadd.f32 0.0, %v472
        %474 = vmatmul.f32.gmra.mxu0 %v363
        %v475 = vpop.f32.mrf.mxu0
        %v476 = vadd.f32 0.0, %v475
        %477 = vmatmul.f32.gmra.mxu0 %v366
        %v478 = vpop.f32.mrf.mxu0
        %v479 = vadd.f32 0.0, %v478
        %480 = vmatmul.f32.gmra.mxu0 %v369
        %v481 = vpop.f32.mrf.mxu0
        %v482 = vadd.f32 0.0, %v481
        %483 = vmatmul.f32.gmra.mxu0 %v372
        %v484 = vpop.f32.mrf.mxu0
        %v485 = vadd.f32 0.0, %v484
        %486 = vmatmul.f32.gmra.mxu0 %v375
        %v487 = vpop.f32.mrf.mxu0
        %v488 = vadd.f32 0.0, %v487
        %489 = vmatmul.f32.gmra.mxu0 %v378
        %v490 = vpop.f32.mrf.mxu0
        %v491 = vadd.f32 0.0, %v490
        %492 = vmatmul.f32.gmra.mxu0 %v381
        %v493 = vpop.f32.mrf.mxu0
        %v494 = vadd.f32 0.0, %v493
        %495 = vmatmul.f32.gmra.mxu0 %v384
        %v496 = vpop.f32.mrf.mxu0
        %v497 = vadd.f32 0.0, %v496
        %498 = vmatmul.f32.gmra.mxu0 %v387
        %v499 = vpop.f32.mrf.mxu0
        %v500 = vadd.f32 0.0, %v499
        %501 = vmatmul.f32.gmra.mxu0 %v390
        %v502 = vpop.f32.mrf.mxu0
        %v503 = vadd.f32 0.0, %v502
        %504 = vmatmul.f32.gmra.mxu0 %v393
        %v505 = vpop.f32.mrf.mxu0
        %v506 = vadd.f32 0.0, %v505
        %507 = vmatmul.f32.gmra.mxu0 %v396
        %v508 = vpop.f32.mrf.mxu0
        %v509 = vadd.f32 0.0, %v508
        %510 = vmatmul.f32.gmra.mxu0 %v399
        %v511 = vpop.f32.mrf.mxu0
        %v512 = vadd.f32 0.0, %v511
        %513 = vmatmul.f32.gmra.mxu0 %v402
        %v514 = vpop.f32.mrf.mxu0
        %v515 = vadd.f32 0.0, %v514
        %516 = vmatmul.f32.gmra.mxu0 %v405
        %v517 = vpop.f32.mrf.mxu0
        %v518 = vadd.f32 0.0, %v517
        %519 = vmatmul.f32.gmra.mxu0 %v408
        %v520 = vpop.f32.mrf.mxu0
        %v521 = vadd.f32 0.0, %v520
        %522 = vmatmul.f32.gmra.mxu0 %v411
        %v523 = vpop.f32.mrf.mxu0
        %v524 = vadd.f32 0.0, %v523
        %525 = vdwg.mxu0
        %v527 = vsel %vm316, %v248, 0
        %v530 = vsel %vm316, %v249, 0
        %v533 = vsel %vm316, %v250, 0
        %v536 = vsel %vm316, %v251, 0
        %v539 = vsel %vm316, %v252, 0
        %v542 = vsel %vm316, %v253, 0
        %v545 = vsel %vm316, %v254, 0
        %v548 = vsel %vm316, %v255, 0
        %v551 = vsel %vm316, %v256, 0
        %v554 = vsel %vm316, %v257, 0
        %v557 = vsel %vm316, %v258, 0
        %v560 = vsel %vm316, %v259, 0
        %v563 = vsel %vm316, %v260, 0
        %v566 = vsel %vm316, %v261, 0
        %v569 = vsel %vm316, %v262, 0
        %v572 = vsel %vm316, %v263, 0
        %v575 = vsel %vm316, %v264, 0
        %v578 = vsel %vm316, %v265, 0
        %v581 = vsel %vm316, %v266, 0
        %v584 = vsel %vm316, %v267, 0
        %v587 = vsel %vm316, %v268, 0
        %v590 = vsel %vm316, %v269, 0
        %v593 = vsel %vm316, %v270, 0
        %v596 = vsel %vm316, %v271, 0
        %v599 = vsel %vm316, %v272, 0
        %v602 = vsel %vm316, %v273, 0
        %v605 = vsel %vm316, %v274, 0
        %v608 = vsel %vm316, %v275, 0
        %v611 = vsel %vm316, %v276, 0
        %v614 = vsel %vm316, %v277, 0
        %v617 = vsel %vm316, %v278, 0
        %v620 = vsel %vm316, %v279, 0
        %622 = vmatpush.msra.mxu0 0.0
        %623 = vmatpush.msra.mxu0 0.0
        %624 = vmatpush.msra.mxu0 0.0
        %625 = vmatpush.msra.mxu0 0.0
        %626 = vmatpush.msra.mxu0 0.0
        %627 = vmatpush.msra.mxu0 0.0
        %628 = vmatpush.msra.mxu0 0.0
        %629 = vmatpush.msra.mxu0 0.0
        %630 = vmatpush.msra.mxu0 0.0
        %631 = vmatpush.msra.mxu0 0.0
        %632 = vmatpush.msra.mxu0 0.0
        %633 = vmatpush.msra.mxu0 0.0
        %634 = vmatpush.msra.mxu0 0.0
        %635 = vmatpush.msra.mxu0 0.0
        %636 = vmatpush.msra.mxu0 %v281
        %637 = vmatpush.msra.mxu0 %v280
        %638 = vmatmul.f32.gmra.mxu0 %v527
        %v639 = vpop.f32.mrf.mxu0
        %v640 = vadd.f32 %v431, %v639
        %641 = vmatmul.f32.gmra.mxu0 %v530
        %v642 = vpop.f32.mrf.mxu0
        %v643 = vadd.f32 %v434, %v642
        %644 = vmatmul.f32.gmra.mxu0 %v533
        %v645 = vpop.f32.mrf.mxu0
        %v646 = vadd.f32 %v437, %v645
        %647 = vmatmul.f32.gmra.mxu0 %v536
        %v648 = vpop.f32.mrf.mxu0
        %v649 = vadd.f32 %v440, %v648
        %650 = vmatmul.f32.gmra.mxu0 %v539
        %v651 = vpop.f32.mrf.mxu0
        %v652 = vadd.f32 %v443, %v651
        %653 = vmatmul.f32.gmra.mxu0 %v542
        %v654 = vpop.f32.mrf.mxu0
        %v655 = vadd.f32 %v446, %v654
        %656 = vmatmul.f32.gmra.mxu0 %v545
        %v657 = vpop.f32.mrf.mxu0
        %v658 = vadd.f32 %v449, %v657
        %659 = vmatmul.f32.gmra.mxu0 %v548
        %v660 = vpop.f32.mrf.mxu0
        %v661 = vadd.f32 %v452, %v660
        %662 = vmatmul.f32.gmra.mxu0 %v551
        %v663 = vpop.f32.mrf.mxu0
        %v664 = vadd.f32 %v455, %v663
        %665 = vmatmul.f32.gmra.mxu0 %v554
        %v666 = vpop.f32.mrf.mxu0
        %v667 = vadd.f32 %v458, %v666
        %668 = vmatmul.f32.gmra.mxu0 %v557
        %v669 = vpop.f32.mrf.mxu0
        %v670 = vadd.f32 %v461, %v669
        %671 = vmatmul.f32.gmra.mxu0 %v560
        %v672 = vpop.f32.mrf.mxu0
        %v673 = vadd.f32 %v464, %v672
        %674 = vmatmul.f32.gmra.mxu0 %v563
        %v675 = vpop.f32.mrf.mxu0
        %v676 = vadd.f32 %v467, %v675
        %677 = vmatmul.f32.gmra.mxu0 %v566
        %v678 = vpop.f32.mrf.mxu0
        %v679 = vadd.f32 %v470, %v678
        %680 = vmatmul.f32.gmra.mxu0 %v569
        %v681 = vpop.f32.mrf.mxu0
        %v682 = vadd.f32 %v473, %v681
        %683 = vmatmul.f32.gmra.mxu0 %v572
        %v684 = vpop.f32.mrf.mxu0
        %v685 = vadd.f32 %v476, %v684
        %686 = vmatmul.f32.gmra.mxu0 %v575
        %v687 = vpop.f32.mrf.mxu0
        %v688 = vadd.f32 %v479, %v687
        %689 = vmatmul.f32.gmra.mxu0 %v578
        %v690 = vpop.f32.mrf.mxu0
        %v691 = vadd.f32 %v482, %v690
        %692 = vmatmul.f32.gmra.mxu0 %v581
        %v693 = vpop.f32.mrf.mxu0
        %v694 = vadd.f32 %v485, %v693
        %695 = vmatmul.f32.gmra.mxu0 %v584
        %v696 = vpop.f32.mrf.mxu0
        %v697 = vadd.f32 %v488, %v696
        %698 = vmatmul.f32.gmra.mxu0 %v587
        %v699 = vpop.f32.mrf.mxu0
        %v700 = vadd.f32 %v491, %v699
        %701 = vmatmul.f32.gmra.mxu0 %v590
        %v702 = vpop.f32.mrf.mxu0
        %v703 = vadd.f32 %v494, %v702
        %704 = vmatmul.f32.gmra.mxu0 %v593
        %v705 = vpop.f32.mrf.mxu0
        %v706 = vadd.f32 %v497, %v705
        %707 = vmatmul.f32.gmra.mxu0 %v596
        %v708 = vpop.f32.mrf.mxu0
        %v709 = vadd.f32 %v500, %v708
        %710 = vmatmul.f32.gmra.mxu0 %v599
        %v711 = vpop.f32.mrf.mxu0
        %v712 = vadd.f32 %v503, %v711
        %713 = vmatmul.f32.gmra.mxu0 %v602
        %v714 = vpop.f32.mrf.mxu0
        %v715 = vadd.f32 %v506, %v714
        %716 = vmatmul.f32.gmra.mxu0 %v605
        %v717 = vpop.f32.mrf.mxu0
        %v718 = vadd.f32 %v509, %v717
        %719 = vmatmul.f32.gmra.mxu0 %v608
        %v720 = vpop.f32.mrf.mxu0
        %v721 = vadd.f32 %v512, %v720
        %722 = vmatmul.f32.gmra.mxu0 %v611
        %v723 = vpop.f32.mrf.mxu0
        %v724 = vadd.f32 %v515, %v723
        %725 = vmatmul.f32.gmra.mxu0 %v614
        %v726 = vpop.f32.mrf.mxu0
        %v727 = vadd.f32 %v518, %v726
        %728 = vmatmul.f32.gmra.mxu0 %v617
        %v729 = vpop.f32.mrf.mxu0
        %v730 = vadd.f32 %v521, %v729
        %731 = vmatmul.f32.gmra.mxu0 %v620
        %v732 = vpop.f32.mrf.mxu0
        %v733 = vadd.f32 %v524, %v732
        %734 = vdwg.mxu0
        %v735 = vld [vmem:[%s4] sm:$0x1]
        %v737 = vperm.slane %v735, 0
        %v739 = vadd.f32 %v640, %v737
        %v740 = vadd.f32 %v643, %v737
        %v741 = vadd.f32 %v646, %v737
        %v742 = vadd.f32 %v649, %v737
        %v743 = vadd.f32 %v652, %v737
        %v744 = vadd.f32 %v655, %v737
        %v745 = vadd.f32 %v658, %v737
        %v746 = vadd.f32 %v661, %v737
        %v747 = vadd.f32 %v664, %v737
        %v748 = vadd.f32 %v667, %v737
        %v749 = vadd.f32 %v670, %v737
        %v750 = vadd.f32 %v673, %v737
        %v751 = vadd.f32 %v676, %v737
        %v752 = vadd.f32 %v679, %v737
        %v753 = vadd.f32 %v682, %v737
        %v754 = vadd.f32 %v685, %v737
        %v755 = vadd.f32 %v688, %v737
        %v756 = vadd.f32 %v691, %v737
        %v757 = vadd.f32 %v694, %v737
        %v758 = vadd.f32 %v697, %v737
        %v759 = vadd.f32 %v700, %v737
        %v760 = vadd.f32 %v703, %v737
        %v761 = vadd.f32 %v706, %v737
        %v762 = vadd.f32 %v709, %v737
        %v763 = vadd.f32 %v712, %v737
        %v764 = vadd.f32 %v715, %v737
        %v765 = vadd.f32 %v718, %v737
        %v766 = vadd.f32 %v721, %v737
        %v767 = vadd.f32 %v724, %v737
        %v768 = vadd.f32 %v727, %v737
        %v769 = vadd.f32 %v730, %v737
        %v770 = vadd.f32 %v733, %v737
        %v771 = vsub.f32 0.0, %v739
        %v772 = vsub.f32 0.0, %v740
        %v773 = vsub.f32 0.0, %v741
        %v774 = vsub.f32 0.0, %v742
        %v775 = vsub.f32 0.0, %v743
        %v776 = vsub.f32 0.0, %v744
        %v777 = vsub.f32 0.0, %v745
        %v778 = vsub.f32 0.0, %v746
        %v779 = vsub.f32 0.0, %v747
        %v780 = vsub.f32 0.0, %v748
        %v781 = vsub.f32 0.0, %v749
        %v782 = vsub.f32 0.0, %v750
        %v783 = vsub.f32 0.0, %v751
        %v784 = vsub.f32 0.0, %v752
        %v785 = vsub.f32 0.0, %v753
        %v786 = vsub.f32 0.0, %v754
        %v787 = vsub.f32 0.0, %v755
        %v788 = vsub.f32 0.0, %v756
        %v789 = vsub.f32 0.0, %v757
        %v790 = vsub.f32 0.0, %v758
        %v791 = vsub.f32 0.0, %v759
        %v792 = vsub.f32 0.0, %v760
        %v793 = vsub.f32 0.0, %v761
        %v794 = vsub.f32 0.0, %v762
        %v795 = vsub.f32 0.0, %v763
        %v796 = vsub.f32 0.0, %v764
        %v797 = vsub.f32 0.0, %v765
        %v798 = vsub.f32 0.0, %v766
        %v799 = vsub.f32 0.0, %v767
        %v800 = vsub.f32 0.0, %v768
        %v801 = vsub.f32 0.0, %v769
        %v802 = vsub.f32 0.0, %v770
        %v803 = vmul.f32 %v771, 1.442695
        %v804 = vpow.pop %v803
        %v805 = vmul.f32 %v772, 1.442695
        %v806 = vpow.pop %v805
        %v807 = vmul.f32 %v773, 1.442695
        %v808 = vpow.pop %v807
        %v809 = vmul.f32 %v774, 1.442695
        %v810 = vpow.pop %v809
        %v811 = vmul.f32 %v775, 1.442695
        %v812 = vpow.pop %v811
        %v813 = vmul.f32 %v776, 1.442695
        %v814 = vpow.pop %v813
        %v815 = vmul.f32 %v777, 1.442695
        %v816 = vpow.pop %v815
        %v817 = vmul.f32 %v778, 1.442695
        %v818 = vpow.pop %v817
        %v819 = vmul.f32 %v779, 1.442695
        %v820 = vpow.pop %v819
        %v821 = vmul.f32 %v780, 1.442695
        %v822 = vpow.pop %v821
        %v823 = vmul.f32 %v781, 1.442695
        %v824 = vpow.pop %v823
        %v825 = vmul.f32 %v782, 1.442695
        %v826 = vpow.pop %v825
        %v827 = vmul.f32 %v783, 1.442695
        %v828 = vpow.pop %v827
        %v829 = vmul.f32 %v784, 1.442695
        %v830 = vpow.pop %v829
        %v831 = vmul.f32 %v785, 1.442695
        %v832 = vpow.pop %v831
        %v833 = vmul.f32 %v786, 1.442695
        %v834 = vpow.pop %v833
        %v835 = vmul.f32 %v787, 1.442695
        %v836 = vpow.pop %v835
        %v837 = vmul.f32 %v788, 1.442695
        %v838 = vpow.pop %v837
        %v839 = vmul.f32 %v789, 1.442695
        %v840 = vpow.pop %v839
        %v841 = vmul.f32 %v790, 1.442695
        %v842 = vpow.pop %v841
        %v843 = vmul.f32 %v791, 1.442695
        %v844 = vpow.pop %v843
        %v845 = vmul.f32 %v792, 1.442695
        %v846 = vpow.pop %v845
        %v847 = vmul.f32 %v793, 1.442695
        %v848 = vpow.pop %v847
        %v849 = vmul.f32 %v794, 1.442695
        %v850 = vpow.pop %v849
        %v851 = vmul.f32 %v795, 1.442695
        %v852 = vpow.pop %v851
        %v853 = vmul.f32 %v796, 1.442695
        %v854 = vpow.pop %v853
        %v855 = vmul.f32 %v797, 1.442695
        %v856 = vpow.pop %v855
        %v857 = vmul.f32 %v798, 1.442695
        %v858 = vpow.pop %v857
        %v859 = vmul.f32 %v799, 1.442695
        %v860 = vpow.pop %v859
        %v861 = vmul.f32 %v800, 1.442695
        %v862 = vpow.pop %v861
        %v863 = vmul.f32 %v801, 1.442695
        %v864 = vpow.pop %v863
        %v865 = vmul.f32 %v802, 1.442695
        %v866 = vpow.pop %v865
        %v867 = vadd.f32 %v804, 1.0
        %v868 = vadd.f32 %v806, 1.0
        %v869 = vadd.f32 %v808, 1.0
        %v870 = vadd.f32 %v810, 1.0
        %v871 = vadd.f32 %v812, 1.0
        %v872 = vadd.f32 %v814, 1.0
        %v873 = vadd.f32 %v816, 1.0
        %v874 = vadd.f32 %v818, 1.0
        %v875 = vadd.f32 %v820, 1.0
        %v876 = vadd.f32 %v822, 1.0
        %v877 = vadd.f32 %v824, 1.0
        %v878 = vadd.f32 %v826, 1.0
        %v879 = vadd.f32 %v828, 1.0
        %v880 = vadd.f32 %v830, 1.0
        %v881 = vadd.f32 %v832, 1.0
        %v882 = vadd.f32 %v834, 1.0
        %v883 = vadd.f32 %v836, 1.0
        %v884 = vadd.f32 %v838, 1.0
        %v885 = vadd.f32 %v840, 1.0
        %v886 = vadd.f32 %v842, 1.0
        %v887 = vadd.f32 %v844, 1.0
        %v888 = vadd.f32 %v846, 1.0
        %v889 = vadd.f32 %v848, 1.0
        %v890 = vadd.f32 %v850, 1.0
        %v891 = vadd.f32 %v852, 1.0
        %v892 = vadd.f32 %v854, 1.0
        %v893 = vadd.f32 %v856, 1.0
        %v894 = vadd.f32 %v858, 1.0
        %v895 = vadd.f32 %v860, 1.0
        %v896 = vadd.f32 %v862, 1.0
        %v897 = vadd.f32 %v864, 1.0
        %v898 = vadd.f32 %v866, 1.0
        %v899 = vrcp.pop %v867
        %v900 = vmul.f32 %v867, %v899
        %v901 = vsub.f32 1.0, %v900
        %v902 = vmul.f32 %v899, %v901
        %v903 = vadd.f32 %v899, %v902
        %vm904 = vweird.f32 %v867
        %vm905 = vweird.f32 %v899
        %vm906 = vmor %vm904, %vm905
        %v907 = vsel %vm906, %v899, %v903
        %v908 = vand.u32 2147483647, %v867
        %vm909 = vcmp.eq.f32.partialorder %v908, 8.507059e+37
        %v910 = vand.u32 %v867, 2147483648
        %v911 = vor.u32 1.1754944e-38, %v910
        %v912 = vsel %vm909, %v911, %v907
        %v913 = vmul.f32 %v739, %v912
        %v914 = vrcp.pop %v868
        %v915 = vmul.f32 %v868, %v914
        %v916 = vsub.f32 1.0, %v915
        %v917 = vmul.f32 %v914, %v916
        %v918 = vadd.f32 %v914, %v917
        %vm919 = vweird.f32 %v868
        %vm920 = vweird.f32 %v914
        %vm921 = vmor %vm919, %vm920
        %v922 = vsel %vm921, %v914, %v918
        %v923 = vand.u32 2147483647, %v868
        %vm924 = vcmp.eq.f32.partialorder %v923, 8.507059e+37
        %v925 = vand.u32 %v868, 2147483648
        %v926 = vor.u32 1.1754944e-38, %v925
        %v927 = vsel %vm924, %v926, %v922
        %v928 = vmul.f32 %v740, %v927
        %v929 = vrcp.pop %v869
        %v930 = vmul.f32 %v869, %v929
        %v931 = vsub.f32 1.0, %v930
        %v932 = vmul.f32 %v929, %v931
        %v933 = vadd.f32 %v929, %v932
        %vm934 = vweird.f32 %v869
        %vm935 = vweird.f32 %v929
        %vm936 = vmor %vm934, %vm935
        %v937 = vsel %vm936, %v929, %v933
        %v938 = vand.u32 2147483647, %v869
        %vm939 = vcmp.eq.f32.partialorder %v938, 8.507059e+37
        %v940 = vand.u32 %v869, 2147483648
        %v941 = vor.u32 1.1754944e-38, %v940
        %v942 = vsel %vm939, %v941, %v937
        %v943 = vmul.f32 %v741, %v942
        %v944 = vrcp.pop %v870
        %v945 = vmul.f32 %v870, %v944
        %v946 = vsub.f32 1.0, %v945
        %v947 = vmul.f32 %v944, %v946
        %v948 = vadd.f32 %v944, %v947
        %vm949 = vweird.f32 %v870
        %vm950 = vweird.f32 %v944
        %vm951 = vmor %vm949, %vm950
        %v952 = vsel %vm951, %v944, %v948
        %v953 = vand.u32 2147483647, %v870
        %vm954 = vcmp.eq.f32.partialorder %v953, 8.507059e+37
        %v955 = vand.u32 %v870, 2147483648
        %v956 = vor.u32 1.1754944e-38, %v955
        %v957 = vsel %vm954, %v956, %v952
        %v958 = vmul.f32 %v742, %v957
        %v959 = vrcp.pop %v871
        %v960 = vmul.f32 %v871, %v959
        %v961 = vsub.f32 1.0, %v960
        %v962 = vmul.f32 %v959, %v961
        %v963 = vadd.f32 %v959, %v962
        %vm964 = vweird.f32 %v871
        %vm965 = vweird.f32 %v959
        %vm966 = vmor %vm964, %vm965
        %v967 = vsel %vm966, %v959, %v963
        %v968 = vand.u32 2147483647, %v871
        %vm969 = vcmp.eq.f32.partialorder %v968, 8.507059e+37
        %v970 = vand.u32 %v871, 2147483648
        %v971 = vor.u32 1.1754944e-38, %v970
        %v972 = vsel %vm969, %v971, %v967
        %v973 = vmul.f32 %v743, %v972
        %v974 = vrcp.pop %v872
        %v975 = vmul.f32 %v872, %v974
        %v976 = vsub.f32 1.0, %v975
        %v977 = vmul.f32 %v974, %v976
        %v978 = vadd.f32 %v974, %v977
        %vm979 = vweird.f32 %v872
        %vm980 = vweird.f32 %v974
        %vm981 = vmor %vm979, %vm980
        %v982 = vsel %vm981, %v974, %v978
        %v983 = vand.u32 2147483647, %v872
        %vm984 = vcmp.eq.f32.partialorder %v983, 8.507059e+37
        %v985 = vand.u32 %v872, 2147483648
        %v986 = vor.u32 1.1754944e-38, %v985
        %v987 = vsel %vm984, %v986, %v982
        %v988 = vmul.f32 %v744, %v987
        %v989 = vrcp.pop %v873
        %v990 = vmul.f32 %v873, %v989
        %v991 = vsub.f32 1.0, %v990
        %v992 = vmul.f32 %v989, %v991
        %v993 = vadd.f32 %v989, %v992
        %vm994 = vweird.f32 %v873
        %vm995 = vweird.f32 %v989
        %vm996 = vmor %vm994, %vm995
        %v997 = vsel %vm996, %v989, %v993
        %v998 = vand.u32 2147483647, %v873
        %vm999 = vcmp.eq.f32.partialorder %v998, 8.507059e+37
        %v1000 = vand.u32 %v873, 2147483648
        %v1001 = vor.u32 1.1754944e-38, %v1000
        %v1002 = vsel %vm999, %v1001, %v997
        %v1003 = vmul.f32 %v745, %v1002
        %v1004 = vrcp.pop %v874
        %v1005 = vmul.f32 %v874, %v1004
        %v1006 = vsub.f32 1.0, %v1005
        %v1007 = vmul.f32 %v1004, %v1006
        %v1008 = vadd.f32 %v1004, %v1007
        %vm1009 = vweird.f32 %v874
        %vm1010 = vweird.f32 %v1004
        %vm1011 = vmor %vm1009, %vm1010
        %v1012 = vsel %vm1011, %v1004, %v1008
        %v1013 = vand.u32 2147483647, %v874
        %vm1014 = vcmp.eq.f32.partialorder %v1013, 8.507059e+37
        %v1015 = vand.u32 %v874, 2147483648
        %v1016 = vor.u32 1.1754944e-38, %v1015
        %v1017 = vsel %vm1014, %v1016, %v1012
        %v1018 = vmul.f32 %v746, %v1017
        %v1019 = vrcp.pop %v875
        %v1020 = vmul.f32 %v875, %v1019
        %v1021 = vsub.f32 1.0, %v1020
        %v1022 = vmul.f32 %v1019, %v1021
        %v1023 = vadd.f32 %v1019, %v1022
        %vm1024 = vweird.f32 %v875
        %vm1025 = vweird.f32 %v1019
        %vm1026 = vmor %vm1024, %vm1025
        %v1027 = vsel %vm1026, %v1019, %v1023
        %v1028 = vand.u32 2147483647, %v875
        %vm1029 = vcmp.eq.f32.partialorder %v1028, 8.507059e+37
        %v1030 = vand.u32 %v875, 2147483648
        %v1031 = vor.u32 1.1754944e-38, %v1030
        %v1032 = vsel %vm1029, %v1031, %v1027
        %v1033 = vmul.f32 %v747, %v1032
        %v1034 = vrcp.pop %v876
        %v1035 = vmul.f32 %v876, %v1034
        %v1036 = vsub.f32 1.0, %v1035
        %v1037 = vmul.f32 %v1034, %v1036
        %v1038 = vadd.f32 %v1034, %v1037
        %vm1039 = vweird.f32 %v876
        %vm1040 = vweird.f32 %v1034
        %vm1041 = vmor %vm1039, %vm1040
        %v1042 = vsel %vm1041, %v1034, %v1038
        %v1043 = vand.u32 2147483647, %v876
        %vm1044 = vcmp.eq.f32.partialorder %v1043, 8.507059e+37
        %v1045 = vand.u32 %v876, 2147483648
        %v1046 = vor.u32 1.1754944e-38, %v1045
        %v1047 = vsel %vm1044, %v1046, %v1042
        %v1048 = vmul.f32 %v748, %v1047
        %v1049 = vrcp.pop %v877
        %v1050 = vmul.f32 %v877, %v1049
        %v1051 = vsub.f32 1.0, %v1050
        %v1052 = vmul.f32 %v1049, %v1051
        %v1053 = vadd.f32 %v1049, %v1052
        %vm1054 = vweird.f32 %v877
        %vm1055 = vweird.f32 %v1049
        %vm1056 = vmor %vm1054, %vm1055
        %v1057 = vsel %vm1056, %v1049, %v1053
        %v1058 = vand.u32 2147483647, %v877
        %vm1059 = vcmp.eq.f32.partialorder %v1058, 8.507059e+37
        %v1060 = vand.u32 %v877, 2147483648
        %v1061 = vor.u32 1.1754944e-38, %v1060
        %v1062 = vsel %vm1059, %v1061, %v1057
        %v1063 = vmul.f32 %v749, %v1062
        %v1064 = vrcp.pop %v878
        %v1065 = vmul.f32 %v878, %v1064
        %v1066 = vsub.f32 1.0, %v1065
        %v1067 = vmul.f32 %v1064, %v1066
        %v1068 = vadd.f32 %v1064, %v1067
        %vm1069 = vweird.f32 %v878
        %vm1070 = vweird.f32 %v1064
        %vm1071 = vmor %vm1069, %vm1070
        %v1072 = vsel %vm1071, %v1064, %v1068
        %v1073 = vand.u32 2147483647, %v878
        %vm1074 = vcmp.eq.f32.partialorder %v1073, 8.507059e+37
        %v1075 = vand.u32 %v878, 2147483648
        %v1076 = vor.u32 1.1754944e-38, %v1075
        %v1077 = vsel %vm1074, %v1076, %v1072
        %v1078 = vmul.f32 %v750, %v1077
        %v1079 = vrcp.pop %v879
        %v1080 = vmul.f32 %v879, %v1079
        %v1081 = vsub.f32 1.0, %v1080
        %v1082 = vmul.f32 %v1079, %v1081
        %v1083 = vadd.f32 %v1079, %v1082
        %vm1084 = vweird.f32 %v879
        %vm1085 = vweird.f32 %v1079
        %vm1086 = vmor %vm1084, %vm1085
        %v1087 = vsel %vm1086, %v1079, %v1083
        %v1088 = vand.u32 2147483647, %v879
        %vm1089 = vcmp.eq.f32.partialorder %v1088, 8.507059e+37
        %v1090 = vand.u32 %v879, 2147483648
        %v1091 = vor.u32 1.1754944e-38, %v1090
        %v1092 = vsel %vm1089, %v1091, %v1087
        %v1093 = vmul.f32 %v751, %v1092
        %v1094 = vrcp.pop %v880
        %v1095 = vmul.f32 %v880, %v1094
        %v1096 = vsub.f32 1.0, %v1095
        %v1097 = vmul.f32 %v1094, %v1096
        %v1098 = vadd.f32 %v1094, %v1097
        %vm1099 = vweird.f32 %v880
        %vm1100 = vweird.f32 %v1094
        %vm1101 = vmor %vm1099, %vm1100
        %v1102 = vsel %vm1101, %v1094, %v1098
        %v1103 = vand.u32 2147483647, %v880
        %vm1104 = vcmp.eq.f32.partialorder %v1103, 8.507059e+37
        %v1105 = vand.u32 %v880, 2147483648
        %v1106 = vor.u32 1.1754944e-38, %v1105
        %v1107 = vsel %vm1104, %v1106, %v1102
        %v1108 = vmul.f32 %v752, %v1107
        %v1109 = vrcp.pop %v881
        %v1110 = vmul.f32 %v881, %v1109
        %v1111 = vsub.f32 1.0, %v1110
        %v1112 = vmul.f32 %v1109, %v1111
        %v1113 = vadd.f32 %v1109, %v1112
        %vm1114 = vweird.f32 %v881
        %vm1115 = vweird.f32 %v1109
        %vm1116 = vmor %vm1114, %vm1115
        %v1117 = vsel %vm1116, %v1109, %v1113
        %v1118 = vand.u32 2147483647, %v881
        %vm1119 = vcmp.eq.f32.partialorder %v1118, 8.507059e+37
        %v1120 = vand.u32 %v881, 2147483648
        %v1121 = vor.u32 1.1754944e-38, %v1120
        %v1122 = vsel %vm1119, %v1121, %v1117
        %v1123 = vmul.f32 %v753, %v1122
        %v1124 = vrcp.pop %v882
        %v1125 = vmul.f32 %v882, %v1124
        %v1126 = vsub.f32 1.0, %v1125
        %v1127 = vmul.f32 %v1124, %v1126
        %v1128 = vadd.f32 %v1124, %v1127
        %vm1129 = vweird.f32 %v882
        %vm1130 = vweird.f32 %v1124
        %vm1131 = vmor %vm1129, %vm1130
        %v1132 = vsel %vm1131, %v1124, %v1128
        %v1133 = vand.u32 2147483647, %v882
        %vm1134 = vcmp.eq.f32.partialorder %v1133, 8.507059e+37
        %v1135 = vand.u32 %v882, 2147483648
        %v1136 = vor.u32 1.1754944e-38, %v1135
        %v1137 = vsel %vm1134, %v1136, %v1132
        %v1138 = vmul.f32 %v754, %v1137
        %v1139 = vrcp.pop %v883
        %v1140 = vmul.f32 %v883, %v1139
        %v1141 = vsub.f32 1.0, %v1140
        %v1142 = vmul.f32 %v1139, %v1141
        %v1143 = vadd.f32 %v1139, %v1142
        %vm1144 = vweird.f32 %v883
        %vm1145 = vweird.f32 %v1139
        %vm1146 = vmor %vm1144, %vm1145
        %v1147 = vsel %vm1146, %v1139, %v1143
        %v1148 = vand.u32 2147483647, %v883
        %vm1149 = vcmp.eq.f32.partialorder %v1148, 8.507059e+37
        %v1150 = vand.u32 %v883, 2147483648
        %v1151 = vor.u32 1.1754944e-38, %v1150
        %v1152 = vsel %vm1149, %v1151, %v1147
        %v1153 = vmul.f32 %v755, %v1152
        %v1154 = vrcp.pop %v884
        %v1155 = vmul.f32 %v884, %v1154
        %v1156 = vsub.f32 1.0, %v1155
        %v1157 = vmul.f32 %v1154, %v1156
        %v1158 = vadd.f32 %v1154, %v1157
        %vm1159 = vweird.f32 %v884
        %vm1160 = vweird.f32 %v1154
        %vm1161 = vmor %vm1159, %vm1160
        %v1162 = vsel %vm1161, %v1154, %v1158
        %v1163 = vand.u32 2147483647, %v884
        %vm1164 = vcmp.eq.f32.partialorder %v1163, 8.507059e+37
        %v1165 = vand.u32 %v884, 2147483648
        %v1166 = vor.u32 1.1754944e-38, %v1165
        %v1167 = vsel %vm1164, %v1166, %v1162
        %v1168 = vmul.f32 %v756, %v1167
        %v1169 = vrcp.pop %v885
        %v1170 = vmul.f32 %v885, %v1169
        %v1171 = vsub.f32 1.0, %v1170
        %v1172 = vmul.f32 %v1169, %v1171
        %v1173 = vadd.f32 %v1169, %v1172
        %vm1174 = vweird.f32 %v885
        %vm1175 = vweird.f32 %v1169
        %vm1176 = vmor %vm1174, %vm1175
        %v1177 = vsel %vm1176, %v1169, %v1173
        %v1178 = vand.u32 2147483647, %v885
        %vm1179 = vcmp.eq.f32.partialorder %v1178, 8.507059e+37
        %v1180 = vand.u32 %v885, 2147483648
        %v1181 = vor.u32 1.1754944e-38, %v1180
        %v1182 = vsel %vm1179, %v1181, %v1177
        %v1183 = vmul.f32 %v757, %v1182
        %v1184 = vrcp.pop %v886
        %v1185 = vmul.f32 %v886, %v1184
        %v1186 = vsub.f32 1.0, %v1185
        %v1187 = vmul.f32 %v1184, %v1186
        %v1188 = vadd.f32 %v1184, %v1187
        %vm1189 = vweird.f32 %v886
        %vm1190 = vweird.f32 %v1184
        %vm1191 = vmor %vm1189, %vm1190
        %v1192 = vsel %vm1191, %v1184, %v1188
        %v1193 = vand.u32 2147483647, %v886
        %vm1194 = vcmp.eq.f32.partialorder %v1193, 8.507059e+37
        %v1195 = vand.u32 %v886, 2147483648
        %v1196 = vor.u32 1.1754944e-38, %v1195
        %v1197 = vsel %vm1194, %v1196, %v1192
        %v1198 = vmul.f32 %v758, %v1197
        %v1199 = vrcp.pop %v887
        %v1200 = vmul.f32 %v887, %v1199
        %v1201 = vsub.f32 1.0, %v1200
        %v1202 = vmul.f32 %v1199, %v1201
        %v1203 = vadd.f32 %v1199, %v1202
        %vm1204 = vweird.f32 %v887
        %vm1205 = vweird.f32 %v1199
        %vm1206 = vmor %vm1204, %vm1205
        %v1207 = vsel %vm1206, %v1199, %v1203
        %v1208 = vand.u32 2147483647, %v887
        %vm1209 = vcmp.eq.f32.partialorder %v1208, 8.507059e+37
        %v1210 = vand.u32 %v887, 2147483648
        %v1211 = vor.u32 1.1754944e-38, %v1210
        %v1212 = vsel %vm1209, %v1211, %v1207
        %v1213 = vmul.f32 %v759, %v1212
        %v1214 = vrcp.pop %v888
        %v1215 = vmul.f32 %v888, %v1214
        %v1216 = vsub.f32 1.0, %v1215
        %v1217 = vmul.f32 %v1214, %v1216
        %v1218 = vadd.f32 %v1214, %v1217
        %vm1219 = vweird.f32 %v888
        %vm1220 = vweird.f32 %v1214
        %vm1221 = vmor %vm1219, %vm1220
        %v1222 = vsel %vm1221, %v1214, %v1218
        %v1223 = vand.u32 2147483647, %v888
        %vm1224 = vcmp.eq.f32.partialorder %v1223, 8.507059e+37
        %v1225 = vand.u32 %v888, 2147483648
        %v1226 = vor.u32 1.1754944e-38, %v1225
        %v1227 = vsel %vm1224, %v1226, %v1222
        %v1228 = vmul.f32 %v760, %v1227
        %v1229 = vrcp.pop %v889
        %v1230 = vmul.f32 %v889, %v1229
        %v1231 = vsub.f32 1.0, %v1230
        %v1232 = vmul.f32 %v1229, %v1231
        %v1233 = vadd.f32 %v1229, %v1232
        %vm1234 = vweird.f32 %v889
        %vm1235 = vweird.f32 %v1229
        %vm1236 = vmor %vm1234, %vm1235
        %v1237 = vsel %vm1236, %v1229, %v1233
        %v1238 = vand.u32 2147483647, %v889
        %vm1239 = vcmp.eq.f32.partialorder %v1238, 8.507059e+37
        %v1240 = vand.u32 %v889, 2147483648
        %v1241 = vor.u32 1.1754944e-38, %v1240
        %v1242 = vsel %vm1239, %v1241, %v1237
        %v1243 = vmul.f32 %v761, %v1242
        %v1244 = vrcp.pop %v890
        %v1245 = vmul.f32 %v890, %v1244
        %v1246 = vsub.f32 1.0, %v1245
        %v1247 = vmul.f32 %v1244, %v1246
        %v1248 = vadd.f32 %v1244, %v1247
        %vm1249 = vweird.f32 %v890
        %vm1250 = vweird.f32 %v1244
        %vm1251 = vmor %vm1249, %vm1250
        %v1252 = vsel %vm1251, %v1244, %v1248
        %v1253 = vand.u32 2147483647, %v890
        %vm1254 = vcmp.eq.f32.partialorder %v1253, 8.507059e+37
        %v1255 = vand.u32 %v890, 2147483648
        %v1256 = vor.u32 1.1754944e-38, %v1255
        %v1257 = vsel %vm1254, %v1256, %v1252
        %v1258 = vmul.f32 %v762, %v1257
        %v1259 = vrcp.pop %v891
        %v1260 = vmul.f32 %v891, %v1259
        %v1261 = vsub.f32 1.0, %v1260
        %v1262 = vmul.f32 %v1259, %v1261
        %v1263 = vadd.f32 %v1259, %v1262
        %vm1264 = vweird.f32 %v891
        %vm1265 = vweird.f32 %v1259
        %vm1266 = vmor %vm1264, %vm1265
        %v1267 = vsel %vm1266, %v1259, %v1263
        %v1268 = vand.u32 2147483647, %v891
        %vm1269 = vcmp.eq.f32.partialorder %v1268, 8.507059e+37
        %v1270 = vand.u32 %v891, 2147483648
        %v1271 = vor.u32 1.1754944e-38, %v1270
        %v1272 = vsel %vm1269, %v1271, %v1267
        %v1273 = vmul.f32 %v763, %v1272
        %v1274 = vrcp.pop %v892
        %v1275 = vmul.f32 %v892, %v1274
        %v1276 = vsub.f32 1.0, %v1275
        %v1277 = vmul.f32 %v1274, %v1276
        %v1278 = vadd.f32 %v1274, %v1277
        %vm1279 = vweird.f32 %v892
        %vm1280 = vweird.f32 %v1274
        %vm1281 = vmor %vm1279, %vm1280
        %v1282 = vsel %vm1281, %v1274, %v1278
        %v1283 = vand.u32 2147483647, %v892
        %vm1284 = vcmp.eq.f32.partialorder %v1283, 8.507059e+37
        %v1285 = vand.u32 %v892, 2147483648
        %v1286 = vor.u32 1.1754944e-38, %v1285
        %v1287 = vsel %vm1284, %v1286, %v1282
        %v1288 = vmul.f32 %v764, %v1287
        %v1289 = vrcp.pop %v893
        %v1290 = vmul.f32 %v893, %v1289
        %v1291 = vsub.f32 1.0, %v1290
        %v1292 = vmul.f32 %v1289, %v1291
        %v1293 = vadd.f32 %v1289, %v1292
        %vm1294 = vweird.f32 %v893
        %vm1295 = vweird.f32 %v1289
        %vm1296 = vmor %vm1294, %vm1295
        %v1297 = vsel %vm1296, %v1289, %v1293
        %v1298 = vand.u32 2147483647, %v893
        %vm1299 = vcmp.eq.f32.partialorder %v1298, 8.507059e+37
        %v1300 = vand.u32 %v893, 2147483648
        %v1301 = vor.u32 1.1754944e-38, %v1300
        %v1302 = vsel %vm1299, %v1301, %v1297
        %v1303 = vmul.f32 %v765, %v1302
        %v1304 = vrcp.pop %v894
        %v1305 = vmul.f32 %v894, %v1304
        %v1306 = vsub.f32 1.0, %v1305
        %v1307 = vmul.f32 %v1304, %v1306
        %v1308 = vadd.f32 %v1304, %v1307
        %vm1309 = vweird.f32 %v894
        %vm1310 = vweird.f32 %v1304
        %vm1311 = vmor %vm1309, %vm1310
        %v1312 = vsel %vm1311, %v1304, %v1308
        %v1313 = vand.u32 2147483647, %v894
        %vm1314 = vcmp.eq.f32.partialorder %v1313, 8.507059e+37
        %v1315 = vand.u32 %v894, 2147483648
        %v1316 = vor.u32 1.1754944e-38, %v1315
        %v1317 = vsel %vm1314, %v1316, %v1312
        %v1318 = vmul.f32 %v766, %v1317
        %v1319 = vrcp.pop %v895
        %v1320 = vmul.f32 %v895, %v1319
        %v1321 = vsub.f32 1.0, %v1320
        %v1322 = vmul.f32 %v1319, %v1321
        %v1323 = vadd.f32 %v1319, %v1322
        %vm1324 = vweird.f32 %v895
        %vm1325 = vweird.f32 %v1319
        %vm1326 = vmor %vm1324, %vm1325
        %v1327 = vsel %vm1326, %v1319, %v1323
        %v1328 = vand.u32 2147483647, %v895
        %vm1329 = vcmp.eq.f32.partialorder %v1328, 8.507059e+37
        %v1330 = vand.u32 %v895, 2147483648
        %v1331 = vor.u32 1.1754944e-38, %v1330
        %v1332 = vsel %vm1329, %v1331, %v1327
        %v1333 = vmul.f32 %v767, %v1332
        %v1334 = vrcp.pop %v896
        %v1335 = vmul.f32 %v896, %v1334
        %v1336 = vsub.f32 1.0, %v1335
        %v1337 = vmul.f32 %v1334, %v1336
        %v1338 = vadd.f32 %v1334, %v1337
        %vm1339 = vweird.f32 %v896
        %vm1340 = vweird.f32 %v1334
        %vm1341 = vmor %vm1339, %vm1340
        %v1342 = vsel %vm1341, %v1334, %v1338
        %v1343 = vand.u32 2147483647, %v896
        %vm1344 = vcmp.eq.f32.partialorder %v1343, 8.507059e+37
        %v1345 = vand.u32 %v896, 2147483648
        %v1346 = vor.u32 1.1754944e-38, %v1345
        %v1347 = vsel %vm1344, %v1346, %v1342
        %v1348 = vmul.f32 %v768, %v1347
        %v1349 = vrcp.pop %v897
        %v1350 = vmul.f32 %v897, %v1349
        %v1351 = vsub.f32 1.0, %v1350
        %v1352 = vmul.f32 %v1349, %v1351
        %v1353 = vadd.f32 %v1349, %v1352
        %vm1354 = vweird.f32 %v897
        %vm1355 = vweird.f32 %v1349
        %vm1356 = vmor %vm1354, %vm1355
        %v1357 = vsel %vm1356, %v1349, %v1353
        %v1358 = vand.u32 2147483647, %v897
        %vm1359 = vcmp.eq.f32.partialorder %v1358, 8.507059e+37
        %v1360 = vand.u32 %v897, 2147483648
        %v1361 = vor.u32 1.1754944e-38, %v1360
        %v1362 = vsel %vm1359, %v1361, %v1357
        %v1363 = vmul.f32 %v769, %v1362
        %v1364 = vrcp.pop %v898
        %v1365 = vmul.f32 %v898, %v1364
        %v1366 = vsub.f32 1.0, %v1365
        %v1367 = vmul.f32 %v1364, %v1366
        %v1368 = vadd.f32 %v1364, %v1367
        %vm1369 = vweird.f32 %v898
        %vm1370 = vweird.f32 %v1364
        %vm1371 = vmor %vm1369, %vm1370
        %v1372 = vsel %vm1371, %v1364, %v1368
        %v1373 = vand.u32 2147483647, %v898
        %vm1374 = vcmp.eq.f32.partialorder %v1373, 8.507059e+37
        %v1375 = vand.u32 %v898, 2147483648
        %v1376 = vor.u32 1.1754944e-38, %v1375
        %v1377 = vsel %vm1374, %v1376, %v1372
        %v1378 = vmul.f32 %v770, %v1377
        %vm1379 = vcmask 261120
        %1380 = vst.msk [vmem:[%s234] sm:$0xff] %vm1379, %v913
        %1381 = vst.msk [vmem:[%s234 + $0x8] sm:$0xff] %vm1379, %v928
        %1382 = vst.msk [vmem:[%s234 + $0x10] sm:$0xff] %vm1379, %v943
        %1383 = vst.msk [vmem:[%s234 + $0x18] sm:$0xff] %vm1379, %v958
        %1384 = vst.msk [vmem:[%s234 + $0x20] sm:$0xff] %vm1379, %v973
        %1385 = vst.msk [vmem:[%s234 + $0x28] sm:$0xff] %vm1379, %v988
        %1386 = vst.msk [vmem:[%s234 + $0x30] sm:$0xff] %vm1379, %v1003
        %1387 = vst.msk [vmem:[%s234 + $0x38] sm:$0xff] %vm1379, %v1018
        %1388 = vst.msk [vmem:[%s234 + $0x40] sm:$0xff] %vm1379, %v1033
        %1389 = vst.msk [vmem:[%s234 + $0x48] sm:$0xff] %vm1379, %v1048
        %1390 = vst.msk [vmem:[%s234 + $0x50] sm:$0xff] %vm1379, %v1063
        %1391 = vst.msk [vmem:[%s234 + $0x58] sm:$0xff] %vm1379, %v1078
        %1392 = vst.msk [vmem:[%s234 + $0x60] sm:$0xff] %vm1379, %v1093
        %1393 = vst.msk [vmem:[%s234 + $0x68] sm:$0xff] %vm1379, %v1108
        %1394 = vst.msk [vmem:[%s234 + $0x70] sm:$0xff] %vm1379, %v1123
        %1395 = vst.msk [vmem:[%s234 + $0x78] sm:$0xff] %vm1379, %v1138
        %1396 = vst.msk [vmem:[%s234 + $0x80] sm:$0xff] %vm1379, %v1153
        %1397 = vst.msk [vmem:[%s234 + $0x88] sm:$0xff] %vm1379, %v1168
        %1398 = vst.msk [vmem:[%s234 + $0x90] sm:$0xff] %vm1379, %v1183
        %1399 = vst.msk [vmem:[%s234 + $0x98] sm:$0xff] %vm1379, %v1198
        %1400 = vst.msk [vmem:[%s234 + $0xa0] sm:$0xff] %vm1379, %v1213
        %1401 = vst.msk [vmem:[%s234 + $0xa8] sm:$0xff] %vm1379, %v1228
        %1402 = vst.msk [vmem:[%s234 + $0xb0] sm:$0xff] %vm1379, %v1243
        %1403 = vst.msk [vmem:[%s234 + $0xb8] sm:$0xff] %vm1379, %v1258
        %1404 = vst.msk [vmem:[%s234 + $0xc0] sm:$0xff] %vm1379, %v1273
        %1405 = vst.msk [vmem:[%s234 + $0xc8] sm:$0xff] %vm1379, %v1288
        %1406 = vst.msk [vmem:[%s234 + $0xd0] sm:$0xff] %vm1379, %v1303
        %1407 = vst.msk [vmem:[%s234 + $0xd8] sm:$0xff] %vm1379, %v1318
        %1408 = vst.msk [vmem:[%s234 + $0xe0] sm:$0xff] %vm1379, %v1333
        %1409 = vst.msk [vmem:[%s234 + $0xe8] sm:$0xff] %vm1379, %v1348
        %1410 = vst.msk [vmem:[%s234 + $0xf0] sm:$0xff] %vm1379, %v1363
        %1411 = vst.msk [vmem:[%s234 + $0xf8] sm:$0xff] %vm1379, %v1378
        %s1412 = sand.u32 %s142, 1
        %s1413 = scalar_lea.sflag [#allocation3], %s1412
        %s1414 = sand.u32 %s142, 1
        %s1415 = smul.addr %s1414, 256
        %s1416 = scalar_lea.vmem [#allocation2], %s1415
        // Predicated region
        $region41: #{csp_stage_forward.9} parent=39 // pred_check
          %p1417 = pneg %p152
        $region42: #{csp_stage_forward.9} parent=39 // pred_check_branch
          %1419 = sbr.rel (%p1417) target = $region44
        $region43: #{csp_stage_forward.9} parent=39 // pred_region
          %s1420 = smul.u32 32, %s19
          %1422 = vsyncadd %s1413, 0
          %s1423 = smul.addr %s1420, 8
          %s1424 = scalar_lea.hbm %s5, %s1423
          %s1425 = sshll.u32 %s1416, 4
          %s1426 = int_to_ptr.vmem [resolvable:$true] %s1425
          %s1427 = sshll.u32 %s1424, 4
          %s1428 = int_to_ptr.hbm [resolvable:$true] %s1427
          %1433 = dma.vmem_to_hbm [thread:$0]  %s1426, 4096, %s1428, %s1413, 128, 128, 8
        $region44: #{csp_stage_forward.9} parent=39 // pred_fallthru
          _
      $region40: #{csp_stage_forward.9} parent=5 // pred_fallthru
        _
      %p1434 = scmp.le.s32.totalorder 2, %s14
      // Predicated region
      $region45: #{csp_stage_forward.9} parent=5 // pred_check
        %p1435 = pneg %p1434
      $region46: #{csp_stage_forward.9} parent=5 // pred_check_branch
        %1437 = sbr.rel (%p1435) target = $region48
      $region47: #{csp_stage_forward.9} parent=5 // pred_region
        %s1438 = ssub.s32 %s14, 2
        // Predicated region
        $region49: #{csp_stage_forward.9} parent=47 // pred_check
          %p1439 = pneg %p158
        $region50: #{csp_stage_forward.9} parent=47 // pred_check_branch
          %1441 = sbr.rel (%p1439) target = $region52
        $region51: #{csp_stage_forward.9} parent=47 // pred_region
          %s1442 = sand.u32 %s143, 1
          %s1443 = scalar_lea.sflag [#allocation3], %s1442
          %s1444 = sand.u32 %s143, 1
          %s1445 = smul.addr %s1444, 256
          %s1446 = scalar_lea.vmem [#allocation2], %s1445
          %1448 = dma.done %s1443, 4096
        $region52: #{csp_stage_forward.9} parent=47 // pred_fallthru
          _
      $region48: #{csp_stage_forward.9} parent=5 // pred_fallthru
        _
    $region6: #{csp_stage_forward.9} parent=1 // loop_footer
      %s18 = sadd.s32 1, %s14
    $region7: #{csp_stage_forward.9} parent=1 // loop_footer_branch
      %13 = sbr.rel target = $region3
    $region8: #{csp_stage_forward.9} parent=1 // loop_exit
      _
    %1449 = vsyncpa [#allocation3], 1
    %s1450 = scalar_lea.sflag [#allocation3], 1
    %1451 = vsyncpa %s1450, 1

// kernel: csp_stage_forward.5
$region0: #{csp_stage_forward.5}
  #allocation0 [shape = 'u32[]', space=smem, size = 0x4, offset = 0x4, fixed_abs, tag = 'smem constant byte address 0x4 - core index']
  #allocation1 [shape = 'u32[72,128]{1,0:T(1,128)}', space=vmem, size = 0x9000, scoped, tag = 'internal scratch']
  %s0 = inlined_call_operand.vmem [shape: f32[512,32], index: 0, kind: input, shape index: {}]
  %s1 = inlined_call_operand.vmem [shape: f32[32,16], index: 1, kind: input, shape index: {}]
  %s2 = inlined_call_operand.vmem [shape: f32[1,16], index: 2, kind: input, shape index: {}]
  %s3 = inlined_call_operand.vmem [shape: f32[512,16], index: 3, kind: output, shape index: {}]
  %s4 = sld [smem:[#allocation0]]
  $region45: #{csp_stage_forward.5} parent=0
    _
  %s6 = ssub.s32 1, %s4
  %s7 = scalar_select 0, %s6, %s4
  loop: start=0, step=1, limit=4
  $region2: #{csp_stage_forward.5} parent=0 // loop_pre_header
    _
  $region3: #{csp_stage_forward.5} parent=0 // loop_header
    %s9 = sphi 0, %s13
    %p10 = scmp.ge.s32.totalorder %s9, 4
    %s19 = sphi 0, %s21
    %s22 = sphi 0, %s19
    %s23 = sphi 0, %s22
    %s39 = sphi 0, %s23
    %s43 = sphi 0, %s43
    %s45 = sphi 0, %s43
    %s46 = sphi 0, %s45
    %s60 = sphi 0, %s46
    %s64 = sphi 0, %s64
    %s66 = sphi 0, %s64
    %s67 = sphi 0, %s66
    %s81 = sphi 0, %s67
    %s87 = sphi 0, %s89
    %s90 = sphi 0, %s87
    %s91 = sphi 0, %s90
    %s107 = sphi 0, %s91
  $region4: #{csp_stage_forward.5} parent=0 // loop_header_branch
    %12 = sbr.rel (%p10) target = $region8
  $region5: #{csp_stage_forward.5} parent=0 // loop_body
    %s14 = ssub.s32 %s9, 1
    %s15 = ssub.s32 %s9, 2
    %s16 = sadd.s32 %s9, 1
    %s17 = ssub.s32 %s9, %s16
    %p18 = scmp.eq.s32.totalorder %s17, 0
    %s20 = sadd.s32 %s19, 1
    %s21 = scalar_select %p18, %s19, %s20
    %p24 = pneg %p18
    %p25 = scmp.eq.s32.totalorder %s9, 1
    %p26 = por %p24, %p25
    %p27 = scmp.ne.s32.totalorder %s19, %s22
    %p28 = scmp.eq.s32.totalorder %s9, 0
    %p29 = por %p27, %p28
    %p30 = scmp.ne.s32.totalorder %s19, %s22
    %p31 = scmp.eq.s32.totalorder %s14, 1
    %p32 = por %p30, %p31
    %p33 = scmp.ne.s32.totalorder %s22, %s23
    %p34 = scmp.eq.s32.totalorder %s14, 0
    %p35 = por %p33, %p34
    %p36 = scmp.ne.s32.totalorder %s22, %s23
    %p37 = scmp.eq.s32.totalorder %s15, 1
    %p38 = por %p36, %p37
    %p40 = scmp.ne.s32.totalorder %s23, %s39
    %p41 = scmp.eq.s32.totalorder %s15, 0
    %p42 = por %p40, %p41
    %s44 = sadd.s32 %s43, 1
    %p47 = scmp.eq.s32.totalorder %s9, 1
    %p48 = scmp.ne.s32.totalorder %s43, %s45
    %p49 = scmp.eq.s32.totalorder %s9, 0
    %p50 = por %p48, %p49
    %p51 = scmp.ne.s32.totalorder %s43, %s45
    %p52 = scmp.eq.s32.totalorder %s14, 1
    %p53 = por %p51, %p52
    %p54 = scmp.ne.s32.totalorder %s45, %s46
    %p55 = scmp.eq.s32.totalorder %s14, 0
    %p56 = por %p54, %p55
    %p57 = scmp.ne.s32.totalorder %s45, %s46
    %p58 = scmp.eq.s32.totalorder %s15, 1
    %p59 = por %p57, %p58
    %p61 = scmp.ne.s32.totalorder %s46, %s60
    %p62 = scmp.eq.s32.totalorder %s15, 0
    %p63 = por %p61, %p62
    %s65 = sadd.s32 %s64, 1
    %p68 = scmp.eq.s32.totalorder %s9, 1
    %p69 = scmp.ne.s32.totalorder %s64, %s66
    %p70 = scmp.eq.s32.totalorder %s9, 0
    %p71 = por %p69, %p70
    %p72 = scmp.ne.s32.totalorder %s64, %s66
    %p73 = scmp.eq.s32.totalorder %s14, 1
    %p74 = por %p72, %p73
    %p75 = scmp.ne.s32.totalorder %s66, %s67
    %p76 = scmp.eq.s32.totalorder %s14, 0
    %p77 = por %p75, %p76
    %p78 = scmp.ne.s32.totalorder %s66, %s67
    %p79 = scmp.eq.s32.totalorder %s15, 1
    %p80 = por %p78, %p79
    %p82 = scmp.ne.s32.totalorder %s67, %s81
    %p83 = scmp.eq.s32.totalorder %s15, 0
    %p84 = por %p82, %p83
    %s85 = ssub.s32 %s9, %s16
    %p86 = scmp.eq.s32.totalorder %s85, 0
    %s88 = sadd.s32 %s87, 1
    %s89 = scalar_select %p86, %s87, %s88
    %p92 = pneg %p86
    %p93 = scmp.eq.s32.totalorder %s9, 1
    %p94 = por %p92, %p93
    %p95 = scmp.ne.s32.totalorder %s87, %s90
    %p96 = scmp.eq.s32.totalorder %s9, 0
    %p97 = por %p95, %p96
    %p98 = scmp.ne.s32.totalorder %s87, %s90
    %p99 = scmp.eq.s32.totalorder %s14, 1
    %p100 = por %p98, %p99
    %p101 = scmp.ne.s32.totalorder %s90, %s91
    %p102 = scmp.eq.s32.totalorder %s14, 0
    %p103 = por %p101, %p102
    %p104 = scmp.ne.s32.totalorder %s90, %s91
    %p105 = scmp.eq.s32.totalorder %s15, 1
    %p106 = por %p104, %p105
    %p108 = scmp.ne.s32.totalorder %s91, %s107
    %p109 = scmp.eq.s32.totalorder %s15, 0
    %p110 = por %p108, %p109
    %p111 = scmp.le.s32.totalorder 1, %s9
    %p112 = scmp.lt.s32.totalorder %s9, 3
    %p113 = pnand %p111, %p112
    %p114 = pneg %p113
    // Predicated region
    $region9: #{csp_stage_forward.5} parent=5 // pred_check
      _
    $region10: #{csp_stage_forward.5} parent=5 // pred_check_branch
      %116 = sbr.rel (%p113) target = $region12
    $region11: #{csp_stage_forward.5} parent=5 // pred_region
      %s117 = ssub.s32 %s9, 1
      // Predicated region
      $region13: #{csp_stage_forward.5} parent=11 // pred_check
        %p118 = pneg %p56
      $region14: #{csp_stage_forward.5} parent=11 // pred_check_branch
        %120 = sbr.rel (%p118) target = $region16
      $region15: #{csp_stage_forward.5} parent=11 // pred_region
        _
      $region16: #{csp_stage_forward.5} parent=11 // pred_fallthru
        _
      // Predicated region
      $region17: #{csp_stage_forward.5} parent=11 // pred_check
        %p121 = pneg %p77
      $region18: #{csp_stage_forward.5} parent=11 // pred_check_branch
        %123 = sbr.rel (%p121) target = $region20
      $region19: #{csp_stage_forward.5} parent=11 // pred_region
        _
      $region20: #{csp_stage_forward.5} parent=11 // pred_fallthru
        _
    $region12: #{csp_stage_forward.5} parent=5 // pred_fallthru
      _
    %p124 = scmp.lt.s32.totalorder %s9, 2
    // Predicated region
    $region21: #{csp_stage_forward.5} parent=5 // pred_check
      %p125 = pneg %p124
    $region22: #{csp_stage_forward.5} parent=5 // pred_check_branch
      %127 = sbr.rel (%p125) target = $region24
    $region23: #{csp_stage_forward.5} parent=5 // pred_region
      // Predicated region
      $region25: #{csp_stage_forward.5} parent=23 // pred_check
        %p128 = pneg %p29
      $region26: #{csp_stage_forward.5} parent=23 // pred_check_branch
        %130 = sbr.rel (%p128) target = $region28
      $region27: #{csp_stage_forward.5} parent=23 // pred_region
        %s131 = smul.u32 32, %s9
        %p132 = scmp.lt.s32.totalorder %s131, 63
        %s133 = scalar_select %p132, %s131, 63
        %s134 = smul.addr %s133, 8
        %s135 = scalar_lea.vmem %s0, %s134
        %s136 = smul.u32 32, %s9
      $region28: #{csp_stage_forward.5} parent=23 // pred_fallthru
        _
    $region24: #{csp_stage_forward.5} parent=5 // pred_fallthru
      _
    %p137 = scmp.le.s32.totalorder 1, %s9
    %p138 = scmp.lt.s32.totalorder %s9, 3
    %p139 = pnand %p137, %p138
    %p140 = pneg %p139
    // Predicated region
    $region29: #{csp_stage_forward.5} parent=5 // pred_check
      _
    $region30: #{csp_stage_forward.5} parent=5 // pred_check_branch
      %142 = sbr.rel (%p139) target = $region32
    $region31: #{csp_stage_forward.5} parent=5 // pred_region
      %s143 = ssub.s32 %s9, 1
      %s144 = smul.u32 32, %s14
      %p145 = scmp.lt.s32.totalorder %s144, 63
      %s146 = scalar_select %p145, %s144, 63
      %s147 = smul.addr %s146, 8
      %s148 = scalar_lea.vmem %s0, %s147
      %p149 = pneg %p35
      %p150 = pneg %p32
      %p151 = pneg %p56
      %p152 = pneg %p53
      %p153 = pneg %p77
      %p154 = pneg %p74
      %p155 = pneg %p103
      %p156 = pneg %p100
      %s157 = smul.u32 32, %s14
      %p158 = scmp.lt.s32.totalorder %s157, 63
      %s159 = scalar_select %p158, %s157, 63
      %s160 = smul.addr %s159, 8
      %s161 = scalar_lea.vmem %s3, %s160
      %s162 = smul.u32 32, %s14
      %p163 = scmp.lt.s32.totalorder %s162, 63
      %s164 = scalar_select %p163, %s162, 63
      %s165 = smul.addr %s164, 8
      %s166 = scalar_lea.vmem %s0, %s165
      %s167 = smul.u32 32, %s14
      %s168 = smul.u32 32, %s14
      %p169 = scmp.lt.s32.totalorder %s168, 63
      %s170 = scalar_select %p169, %s168, 63
      %s171 = smul.addr %s170, 8
      %s172 = scalar_lea.vmem %s3, %s171
      %s173 = smul.u32 32, %s14
      %v174 = vld [vmem:[%s166] sm:$0xff]
      %v175 = vld [vmem:[%s166 + $0x8] sm:$0xff]
      %v176 = vld [vmem:[%s166 + $0x10] sm:$0xff]
      %v177 = vld [vmem:[%s166 + $0x18] sm:$0xff]
      %v178 = vld [vmem:[%s166 + $0x20] sm:$0xff]
      %v179 = vld [vmem:[%s166 + $0x28] sm:$0xff]
      %v180 = vld [vmem:[%s166 + $0x30] sm:$0xff]
      %v181 = vld [vmem:[%s166 + $0x38] sm:$0xff]
      %v182 = vld [vmem:[%s166 + $0x40] sm:$0xff]
      %v183 = vld [vmem:[%s166 + $0x48] sm:$0xff]
      %v184 = vld [vmem:[%s166 + $0x50] sm:$0xff]
      %v185 = vld [vmem:[%s166 + $0x58] sm:$0xff]
      %v186 = vld [vmem:[%s166 + $0x60] sm:$0xff]
      %v187 = vld [vmem:[%s166 + $0x68] sm:$0xff]
      %v188 = vld [vmem:[%s166 + $0x70] sm:$0xff]
      %v189 = vld [vmem:[%s166 + $0x78] sm:$0xff]
      %v190 = vld [vmem:[%s166 + $0x80] sm:$0xff]
      %v191 = vld [vmem:[%s166 + $0x88] sm:$0xff]
      %v192 = vld [vmem:[%s166 + $0x90] sm:$0xff]
      %v193 = vld [vmem:[%s166 + $0x98] sm:$0xff]
      %v194 = vld [vmem:[%s166 + $0xa0] sm:$0xff]
      %v195 = vld [vmem:[%s166 + $0xa8] sm:$0xff]
      %v196 = vld [vmem:[%s166 + $0xb0] sm:$0xff]
      %v197 = vld [vmem:[%s166 + $0xb8] sm:$0xff]
      %v198 = vld [vmem:[%s166 + $0xc0] sm:$0xff]
      %v199 = vld [vmem:[%s166 + $0xc8] sm:$0xff]
      %v200 = vld [vmem:[%s166 + $0xd0] sm:$0xff]
      %v201 = vld [vmem:[%s166 + $0xd8] sm:$0xff]
      %v202 = vld [vmem:[%s166 + $0xe0] sm:$0xff]
      %v203 = vld [vmem:[%s166 + $0xe8] sm:$0xff]
      %v204 = vld [vmem:[%s166 + $0xf0] sm:$0xff]
      %v205 = vld [vmem:[%s166 + $0xf8] sm:$0xff]
      %v206 = vld [vmem:[%s1] sm:$0xff]
      %v207 = vld [vmem:[%s1 + $0x8] sm:$0xff]
      %v208 = vld [vmem:[%s1 + $0x10] sm:$0xff]
      %v209 = vld [vmem:[%s1 + $0x18] sm:$0xff]
      %v210 = vld [vmem:[%s2] sm:$0x1]
      %v212 = vperm.slane %v210, 0
      %vm214 = vcmask 261120
      %v216 = vsel %vm214, %v174, 0
      %v219 = vsel %vm214, %v175, 0
      %v222 = vsel %vm214, %v176, 0
      %v225 = vsel %vm214, %v177, 0
      %v228 = vsel %vm214, %v178, 0
      %v231 = vsel %vm214, %v179, 0
      %v234 = vsel %vm214, %v180, 0
      %v237 = vsel %vm214, %v181, 0
      %v240 = vsel %vm214, %v182, 0
      %v243 = vsel %vm214, %v183, 0
      %v246 = vsel %vm214, %v184, 0
      %v249 = vsel %vm214, %v185, 0
      %v252 = vsel %vm214, %v186, 0
      %v255 = vsel %vm214, %v187, 0
      %v258 = vsel %vm214, %v188, 0
      %v261 = vsel %vm214, %v189, 0
      %v264 = vsel %vm214, %v190, 0
      %v267 = vsel %vm214, %v191, 0
      %v270 = vsel %vm214, %v192, 0
      %v273 = vsel %vm214, %v193, 0
      %v276 = vsel %vm214, %v194, 0
      %v279 = vsel %vm214, %v195, 0
      %v282 = vsel %vm214, %v196, 0
      %v285 = vsel %vm214, %v197, 0
      %v288 = vsel %vm214, %v198, 0
      %v291 = vsel %vm214, %v199, 0
      %v294 = vsel %vm214, %v200, 0
      %v297 = vsel %vm214, %v201, 0
      %v300 = vsel %vm214, %v202, 0
      %v303 = vsel %vm214, %v203, 0
      %v306 = vsel %vm214, %v204, 0
      %v309 = vsel %vm214, %v205, 0
      %311 = vmatpush.msra.mxu0 0.0
      %312 = vmatpush.msra.mxu0 0.0
      %313 = vmatpush.msra.mxu0 0.0
      %314 = vmatpush.msra.mxu0 0.0
      %315 = vmatpush.msra.mxu0 0.0
      %316 = vmatpush.msra.mxu0 0.0
      %317 = vmatpush.msra.mxu0 0.0
      %318 = vmatpush.msra.mxu0 0.0
      %319 = vmatpush.msra.mxu0 0.0
      %320 = vmatpush.msra.mxu0 0.0
      %321 = vmatpush.msra.mxu0 0.0
      %322 = vmatpush.msra.mxu0 0.0
      %323 = vmatpush.msra.mxu0 %v209
      %324 = vmatpush.msra.mxu0 %v208
      %325 = vmatpush.msra.mxu0 %v207
      %326 = vmatpush.msra.mxu0 %v206
      %327 = vmatmul.f32.gmra.mxu0 %v216
      %v328 = vpop.f32.mrf.mxu0
      %v329 = vadd.f32 %v212, %v328
      %330 = vmatmul.f32.gmra.mxu0 %v219
      %v331 = vpop.f32.mrf.mxu0
      %v332 = vadd.f32 %v212, %v331
      %333 = vmatmul.f32.gmra.mxu0 %v222
      %v334 = vpop.f32.mrf.mxu0
      %v335 = vadd.f32 %v212, %v334
      %336 = vmatmul.f32.gmra.mxu0 %v225
      %v337 = vpop.f32.mrf.mxu0
      %v338 = vadd.f32 %v212, %v337
      %339 = vmatmul.f32.gmra.mxu0 %v228
      %v340 = vpop.f32.mrf.mxu0
      %v341 = vadd.f32 %v212, %v340
      %342 = vmatmul.f32.gmra.mxu0 %v231
      %v343 = vpop.f32.mrf.mxu0
      %v344 = vadd.f32 %v212, %v343
      %345 = vmatmul.f32.gmra.mxu0 %v234
      %v346 = vpop.f32.mrf.mxu0
      %v347 = vadd.f32 %v212, %v346
      %348 = vmatmul.f32.gmra.mxu0 %v237
      %v349 = vpop.f32.mrf.mxu0
      %v350 = vadd.f32 %v212, %v349
      %351 = vmatmul.f32.gmra.mxu0 %v240
      %v352 = vpop.f32.mrf.mxu0
      %v353 = vadd.f32 %v212, %v352
      %354 = vmatmul.f32.gmra.mxu0 %v243
      %v355 = vpop.f32.mrf.mxu0
      %v356 = vadd.f32 %v212, %v355
      %357 = vmatmul.f32.gmra.mxu0 %v246
      %v358 = vpop.f32.mrf.mxu0
      %v359 = vadd.f32 %v212, %v358
      %360 = vmatmul.f32.gmra.mxu0 %v249
      %v361 = vpop.f32.mrf.mxu0
      %v362 = vadd.f32 %v212, %v361
      %363 = vmatmul.f32.gmra.mxu0 %v252
      %v364 = vpop.f32.mrf.mxu0
      %v365 = vadd.f32 %v212, %v364
      %366 = vmatmul.f32.gmra.mxu0 %v255
      %v367 = vpop.f32.mrf.mxu0
      %v368 = vadd.f32 %v212, %v367
      %369 = vmatmul.f32.gmra.mxu0 %v258
      %v370 = vpop.f32.mrf.mxu0
      %v371 = vadd.f32 %v212, %v370
      %372 = vmatmul.f32.gmra.mxu0 %v261
      %v373 = vpop.f32.mrf.mxu0
      %v374 = vadd.f32 %v212, %v373
      %375 = vmatmul.f32.gmra.mxu0 %v264
      %v376 = vpop.f32.mrf.mxu0
      %v377 = vadd.f32 %v212, %v376
      %378 = vmatmul.f32.gmra.mxu0 %v267
      %v379 = vpop.f32.mrf.mxu0
      %v380 = vadd.f32 %v212, %v379
      %381 = vmatmul.f32.gmra.mxu0 %v270
      %v382 = vpop.f32.mrf.mxu0
      %v383 = vadd.f32 %v212, %v382
      %384 = vmatmul.f32.gmra.mxu0 %v273
      %v385 = vpop.f32.mrf.mxu0
      %v386 = vadd.f32 %v212, %v385
      %387 = vmatmul.f32.gmra.mxu0 %v276
      %v388 = vpop.f32.mrf.mxu0
      %v389 = vadd.f32 %v212, %v388
      %390 = vmatmul.f32.gmra.mxu0 %v279
      %v391 = vpop.f32.mrf.mxu0
      %v392 = vadd.f32 %v212, %v391
      %393 = vmatmul.f32.gmra.mxu0 %v282
      %v394 = vpop.f32.mrf.mxu0
      %v395 = vadd.f32 %v212, %v394
      %396 = vmatmul.f32.gmra.mxu0 %v285
      %v397 = vpop.f32.mrf.mxu0
      %v398 = vadd.f32 %v212, %v397
      %399 = vmatmul.f32.gmra.mxu0 %v288
      %v400 = vpop.f32.mrf.mxu0
      %v401 = vadd.f32 %v212, %v400
      %402 = vmatmul.f32.gmra.mxu0 %v291
      %v403 = vpop.f32.mrf.mxu0
      %v404 = vadd.f32 %v212, %v403
      %405 = vmatmul.f32.gmra.mxu0 %v294
      %v406 = vpop.f32.mrf.mxu0
      %v407 = vadd.f32 %v212, %v406
      %408 = vmatmul.f32.gmra.mxu0 %v297
      %v409 = vpop.f32.mrf.mxu0
      %v410 = vadd.f32 %v212, %v409
      %411 = vmatmul.f32.gmra.mxu0 %v300
      %v412 = vpop.f32.mrf.mxu0
      %v413 = vadd.f32 %v212, %v412
      %414 = vmatmul.f32.gmra.mxu0 %v303
      %v415 = vpop.f32.mrf.mxu0
      %v416 = vadd.f32 %v212, %v415
      %417 = vmatmul.f32.gmra.mxu0 %v306
      %v418 = vpop.f32.mrf.mxu0
      %v419 = vadd.f32 %v212, %v418
      %420 = vmatmul.f32.gmra.mxu0 %v309
      %v421 = vpop.f32.mrf.mxu0
      %v422 = vadd.f32 %v212, %v421
      %423 = vdwg.mxu0
      %v424 = vsub.f32 0.0, %v329
      %v425 = vsub.f32 0.0, %v332
      %v426 = vsub.f32 0.0, %v335
      %v427 = vsub.f32 0.0, %v338
      %v428 = vsub.f32 0.0, %v341
      %v429 = vsub.f32 0.0, %v344
      %v430 = vsub.f32 0.0, %v347
      %v431 = vsub.f32 0.0, %v350
      %v432 = vsub.f32 0.0, %v353
      %v433 = vsub.f32 0.0, %v356
      %v434 = vsub.f32 0.0, %v359
      %v435 = vsub.f32 0.0, %v362
      %v436 = vsub.f32 0.0, %v365
      %v437 = vsub.f32 0.0, %v368
      %v438 = vsub.f32 0.0, %v371
      %v439 = vsub.f32 0.0, %v374
      %v440 = vsub.f32 0.0, %v377
      %v441 = vsub.f32 0.0, %v380
      %v442 = vsub.f32 0.0, %v383
      %v443 = vsub.f32 0.0, %v386
      %v444 = vsub.f32 0.0, %v389
      %v445 = vsub.f32 0.0, %v392
      %v446 = vsub.f32 0.0, %v395
      %v447 = vsub.f32 0.0, %v398
      %v448 = vsub.f32 0.0, %v401
      %v449 = vsub.f32 0.0, %v404
      %v450 = vsub.f32 0.0, %v407
      %v451 = vsub.f32 0.0, %v410
      %v452 = vsub.f32 0.0, %v413
      %v453 = vsub.f32 0.0, %v416
      %v454 = vsub.f32 0.0, %v419
      %v455 = vsub.f32 0.0, %v422
      %v456 = vmul.f32 %v424, 1.442695
      %v457 = vpow.pop %v456
      %v458 = vmul.f32 %v425, 1.442695
      %v459 = vpow.pop %v458
      %v460 = vmul.f32 %v426, 1.442695
      %v461 = vpow.pop %v460
      %v462 = vmul.f32 %v427, 1.442695
      %v463 = vpow.pop %v462
      %v464 = vmul.f32 %v428, 1.442695
      %v465 = vpow.pop %v464
      %v466 = vmul.f32 %v429, 1.442695
      %v467 = vpow.pop %v466
      %v468 = vmul.f32 %v430, 1.442695
      %v469 = vpow.pop %v468
      %v470 = vmul.f32 %v431, 1.442695
      %v471 = vpow.pop %v470
      %v472 = vmul.f32 %v432, 1.442695
      %v473 = vpow.pop %v472
      %v474 = vmul.f32 %v433, 1.442695
      %v475 = vpow.pop %v474
      %v476 = vmul.f32 %v434, 1.442695
      %v477 = vpow.pop %v476
      %v478 = vmul.f32 %v435, 1.442695
      %v479 = vpow.pop %v478
      %v480 = vmul.f32 %v436, 1.442695
      %v481 = vpow.pop %v480
      %v482 = vmul.f32 %v437, 1.442695
      %v483 = vpow.pop %v482
      %v484 = vmul.f32 %v438, 1.442695
      %v485 = vpow.pop %v484
      %v486 = vmul.f32 %v439, 1.442695
      %v487 = vpow.pop %v486
      %v488 = vmul.f32 %v440, 1.442695
      %v489 = vpow.pop %v488
      %v490 = vmul.f32 %v441, 1.442695
      %v491 = vpow.pop %v490
      %v492 = vmul.f32 %v442, 1.442695
      %v493 = vpow.pop %v492
      %v494 = vmul.f32 %v443, 1.442695
      %v495 = vpow.pop %v494
      %v496 = vmul.f32 %v444, 1.442695
      %v497 = vpow.pop %v496
      %v498 = vmul.f32 %v445, 1.442695
      %v499 = vpow.pop %v498
      %v500 = vmul.f32 %v446, 1.442695
      %v501 = vpow.pop %v500
      %v502 = vmul.f32 %v447, 1.442695
      %v503 = vpow.pop %v502
      %v504 = vmul.f32 %v448, 1.442695
      %v505 = vpow.pop %v504
      %v506 = vmul.f32 %v449, 1.442695
      %v507 = vpow.pop %v506
      %v508 = vmul.f32 %v450, 1.442695
      %v509 = vpow.pop %v508
      %v510 = vmul.f32 %v451, 1.442695
      %v511 = vpow.pop %v510
      %v512 = vmul.f32 %v452, 1.442695
      %v513 = vpow.pop %v512
      %v514 = vmul.f32 %v453, 1.442695
      %v515 = vpow.pop %v514
      %v516 = vmul.f32 %v454, 1.442695
      %v517 = vpow.pop %v516
      %v518 = vmul.f32 %v455, 1.442695
      %v519 = vpow.pop %v518
      %v520 = vadd.f32 %v457, 1.0
      %v521 = vadd.f32 %v459, 1.0
      %v522 = vadd.f32 %v461, 1.0
      %v523 = vadd.f32 %v463, 1.0
      %v524 = vadd.f32 %v465, 1.0
      %v525 = vadd.f32 %v467, 1.0
      %v526 = vadd.f32 %v469, 1.0
      %v527 = vadd.f32 %v471, 1.0
      %v528 = vadd.f32 %v473, 1.0
      %v529 = vadd.f32 %v475, 1.0
      %v530 = vadd.f32 %v477, 1.0
      %v531 = vadd.f32 %v479, 1.0
      %v532 = vadd.f32 %v481, 1.0
      %v533 = vadd.f32 %v483, 1.0
      %v534 = vadd.f32 %v485, 1.0
      %v535 = vadd.f32 %v487, 1.0
      %v536 = vadd.f32 %v489, 1.0
      %v537 = vadd.f32 %v491, 1.0
      %v538 = vadd.f32 %v493, 1.0
      %v539 = vadd.f32 %v495, 1.0
      %v540 = vadd.f32 %v497, 1.0
      %v541 = vadd.f32 %v499, 1.0
      %v542 = vadd.f32 %v501, 1.0
      %v543 = vadd.f32 %v503, 1.0
      %v544 = vadd.f32 %v505, 1.0
      %v545 = vadd.f32 %v507, 1.0
      %v546 = vadd.f32 %v509, 1.0
      %v547 = vadd.f32 %v511, 1.0
      %v548 = vadd.f32 %v513, 1.0
      %v549 = vadd.f32 %v515, 1.0
      %v550 = vadd.f32 %v517, 1.0
      %v551 = vadd.f32 %v519, 1.0
      %v552 = vrcp.pop %v520
      %v553 = vmul.f32 %v520, %v552
      %v554 = vsub.f32 1.0, %v553
      %v555 = vmul.f32 %v552, %v554
      %v556 = vadd.f32 %v552, %v555
      %vm557 = vweird.f32 %v520
      %vm558 = vweird.f32 %v552
      %vm559 = vmor %vm557, %vm558
      %v560 = vsel %vm559, %v552, %v556
      %v561 = vand.u32 2147483647, %v520
      %vm562 = vcmp.eq.f32.partialorder %v561, 8.507059e+37
      %v563 = vand.u32 %v520, 2147483648
      %v564 = vor.u32 1.1754944e-38, %v563
      %v565 = vsel %vm562, %v564, %v560
      %v566 = vmul.f32 %v329, %v565
      %v567 = vrcp.pop %v521
      %v568 = vmul.f32 %v521, %v567
      %v569 = vsub.f32 1.0, %v568
      %v570 = vmul.f32 %v567, %v569
      %v571 = vadd.f32 %v567, %v570
      %vm572 = vweird.f32 %v521
      %vm573 = vweird.f32 %v567
      %vm574 = vmor %vm572, %vm573
      %v575 = vsel %vm574, %v567, %v571
      %v576 = vand.u32 2147483647, %v521
      %vm577 = vcmp.eq.f32.partialorder %v576, 8.507059e+37
      %v578 = vand.u32 %v521, 2147483648
      %v579 = vor.u32 1.1754944e-38, %v578
      %v580 = vsel %vm577, %v579, %v575
      %v581 = vmul.f32 %v332, %v580
      %v582 = vrcp.pop %v522
      %v583 = vmul.f32 %v522, %v582
      %v584 = vsub.f32 1.0, %v583
      %v585 = vmul.f32 %v582, %v584
      %v586 = vadd.f32 %v582, %v585
      %vm587 = vweird.f32 %v522
      %vm588 = vweird.f32 %v582
      %vm589 = vmor %vm587, %vm588
      %v590 = vsel %vm589, %v582, %v586
      %v591 = vand.u32 2147483647, %v522
      %vm592 = vcmp.eq.f32.partialorder %v591, 8.507059e+37
      %v593 = vand.u32 %v522, 2147483648
      %v594 = vor.u32 1.1754944e-38, %v593
      %v595 = vsel %vm592, %v594, %v590
      %v596 = vmul.f32 %v335, %v595
      %v597 = vrcp.pop %v523
      %v598 = vmul.f32 %v523, %v597
      %v599 = vsub.f32 1.0, %v598
      %v600 = vmul.f32 %v597, %v599
      %v601 = vadd.f32 %v597, %v600
      %vm602 = vweird.f32 %v523
      %vm603 = vweird.f32 %v597
      %vm604 = vmor %vm602, %vm603
      %v605 = vsel %vm604, %v597, %v601
      %v606 = vand.u32 2147483647, %v523
      %vm607 = vcmp.eq.f32.partialorder %v606, 8.507059e+37
      %v608 = vand.u32 %v523, 2147483648
      %v609 = vor.u32 1.1754944e-38, %v608
      %v610 = vsel %vm607, %v609, %v605
      %v611 = vmul.f32 %v338, %v610
      %v612 = vrcp.pop %v524
      %v613 = vmul.f32 %v524, %v612
      %v614 = vsub.f32 1.0, %v613
      %v615 = vmul.f32 %v612, %v614
      %v616 = vadd.f32 %v612, %v615
      %vm617 = vweird.f32 %v524
      %vm618 = vweird.f32 %v612
      %vm619 = vmor %vm617, %vm618
      %v620 = vsel %vm619, %v612, %v616
      %v621 = vand.u32 2147483647, %v524
      %vm622 = vcmp.eq.f32.partialorder %v621, 8.507059e+37
      %v623 = vand.u32 %v524, 2147483648
      %v624 = vor.u32 1.1754944e-38, %v623
      %v625 = vsel %vm622, %v624, %v620
      %v626 = vmul.f32 %v341, %v625
      %v627 = vrcp.pop %v525
      %v628 = vmul.f32 %v525, %v627
      %v629 = vsub.f32 1.0, %v628
      %v630 = vmul.f32 %v627, %v629
      %v631 = vadd.f32 %v627, %v630
      %vm632 = vweird.f32 %v525
      %vm633 = vweird.f32 %v627
      %vm634 = vmor %vm632, %vm633
      %v635 = vsel %vm634, %v627, %v631
      %v636 = vand.u32 2147483647, %v525
      %vm637 = vcmp.eq.f32.partialorder %v636, 8.507059e+37
      %v638 = vand.u32 %v525, 2147483648
      %v639 = vor.u32 1.1754944e-38, %v638
      %v640 = vsel %vm637, %v639, %v635
      %v641 = vmul.f32 %v344, %v640
      %v642 = vrcp.pop %v526
      %v643 = vmul.f32 %v526, %v642
      %v644 = vsub.f32 1.0, %v643
      %v645 = vmul.f32 %v642, %v644
      %v646 = vadd.f32 %v642, %v645
      %vm647 = vweird.f32 %v526
      %vm648 = vweird.f32 %v642
      %vm649 = vmor %vm647, %vm648
      %v650 = vsel %vm649, %v642, %v646
      %v651 = vand.u32 2147483647, %v526
      %vm652 = vcmp.eq.f32.partialorder %v651, 8.507059e+37
      %v653 = vand.u32 %v526, 2147483648
      %v654 = vor.u32 1.1754944e-38, %v653
      %v655 = vsel %vm652, %v654, %v650
      %v656 = vmul.f32 %v347, %v655
      %v657 = vrcp.pop %v527
      %v658 = vmul.f32 %v527, %v657
      %v659 = vsub.f32 1.0, %v658
      %v660 = vmul.f32 %v657, %v659
      %v661 = vadd.f32 %v657, %v660
      %vm662 = vweird.f32 %v527
      %vm663 = vweird.f32 %v657
      %vm664 = vmor %vm662, %vm663
      %v665 = vsel %vm664, %v657, %v661
      %v666 = vand.u32 2147483647, %v527
      %vm667 = vcmp.eq.f32.partialorder %v666, 8.507059e+37
      %v668 = vand.u32 %v527, 2147483648
      %v669 = vor.u32 1.1754944e-38, %v668
      %v670 = vsel %vm667, %v669, %v665
      %v671 = vmul.f32 %v350, %v670
      %v672 = vrcp.pop %v528
      %v673 = vmul.f32 %v528, %v672
      %v674 = vsub.f32 1.0, %v673
      %v675 = vmul.f32 %v672, %v674
      %v676 = vadd.f32 %v672, %v675
      %vm677 = vweird.f32 %v528
      %vm678 = vweird.f32 %v672
      %vm679 = vmor %vm677, %vm678
      %v680 = vsel %vm679, %v672, %v676
      %v681 = vand.u32 2147483647, %v528
      %vm682 = vcmp.eq.f32.partialorder %v681, 8.507059e+37
      %v683 = vand.u32 %v528, 2147483648
      %v684 = vor.u32 1.1754944e-38, %v683
      %v685 = vsel %vm682, %v684, %v680
      %v686 = vmul.f32 %v353, %v685
      %v687 = vrcp.pop %v529
      %v688 = vmul.f32 %v529, %v687
      %v689 = vsub.f32 1.0, %v688
      %v690 = vmul.f32 %v687, %v689
      %v691 = vadd.f32 %v687, %v690
      %vm692 = vweird.f32 %v529
      %vm693 = vweird.f32 %v687
      %vm694 = vmor %vm692, %vm693
      %v695 = vsel %vm694, %v687, %v691
      %v696 = vand.u32 2147483647, %v529
      %vm697 = vcmp.eq.f32.partialorder %v696, 8.507059e+37
      %v698 = vand.u32 %v529, 2147483648
      %v699 = vor.u32 1.1754944e-38, %v698
      %v700 = vsel %vm697, %v699, %v695
      %v701 = vmul.f32 %v356, %v700
      %v702 = vrcp.pop %v530
      %v703 = vmul.f32 %v530, %v702
      %v704 = vsub.f32 1.0, %v703
      %v705 = vmul.f32 %v702, %v704
      %v706 = vadd.f32 %v702, %v705
      %vm707 = vweird.f32 %v530
      %vm708 = vweird.f32 %v702
      %vm709 = vmor %vm707, %vm708
      %v710 = vsel %vm709, %v702, %v706
      %v711 = vand.u32 2147483647, %v530
      %vm712 = vcmp.eq.f32.partialorder %v711, 8.507059e+37
      %v713 = vand.u32 %v530, 2147483648
      %v714 = vor.u32 1.1754944e-38, %v713
      %v715 = vsel %vm712, %v714, %v710
      %v716 = vmul.f32 %v359, %v715
      %v717 = vrcp.pop %v531
      %v718 = vmul.f32 %v531, %v717
      %v719 = vsub.f32 1.0, %v718
      %v720 = vmul.f32 %v717, %v719
      %v721 = vadd.f32 %v717, %v720
      %vm722 = vweird.f32 %v531
      %vm723 = vweird.f32 %v717
      %vm724 = vmor %vm722, %vm723
      %v725 = vsel %vm724, %v717, %v721
      %v726 = vand.u32 2147483647, %v531
      %vm727 = vcmp.eq.f32.partialorder %v726, 8.507059e+37
      %v728 = vand.u32 %v531, 2147483648
      %v729 = vor.u32 1.1754944e-38, %v728
      %v730 = vsel %vm727, %v729, %v725
      %v731 = vmul.f32 %v362, %v730
      %v732 = vrcp.pop %v532
      %v733 = vmul.f32 %v532, %v732
      %v734 = vsub.f32 1.0, %v733
      %v735 = vmul.f32 %v732, %v734
      %v736 = vadd.f32 %v732, %v735
      %vm737 = vweird.f32 %v532
      %vm738 = vweird.f32 %v732
      %vm739 = vmor %vm737, %vm738
      %v740 = vsel %vm739, %v732, %v736
      %v741 = vand.u32 2147483647, %v532
      %vm742 = vcmp.eq.f32.partialorder %v741, 8.507059e+37
      %v743 = vand.u32 %v532, 2147483648
      %v744 = vor.u32 1.1754944e-38, %v743
      %v745 = vsel %vm742, %v744, %v740
      %v746 = vmul.f32 %v365, %v745
      %v747 = vrcp.pop %v533
      %v748 = vmul.f32 %v533, %v747
      %v749 = vsub.f32 1.0, %v748
      %v750 = vmul.f32 %v747, %v749
      %v751 = vadd.f32 %v747, %v750
      %vm752 = vweird.f32 %v533
      %vm753 = vweird.f32 %v747
      %vm754 = vmor %vm752, %vm753
      %v755 = vsel %vm754, %v747, %v751
      %v756 = vand.u32 2147483647, %v533
      %vm757 = vcmp.eq.f32.partialorder %v756, 8.507059e+37
      %v758 = vand.u32 %v533, 2147483648
      %v759 = vor.u32 1.1754944e-38, %v758
      %v760 = vsel %vm757, %v759, %v755
      %v761 = vmul.f32 %v368, %v760
      %v762 = vrcp.pop %v534
      %v763 = vmul.f32 %v534, %v762
      %v764 = vsub.f32 1.0, %v763
      %v765 = vmul.f32 %v762, %v764
      %v766 = vadd.f32 %v762, %v765
      %vm767 = vweird.f32 %v534
      %vm768 = vweird.f32 %v762
      %vm769 = vmor %vm767, %vm768
      %v770 = vsel %vm769, %v762, %v766
      %v771 = vand.u32 2147483647, %v534
      %vm772 = vcmp.eq.f32.partialorder %v771, 8.507059e+37
      %v773 = vand.u32 %v534, 2147483648
      %v774 = vor.u32 1.1754944e-38, %v773
      %v775 = vsel %vm772, %v774, %v770
      %v776 = vmul.f32 %v371, %v775
      %v777 = vrcp.pop %v535
      %v778 = vmul.f32 %v535, %v777
      %v779 = vsub.f32 1.0, %v778
      %v780 = vmul.f32 %v777, %v779
      %v781 = vadd.f32 %v777, %v780
      %vm782 = vweird.f32 %v535
      %vm783 = vweird.f32 %v777
      %vm784 = vmor %vm782, %vm783
      %v785 = vsel %vm784, %v777, %v781
      %v786 = vand.u32 2147483647, %v535
      %vm787 = vcmp.eq.f32.partialorder %v786, 8.507059e+37
      %v788 = vand.u32 %v535, 2147483648
      %v789 = vor.u32 1.1754944e-38, %v788
      %v790 = vsel %vm787, %v789, %v785
      %v791 = vmul.f32 %v374, %v790
      %v792 = vrcp.pop %v536
      %v793 = vmul.f32 %v536, %v792
      %v794 = vsub.f32 1.0, %v793
      %v795 = vmul.f32 %v792, %v794
      %v796 = vadd.f32 %v792, %v795
      %vm797 = vweird.f32 %v536
      %vm798 = vweird.f32 %v792
      %vm799 = vmor %vm797, %vm798
      %v800 = vsel %vm799, %v792, %v796
      %v801 = vand.u32 2147483647, %v536
      %vm802 = vcmp.eq.f32.partialorder %v801, 8.507059e+37
      %v803 = vand.u32 %v536, 2147483648
      %v804 = vor.u32 1.1754944e-38, %v803
      %v805 = vsel %vm802, %v804, %v800
      %v806 = vmul.f32 %v377, %v805
      %v807 = vrcp.pop %v537
      %v808 = vmul.f32 %v537, %v807
      %v809 = vsub.f32 1.0, %v808
      %v810 = vmul.f32 %v807, %v809
      %v811 = vadd.f32 %v807, %v810
      %vm812 = vweird.f32 %v537
      %vm813 = vweird.f32 %v807
      %vm814 = vmor %vm812, %vm813
      %v815 = vsel %vm814, %v807, %v811
      %v816 = vand.u32 2147483647, %v537
      %vm817 = vcmp.eq.f32.partialorder %v816, 8.507059e+37
      %v818 = vand.u32 %v537, 2147483648
      %v819 = vor.u32 1.1754944e-38, %v818
      %v820 = vsel %vm817, %v819, %v815
      %v821 = vmul.f32 %v380, %v820
      %v822 = vrcp.pop %v538
      %v823 = vmul.f32 %v538, %v822
      %v824 = vsub.f32 1.0, %v823
      %v825 = vmul.f32 %v822, %v824
      %v826 = vadd.f32 %v822, %v825
      %vm827 = vweird.f32 %v538
      %vm828 = vweird.f32 %v822
      %vm829 = vmor %vm827, %vm828
      %v830 = vsel %vm829, %v822, %v826
      %v831 = vand.u32 2147483647, %v538
      %vm832 = vcmp.eq.f32.partialorder %v831, 8.507059e+37
      %v833 = vand.u32 %v538, 2147483648
      %v834 = vor.u32 1.1754944e-38, %v833
      %v835 = vsel %vm832, %v834, %v830
      %v836 = vmul.f32 %v383, %v835
      %v837 = vrcp.pop %v539
      %v838 = vmul.f32 %v539, %v837
      %v839 = vsub.f32 1.0, %v838
      %v840 = vmul.f32 %v837, %v839
      %v841 = vadd.f32 %v837, %v840
      %vm842 = vweird.f32 %v539
      %vm843 = vweird.f32 %v837
      %vm844 = vmor %vm842, %vm843
      %v845 = vsel %vm844, %v837, %v841
      %v846 = vand.u32 2147483647, %v539
      %vm847 = vcmp.eq.f32.partialorder %v846, 8.507059e+37
      %v848 = vand.u32 %v539, 2147483648
      %v849 = vor.u32 1.1754944e-38, %v848
      %v850 = vsel %vm847, %v849, %v845
      %v851 = vmul.f32 %v386, %v850
      %v852 = vrcp.pop %v540
      %v853 = vmul.f32 %v540, %v852
      %v854 = vsub.f32 1.0, %v853
      %v855 = vmul.f32 %v852, %v854
      %v856 = vadd.f32 %v852, %v855
      %vm857 = vweird.f32 %v540
      %vm858 = vweird.f32 %v852
      %vm859 = vmor %vm857, %vm858
      %v860 = vsel %vm859, %v852, %v856
      %v861 = vand.u32 2147483647, %v540
      %vm862 = vcmp.eq.f32.partialorder %v861, 8.507059e+37
      %v863 = vand.u32 %v540, 2147483648
      %v864 = vor.u32 1.1754944e-38, %v863
      %v865 = vsel %vm862, %v864, %v860
      %v866 = vmul.f32 %v389, %v865
      %v867 = vrcp.pop %v541
      %v868 = vmul.f32 %v541, %v867
      %v869 = vsub.f32 1.0, %v868
      %v870 = vmul.f32 %v867, %v869
      %v871 = vadd.f32 %v867, %v870
      %vm872 = vweird.f32 %v541
      %vm873 = vweird.f32 %v867
      %vm874 = vmor %vm872, %vm873
      %v875 = vsel %vm874, %v867, %v871
      %v876 = vand.u32 2147483647, %v541
      %vm877 = vcmp.eq.f32.partialorder %v876, 8.507059e+37
      %v878 = vand.u32 %v541, 2147483648
      %v879 = vor.u32 1.1754944e-38, %v878
      %v880 = vsel %vm877, %v879, %v875
      %v881 = vmul.f32 %v392, %v880
      %v882 = vrcp.pop %v542
      %v883 = vmul.f32 %v542, %v882
      %v884 = vsub.f32 1.0, %v883
      %v885 = vmul.f32 %v882, %v884
      %v886 = vadd.f32 %v882, %v885
      %vm887 = vweird.f32 %v542
      %vm888 = vweird.f32 %v882
      %vm889 = vmor %vm887, %vm888
      %v890 = vsel %vm889, %v882, %v886
      %v891 = vand.u32 2147483647, %v542
      %vm892 = vcmp.eq.f32.partialorder %v891, 8.507059e+37
      %v893 = vand.u32 %v542, 2147483648
      %v894 = vor.u32 1.1754944e-38, %v893
      %v895 = vsel %vm892, %v894, %v890
      %v896 = vmul.f32 %v395, %v895
      %v897 = vrcp.pop %v543
      %v898 = vmul.f32 %v543, %v897
      %v899 = vsub.f32 1.0, %v898
      %v900 = vmul.f32 %v897, %v899
      %v901 = vadd.f32 %v897, %v900
      %vm902 = vweird.f32 %v543
      %vm903 = vweird.f32 %v897
      %vm904 = vmor %vm902, %vm903
      %v905 = vsel %vm904, %v897, %v901
      %v906 = vand.u32 2147483647, %v543
      %vm907 = vcmp.eq.f32.partialorder %v906, 8.507059e+37
      %v908 = vand.u32 %v543, 2147483648
      %v909 = vor.u32 1.1754944e-38, %v908
      %v910 = vsel %vm907, %v909, %v905
      %v911 = vmul.f32 %v398, %v910
      %v912 = vrcp.pop %v544
      %v913 = vmul.f32 %v544, %v912
      %v914 = vsub.f32 1.0, %v913
      %v915 = vmul.f32 %v912, %v914
      %v916 = vadd.f32 %v912, %v915
      %vm917 = vweird.f32 %v544
      %vm918 = vweird.f32 %v912
      %vm919 = vmor %vm917, %vm918
      %v920 = vsel %vm919, %v912, %v916
      %v921 = vand.u32 2147483647, %v544
      %vm922 = vcmp.eq.f32.partialorder %v921, 8.507059e+37
      %v923 = vand.u32 %v544, 2147483648
      %v924 = vor.u32 1.1754944e-38, %v923
      %v925 = vsel %vm922, %v924, %v920
      %v926 = vmul.f32 %v401, %v925
      %v927 = vrcp.pop %v545
      %v928 = vmul.f32 %v545, %v927
      %v929 = vsub.f32 1.0, %v928
      %v930 = vmul.f32 %v927, %v929
      %v931 = vadd.f32 %v927, %v930
      %vm932 = vweird.f32 %v545
      %vm933 = vweird.f32 %v927
      %vm934 = vmor %vm932, %vm933
      %v935 = vsel %vm934, %v927, %v931
      %v936 = vand.u32 2147483647, %v545
      %vm937 = vcmp.eq.f32.partialorder %v936, 8.507059e+37
      %v938 = vand.u32 %v545, 2147483648
      %v939 = vor.u32 1.1754944e-38, %v938
      %v940 = vsel %vm937, %v939, %v935
      %v941 = vmul.f32 %v404, %v940
      %v942 = vrcp.pop %v546
      %v943 = vmul.f32 %v546, %v942
      %v944 = vsub.f32 1.0, %v943
      %v945 = vmul.f32 %v942, %v944
      %v946 = vadd.f32 %v942, %v945
      %vm947 = vweird.f32 %v546
      %vm948 = vweird.f32 %v942
      %vm949 = vmor %vm947, %vm948
      %v950 = vsel %vm949, %v942, %v946
      %v951 = vand.u32 2147483647, %v546
      %vm952 = vcmp.eq.f32.partialorder %v951, 8.507059e+37
      %v953 = vand.u32 %v546, 2147483648
      %v954 = vor.u32 1.1754944e-38, %v953
      %v955 = vsel %vm952, %v954, %v950
      %v956 = vmul.f32 %v407, %v955
      %v957 = vrcp.pop %v547
      %v958 = vmul.f32 %v547, %v957
      %v959 = vsub.f32 1.0, %v958
      %v960 = vmul.f32 %v957, %v959
      %v961 = vadd.f32 %v957, %v960
      %vm962 = vweird.f32 %v547
      %vm963 = vweird.f32 %v957
      %vm964 = vmor %vm962, %vm963
      %v965 = vsel %vm964, %v957, %v961
      %v966 = vand.u32 2147483647, %v547
      %vm967 = vcmp.eq.f32.partialorder %v966, 8.507059e+37
      %v968 = vand.u32 %v547, 2147483648
      %v969 = vor.u32 1.1754944e-38, %v968
      %v970 = vsel %vm967, %v969, %v965
      %v971 = vmul.f32 %v410, %v970
      %v972 = vrcp.pop %v548
      %v973 = vmul.f32 %v548, %v972
      %v974 = vsub.f32 1.0, %v973
      %v975 = vmul.f32 %v972, %v974
      %v976 = vadd.f32 %v972, %v975
      %vm977 = vweird.f32 %v548
      %vm978 = vweird.f32 %v972
      %vm979 = vmor %vm977, %vm978
      %v980 = vsel %vm979, %v972, %v976
      %v981 = vand.u32 2147483647, %v548
      %vm982 = vcmp.eq.f32.partialorder %v981, 8.507059e+37
      %v983 = vand.u32 %v548, 2147483648
      %v984 = vor.u32 1.1754944e-38, %v983
      %v985 = vsel %vm982, %v984, %v980
      %v986 = vmul.f32 %v413, %v985
      %v987 = vrcp.pop %v549
      %v988 = vmul.f32 %v549, %v987
      %v989 = vsub.f32 1.0, %v988
      %v990 = vmul.f32 %v987, %v989
      %v991 = vadd.f32 %v987, %v990
      %vm992 = vweird.f32 %v549
      %vm993 = vweird.f32 %v987
      %vm994 = vmor %vm992, %vm993
      %v995 = vsel %vm994, %v987, %v991
      %v996 = vand.u32 2147483647, %v549
      %vm997 = vcmp.eq.f32.partialorder %v996, 8.507059e+37
      %v998 = vand.u32 %v549, 2147483648
      %v999 = vor.u32 1.1754944e-38, %v998
      %v1000 = vsel %vm997, %v999, %v995
      %v1001 = vmul.f32 %v416, %v1000
      %v1002 = vrcp.pop %v550
      %v1003 = vmul.f32 %v550, %v1002
      %v1004 = vsub.f32 1.0, %v1003
      %v1005 = vmul.f32 %v1002, %v1004
      %v1006 = vadd.f32 %v1002, %v1005
      %vm1007 = vweird.f32 %v550
      %vm1008 = vweird.f32 %v1002
      %vm1009 = vmor %vm1007, %vm1008
      %v1010 = vsel %vm1009, %v1002, %v1006
      %v1011 = vand.u32 2147483647, %v550
      %vm1012 = vcmp.eq.f32.partialorder %v1011, 8.507059e+37
      %v1013 = vand.u32 %v550, 2147483648
      %v1014 = vor.u32 1.1754944e-38, %v1013
      %v1015 = vsel %vm1012, %v1014, %v1010
      %v1016 = vmul.f32 %v419, %v1015
      %v1017 = vrcp.pop %v551
      %v1018 = vmul.f32 %v551, %v1017
      %v1019 = vsub.f32 1.0, %v1018
      %v1020 = vmul.f32 %v1017, %v1019
      %v1021 = vadd.f32 %v1017, %v1020
      %vm1022 = vweird.f32 %v551
      %vm1023 = vweird.f32 %v1017
      %vm1024 = vmor %vm1022, %vm1023
      %v1025 = vsel %vm1024, %v1017, %v1021
      %v1026 = vand.u32 2147483647, %v551
      %vm1027 = vcmp.eq.f32.partialorder %v1026, 8.507059e+37
      %v1028 = vand.u32 %v551, 2147483648
      %v1029 = vor.u32 1.1754944e-38, %v1028
      %v1030 = vsel %vm1027, %v1029, %v1025
      %v1031 = vmul.f32 %v422, %v1030
      %vm1032 = vcmask 130048
      %1033 = vst.msk [vmem:[%s172] sm:$0xff] %vm1032, %v566
      %1034 = vst.msk [vmem:[%s172 + $0x8] sm:$0xff] %vm1032, %v581
      %1035 = vst.msk [vmem:[%s172 + $0x10] sm:$0xff] %vm1032, %v596
      %1036 = vst.msk [vmem:[%s172 + $0x18] sm:$0xff] %vm1032, %v611
      %1037 = vst.msk [vmem:[%s172 + $0x20] sm:$0xff] %vm1032, %v626
      %1038 = vst.msk [vmem:[%s172 + $0x28] sm:$0xff] %vm1032, %v641
      %1039 = vst.msk [vmem:[%s172 + $0x30] sm:$0xff] %vm1032, %v656
      %1040 = vst.msk [vmem:[%s172 + $0x38] sm:$0xff] %vm1032, %v671
      %1041 = vst.msk [vmem:[%s172 + $0x40] sm:$0xff] %vm1032, %v686
      %1042 = vst.msk [vmem:[%s172 + $0x48] sm:$0xff] %vm1032, %v701
      %1043 = vst.msk [vmem:[%s172 + $0x50] sm:$0xff] %vm1032, %v716
      %1044 = vst.msk [vmem:[%s172 + $0x58] sm:$0xff] %vm1032, %v731
      %1045 = vst.msk [vmem:[%s172 + $0x60] sm:$0xff] %vm1032, %v746
      %1046 = vst.msk [vmem:[%s172 + $0x68] sm:$0xff] %vm1032, %v761
      %1047 = vst.msk [vmem:[%s172 + $0x70] sm:$0xff] %vm1032, %v776
      %1048 = vst.msk [vmem:[%s172 + $0x78] sm:$0xff] %vm1032, %v791
      %1049 = vst.msk [vmem:[%s172 + $0x80] sm:$0xff] %vm1032, %v806
      %1050 = vst.msk [vmem:[%s172 + $0x88] sm:$0xff] %vm1032, %v821
      %1051 = vst.msk [vmem:[%s172 + $0x90] sm:$0xff] %vm1032, %v836
      %1052 = vst.msk [vmem:[%s172 + $0x98] sm:$0xff] %vm1032, %v851
      %1053 = vst.msk [vmem:[%s172 + $0xa0] sm:$0xff] %vm1032, %v866
      %1054 = vst.msk [vmem:[%s172 + $0xa8] sm:$0xff] %vm1032, %v881
      %1055 = vst.msk [vmem:[%s172 + $0xb0] sm:$0xff] %vm1032, %v896
      %1056 = vst.msk [vmem:[%s172 + $0xb8] sm:$0xff] %vm1032, %v911
      %1057 = vst.msk [vmem:[%s172 + $0xc0] sm:$0xff] %vm1032, %v926
      %1058 = vst.msk [vmem:[%s172 + $0xc8] sm:$0xff] %vm1032, %v941
      %1059 = vst.msk [vmem:[%s172 + $0xd0] sm:$0xff] %vm1032, %v956
      %1060 = vst.msk [vmem:[%s172 + $0xd8] sm:$0xff] %vm1032, %v971
      %1061 = vst.msk [vmem:[%s172 + $0xe0] sm:$0xff] %vm1032, %v986
      %1062 = vst.msk [vmem:[%s172 + $0xe8] sm:$0xff] %vm1032, %v1001
      %1063 = vst.msk [vmem:[%s172 + $0xf0] sm:$0xff] %vm1032, %v1016
      %1064 = vst.msk [vmem:[%s172 + $0xf8] sm:$0xff] %vm1032, %v1031
      %s1065 = smul.u32 32, %s14
      %p1066 = scmp.lt.s32.totalorder %s1065, 63
      %s1067 = scalar_select %p1066, %s1065, 63
      %s1068 = smul.addr %s1067, 8
      %s1069 = scalar_lea.vmem %s3, %s1068
      // Predicated region
      $region33: #{csp_stage_forward.5} parent=31 // pred_check
        %p1070 = pneg %p100
      $region34: #{csp_stage_forward.5} parent=31 // pred_check_branch
        %1072 = sbr.rel (%p1070) target = $region36
      $region35: #{csp_stage_forward.5} parent=31 // pred_region
        %s1073 = smul.u32 32, %s14
      $region36: #{csp_stage_forward.5} parent=31 // pred_fallthru
        _
    $region32: #{csp_stage_forward.5} parent=5 // pred_fallthru
      _
    %p1074 = scmp.le.s32.totalorder 2, %s9
    // Predicated region
    $region37: #{csp_stage_forward.5} parent=5 // pred_check
      %p1075 = pneg %p1074
    $region38: #{csp_stage_forward.5} parent=5 // pred_check_branch
      %1077 = sbr.rel (%p1075) target = $region40
    $region39: #{csp_stage_forward.5} parent=5 // pred_region
      %s1078 = ssub.s32 %s9, 2
      // Predicated region
      $region41: #{csp_stage_forward.5} parent=39 // pred_check
        %p1079 = pneg %p106
      $region42: #{csp_stage_forward.5} parent=39 // pred_check_branch
        %1081 = sbr.rel (%p1079) target = $region44
      $region43: #{csp_stage_forward.5} parent=39 // pred_region
        %s1082 = smul.u32 32, %s15
        %p1083 = scmp.lt.s32.totalorder %s1082, 63
        %s1084 = scalar_select %p1083, %s1082, 63
        %s1085 = smul.addr %s1084, 8
        %s1086 = scalar_lea.vmem %s3, %s1085
      $region44: #{csp_stage_forward.5} parent=39 // pred_fallthru
        _
    $region40: #{csp_stage_forward.5} parent=5 // pred_fallthru
      _
  $region6: #{csp_stage_forward.5} parent=0 // loop_footer
    %s13 = sadd.s32 1, %s9
  $region7: #{csp_stage_forward.5} parent=0 // loop_footer_branch
    %8 = sbr.rel target = $region3
  $region8: #{csp_stage_forward.5} parent=0 // loop_exit
    _

// kernel: csp_stage_forward.7
$region0: #{csp_stage_forward.7}
  #allocation0 [shape = 'u32[]', space=smem, size = 0x4, offset = 0x4, fixed_abs, tag = 'smem constant byte address 0x4 - core index']
  #allocation1 [shape = 'u32[72,128]{1,0:T(1,128)}', space=vmem, size = 0x9000, scoped, tag = 'internal scratch']
  %s0 = inlined_call_operand.vmem [shape: f32[2,18,18,16], index: 0, kind: input, shape index: {}]
  %s1 = inlined_call_operand.vmem [shape: f32[9,16,16], index: 1, kind: input, shape index: {}]
  %s2 = inlined_call_operand.vmem [shape: f32[1,16], index: 2, kind: input, shape index: {}]
  %s3 = inlined_call_operand.vmem [shape: f32[2,256,16], index: 3, kind: output, shape index: {}]
  %s4 = sld [smem:[#allocation0]]
  $region45: #{csp_stage_forward.7} parent=0
    _
  %s6 = ssub.s32 1, %s4
  %s7 = scalar_select 0, %s6, %s4
  loop: start=0, step=1, limit=4
  $region2: #{csp_stage_forward.7} parent=0 // loop_pre_header
    _
  $region3: #{csp_stage_forward.7} parent=0 // loop_header
    %s9 = sphi 0, %s13
    %p10 = scmp.ge.s32.totalorder %s9, 4
    %s19 = sphi 0, %s21
    %s22 = sphi 0, %s19
    %s23 = sphi 0, %s22
    %s39 = sphi 0, %s23
    %s43 = sphi 0, %s43
    %s45 = sphi 0, %s43
    %s46 = sphi 0, %s45
    %s60 = sphi 0, %s46
    %s64 = sphi 0, %s64
    %s66 = sphi 0, %s64
    %s67 = sphi 0, %s66
    %s81 = sphi 0, %s67
    %s87 = sphi 0, %s89
    %s90 = sphi 0, %s87
    %s91 = sphi 0, %s90
    %s107 = sphi 0, %s91
  $region4: #{csp_stage_forward.7} parent=0 // loop_header_branch
    %12 = sbr.rel (%p10) target = $region8
  $region5: #{csp_stage_forward.7} parent=0 // loop_body
    %s14 = ssub.s32 %s9, 1
    %s15 = ssub.s32 %s9, 2
    %s16 = sadd.s32 %s9, 1
    %s17 = ssub.s32 %s9, %s16
    %p18 = scmp.eq.s32.totalorder %s17, 0
    %s20 = sadd.s32 %s19, 1
    %s21 = scalar_select %p18, %s19, %s20
    %p24 = pneg %p18
    %p25 = scmp.eq.s32.totalorder %s9, 1
    %p26 = por %p24, %p25
    %p27 = scmp.ne.s32.totalorder %s19, %s22
    %p28 = scmp.eq.s32.totalorder %s9, 0
    %p29 = por %p27, %p28
    %p30 = scmp.ne.s32.totalorder %s19, %s22
    %p31 = scmp.eq.s32.totalorder %s14, 1
    %p32 = por %p30, %p31
    %p33 = scmp.ne.s32.totalorder %s22, %s23
    %p34 = scmp.eq.s32.totalorder %s14, 0
    %p35 = por %p33, %p34
    %p36 = scmp.ne.s32.totalorder %s22, %s23
    %p37 = scmp.eq.s32.totalorder %s15, 1
    %p38 = por %p36, %p37
    %p40 = scmp.ne.s32.totalorder %s23, %s39
    %p41 = scmp.eq.s32.totalorder %s15, 0
    %p42 = por %p40, %p41
    %s44 = sadd.s32 %s43, 1
    %p47 = scmp.eq.s32.totalorder %s9, 1
    %p48 = scmp.ne.s32.totalorder %s43, %s45
    %p49 = scmp.eq.s32.totalorder %s9, 0
    %p50 = por %p48, %p49
    %p51 = scmp.ne.s32.totalorder %s43, %s45
    %p52 = scmp.eq.s32.totalorder %s14, 1
    %p53 = por %p51, %p52
    %p54 = scmp.ne.s32.totalorder %s45, %s46
    %p55 = scmp.eq.s32.totalorder %s14, 0
    %p56 = por %p54, %p55
    %p57 = scmp.ne.s32.totalorder %s45, %s46
    %p58 = scmp.eq.s32.totalorder %s15, 1
    %p59 = por %p57, %p58
    %p61 = scmp.ne.s32.totalorder %s46, %s60
    %p62 = scmp.eq.s32.totalorder %s15, 0
    %p63 = por %p61, %p62
    %s65 = sadd.s32 %s64, 1
    %p68 = scmp.eq.s32.totalorder %s9, 1
    %p69 = scmp.ne.s32.totalorder %s64, %s66
    %p70 = scmp.eq.s32.totalorder %s9, 0
    %p71 = por %p69, %p70
    %p72 = scmp.ne.s32.totalorder %s64, %s66
    %p73 = scmp.eq.s32.totalorder %s14, 1
    %p74 = por %p72, %p73
    %p75 = scmp.ne.s32.totalorder %s66, %s67
    %p76 = scmp.eq.s32.totalorder %s14, 0
    %p77 = por %p75, %p76
    %p78 = scmp.ne.s32.totalorder %s66, %s67
    %p79 = scmp.eq.s32.totalorder %s15, 1
    %p80 = por %p78, %p79
    %p82 = scmp.ne.s32.totalorder %s67, %s81
    %p83 = scmp.eq.s32.totalorder %s15, 0
    %p84 = por %p82, %p83
    %s85 = ssub.s32 %s9, %s16
    %p86 = scmp.eq.s32.totalorder %s85, 0
    %s88 = sadd.s32 %s87, 1
    %s89 = scalar_select %p86, %s87, %s88
    %p92 = pneg %p86
    %p93 = scmp.eq.s32.totalorder %s9, 1
    %p94 = por %p92, %p93
    %p95 = scmp.ne.s32.totalorder %s87, %s90
    %p96 = scmp.eq.s32.totalorder %s9, 0
    %p97 = por %p95, %p96
    %p98 = scmp.ne.s32.totalorder %s87, %s90
    %p99 = scmp.eq.s32.totalorder %s14, 1
    %p100 = por %p98, %p99
    %p101 = scmp.ne.s32.totalorder %s90, %s91
    %p102 = scmp.eq.s32.totalorder %s14, 0
    %p103 = por %p101, %p102
    %p104 = scmp.ne.s32.totalorder %s90, %s91
    %p105 = scmp.eq.s32.totalorder %s15, 1
    %p106 = por %p104, %p105
    %p108 = scmp.ne.s32.totalorder %s91, %s107
    %p109 = scmp.eq.s32.totalorder %s15, 0
    %p110 = por %p108, %p109
    %p111 = scmp.le.s32.totalorder 1, %s9
    %p112 = scmp.lt.s32.totalorder %s9, 3
    %p113 = pnand %p111, %p112
    %p114 = pneg %p113
    // Predicated region
    $region9: #{csp_stage_forward.7} parent=5 // pred_check
      _
    $region10: #{csp_stage_forward.7} parent=5 // pred_check_branch
      %116 = sbr.rel (%p113) target = $region12
    $region11: #{csp_stage_forward.7} parent=5 // pred_region
      %s117 = ssub.s32 %s9, 1
      // Predicated region
      $region13: #{csp_stage_forward.7} parent=11 // pred_check
        %p118 = pneg %p56
      $region14: #{csp_stage_forward.7} parent=11 // pred_check_branch
        %120 = sbr.rel (%p118) target = $region16
      $region15: #{csp_stage_forward.7} parent=11 // pred_region
        _
      $region16: #{csp_stage_forward.7} parent=11 // pred_fallthru
        _
      // Predicated region
      $region17: #{csp_stage_forward.7} parent=11 // pred_check
        %p121 = pneg %p77
      $region18: #{csp_stage_forward.7} parent=11 // pred_check_branch
        %123 = sbr.rel (%p121) target = $region20
      $region19: #{csp_stage_forward.7} parent=11 // pred_region
        _
      $region20: #{csp_stage_forward.7} parent=11 // pred_fallthru
        _
    $region12: #{csp_stage_forward.7} parent=5 // pred_fallthru
      _
    %p124 = scmp.lt.s32.totalorder %s9, 2
    // Predicated region
    $region21: #{csp_stage_forward.7} parent=5 // pred_check
      %p125 = pneg %p124
    $region22: #{csp_stage_forward.7} parent=5 // pred_check_branch
      %127 = sbr.rel (%p125) target = $region24
    $region23: #{csp_stage_forward.7} parent=5 // pred_region
      // Predicated region
      $region25: #{csp_stage_forward.7} parent=23 // pred_check
        %p128 = pneg %p29
      $region26: #{csp_stage_forward.7} parent=23 // pred_check_branch
        %130 = sbr.rel (%p128) target = $region28
      $region27: #{csp_stage_forward.7} parent=23 // pred_region
        %p131 = scmp.lt.s32.totalorder %s9, 1
        %s132 = scalar_select %p131, %s9, 1
        %s133 = smul.addr %s132, 54
        %s134 = smul.addr %s133, 8
        %s135 = scalar_lea.vmem %s0, %s134
      $region28: #{csp_stage_forward.7} parent=23 // pred_fallthru
        _
    $region24: #{csp_stage_forward.7} parent=5 // pred_fallthru
      _
    %p136 = scmp.le.s32.totalorder 1, %s9
    %p137 = scmp.lt.s32.totalorder %s9, 3
    %p138 = pnand %p136, %p137
    %p139 = pneg %p138
    // Predicated region
    $region29: #{csp_stage_forward.7} parent=5 // pred_check
      _
    $region30: #{csp_stage_forward.7} parent=5 // pred_check_branch
      %141 = sbr.rel (%p138) target = $region32
    $region31: #{csp_stage_forward.7} parent=5 // pred_region
      %s142 = ssub.s32 %s9, 1
      %p143 = scmp.lt.s32.totalorder %s14, 1
      %s144 = scalar_select %p143, %s14, 1
      %s145 = smul.addr %s144, 54
      %s146 = smul.addr %s145, 8
      %s147 = scalar_lea.vmem %s0, %s146
      %p148 = pneg %p35
      %p149 = pneg %p32
      %p150 = pneg %p56
      %p151 = pneg %p53
      %p152 = pneg %p77
      %p153 = pneg %p74
      %p154 = pneg %p103
      %p155 = pneg %p100
      %p156 = scmp.lt.s32.totalorder %s14, 1
      %s157 = scalar_select %p156, %s14, 1
      %s158 = smul.addr %s157, 32
      %s159 = smul.addr %s158, 8
      %s160 = scalar_lea.vmem %s3, %s159
      %p161 = scmp.lt.s32.totalorder %s14, 1
      %s162 = scalar_select %p161, %s14, 1
      %s163 = smul.addr %s162, 54
      %s164 = smul.addr %s163, 8
      %s165 = scalar_lea.vmem %s0, %s164
      %p166 = scmp.lt.s32.totalorder %s14, 1
      %s167 = scalar_select %p166, %s14, 1
      %s168 = smul.addr %s167, 32
      %s169 = smul.addr %s168, 8
      %s170 = scalar_lea.vmem %s3, %s169
      %v171 = vld [vmem:[%s165] sm:$0xff]
      %v172 = vld [vmem:[%s165 + $0x8] sm:$0xff]
      %v173 = vld [vmem:[%s165 + $0x18] sm:$0xff]
      %v174 = vld [vmem:[%s165 + $0x20] sm:$0xff]
      %v175 = vld [vmem:[%s165 + $0x30] sm:$0xff]
      %v176 = vld [vmem:[%s165 + $0x38] sm:$0xff]
      %v177 = vld [vmem:[%s165 + $0x48] sm:$0xff]
      %v178 = vld [vmem:[%s165 + $0x50] sm:$0xff]
      %v179 = vld [vmem:[%s165 + $0x60] sm:$0xff]
      %v180 = vld [vmem:[%s165 + $0x68] sm:$0xff]
      %v181 = vld [vmem:[%s165 + $0x78] sm:$0xff]
      %v182 = vld [vmem:[%s165 + $0x80] sm:$0xff]
      %v183 = vld [vmem:[%s165 + $0x90] sm:$0xff]
      %v184 = vld [vmem:[%s165 + $0x98] sm:$0xff]
      %v185 = vld [vmem:[%s165 + $0xa8] sm:$0xff]
      %v186 = vld [vmem:[%s165 + $0xb0] sm:$0xff]
      %v187 = vld [vmem:[%s165 + $0xc0] sm:$0xff]
      %v188 = vld [vmem:[%s165 + $0xc8] sm:$0xff]
      %v189 = vld [vmem:[%s165 + $0xd8] sm:$0xff]
      %v190 = vld [vmem:[%s165 + $0xe0] sm:$0xff]
      %v191 = vld [vmem:[%s165 + $0xf0] sm:$0xff]
      %v192 = vld [vmem:[%s165 + $0xf8] sm:$0xff]
      %v193 = vld [vmem:[%s165 + $0x108] sm:$0xff]
      %v194 = vld [vmem:[%s165 + $0x110] sm:$0xff]
      %v195 = vld [vmem:[%s165 + $0x120] sm:$0xff]
      %v196 = vld [vmem:[%s165 + $0x128] sm:$0xff]
      %v197 = vld [vmem:[%s165 + $0x138] sm:$0xff]
      %v198 = vld [vmem:[%s165 + $0x140] sm:$0xff]
      %v199 = vld [vmem:[%s165 + $0x150] sm:$0xff]
      %v200 = vld [vmem:[%s165 + $0x158] sm:$0xff]
      %v201 = vld [vmem:[%s165 + $0x168] sm:$0xff]
      %v202 = vld [vmem:[%s165 + $0x170] sm:$0xff]
      %v203 = vld [vmem:[%s1] sm:$0xff]
      %v204 = vld [vmem:[%s1 + $0x8] sm:$0xff]
      %v205 = vld [vmem:[%s165 + $0x1] sm:$0xff]
      %v206 = vld [vmem:[%s165 + $0x9] sm:$0xff]
      %v207 = vld [vmem:[%s165 + $0x19] sm:$0xff]
      %v208 = vld [vmem:[%s165 + $0x21] sm:$0xff]
      %v209 = vld [vmem:[%s165 + $0x31] sm:$0xff]
      %v210 = vld [vmem:[%s165 + $0x39] sm:$0xff]
      %v211 = vld [vmem:[%s165 + $0x49] sm:$0xff]
      %v212 = vld [vmem:[%s165 + $0x51] sm:$0xff]
      %v213 = vld [vmem:[%s165 + $0x61] sm:$0xff]
      %v214 = vld [vmem:[%s165 + $0x69] sm:$0xff]
      %v215 = vld [vmem:[%s165 + $0x79] sm:$0xff]
      %v216 = vld [vmem:[%s165 + $0x81] sm:$0xff]
      %v217 = vld [vmem:[%s165 + $0x91] sm:$0xff]
      %v218 = vld [vmem:[%s165 + $0x99] sm:$0xff]
      %v219 = vld [vmem:[%s165 + $0xa9] sm:$0xff]
      %v220 = vld [vmem:[%s165 + $0xb1] sm:$0xff]
      %v221 = vld [vmem:[%s165 + $0xc1] sm:$0xff]
      %v222 = vld [vmem:[%s165 + $0xc9] sm:$0xff]
      %v223 = vld [vmem:[%s165 + $0xd9] sm:$0xff]
      %v224 = vld [vmem:[%s165 + $0xe1] sm:$0xff]
      %v225 = vld [vmem:[%s165 + $0xf1] sm:$0xff]
      %v226 = vld [vmem:[%s165 + $0xf9] sm:$0xff]
      %v227 = vld [vmem:[%s165 + $0x109] sm:$0xff]
      %v228 = vld [vmem:[%s165 + $0x111] sm:$0xff]
      %v229 = vld [vmem:[%s165 + $0x121] sm:$0xff]
      %v230 = vld [vmem:[%s165 + $0x129] sm:$0xff]
      %v231 = vld [vmem:[%s165 + $0x139] sm:$0xff]
      %v232 = vld [vmem:[%s165 + $0x141] sm:$0xff]
      %v233 = vld [vmem:[%s165 + $0x151] sm:$0xff]
      %v234 = vld [vmem:[%s165 + $0x159] sm:$0xff]
      %v235 = vld [vmem:[%s165 + $0x169] sm:$0xff]
      %v236 = vld [vmem:[%s165 + $0x171] sm:$0xff]
      %s237 = scalar_lea.vmem %s1, 16
      %v238 = vld [vmem:[%s237] sm:$0xff]
      %v239 = vld [vmem:[%s237 + $0x8] sm:$0xff]
      %vm240 = vcmask 130048
      %v242 = vsel %vm240, %v205, 0
      %v245 = vsel %vm240, %v206, 0
      %v248 = vsel %vm240, %v207, 0
      %v251 = vsel %vm240, %v208, 0
      %v254 = vsel %vm240, %v209, 0
      %v257 = vsel %vm240, %v210, 0
      %v260 = vsel %vm240, %v211, 0
      %v263 = vsel %vm240, %v212, 0
      %v266 = vsel %vm240, %v213, 0
      %v269 = vsel %vm240, %v214, 0
      %v272 = vsel %vm240, %v215, 0
      %v275 = vsel %vm240, %v216, 0
      %v278 = vsel %vm240, %v217, 0
      %v281 = vsel %vm240, %v218, 0
      %v284 = vsel %vm240, %v219, 0
      %v287 = vsel %vm240, %v220, 0
      %v290 = vsel %vm240, %v221, 0
      %v293 = vsel %vm240, %v222, 0
      %v296 = vsel %vm240, %v223, 0
      %v299 = vsel %vm240, %v224, 0
      %v302 = vsel %vm240, %v225, 0
      %v305 = vsel %vm240, %v226, 0
      %v308 = vsel %vm240, %v227, 0
      %v311 = vsel %vm240, %v228, 0
      %v314 = vsel %vm240, %v229, 0
      %v317 = vsel %vm240, %v230, 0
      %v320 = vsel %vm240, %v231, 0
      %v323 = vsel %vm240, %v232, 0
      %v326 = vsel %vm240, %v233, 0
      %v329 = vsel %vm240, %v234, 0
      %v332 = vsel %vm240, %v235, 0
      %v335 = vsel %vm240, %v236, 0
      %337 = vmatpush.msra.mxu0 0.0
      %338 = vmatpush.msra.mxu0 0.0
      %339 = vmatpush.msra.mxu0 0.0
      %340 = vmatpush.msra.mxu0 0.0
      %341 = vmatpush.msra.mxu0 0.0
      %342 = vmatpush.msra.mxu0 0.0
      %343 = vmatpush.msra.mxu0 0.0
      %344 = vmatpush.msra.mxu0 0.0
      %345 = vmatpush.msra.mxu0 0.0
      %346 = vmatpush.msra.mxu0 0.0
      %347 = vmatpush.msra.mxu0 0.0
      %348 = vmatpush.msra.mxu0 0.0
      %349 = vmatpush.msra.mxu0 0.0
      %350 = vmatpush.msra.mxu0 0.0
      %351 = vmatpush.msra.mxu0 %v239
      %352 = vmatpush.msra.mxu0 %v238
      %353 = vmatmul.f32.gmra.mxu0 %v242
      %v354 = vpop.f32.mrf.mxu0
      %v355 = vadd.f32 0.0, %v354
      %356 = vmatmul.f32.gmra.mxu0 %v245
      %v357 = vpop.f32.mrf.mxu0
      %v358 = vadd.f32 0.0, %v357
      %359 = vmatmul.f32.gmra.mxu0 %v248
      %v360 = vpop.f32.mrf.mxu0
      %v361 = vadd.f32 0.0, %v360
      %362 = vmatmul.f32.gmra.mxu0 %v251
      %v363 = vpop.f32.mrf.mxu0
      %v364 = vadd.f32 0.0, %v363
      %365 = vmatmul.f32.gmra.mxu0 %v254
      %v366 = vpop.f32.mrf.mxu0
      %v367 = vadd.f32 0.0, %v366
      %368 = vmatmul.f32.gmra.mxu0 %v257
      %v369 = vpop.f32.mrf.mxu0
      %v370 = vadd.f32 0.0, %v369
      %371 = vmatmul.f32.gmra.mxu0 %v260
      %v372 = vpop.f32.mrf.mxu0
      %v373 = vadd.f32 0.0, %v372
      %374 = vmatmul.f32.gmra.mxu0 %v263
      %v375 = vpop.f32.mrf.mxu0
      %v376 = vadd.f32 0.0, %v375
      %377 = vmatmul.f32.gmra.mxu0 %v266
      %v378 = vpop.f32.mrf.mxu0
      %v379 = vadd.f32 0.0, %v378
      %380 = vmatmul.f32.gmra.mxu0 %v269
      %v381 = vpop.f32.mrf.mxu0
      %v382 = vadd.f32 0.0, %v381
      %383 = vmatmul.f32.gmra.mxu0 %v272
      %v384 = vpop.f32.mrf.mxu0
      %v385 = vadd.f32 0.0, %v384
      %386 = vmatmul.f32.gmra.mxu0 %v275
      %v387 = vpop.f32.mrf.mxu0
      %v388 = vadd.f32 0.0, %v387
      %389 = vmatmul.f32.gmra.mxu0 %v278
      %v390 = vpop.f32.mrf.mxu0
      %v391 = vadd.f32 0.0, %v390
      %392 = vmatmul.f32.gmra.mxu0 %v281
      %v393 = vpop.f32.mrf.mxu0
      %v394 = vadd.f32 0.0, %v393
      %395 = vmatmul.f32.gmra.mxu0 %v284
      %v396 = vpop.f32.mrf.mxu0
      %v397 = vadd.f32 0.0, %v396
      %398 = vmatmul.f32.gmra.mxu0 %v287
      %v399 = vpop.f32.mrf.mxu0
      %v400 = vadd.f32 0.0, %v399
      %401 = vmatmul.f32.gmra.mxu0 %v290
      %v402 = vpop.f32.mrf.mxu0
      %v403 = vadd.f32 0.0, %v402
      %404 = vmatmul.f32.gmra.mxu0 %v293
      %v405 = vpop.f32.mrf.mxu0
      %v406 = vadd.f32 0.0, %v405
      %407 = vmatmul.f32.gmra.mxu0 %v296
      %v408 = vpop.f32.mrf.mxu0
      %v409 = vadd.f32 0.0, %v408
      %410 = vmatmul.f32.gmra.mxu0 %v299
      %v411 = vpop.f32.mrf.mxu0
      %v412 = vadd.f32 0.0, %v411
      %413 = vmatmul.f32.gmra.mxu0 %v302
      %v414 = vpop.f32.mrf.mxu0
      %v415 = vadd.f32 0.0, %v414
      %416 = vmatmul.f32.gmra.mxu0 %v305
      %v417 = vpop.f32.mrf.mxu0
      %v418 = vadd.f32 0.0, %v417
      %419 = vmatmul.f32.gmra.mxu0 %v308
      %v420 = vpop.f32.mrf.mxu0
      %v421 = vadd.f32 0.0, %v420
      %422 = vmatmul.f32.gmra.mxu0 %v311
      %v423 = vpop.f32.mrf.mxu0
      %v424 = vadd.f32 0.0, %v423
      %425 = vmatmul.f32.gmra.mxu0 %v314
      %v426 = vpop.f32.mrf.mxu0
      %v427 = vadd.f32 0.0, %v426
      %428 = vmatmul.f32.gmra.mxu0 %v317
      %v429 = vpop.f32.mrf.mxu0
      %v430 = vadd.f32 0.0, %v429
      %431 = vmatmul.f32.gmra.mxu0 %v320
      %v432 = vpop.f32.mrf.mxu0
      %v433 = vadd.f32 0.0, %v432
      %434 = vmatmul.f32.gmra.mxu0 %v323
      %v435 = vpop.f32.mrf.mxu0
      %v436 = vadd.f32 0.0, %v435
      %437 = vmatmul.f32.gmra.mxu0 %v326
      %v438 = vpop.f32.mrf.mxu0
      %v439 = vadd.f32 0.0, %v438
      %440 = vmatmul.f32.gmra.mxu0 %v329
      %v441 = vpop.f32.mrf.mxu0
      %v442 = vadd.f32 0.0, %v441
      %443 = vmatmul.f32.gmra.mxu0 %v332
      %v444 = vpop.f32.mrf.mxu0
      %v445 = vadd.f32 0.0, %v444
      %446 = vmatmul.f32.gmra.mxu0 %v335
      %v447 = vpop.f32.mrf.mxu0
      %v448 = vadd.f32 0.0, %v447
      %449 = vdwg.mxu0
      %v451 = vsel %vm240, %v171, 0
      %v454 = vsel %vm240, %v172, 0
      %v457 = vsel %vm240, %v173, 0
      %v460 = vsel %vm240, %v174, 0
      %v463 = vsel %vm240, %v175, 0
      %v466 = vsel %vm240, %v176, 0
      %v469 = vsel %vm240, %v177, 0
      %v472 = vsel %vm240, %v178, 0
      %v475 = vsel %vm240, %v179, 0
      %v478 = vsel %vm240, %v180, 0
      %v481 = vsel %vm240, %v181, 0
      %v484 = vsel %vm240, %v182, 0
      %v487 = vsel %vm240, %v183, 0
      %v490 = vsel %vm240, %v184, 0
      %v493 = vsel %vm240, %v185, 0
      %v496 = vsel %vm240, %v186, 0
      %v499 = vsel %vm240, %v187, 0
      %v502 = vsel %vm240, %v188, 0
      %v505 = vsel %vm240, %v189, 0
      %v508 = vsel %vm240, %v190, 0
      %v511 = vsel %vm240, %v191, 0
      %v514 = vsel %vm240, %v192, 0
      %v517 = vsel %vm240, %v193, 0
      %v520 = vsel %vm240, %v194, 0
      %v523 = vsel %vm240, %v195, 0
      %v526 = vsel %vm240, %v196, 0
      %v529 = vsel %vm240, %v197, 0
      %v532 = vsel %vm240, %v198, 0
      %v535 = vsel %vm240, %v199, 0
      %v538 = vsel %vm240, %v200, 0
      %v541 = vsel %vm240, %v201, 0
      %v544 = vsel %vm240, %v202, 0
      %546 = vmatpush.msra.mxu0 0.0
      %547 = vmatpush.msra.mxu0 0.0
      %548 = vmatpush.msra.mxu0 0.0
      %549 = vmatpush.msra.mxu0 0.0
      %550 = vmatpush.msra.mxu0 0.0
      %551 = vmatpush.msra.mxu0 0.0
      %552 = vmatpush.msra.mxu0 0.0
      %553 = vmatpush.msra.mxu0 0.0
      %554 = vmatpush.msra.mxu0 0.0
      %555 = vmatpush.msra.mxu0 0.0
      %556 = vmatpush.msra.mxu0 0.0
      %557 = vmatpush.msra.mxu0 0.0
      %558 = vmatpush.msra.mxu0 0.0
      %559 = vmatpush.msra.mxu0 0.0
      %560 = vmatpush.msra.mxu0 %v204
      %561 = vmatpush.msra.mxu0 %v203
      %562 = vmatmul.f32.gmra.mxu0 %v451
      %v563 = vpop.f32.mrf.mxu0
      %v564 = vadd.f32 %v355, %v563
      %565 = vmatmul.f32.gmra.mxu0 %v454
      %v566 = vpop.f32.mrf.mxu0
      %v567 = vadd.f32 %v358, %v566
      %568 = vmatmul.f32.gmra.mxu0 %v457
      %v569 = vpop.f32.mrf.mxu0
      %v570 = vadd.f32 %v361, %v569
      %571 = vmatmul.f32.gmra.mxu0 %v460
      %v572 = vpop.f32.mrf.mxu0
      %v573 = vadd.f32 %v364, %v572
      %574 = vmatmul.f32.gmra.mxu0 %v463
      %v575 = vpop.f32.mrf.mxu0
      %v576 = vadd.f32 %v367, %v575
      %577 = vmatmul.f32.gmra.mxu0 %v466
      %v578 = vpop.f32.mrf.mxu0
      %v579 = vadd.f32 %v370, %v578
      %580 = vmatmul.f32.gmra.mxu0 %v469
      %v581 = vpop.f32.mrf.mxu0
      %v582 = vadd.f32 %v373, %v581
      %583 = vmatmul.f32.gmra.mxu0 %v472
      %v584 = vpop.f32.mrf.mxu0
      %v585 = vadd.f32 %v376, %v584
      %586 = vmatmul.f32.gmra.mxu0 %v475
      %v587 = vpop.f32.mrf.mxu0
      %v588 = vadd.f32 %v379, %v587
      %589 = vmatmul.f32.gmra.mxu0 %v478
      %v590 = vpop.f32.mrf.mxu0
      %v591 = vadd.f32 %v382, %v590
      %592 = vmatmul.f32.gmra.mxu0 %v481
      %v593 = vpop.f32.mrf.mxu0
      %v594 = vadd.f32 %v385, %v593
      %595 = vmatmul.f32.gmra.mxu0 %v484
      %v596 = vpop.f32.mrf.mxu0
      %v597 = vadd.f32 %v388, %v596
      %598 = vmatmul.f32.gmra.mxu0 %v487
      %v599 = vpop.f32.mrf.mxu0
      %v600 = vadd.f32 %v391, %v599
      %601 = vmatmul.f32.gmra.mxu0 %v490
      %v602 = vpop.f32.mrf.mxu0
      %v603 = vadd.f32 %v394, %v602
      %604 = vmatmul.f32.gmra.mxu0 %v493
      %v605 = vpop.f32.mrf.mxu0
      %v606 = vadd.f32 %v397, %v605
      %607 = vmatmul.f32.gmra.mxu0 %v496
      %v608 = vpop.f32.mrf.mxu0
      %v609 = vadd.f32 %v400, %v608
      %610 = vmatmul.f32.gmra.mxu0 %v499
      %v611 = vpop.f32.mrf.mxu0
      %v612 = vadd.f32 %v403, %v611
      %613 = vmatmul.f32.gmra.mxu0 %v502
      %v614 = vpop.f32.mrf.mxu0
      %v615 = vadd.f32 %v406, %v614
      %616 = vmatmul.f32.gmra.mxu0 %v505
      %v617 = vpop.f32.mrf.mxu0
      %v618 = vadd.f32 %v409, %v617
      %619 = vmatmul.f32.gmra.mxu0 %v508
      %v620 = vpop.f32.mrf.mxu0
      %v621 = vadd.f32 %v412, %v620
      %622 = vmatmul.f32.gmra.mxu0 %v511
      %v623 = vpop.f32.mrf.mxu0
      %v624 = vadd.f32 %v415, %v623
      %625 = vmatmul.f32.gmra.mxu0 %v514
      %v626 = vpop.f32.mrf.mxu0
      %v627 = vadd.f32 %v418, %v626
      %628 = vmatmul.f32.gmra.mxu0 %v517
      %v629 = vpop.f32.mrf.mxu0
      %v630 = vadd.f32 %v421, %v629
      %631 = vmatmul.f32.gmra.mxu0 %v520
      %v632 = vpop.f32.mrf.mxu0
      %v633 = vadd.f32 %v424, %v632
      %634 = vmatmul.f32.gmra.mxu0 %v523
      %v635 = vpop.f32.mrf.mxu0
      %v636 = vadd.f32 %v427, %v635
      %637 = vmatmul.f32.gmra.mxu0 %v526
      %v638 = vpop.f32.mrf.mxu0
      %v639 = vadd.f32 %v430, %v638
      %640 = vmatmul.f32.gmra.mxu0 %v529
      %v641 = vpop.f32.mrf.mxu0
      %v642 = vadd.f32 %v433, %v641
      %643 = vmatmul.f32.gmra.mxu0 %v532
      %v644 = vpop.f32.mrf.mxu0
      %v645 = vadd.f32 %v436, %v644
      %646 = vmatmul.f32.gmra.mxu0 %v535
      %v647 = vpop.f32.mrf.mxu0
      %v648 = vadd.f32 %v439, %v647
      %649 = vmatmul.f32.gmra.mxu0 %v538
      %v650 = vpop.f32.mrf.mxu0
      %v651 = vadd.f32 %v442, %v650
      %652 = vmatmul.f32.gmra.mxu0 %v541
      %v653 = vpop.f32.mrf.mxu0
      %v654 = vadd.f32 %v445, %v653
      %655 = vmatmul.f32.gmra.mxu0 %v544
      %v656 = vpop.f32.mrf.mxu0
      %v657 = vadd.f32 %v448, %v656
      %658 = vdwg.mxu0
      %v659 = vld [vmem:[%s165 + $0x2] sm:$0xff]
      %v660 = vld [vmem:[%s165 + $0xa] sm:$0xff]
      %v661 = vld [vmem:[%s165 + $0x1a] sm:$0xff]
      %v662 = vld [vmem:[%s165 + $0x22] sm:$0xff]
      %v663 = vld [vmem:[%s165 + $0x32] sm:$0xff]
      %v664 = vld [vmem:[%s165 + $0x3a] sm:$0xff]
      %v665 = vld [vmem:[%s165 + $0x4a] sm:$0xff]
      %v666 = vld [vmem:[%s165 + $0x52] sm:$0xff]
      %v667 = vld [vmem:[%s165 + $0x62] sm:$0xff]
      %v668 = vld [vmem:[%s165 + $0x6a] sm:$0xff]
      %v669 = vld [vmem:[%s165 + $0x7a] sm:$0xff]
      %v670 = vld [vmem:[%s165 + $0x82] sm:$0xff]
      %v671 = vld [vmem:[%s165 + $0x92] sm:$0xff]
      %v672 = vld [vmem:[%s165 + $0x9a] sm:$0xff]
      %v673 = vld [vmem:[%s165 + $0xaa] sm:$0xff]
      %v674 = vld [vmem:[%s165 + $0xb2] sm:$0xff]
      %v675 = vld [vmem:[%s165 + $0xc2] sm:$0xff]
      %v676 = vld [vmem:[%s165 + $0xca] sm:$0xff]
      %v677 = vld [vmem:[%s165 + $0xda] sm:$0xff]
      %v678 = vld [vmem:[%s165 + $0xe2] sm:$0xff]
      %v679 = vld [vmem:[%s165 + $0xf2] sm:$0xff]
      %v680 = vld [vmem:[%s165 + $0xfa] sm:$0xff]
      %v681 = vld [vmem:[%s165 + $0x10a] sm:$0xff]
      %v682 = vld [vmem:[%s165 + $0x112] sm:$0xff]
      %v683 = vld [vmem:[%s165 + $0x122] sm:$0xff]
      %v684 = vld [vmem:[%s165 + $0x12a] sm:$0xff]
      %v685 = vld [vmem:[%s165 + $0x13a] sm:$0xff]
      %v686 = vld [vmem:[%s165 + $0x142] sm:$0xff]
      %v687 = vld [vmem:[%s165 + $0x152] sm:$0xff]
      %v688 = vld [vmem:[%s165 + $0x15a] sm:$0xff]
      %v689 = vld [vmem:[%s165 + $0x16a] sm:$0xff]
      %v690 = vld [vmem:[%s165 + $0x172] sm:$0xff]
      %s691 = scalar_lea.vmem %s1, 32
      %v692 = vld [vmem:[%s691] sm:$0xff]
      %v693 = vld [vmem:[%s691 + $0x8] sm:$0xff]
      %v695 = vsel %vm240, %v659, 0
      %v698 = vsel %vm240, %v660, 0
      %v701 = vsel %vm240, %v661, 0
      %v704 = vsel %vm240, %v662, 0
      %v707 = vsel %vm240, %v663, 0
      %v710 = vsel %vm240, %v664, 0
      %v713 = vsel %vm240, %v665, 0
      %v716 = vsel %vm240, %v666, 0
      %v719 = vsel %vm240, %v667, 0
      %v722 = vsel %vm240, %v668, 0
      %v725 = vsel %vm240, %v669, 0
      %v728 = vsel %vm240, %v670, 0
      %v731 = vsel %vm240, %v671, 0
      %v734 = vsel %vm240, %v672, 0
      %v737 = vsel %vm240, %v673, 0
      %v740 = vsel %vm240, %v674, 0
      %v743 = vsel %vm240, %v675, 0
      %v746 = vsel %vm240, %v676, 0
      %v749 = vsel %vm240, %v677, 0
      %v752 = vsel %vm240, %v678, 0
      %v755 = vsel %vm240, %v679, 0
      %v758 = vsel %vm240, %v680, 0
      %v761 = vsel %vm240, %v681, 0
      %v764 = vsel %vm240, %v682, 0
      %v767 = vsel %vm240, %v683, 0
      %v770 = vsel %vm240, %v684, 0
      %v773 = vsel %vm240, %v685, 0
      %v776 = vsel %vm240, %v686, 0
      %v779 = vsel %vm240, %v687, 0
      %v782 = vsel %vm240, %v688, 0
      %v785 = vsel %vm240, %v689, 0
      %v788 = vsel %vm240, %v690, 0
      %790 = vmatpush.msra.mxu0 0.0
      %791 = vmatpush.msra.mxu0 0.0
      %792 = vmatpush.msra.mxu0 0.0
      %793 = vmatpush.msra.mxu0 0.0
      %794 = vmatpush.msra.mxu0 0.0
      %795 = vmatpush.msra.mxu0 0.0
      %796 = vmatpush.msra.mxu0 0.0
      %797 = vmatpush.msra.mxu0 0.0
      %798 = vmatpush.msra.mxu0 0.0
      %799 = vmatpush.msra.mxu0 0.0
      %800 = vmatpush.msra.mxu0 0.0
      %801 = vmatpush.msra.mxu0 0.0
      %802 = vmatpush.msra.mxu0 0.0
      %803 = vmatpush.msra.mxu0 0.0
      %804 = vmatpush.msra.mxu0 %v693
      %805 = vmatpush.msra.mxu0 %v692
      %806 = vmatmul.f32.gmra.mxu0 %v695
      %v807 = vpop.f32.mrf.mxu0
      %v808 = vadd.f32 0.0, %v807
      %809 = vmatmul.f32.gmra.mxu0 %v698
      %v810 = vpop.f32.mrf.mxu0
      %v811 = vadd.f32 0.0, %v810
      %812 = vmatmul.f32.gmra.mxu0 %v701
      %v813 = vpop.f32.mrf.mxu0
      %v814 = vadd.f32 0.0, %v813
      %815 = vmatmul.f32.gmra.mxu0 %v704
      %v816 = vpop.f32.mrf.mxu0
      %v817 = vadd.f32 0.0, %v816
      %818 = vmatmul.f32.gmra.mxu0 %v707
      %v819 = vpop.f32.mrf.mxu0
      %v820 = vadd.f32 0.0, %v819
      %821 = vmatmul.f32.gmra.mxu0 %v710
      %v822 = vpop.f32.mrf.mxu0
      %v823 = vadd.f32 0.0, %v822
      %824 = vmatmul.f32.gmra.mxu0 %v713
      %v825 = vpop.f32.mrf.mxu0
      %v826 = vadd.f32 0.0, %v825
      %827 = vmatmul.f32.gmra.mxu0 %v716
      %v828 = vpop.f32.mrf.mxu0
      %v829 = vadd.f32 0.0, %v828
      %830 = vmatmul.f32.gmra.mxu0 %v719
      %v831 = vpop.f32.mrf.mxu0
      %v832 = vadd.f32 0.0, %v831
      %833 = vmatmul.f32.gmra.mxu0 %v722
      %v834 = vpop.f32.mrf.mxu0
      %v835 = vadd.f32 0.0, %v834
      %836 = vmatmul.f32.gmra.mxu0 %v725
      %v837 = vpop.f32.mrf.mxu0
      %v838 = vadd.f32 0.0, %v837
      %839 = vmatmul.f32.gmra.mxu0 %v728
      %v840 = vpop.f32.mrf.mxu0
      %v841 = vadd.f32 0.0, %v840
      %842 = vmatmul.f32.gmra.mxu0 %v731
      %v843 = vpop.f32.mrf.mxu0
      %v844 = vadd.f32 0.0, %v843
      %845 = vmatmul.f32.gmra.mxu0 %v734
      %v846 = vpop.f32.mrf.mxu0
      %v847 = vadd.f32 0.0, %v846
      %848 = vmatmul.f32.gmra.mxu0 %v737
      %v849 = vpop.f32.mrf.mxu0
      %v850 = vadd.f32 0.0, %v849
      %851 = vmatmul.f32.gmra.mxu0 %v740
      %v852 = vpop.f32.mrf.mxu0
      %v853 = vadd.f32 0.0, %v852
      %854 = vmatmul.f32.gmra.mxu0 %v743
      %v855 = vpop.f32.mrf.mxu0
      %v856 = vadd.f32 0.0, %v855
      %857 = vmatmul.f32.gmra.mxu0 %v746
      %v858 = vpop.f32.mrf.mxu0
      %v859 = vadd.f32 0.0, %v858
      %860 = vmatmul.f32.gmra.mxu0 %v749
      %v861 = vpop.f32.mrf.mxu0
      %v862 = vadd.f32 0.0, %v861
      %863 = vmatmul.f32.gmra.mxu0 %v752
      %v864 = vpop.f32.mrf.mxu0
      %v865 = vadd.f32 0.0, %v864
      %866 = vmatmul.f32.gmra.mxu0 %v755
      %v867 = vpop.f32.mrf.mxu0
      %v868 = vadd.f32 0.0, %v867
      %869 = vmatmul.f32.gmra.mxu0 %v758
      %v870 = vpop.f32.mrf.mxu0
      %v871 = vadd.f32 0.0, %v870
      %872 = vmatmul.f32.gmra.mxu0 %v761
      %v873 = vpop.f32.mrf.mxu0
      %v874 = vadd.f32 0.0, %v873
      %875 = vmatmul.f32.gmra.mxu0 %v764
      %v876 = vpop.f32.mrf.mxu0
      %v877 = vadd.f32 0.0, %v876
      %878 = vmatmul.f32.gmra.mxu0 %v767
      %v879 = vpop.f32.mrf.mxu0
      %v880 = vadd.f32 0.0, %v879
      %881 = vmatmul.f32.gmra.mxu0 %v770
      %v882 = vpop.f32.mrf.mxu0
      %v883 = vadd.f32 0.0, %v882
      %884 = vmatmul.f32.gmra.mxu0 %v773
      %v885 = vpop.f32.mrf.mxu0
      %v886 = vadd.f32 0.0, %v885
      %887 = vmatmul.f32.gmra.mxu0 %v776
      %v888 = vpop.f32.mrf.mxu0
      %v889 = vadd.f32 0.0, %v888
      %890 = vmatmul.f32.gmra.mxu0 %v779
      %v891 = vpop.f32.mrf.mxu0
      %v892 = vadd.f32 0.0, %v891
      %893 = vmatmul.f32.gmra.mxu0 %v782
      %v894 = vpop.f32.mrf.mxu0
      %v895 = vadd.f32 0.0, %v894
      %896 = vmatmul.f32.gmra.mxu0 %v785
      %v897 = vpop.f32.mrf.mxu0
      %v898 = vadd.f32 0.0, %v897
      %899 = vmatmul.f32.gmra.mxu0 %v788
      %v900 = vpop.f32.mrf.mxu0
      %v901 = vadd.f32 0.0, %v900
      %902 = vdwg.mxu0
      %v903 = vadd.f32 %v564, %v808
      %v904 = vadd.f32 %v567, %v811
      %v905 = vadd.f32 %v570, %v814
      %v906 = vadd.f32 %v573, %v817
      %v907 = vadd.f32 %v576, %v820
      %v908 = vadd.f32 %v579, %v823
      %v909 = vadd.f32 %v582, %v826
      %v910 = vadd.f32 %v585, %v829
      %v911 = vadd.f32 %v588, %v832
      %v912 = vadd.f32 %v591, %v835
      %v913 = vadd.f32 %v594, %v838
      %v914 = vadd.f32 %v597, %v841
      %v915 = vadd.f32 %v600, %v844
      %v916 = vadd.f32 %v603, %v847
      %v917 = vadd.f32 %v606, %v850
      %v918 = vadd.f32 %v609, %v853
      %v919 = vadd.f32 %v612, %v856
      %v920 = vadd.f32 %v615, %v859
      %v921 = vadd.f32 %v618, %v862
      %v922 = vadd.f32 %v621, %v865
      %v923 = vadd.f32 %v624, %v868
      %v924 = vadd.f32 %v627, %v871
      %v925 = vadd.f32 %v630, %v874
      %v926 = vadd.f32 %v633, %v877
      %v927 = vadd.f32 %v636, %v880
      %v928 = vadd.f32 %v639, %v883
      %v929 = vadd.f32 %v642, %v886
      %v930 = vadd.f32 %v645, %v889
      %v931 = vadd.f32 %v648, %v892
      %v932 = vadd.f32 %v651, %v895
      %v933 = vadd.f32 %v654, %v898
      %v934 = vadd.f32 %v657, %v901
      %s935 = scalar_lea.vmem %s165, 24
      %v936 = vld [vmem:[%s935] sm:$0xff]
      %v937 = vld [vmem:[%s935 + $0x8] sm:$0xff]
      %v938 = vld [vmem:[%s935 + $0x18] sm:$0xff]
      %v939 = vld [vmem:[%s935 + $0x20] sm:$0xff]
      %v940 = vld [vmem:[%s935 + $0x30] sm:$0xff]
      %v941 = vld [vmem:[%s935 + $0x38] sm:$0xff]
      %v942 = vld [vmem:[%s935 + $0x48] sm:$0xff]
      %v943 = vld [vmem:[%s935 + $0x50] sm:$0xff]
      %v944 = vld [vmem:[%s935 + $0x60] sm:$0xff]
      %v945 = vld [vmem:[%s935 + $0x68] sm:$0xff]
      %v946 = vld [vmem:[%s935 + $0x78] sm:$0xff]
      %v947 = vld [vmem:[%s935 + $0x80] sm:$0xff]
      %v948 = vld [vmem:[%s935 + $0x90] sm:$0xff]
      %v949 = vld [vmem:[%s935 + $0x98] sm:$0xff]
      %v950 = vld [vmem:[%s935 + $0xa8] sm:$0xff]
      %v951 = vld [vmem:[%s935 + $0xb0] sm:$0xff]
      %v952 = vld [vmem:[%s935 + $0xc0] sm:$0xff]
      %v953 = vld [vmem:[%s935 + $0xc8] sm:$0xff]
      %v954 = vld [vmem:[%s935 + $0xd8] sm:$0xff]
      %v955 = vld [vmem:[%s935 + $0xe0] sm:$0xff]
      %v956 = vld [vmem:[%s935 + $0xf0] sm:$0xff]
      %v957 = vld [vmem:[%s935 + $0xf8] sm:$0xff]
      %v958 = vld [vmem:[%s935 + $0x108] sm:$0xff]
      %v959 = vld [vmem:[%s935 + $0x110] sm:$0xff]
      %v960 = vld [vmem:[%s935 + $0x120] sm:$0xff]
      %v961 = vld [vmem:[%s935 + $0x128] sm:$0xff]
      %v962 = vld [vmem:[%s935 + $0x138] sm:$0xff]
      %v963 = vld [vmem:[%s935 + $0x140] sm:$0xff]
      %v964 = vld [vmem:[%s935 + $0x150] sm:$0xff]
      %v965 = vld [vmem:[%s935 + $0x158] sm:$0xff]
      %v966 = vld [vmem:[%s935 + $0x168] sm:$0xff]
      %v967 = vld [vmem:[%s935 + $0x170] sm:$0xff]
      %s968 = scalar_lea.vmem %s1, 48
      %v969 = vld [vmem:[%s968] sm:$0xff]
      %v970 = vld [vmem:[%s968 + $0x8] sm:$0xff]
      %v972 = vsel %vm240, %v936, 0
      %v975 = vsel %vm240, %v937, 0
      %v978 = vsel %vm240, %v938, 0
      %v981 = vsel %vm240, %v939, 0
      %v984 = vsel %vm240, %v940, 0
      %v987 = vsel %vm240, %v941, 0
      %v990 = vsel %vm240, %v942, 0
      %v993 = vsel %vm240, %v943, 0
      %v996 = vsel %vm240, %v944, 0
      %v999 = vsel %vm240, %v945, 0
      %v1002 = vsel %vm240, %v946, 0
      %v1005 = vsel %vm240, %v947, 0
      %v1008 = vsel %vm240, %v948, 0
      %v1011 = vsel %vm240, %v949, 0
      %v1014 = vsel %vm240, %v950, 0
      %v1017 = vsel %vm240, %v951, 0
      %v1020 = vsel %vm240, %v952, 0
      %v1023 = vsel %vm240, %v953, 0
      %v1026 = vsel %vm240, %v954, 0
      %v1029 = vsel %vm240, %v955, 0
      %v1032 = vsel %vm240, %v956, 0
      %v1035 = vsel %vm240, %v957, 0
      %v1038 = vsel %vm240, %v958, 0
      %v1041 = vsel %vm240, %v959, 0
      %v1044 = vsel %vm240, %v960, 0
      %v1047 = vsel %vm240, %v961, 0
      %v1050 = vsel %vm240, %v962, 0
      %v1053 = vsel %vm240, %v963, 0
      %v1056 = vsel %vm240, %v964, 0
      %v1059 = vsel %vm240, %v965, 0
      %v1062 = vsel %vm240, %v966, 0
      %v1065 = vsel %vm240, %v967, 0
      %1067 = vmatpush.msra.mxu0 0.0
      %1068 = vmatpush.msra.mxu0 0.0
      %1069 = vmatpush.msra.mxu0 0.0
      %1070 = vmatpush.msra.mxu0 0.0
      %1071 = vmatpush.msra.mxu0 0.0
      %1072 = vmatpush.msra.mxu0 0.0
      %1073 = vmatpush.msra.mxu0 0.0
      %1074 = vmatpush.msra.mxu0 0.0
      %1075 = vmatpush.msra.mxu0 0.0
      %1076 = vmatpush.msra.mxu0 0.0
      %1077 = vmatpush.msra.mxu0 0.0
      %1078 = vmatpush.msra.mxu0 0.0
      %1079 = vmatpush.msra.mxu0 0.0
      %1080 = vmatpush.msra.mxu0 0.0
      %1081 = vmatpush.msra.mxu0 %v970
      %1082 = vmatpush.msra.mxu0 %v969
      %1083 = vmatmul.f32.gmra.mxu0 %v972
      %v1084 = vpop.f32.mrf.mxu0
      %v1085 = vadd.f32 0.0, %v1084
      %1086 = vmatmul.f32.gmra.mxu0 %v975
      %v1087 = vpop.f32.mrf.mxu0
      %v1088 = vadd.f32 0.0, %v1087
      %1089 = vmatmul.f32.gmra.mxu0 %v978
      %v1090 = vpop.f32.mrf.mxu0
      %v1091 = vadd.f32 0.0, %v1090
      %1092 = vmatmul.f32.gmra.mxu0 %v981
      %v1093 = vpop.f32.mrf.mxu0
      %v1094 = vadd.f32 0.0, %v1093
      %1095 = vmatmul.f32.gmra.mxu0 %v984
      %v1096 = vpop.f32.mrf.mxu0
      %v1097 = vadd.f32 0.0, %v1096
      %1098 = vmatmul.f32.gmra.mxu0 %v987
      %v1099 = vpop.f32.mrf.mxu0
      %v1100 = vadd.f32 0.0, %v1099
      %1101 = vmatmul.f32.gmra.mxu0 %v990
      %v1102 = vpop.f32.mrf.mxu0
      %v1103 = vadd.f32 0.0, %v1102
      %1104 = vmatmul.f32.gmra.mxu0 %v993
      %v1105 = vpop.f32.mrf.mxu0
      %v1106 = vadd.f32 0.0, %v1105
      %1107 = vmatmul.f32.gmra.mxu0 %v996
      %v1108 = vpop.f32.mrf.mxu0
      %v1109 = vadd.f32 0.0, %v1108
      %1110 = vmatmul.f32.gmra.mxu0 %v999
      %v1111 = vpop.f32.mrf.mxu0
      %v1112 = vadd.f32 0.0, %v1111
      %1113 = vmatmul.f32.gmra.mxu0 %v1002
      %v1114 = vpop.f32.mrf.mxu0
      %v1115 = vadd.f32 0.0, %v1114
      %1116 = vmatmul.f32.gmra.mxu0 %v1005
      %v1117 = vpop.f32.mrf.mxu0
      %v1118 = vadd.f32 0.0, %v1117
      %1119 = vmatmul.f32.gmra.mxu0 %v1008
      %v1120 = vpop.f32.mrf.mxu0
      %v1121 = vadd.f32 0.0, %v1120
      %1122 = vmatmul.f32.gmra.mxu0 %v1011
      %v1123 = vpop.f32.mrf.mxu0
      %v1124 = vadd.f32 0.0, %v1123
      %1125 = vmatmul.f32.gmra.mxu0 %v1014
      %v1126 = vpop.f32.mrf.mxu0
      %v1127 = vadd.f32 0.0, %v1126
      %1128 = vmatmul.f32.gmra.mxu0 %v1017
      %v1129 = vpop.f32.mrf.mxu0
      %v1130 = vadd.f32 0.0, %v1129
      %1131 = vmatmul.f32.gmra.mxu0 %v1020
      %v1132 = vpop.f32.mrf.mxu0
      %v1133 = vadd.f32 0.0, %v1132
      %1134 = vmatmul.f32.gmra.mxu0 %v1023
      %v1135 = vpop.f32.mrf.mxu0
      %v1136 = vadd.f32 0.0, %v1135
      %1137 = vmatmul.f32.gmra.mxu0 %v1026
      %v1138 = vpop.f32.mrf.mxu0
      %v1139 = vadd.f32 0.0, %v1138
      %1140 = vmatmul.f32.gmra.mxu0 %v1029
      %v1141 = vpop.f32.mrf.mxu0
      %v1142 = vadd.f32 0.0, %v1141
      %1143 = vmatmul.f32.gmra.mxu0 %v1032
      %v1144 = vpop.f32.mrf.mxu0
      %v1145 = vadd.f32 0.0, %v1144
      %1146 = vmatmul.f32.gmra.mxu0 %v1035
      %v1147 = vpop.f32.mrf.mxu0
      %v1148 = vadd.f32 0.0, %v1147
      %1149 = vmatmul.f32.gmra.mxu0 %v1038
      %v1150 = vpop.f32.mrf.mxu0
      %v1151 = vadd.f32 0.0, %v1150
      %1152 = vmatmul.f32.gmra.mxu0 %v1041
      %v1153 = vpop.f32.mrf.mxu0
      %v1154 = vadd.f32 0.0, %v1153
      %1155 = vmatmul.f32.gmra.mxu0 %v1044
      %v1156 = vpop.f32.mrf.mxu0
      %v1157 = vadd.f32 0.0, %v1156
      %1158 = vmatmul.f32.gmra.mxu0 %v1047
      %v1159 = vpop.f32.mrf.mxu0
      %v1160 = vadd.f32 0.0, %v1159
      %1161 = vmatmul.f32.gmra.mxu0 %v1050
      %v1162 = vpop.f32.mrf.mxu0
      %v1163 = vadd.f32 0.0, %v1162
      %1164 = vmatmul.f32.gmra.mxu0 %v1053
      %v1165 = vpop.f32.mrf.mxu0
      %v1166 = vadd.f32 0.0, %v1165
      %1167 = vmatmul.f32.gmra.mxu0 %v1056
      %v1168 = vpop.f32.mrf.mxu0
      %v1169 = vadd.f32 0.0, %v1168
      %1170 = vmatmul.f32.gmra.mxu0 %v1059
      %v1171 = vpop.f32.mrf.mxu0
      %v1172 = vadd.f32 0.0, %v1171
      %1173 = vmatmul.f32.gmra.mxu0 %v1062
      %v1174 = vpop.f32.mrf.mxu0
      %v1175 = vadd.f32 0.0, %v1174
      %1176 = vmatmul.f32.gmra.mxu0 %v1065
      %v1177 = vpop.f32.mrf.mxu0
      %v1178 = vadd.f32 0.0, %v1177
      %1179 = vdwg.mxu0
      %v1180 = vadd.f32 %v903, %v1085
      %v1181 = vadd.f32 %v904, %v1088
      %v1182 = vadd.f32 %v905, %v1091
      %v1183 = vadd.f32 %v906, %v1094
      %v1184 = vadd.f32 %v907, %v1097
      %v1185 = vadd.f32 %v908, %v1100
      %v1186 = vadd.f32 %v909, %v1103
      %v1187 = vadd.f32 %v910, %v1106
      %v1188 = vadd.f32 %v911, %v1109
      %v1189 = vadd.f32 %v912, %v1112
      %v1190 = vadd.f32 %v913, %v1115
      %v1191 = vadd.f32 %v914, %v1118
      %v1192 = vadd.f32 %v915, %v1121
      %v1193 = vadd.f32 %v916, %v1124
      %v1194 = vadd.f32 %v917, %v1127
      %v1195 = vadd.f32 %v918, %v1130
      %v1196 = vadd.f32 %v919, %v1133
      %v1197 = vadd.f32 %v920, %v1136
      %v1198 = vadd.f32 %v921, %v1139
      %v1199 = vadd.f32 %v922, %v1142
      %v1200 = vadd.f32 %v923, %v1145
      %v1201 = vadd.f32 %v924, %v1148
      %v1202 = vadd.f32 %v925, %v1151
      %v1203 = vadd.f32 %v926, %v1154
      %v1204 = vadd.f32 %v927, %v1157
      %v1205 = vadd.f32 %v928, %v1160
      %v1206 = vadd.f32 %v929, %v1163
      %v1207 = vadd.f32 %v930, %v1166
      %v1208 = vadd.f32 %v931, %v1169
      %v1209 = vadd.f32 %v932, %v1172
      %v1210 = vadd.f32 %v933, %v1175
      %v1211 = vadd.f32 %v934, %v1178
      %v1212 = vld [vmem:[%s935 + $0x1] sm:$0xff]
      %v1213 = vld [vmem:[%s935 + $0x9] sm:$0xff]
      %v1214 = vld [vmem:[%s935 + $0x19] sm:$0xff]
      %v1215 = vld [vmem:[%s935 + $0x21] sm:$0xff]
      %v1216 = vld [vmem:[%s935 + $0x31] sm:$0xff]
      %v1217 = vld [vmem:[%s935 + $0x39] sm:$0xff]
      %v1218 = vld [vmem:[%s935 + $0x49] sm:$0xff]
      %v1219 = vld [vmem:[%s935 + $0x51] sm:$0xff]
      %v1220 = vld [vmem:[%s935 + $0x61] sm:$0xff]
      %v1221 = vld [vmem:[%s935 + $0x69] sm:$0xff]
      %v1222 = vld [vmem:[%s935 + $0x79] sm:$0xff]
      %v1223 = vld [vmem:[%s935 + $0x81] sm:$0xff]
      %v1224 = vld [vmem:[%s935 + $0x91] sm:$0xff]
      %v1225 = vld [vmem:[%s935 + $0x99] sm:$0xff]
      %v1226 = vld [vmem:[%s935 + $0xa9] sm:$0xff]
      %v1227 = vld [vmem:[%s935 + $0xb1] sm:$0xff]
      %v1228 = vld [vmem:[%s935 + $0xc1] sm:$0xff]
      %v1229 = vld [vmem:[%s935 + $0xc9] sm:$0xff]
      %v1230 = vld [vmem:[%s935 + $0xd9] sm:$0xff]
      %v1231 = vld [vmem:[%s935 + $0xe1] sm:$0xff]
      %v1232 = vld [vmem:[%s935 + $0xf1] sm:$0xff]
      %v1233 = vld [vmem:[%s935 + $0xf9] sm:$0xff]
      %v1234 = vld [vmem:[%s935 + $0x109] sm:$0xff]
      %v1235 = vld [vmem:[%s935 + $0x111] sm:$0xff]
      %v1236 = vld [vmem:[%s935 + $0x121] sm:$0xff]
      %v1237 = vld [vmem:[%s935 + $0x129] sm:$0xff]
      %v1238 = vld [vmem:[%s935 + $0x139] sm:$0xff]
      %v1239 = vld [vmem:[%s935 + $0x141] sm:$0xff]
      %v1240 = vld [vmem:[%s935 + $0x151] sm:$0xff]
      %v1241 = vld [vmem:[%s935 + $0x159] sm:$0xff]
      %v1242 = vld [vmem:[%s935 + $0x169] sm:$0xff]
      %v1243 = vld [vmem:[%s935 + $0x171] sm:$0xff]
      %s1244 = scalar_lea.vmem %s1, 64
      %v1245 = vld [vmem:[%s1244] sm:$0xff]
      %v1246 = vld [vmem:[%s1244 + $0x8] sm:$0xff]
      %v1248 = vsel %vm240, %v1212, 0
      %v1251 = vsel %vm240, %v1213, 0
      %v1254 = vsel %vm240, %v1214, 0
      %v1257 = vsel %vm240, %v1215, 0
      %v1260 = vsel %vm240, %v1216, 0
      %v1263 = vsel %vm240, %v1217, 0
      %v1266 = vsel %vm240, %v1218, 0
      %v1269 = vsel %vm240, %v1219, 0
      %v1272 = vsel %vm240, %v1220, 0
      %v1275 = vsel %vm240, %v1221, 0
      %v1278 = vsel %vm240, %v1222, 0
      %v1281 = vsel %vm240, %v1223, 0
      %v1284 = vsel %vm240, %v1224, 0
      %v1287 = vsel %vm240, %v1225, 0
      %v1290 = vsel %vm240, %v1226, 0
      %v1293 = vsel %vm240, %v1227, 0
      %v1296 = vsel %vm240, %v1228, 0
      %v1299 = vsel %vm240, %v1229, 0
      %v1302 = vsel %vm240, %v1230, 0
      %v1305 = vsel %vm240, %v1231, 0
      %v1308 = vsel %vm240, %v1232, 0
      %v1311 = vsel %vm240, %v1233, 0
      %v1314 = vsel %vm240, %v1234, 0
      %v1317 = vsel %vm240, %v1235, 0
      %v1320 = vsel %vm240, %v1236, 0
      %v1323 = vsel %vm240, %v1237, 0
      %v1326 = vsel %vm240, %v1238, 0
      %v1329 = vsel %vm240, %v1239, 0
      %v1332 = vsel %vm240, %v1240, 0
      %v1335 = vsel %vm240, %v1241, 0
      %v1338 = vsel %vm240, %v1242, 0
      %v1341 = vsel %vm240, %v1243, 0
      %1343 = vmatpush.msra.mxu0 0.0
      %1344 = vmatpush.msra.mxu0 0.0
      %1345 = vmatpush.msra.mxu0 0.0
      %1346 = vmatpush.msra.mxu0 0.0
      %1347 = vmatpush.msra.mxu0 0.0
      %1348 = vmatpush.msra.mxu0 0.0
      %1349 = vmatpush.msra.mxu0 0.0
      %1350 = vmatpush.msra.mxu0 0.0
      %1351 = vmatpush.msra.mxu0 0.0
      %1352 = vmatpush.msra.mxu0 0.0
      %1353 = vmatpush.msra.mxu0 0.0
      %1354 = vmatpush.msra.mxu0 0.0
      %1355 = vmatpush.msra.mxu0 0.0
      %1356 = vmatpush.msra.mxu0 0.0
      %1357 = vmatpush.msra.mxu0 %v1246
      %1358 = vmatpush.msra.mxu0 %v1245
      %1359 = vmatmul.f32.gmra.mxu0 %v1248
      %v1360 = vpop.f32.mrf.mxu0
      %v1361 = vadd.f32 0.0, %v1360
      %1362 = vmatmul.f32.gmra.mxu0 %v1251
      %v1363 = vpop.f32.mrf.mxu0
      %v1364 = vadd.f32 0.0, %v1363
      %1365 = vmatmul.f32.gmra.mxu0 %v1254
      %v1366 = vpop.f32.mrf.mxu0
      %v1367 = vadd.f32 0.0, %v1366
      %1368 = vmatmul.f32.gmra.mxu0 %v1257
      %v1369 = vpop.f32.mrf.mxu0
      %v1370 = vadd.f32 0.0, %v1369
      %1371 = vmatmul.f32.gmra.mxu0 %v1260
      %v1372 = vpop.f32.mrf.mxu0
      %v1373 = vadd.f32 0.0, %v1372
      %1374 = vmatmul.f32.gmra.mxu0 %v1263
      %v1375 = vpop.f32.mrf.mxu0
      %v1376 = vadd.f32 0.0, %v1375
      %1377 = vmatmul.f32.gmra.mxu0 %v1266
      %v1378 = vpop.f32.mrf.mxu0
      %v1379 = vadd.f32 0.0, %v1378
      %1380 = vmatmul.f32.gmra.mxu0 %v1269
      %v1381 = vpop.f32.mrf.mxu0
      %v1382 = vadd.f32 0.0, %v1381
      %1383 = vmatmul.f32.gmra.mxu0 %v1272
      %v1384 = vpop.f32.mrf.mxu0
      %v1385 = vadd.f32 0.0, %v1384
      %1386 = vmatmul.f32.gmra.mxu0 %v1275
      %v1387 = vpop.f32.mrf.mxu0
      %v1388 = vadd.f32 0.0, %v1387
      %1389 = vmatmul.f32.gmra.mxu0 %v1278
      %v1390 = vpop.f32.mrf.mxu0
      %v1391 = vadd.f32 0.0, %v1390
      %1392 = vmatmul.f32.gmra.mxu0 %v1281
      %v1393 = vpop.f32.mrf.mxu0
      %v1394 = vadd.f32 0.0, %v1393
      %1395 = vmatmul.f32.gmra.mxu0 %v1284
      %v1396 = vpop.f32.mrf.mxu0
      %v1397 = vadd.f32 0.0, %v1396
      %1398 = vmatmul.f32.gmra.mxu0 %v1287
      %v1399 = vpop.f32.mrf.mxu0
      %v1400 = vadd.f32 0.0, %v1399
      %1401 = vmatmul.f32.gmra.mxu0 %v1290
      %v1402 = vpop.f32.mrf.mxu0
      %v1403 = vadd.f32 0.0, %v1402
      %1404 = vmatmul.f32.gmra.mxu0 %v1293
      %v1405 = vpop.f32.mrf.mxu0
      %v1406 = vadd.f32 0.0, %v1405
      %1407 = vmatmul.f32.gmra.mxu0 %v1296
      %v1408 = vpop.f32.mrf.mxu0
      %v1409 = vadd.f32 0.0, %v1408
      %1410 = vmatmul.f32.gmra.mxu0 %v1299
      %v1411 = vpop.f32.mrf.mxu0
      %v1412 = vadd.f32 0.0, %v1411
      %1413 = vmatmul.f32.gmra.mxu0 %v1302
      %v1414 = vpop.f32.mrf.mxu0
      %v1415 = vadd.f32 0.0, %v1414
      %1416 = vmatmul.f32.gmra.mxu0 %v1305
      %v1417 = vpop.f32.mrf.mxu0
      %v1418 = vadd.f32 0.0, %v1417
      %1419 = vmatmul.f32.gmra.mxu0 %v1308
      %v1420 = vpop.f32.mrf.mxu0
      %v1421 = vadd.f32 0.0, %v1420
      %1422 = vmatmul.f32.gmra.mxu0 %v1311
      %v1423 = vpop.f32.mrf.mxu0
      %v1424 = vadd.f32 0.0, %v1423
      %1425 = vmatmul.f32.gmra.mxu0 %v1314
      %v1426 = vpop.f32.mrf.mxu0
      %v1427 = vadd.f32 0.0, %v1426
      %1428 = vmatmul.f32.gmra.mxu0 %v1317
      %v1429 = vpop.f32.mrf.mxu0
      %v1430 = vadd.f32 0.0, %v1429
      %1431 = vmatmul.f32.gmra.mxu0 %v1320
      %v1432 = vpop.f32.mrf.mxu0
      %v1433 = vadd.f32 0.0, %v1432
      %1434 = vmatmul.f32.gmra.mxu0 %v1323
      %v1435 = vpop.f32.mrf.mxu0
      %v1436 = vadd.f32 0.0, %v1435
      %1437 = vmatmul.f32.gmra.mxu0 %v1326
      %v1438 = vpop.f32.mrf.mxu0
      %v1439 = vadd.f32 0.0, %v1438
      %1440 = vmatmul.f32.gmra.mxu0 %v1329
      %v1441 = vpop.f32.mrf.mxu0
      %v1442 = vadd.f32 0.0, %v1441
      %1443 = vmatmul.f32.gmra.mxu0 %v1332
      %v1444 = vpop.f32.mrf.mxu0
      %v1445 = vadd.f32 0.0, %v1444
      %1446 = vmatmul.f32.gmra.mxu0 %v1335
      %v1447 = vpop.f32.mrf.mxu0
      %v1448 = vadd.f32 0.0, %v1447
      %1449 = vmatmul.f32.gmra.mxu0 %v1338
      %v1450 = vpop.f32.mrf.mxu0
      %v1451 = vadd.f32 0.0, %v1450
      %1452 = vmatmul.f32.gmra.mxu0 %v1341
      %v1453 = vpop.f32.mrf.mxu0
      %v1454 = vadd.f32 0.0, %v1453
      %1455 = vdwg.mxu0
      %v1456 = vadd.f32 %v1180, %v1361
      %v1457 = vadd.f32 %v1181, %v1364
      %v1458 = vadd.f32 %v1182, %v1367
      %v1459 = vadd.f32 %v1183, %v1370
      %v1460 = vadd.f32 %v1184, %v1373
      %v1461 = vadd.f32 %v1185, %v1376
      %v1462 = vadd.f32 %v1186, %v1379
      %v1463 = vadd.f32 %v1187, %v1382
      %v1464 = vadd.f32 %v1188, %v1385
      %v1465 = vadd.f32 %v1189, %v1388
      %v1466 = vadd.f32 %v1190, %v1391
      %v1467 = vadd.f32 %v1191, %v1394
      %v1468 = vadd.f32 %v1192, %v1397
      %v1469 = vadd.f32 %v1193, %v1400
      %v1470 = vadd.f32 %v1194, %v1403
      %v1471 = vadd.f32 %v1195, %v1406
      %v1472 = vadd.f32 %v1196, %v1409
      %v1473 = vadd.f32 %v1197, %v1412
      %v1474 = vadd.f32 %v1198, %v1415
      %v1475 = vadd.f32 %v1199, %v1418
      %v1476 = vadd.f32 %v1200, %v1421
      %v1477 = vadd.f32 %v1201, %v1424
      %v1478 = vadd.f32 %v1202, %v1427
      %v1479 = vadd.f32 %v1203, %v1430
      %v1480 = vadd.f32 %v1204, %v1433
      %v1481 = vadd.f32 %v1205, %v1436
      %v1482 = vadd.f32 %v1206, %v1439
      %v1483 = vadd.f32 %v1207, %v1442
      %v1484 = vadd.f32 %v1208, %v1445
      %v1485 = vadd.f32 %v1209, %v1448
      %v1486 = vadd.f32 %v1210, %v1451
      %v1487 = vadd.f32 %v1211, %v1454
      %v1488 = vld [vmem:[%s935 + $0x2] sm:$0xff]
      %v1489 = vld [vmem:[%s935 + $0xa] sm:$0xff]
      %v1490 = vld [vmem:[%s935 + $0x1a] sm:$0xff]
      %v1491 = vld [vmem:[%s935 + $0x22] sm:$0xff]
      %v1492 = vld [vmem:[%s935 + $0x32] sm:$0xff]
      %v1493 = vld [vmem:[%s935 + $0x3a] sm:$0xff]
      %v1494 = vld [vmem:[%s935 + $0x4a] sm:$0xff]
      %v1495 = vld [vmem:[%s935 + $0x52] sm:$0xff]
      %v1496 = vld [vmem:[%s935 + $0x62] sm:$0xff]
      %v1497 = vld [vmem:[%s935 + $0x6a] sm:$0xff]
      %v1498 = vld [vmem:[%s935 + $0x7a] sm:$0xff]
      %v1499 = vld [vmem:[%s935 + $0x82] sm:$0xff]
      %v1500 = vld [vmem:[%s935 + $0x92] sm:$0xff]
      %v1501 = vld [vmem:[%s935 + $0x9a] sm:$0xff]
      %v1502 = vld [vmem:[%s935 + $0xaa] sm:$0xff]
      %v1503 = vld [vmem:[%s935 + $0xb2] sm:$0xff]
      %v1504 = vld [vmem:[%s935 + $0xc2] sm:$0xff]
      %v1505 = vld [vmem:[%s935 + $0xca] sm:$0xff]
      %v1506 = vld [vmem:[%s935 + $0xda] sm:$0xff]
      %v1507 = vld [vmem:[%s935 + $0xe2] sm:$0xff]
      %v1508 = vld [vmem:[%s935 + $0xf2] sm:$0xff]
      %v1509 = vld [vmem:[%s935 + $0xfa] sm:$0xff]
      %v1510 = vld [vmem:[%s935 + $0x10a] sm:$0xff]
      %v1511 = vld [vmem:[%s935 + $0x112] sm:$0xff]
      %v1512 = vld [vmem:[%s935 + $0x122] sm:$0xff]
      %v1513 = vld [vmem:[%s935 + $0x12a] sm:$0xff]
      %v1514 = vld [vmem:[%s935 + $0x13a] sm:$0xff]
      %v1515 = vld [vmem:[%s935 + $0x142] sm:$0xff]
      %v1516 = vld [vmem:[%s935 + $0x152] sm:$0xff]
      %v1517 = vld [vmem:[%s935 + $0x15a] sm:$0xff]
      %v1518 = vld [vmem:[%s935 + $0x16a] sm:$0xff]
      %v1519 = vld [vmem:[%s935 + $0x172] sm:$0xff]
      %s1520 = scalar_lea.vmem %s1, 80
      %v1521 = vld [vmem:[%s1520] sm:$0xff]
      %v1522 = vld [vmem:[%s1520 + $0x8] sm:$0xff]
      %v1524 = vsel %vm240, %v1488, 0
      %v1527 = vsel %vm240, %v1489, 0
      %v1530 = vsel %vm240, %v1490, 0
      %v1533 = vsel %vm240, %v1491, 0
      %v1536 = vsel %vm240, %v1492, 0
      %v1539 = vsel %vm240, %v1493, 0
      %v1542 = vsel %vm240, %v1494, 0
      %v1545 = vsel %vm240, %v1495, 0
      %v1548 = vsel %vm240, %v1496, 0
      %v1551 = vsel %vm240, %v1497, 0
      %v1554 = vsel %vm240, %v1498, 0
      %v1557 = vsel %vm240, %v1499, 0
      %v1560 = vsel %vm240, %v1500, 0
      %v1563 = vsel %vm240, %v1501, 0
      %v1566 = vsel %vm240, %v1502, 0
      %v1569 = vsel %vm240, %v1503, 0
      %v1572 = vsel %vm240, %v1504, 0
      %v1575 = vsel %vm240, %v1505, 0
      %v1578 = vsel %vm240, %v1506, 0
      %v1581 = vsel %vm240, %v1507, 0
      %v1584 = vsel %vm240, %v1508, 0
      %v1587 = vsel %vm240, %v1509, 0
      %v1590 = vsel %vm240, %v1510, 0
      %v1593 = vsel %vm240, %v1511, 0
      %v1596 = vsel %vm240, %v1512, 0
      %v1599 = vsel %vm240, %v1513, 0
      %v1602 = vsel %vm240, %v1514, 0
      %v1605 = vsel %vm240, %v1515, 0
      %v1608 = vsel %vm240, %v1516, 0
      %v1611 = vsel %vm240, %v1517, 0
      %v1614 = vsel %vm240, %v1518, 0
      %v1617 = vsel %vm240, %v1519, 0
      %1619 = vmatpush.msra.mxu0 0.0
      %1620 = vmatpush.msra.mxu0 0.0
      %1621 = vmatpush.msra.mxu0 0.0
      %1622 = vmatpush.msra.mxu0 0.0
      %1623 = vmatpush.msra.mxu0 0.0
      %1624 = vmatpush.msra.mxu0 0.0
      %1625 = vmatpush.msra.mxu0 0.0
      %1626 = vmatpush.msra.mxu0 0.0
      %1627 = vmatpush.msra.mxu0 0.0
      %1628 = vmatpush.msra.mxu0 0.0
      %1629 = vmatpush.msra.mxu0 0.0
      %1630 = vmatpush.msra.mxu0 0.0
      %1631 = vmatpush.msra.mxu0 0.0
      %1632 = vmatpush.msra.mxu0 0.0
      %1633 = vmatpush.msra.mxu0 %v1522
      %1634 = vmatpush.msra.mxu0 %v1521
      %1635 = vmatmul.f32.gmra.mxu0 %v1524
      %v1636 = vpop.f32.mrf.mxu0
      %v1637 = vadd.f32 0.0, %v1636
      %1638 = vmatmul.f32.gmra.mxu0 %v1527
      %v1639 = vpop.f32.mrf.mxu0
      %v1640 = vadd.f32 0.0, %v1639
      %1641 = vmatmul.f32.gmra.mxu0 %v1530
      %v1642 = vpop.f32.mrf.mxu0
      %v1643 = vadd.f32 0.0, %v1642
      %1644 = vmatmul.f32.gmra.mxu0 %v1533
      %v1645 = vpop.f32.mrf.mxu0
      %v1646 = vadd.f32 0.0, %v1645
      %1647 = vmatmul.f32.gmra.mxu0 %v1536
      %v1648 = vpop.f32.mrf.mxu0
      %v1649 = vadd.f32 0.0, %v1648
      %1650 = vmatmul.f32.gmra.mxu0 %v1539
      %v1651 = vpop.f32.mrf.mxu0
      %v1652 = vadd.f32 0.0, %v1651
      %1653 = vmatmul.f32.gmra.mxu0 %v1542
      %v1654 = vpop.f32.mrf.mxu0
      %v1655 = vadd.f32 0.0, %v1654
      %1656 = vmatmul.f32.gmra.mxu0 %v1545
      %v1657 = vpop.f32.mrf.mxu0
      %v1658 = vadd.f32 0.0, %v1657
      %1659 = vmatmul.f32.gmra.mxu0 %v1548
      %v1660 = vpop.f32.mrf.mxu0
      %v1661 = vadd.f32 0.0, %v1660
      %1662 = vmatmul.f32.gmra.mxu0 %v1551
      %v1663 = vpop.f32.mrf.mxu0
      %v1664 = vadd.f32 0.0, %v1663
      %1665 = vmatmul.f32.gmra.mxu0 %v1554
      %v1666 = vpop.f32.mrf.mxu0
      %v1667 = vadd.f32 0.0, %v1666
      %1668 = vmatmul.f32.gmra.mxu0 %v1557
      %v1669 = vpop.f32.mrf.mxu0
      %v1670 = vadd.f32 0.0, %v1669
      %1671 = vmatmul.f32.gmra.mxu0 %v1560
      %v1672 = vpop.f32.mrf.mxu0
      %v1673 = vadd.f32 0.0, %v1672
      %1674 = vmatmul.f32.gmra.mxu0 %v1563
      %v1675 = vpop.f32.mrf.mxu0
      %v1676 = vadd.f32 0.0, %v1675
      %1677 = vmatmul.f32.gmra.mxu0 %v1566
      %v1678 = vpop.f32.mrf.mxu0
      %v1679 = vadd.f32 0.0, %v1678
      %1680 = vmatmul.f32.gmra.mxu0 %v1569
      %v1681 = vpop.f32.mrf.mxu0
      %v1682 = vadd.f32 0.0, %v1681
      %1683 = vmatmul.f32.gmra.mxu0 %v1572
      %v1684 = vpop.f32.mrf.mxu0
      %v1685 = vadd.f32 0.0, %v1684
      %1686 = vmatmul.f32.gmra.mxu0 %v1575
      %v1687 = vpop.f32.mrf.mxu0
      %v1688 = vadd.f32 0.0, %v1687
      %1689 = vmatmul.f32.gmra.mxu0 %v1578
      %v1690 = vpop.f32.mrf.mxu0
      %v1691 = vadd.f32 0.0, %v1690
      %1692 = vmatmul.f32.gmra.mxu0 %v1581
      %v1693 = vpop.f32.mrf.mxu0
      %v1694 = vadd.f32 0.0, %v1693
      %1695 = vmatmul.f32.gmra.mxu0 %v1584
      %v1696 = vpop.f32.mrf.mxu0
      %v1697 = vadd.f32 0.0, %v1696
      %1698 = vmatmul.f32.gmra.mxu0 %v1587
      %v1699 = vpop.f32.mrf.mxu0
      %v1700 = vadd.f32 0.0, %v1699
      %1701 = vmatmul.f32.gmra.mxu0 %v1590
      %v1702 = vpop.f32.mrf.mxu0
      %v1703 = vadd.f32 0.0, %v1702
      %1704 = vmatmul.f32.gmra.mxu0 %v1593
      %v1705 = vpop.f32.mrf.mxu0
      %v1706 = vadd.f32 0.0, %v1705
      %1707 = vmatmul.f32.gmra.mxu0 %v1596
      %v1708 = vpop.f32.mrf.mxu0
      %v1709 = vadd.f32 0.0, %v1708
      %1710 = vmatmul.f32.gmra.mxu0 %v1599
      %v1711 = vpop.f32.mrf.mxu0
      %v1712 = vadd.f32 0.0, %v1711
      %1713 = vmatmul.f32.gmra.mxu0 %v1602
      %v1714 = vpop.f32.mrf.mxu0
      %v1715 = vadd.f32 0.0, %v1714
      %1716 = vmatmul.f32.gmra.mxu0 %v1605
      %v1717 = vpop.f32.mrf.mxu0
      %v1718 = vadd.f32 0.0, %v1717
      %1719 = vmatmul.f32.gmra.mxu0 %v1608
      %v1720 = vpop.f32.mrf.mxu0
      %v1721 = vadd.f32 0.0, %v1720
      %1722 = vmatmul.f32.gmra.mxu0 %v1611
      %v1723 = vpop.f32.mrf.mxu0
      %v1724 = vadd.f32 0.0, %v1723
      %1725 = vmatmul.f32.gmra.mxu0 %v1614
      %v1726 = vpop.f32.mrf.mxu0
      %v1727 = vadd.f32 0.0, %v1726
      %1728 = vmatmul.f32.gmra.mxu0 %v1617
      %v1729 = vpop.f32.mrf.mxu0
      %v1730 = vadd.f32 0.0, %v1729
      %1731 = vdwg.mxu0
      %v1732 = vadd.f32 %v1456, %v1637
      %v1733 = vadd.f32 %v1457, %v1640
      %v1734 = vadd.f32 %v1458, %v1643
      %v1735 = vadd.f32 %v1459, %v1646
      %v1736 = vadd.f32 %v1460, %v1649
      %v1737 = vadd.f32 %v1461, %v1652
      %v1738 = vadd.f32 %v1462, %v1655
      %v1739 = vadd.f32 %v1463, %v1658
      %v1740 = vadd.f32 %v1464, %v1661
      %v1741 = vadd.f32 %v1465, %v1664
      %v1742 = vadd.f32 %v1466, %v1667
      %v1743 = vadd.f32 %v1467, %v1670
      %v1744 = vadd.f32 %v1468, %v1673
      %v1745 = vadd.f32 %v1469, %v1676
      %v1746 = vadd.f32 %v1470, %v1679
      %v1747 = vadd.f32 %v1471, %v1682
      %v1748 = vadd.f32 %v1472, %v1685
      %v1749 = vadd.f32 %v1473, %v1688
      %v1750 = vadd.f32 %v1474, %v1691
      %v1751 = vadd.f32 %v1475, %v1694
      %v1752 = vadd.f32 %v1476, %v1697
      %v1753 = vadd.f32 %v1477, %v1700
      %v1754 = vadd.f32 %v1478, %v1703
      %v1755 = vadd.f32 %v1479, %v1706
      %v1756 = vadd.f32 %v1480, %v1709
      %v1757 = vadd.f32 %v1481, %v1712
      %v1758 = vadd.f32 %v1482, %v1715
      %v1759 = vadd.f32 %v1483, %v1718
      %v1760 = vadd.f32 %v1484, %v1721
      %v1761 = vadd.f32 %v1485, %v1724
      %v1762 = vadd.f32 %v1486, %v1727
      %v1763 = vadd.f32 %v1487, %v1730
      %s1764 = scalar_lea.vmem %s165, 48
      %v1765 = vld [vmem:[%s1764] sm:$0xff]
      %v1766 = vld [vmem:[%s1764 + $0x8] sm:$0xff]
      %v1767 = vld [vmem:[%s1764 + $0x18] sm:$0xff]
      %v1768 = vld [vmem:[%s1764 + $0x20] sm:$0xff]
      %v1769 = vld [vmem:[%s1764 + $0x30] sm:$0xff]
      %v1770 = vld [vmem:[%s1764 + $0x38] sm:$0xff]
      %v1771 = vld [vmem:[%s1764 + $0x48] sm:$0xff]
      %v1772 = vld [vmem:[%s1764 + $0x50] sm:$0xff]
      %v1773 = vld [vmem:[%s1764 + $0x60] sm:$0xff]
      %v1774 = vld [vmem:[%s1764 + $0x68] sm:$0xff]
      %v1775 = vld [vmem:[%s1764 + $0x78] sm:$0xff]
      %v1776 = vld [vmem:[%s1764 + $0x80] sm:$0xff]
      %v1777 = vld [vmem:[%s1764 + $0x90] sm:$0xff]
      %v1778 = vld [vmem:[%s1764 + $0x98] sm:$0xff]
      %v1779 = vld [vmem:[%s1764 + $0xa8] sm:$0xff]
      %v1780 = vld [vmem:[%s1764 + $0xb0] sm:$0xff]
      %v1781 = vld [vmem:[%s1764 + $0xc0] sm:$0xff]
      %v1782 = vld [vmem:[%s1764 + $0xc8] sm:$0xff]
      %v1783 = vld [vmem:[%s1764 + $0xd8] sm:$0xff]
      %v1784 = vld [vmem:[%s1764 + $0xe0] sm:$0xff]
      %v1785 = vld [vmem:[%s1764 + $0xf0] sm:$0xff]
      %v1786 = vld [vmem:[%s1764 + $0xf8] sm:$0xff]
      %v1787 = vld [vmem:[%s1764 + $0x108] sm:$0xff]
      %v1788 = vld [vmem:[%s1764 + $0x110] sm:$0xff]
      %v1789 = vld [vmem:[%s1764 + $0x120] sm:$0xff]
      %v1790 = vld [vmem:[%s1764 + $0x128] sm:$0xff]
      %v1791 = vld [vmem:[%s1764 + $0x138] sm:$0xff]
      %v1792 = vld [vmem:[%s1764 + $0x140] sm:$0xff]
      %v1793 = vld [vmem:[%s1764 + $0x150] sm:$0xff]
      %v1794 = vld [vmem:[%s1764 + $0x158] sm:$0xff]
      %v1795 = vld [vmem:[%s1764 + $0x168] sm:$0xff]
      %v1796 = vld [vmem:[%s1764 + $0x170] sm:$0xff]
      %s1797 = scalar_lea.vmem %s1, 96
      %v1798 = vld [vmem:[%s1797] sm:$0xff]
      %v1799 = vld [vmem:[%s1797 + $0x8] sm:$0xff]
      %v1801 = vsel %vm240, %v1765, 0
      %v1804 = vsel %vm240, %v1766, 0
      %v1807 = vsel %vm240, %v1767, 0
      %v1810 = vsel %vm240, %v1768, 0
      %v1813 = vsel %vm240, %v1769, 0
      %v1816 = vsel %vm240, %v1770, 0
      %v1819 = vsel %vm240, %v1771, 0
      %v1822 = vsel %vm240, %v1772, 0
      %v1825 = vsel %vm240, %v1773, 0
      %v1828 = vsel %vm240, %v1774, 0
      %v1831 = vsel %vm240, %v1775, 0
      %v1834 = vsel %vm240, %v1776, 0
      %v1837 = vsel %vm240, %v1777, 0
      %v1840 = vsel %vm240, %v1778, 0
      %v1843 = vsel %vm240, %v1779, 0
      %v1846 = vsel %vm240, %v1780, 0
      %v1849 = vsel %vm240, %v1781, 0
      %v1852 = vsel %vm240, %v1782, 0
      %v1855 = vsel %vm240, %v1783, 0
      %v1858 = vsel %vm240, %v1784, 0
      %v1861 = vsel %vm240, %v1785, 0
      %v1864 = vsel %vm240, %v1786, 0
      %v1867 = vsel %vm240, %v1787, 0
      %v1870 = vsel %vm240, %v1788, 0
      %v1873 = vsel %vm240, %v1789, 0
      %v1876 = vsel %vm240, %v1790, 0
      %v1879 = vsel %vm240, %v1791, 0
      %v1882 = vsel %vm240, %v1792, 0
      %v1885 = vsel %vm240, %v1793, 0
      %v1888 = vsel %vm240, %v1794, 0
      %v1891 = vsel %vm240, %v1795, 0
      %v1894 = vsel %vm240, %v1796, 0
      %1896 = vmatpush.msra.mxu0 0.0
      %1897 = vmatpush.msra.mxu0 0.0
      %1898 = vmatpush.msra.mxu0 0.0
      %1899 = vmatpush.msra.mxu0 0.0
      %1900 = vmatpush.msra.mxu0 0.0
      %1901 = vmatpush.msra.mxu0 0.0
      %1902 = vmatpush.msra.mxu0 0.0
      %1903 = vmatpush.msra.mxu0 0.0
      %1904 = vmatpush.msra.mxu0 0.0
      %1905 = vmatpush.msra.mxu0 0.0
      %1906 = vmatpush.msra.mxu0 0.0
      %1907 = vmatpush.msra.mxu0 0.0
      %1908 = vmatpush.msra.mxu0 0.0
      %1909 = vmatpush.msra.mxu0 0.0
      %1910 = vmatpush.msra.mxu0 %v1799
      %1911 = vmatpush.msra.mxu0 %v1798
      %1912 = vmatmul.f32.gmra.mxu0 %v1801
      %v1913 = vpop.f32.mrf.mxu0
      %v1914 = vadd.f32 0.0, %v1913
      %1915 = vmatmul.f32.gmra.mxu0 %v1804
      %v1916 = vpop.f32.mrf.mxu0
      %v1917 = vadd.f32 0.0, %v1916
      %1918 = vmatmul.f32.gmra.mxu0 %v1807
      %v1919 = vpop.f32.mrf.mxu0
      %v1920 = vadd.f32 0.0, %v1919
      %1921 = vmatmul.f32.gmra.mxu0 %v1810
      %v1922 = vpop.f32.mrf.mxu0
      %v1923 = vadd.f32 0.0, %v1922
      %1924 = vmatmul.f32.gmra.mxu0 %v1813
      %v1925 = vpop.f32.mrf.mxu0
      %v1926 = vadd.f32 0.0, %v1925
      %1927 = vmatmul.f32.gmra.mxu0 %v1816
      %v1928 = vpop.f32.mrf.mxu0
      %v1929 = vadd.f32 0.0, %v1928
      %1930 = vmatmul.f32.gmra.mxu0 %v1819
      %v1931 = vpop.f32.mrf.mxu0
      %v1932 = vadd.f32 0.0, %v1931
      %1933 = vmatmul.f32.gmra.mxu0 %v1822
      %v1934 = vpop.f32.mrf.mxu0
      %v1935 = vadd.f32 0.0, %v1934
      %1936 = vmatmul.f32.gmra.mxu0 %v1825
      %v1937 = vpop.f32.mrf.mxu0
      %v1938 = vadd.f32 0.0, %v1937
      %1939 = vmatmul.f32.gmra.mxu0 %v1828
      %v1940 = vpop.f32.mrf.mxu0
      %v1941 = vadd.f32 0.0, %v1940
      %1942 = vmatmul.f32.gmra.mxu0 %v1831
      %v1943 = vpop.f32.mrf.mxu0
      %v1944 = vadd.f32 0.0, %v1943
      %1945 = vmatmul.f32.gmra.mxu0 %v1834
      %v1946 = vpop.f32.mrf.mxu0
      %v1947 = vadd.f32 0.0, %v1946
      %1948 = vmatmul.f32.gmra.mxu0 %v1837
      %v1949 = vpop.f32.mrf.mxu0
      %v1950 = vadd.f32 0.0, %v1949
      %1951 = vmatmul.f32.gmra.mxu0 %v1840
      %v1952 = vpop.f32.mrf.mxu0
      %v1953 = vadd.f32 0.0, %v1952
      %1954 = vmatmul.f32.gmra.mxu0 %v1843
      %v1955 = vpop.f32.mrf.mxu0
      %v1956 = vadd.f32 0.0, %v1955
      %1957 = vmatmul.f32.gmra.mxu0 %v1846
      %v1958 = vpop.f32.mrf.mxu0
      %v1959 = vadd.f32 0.0, %v1958
      %1960 = vmatmul.f32.gmra.mxu0 %v1849
      %v1961 = vpop.f32.mrf.mxu0
      %v1962 = vadd.f32 0.0, %v1961
      %1963 = vmatmul.f32.gmra.mxu0 %v1852
      %v1964 = vpop.f32.mrf.mxu0
      %v1965 = vadd.f32 0.0, %v1964
      %1966 = vmatmul.f32.gmra.mxu0 %v1855
      %v1967 = vpop.f32.mrf.mxu0
      %v1968 = vadd.f32 0.0, %v1967
      %1969 = vmatmul.f32.gmra.mxu0 %v1858
      %v1970 = vpop.f32.mrf.mxu0
      %v1971 = vadd.f32 0.0, %v1970
      %1972 = vmatmul.f32.gmra.mxu0 %v1861
      %v1973 = vpop.f32.mrf.mxu0
      %v1974 = vadd.f32 0.0, %v1973
      %1975 = vmatmul.f32.gmra.mxu0 %v1864
      %v1976 = vpop.f32.mrf.mxu0
      %v1977 = vadd.f32 0.0, %v1976
      %1978 = vmatmul.f32.gmra.mxu0 %v1867
      %v1979 = vpop.f32.mrf.mxu0
      %v1980 = vadd.f32 0.0, %v1979
      %1981 = vmatmul.f32.gmra.mxu0 %v1870
      %v1982 = vpop.f32.mrf.mxu0
      %v1983 = vadd.f32 0.0, %v1982
      %1984 = vmatmul.f32.gmra.mxu0 %v1873
      %v1985 = vpop.f32.mrf.mxu0
      %v1986 = vadd.f32 0.0, %v1985
      %1987 = vmatmul.f32.gmra.mxu0 %v1876
      %v1988 = vpop.f32.mrf.mxu0
      %v1989 = vadd.f32 0.0, %v1988
      %1990 = vmatmul.f32.gmra.mxu0 %v1879
      %v1991 = vpop.f32.mrf.mxu0
      %v1992 = vadd.f32 0.0, %v1991
      %1993 = vmatmul.f32.gmra.mxu0 %v1882
      %v1994 = vpop.f32.mrf.mxu0
      %v1995 = vadd.f32 0.0, %v1994
      %1996 = vmatmul.f32.gmra.mxu0 %v1885
      %v1997 = vpop.f32.mrf.mxu0
      %v1998 = vadd.f32 0.0, %v1997
      %1999 = vmatmul.f32.gmra.mxu0 %v1888
      %v2000 = vpop.f32.mrf.mxu0
      %v2001 = vadd.f32 0.0, %v2000
      %2002 = vmatmul.f32.gmra.mxu0 %v1891
      %v2003 = vpop.f32.mrf.mxu0
      %v2004 = vadd.f32 0.0, %v2003
      %2005 = vmatmul.f32.gmra.mxu0 %v1894
      %v2006 = vpop.f32.mrf.mxu0
      %v2007 = vadd.f32 0.0, %v2006
      %2008 = vdwg.mxu0
      %v2009 = vadd.f32 %v1732, %v1914
      %v2010 = vadd.f32 %v1733, %v1917
      %v2011 = vadd.f32 %v1734, %v1920
      %v2012 = vadd.f32 %v1735, %v1923
      %v2013 = vadd.f32 %v1736, %v1926
      %v2014 = vadd.f32 %v1737, %v1929
      %v2015 = vadd.f32 %v1738, %v1932
      %v2016 = vadd.f32 %v1739, %v1935
      %v2017 = vadd.f32 %v1740, %v1938
      %v2018 = vadd.f32 %v1741, %v1941
      %v2019 = vadd.f32 %v1742, %v1944
      %v2020 = vadd.f32 %v1743, %v1947
      %v2021 = vadd.f32 %v1744, %v1950
      %v2022 = vadd.f32 %v1745, %v1953
      %v2023 = vadd.f32 %v1746, %v1956
      %v2024 = vadd.f32 %v1747, %v1959
      %v2025 = vadd.f32 %v1748, %v1962
      %v2026 = vadd.f32 %v1749, %v1965
      %v2027 = vadd.f32 %v1750, %v1968
      %v2028 = vadd.f32 %v1751, %v1971
      %v2029 = vadd.f32 %v1752, %v1974
      %v2030 = vadd.f32 %v1753, %v1977
      %v2031 = vadd.f32 %v1754, %v1980
      %v2032 = vadd.f32 %v1755, %v1983
      %v2033 = vadd.f32 %v1756, %v1986
      %v2034 = vadd.f32 %v1757, %v1989
      %v2035 = vadd.f32 %v1758, %v1992
      %v2036 = vadd.f32 %v1759, %v1995
      %v2037 = vadd.f32 %v1760, %v1998
      %v2038 = vadd.f32 %v1761, %v2001
      %v2039 = vadd.f32 %v1762, %v2004
      %v2040 = vadd.f32 %v1763, %v2007
      %v2041 = vld [vmem:[%s1764 + $0x1] sm:$0xff]
      %v2042 = vld [vmem:[%s1764 + $0x9] sm:$0xff]
      %v2043 = vld [vmem:[%s1764 + $0x19] sm:$0xff]
      %v2044 = vld [vmem:[%s1764 + $0x21] sm:$0xff]
      %v2045 = vld [vmem:[%s1764 + $0x31] sm:$0xff]
      %v2046 = vld [vmem:[%s1764 + $0x39] sm:$0xff]
      %v2047 = vld [vmem:[%s1764 + $0x49] sm:$0xff]
      %v2048 = vld [vmem:[%s1764 + $0x51] sm:$0xff]
      %v2049 = vld [vmem:[%s1764 + $0x61] sm:$0xff]
      %v2050 = vld [vmem:[%s1764 + $0x69] sm:$0xff]
      %v2051 = vld [vmem:[%s1764 + $0x79] sm:$0xff]
      %v2052 = vld [vmem:[%s1764 + $0x81] sm:$0xff]
      %v2053 = vld [vmem:[%s1764 + $0x91] sm:$0xff]
      %v2054 = vld [vmem:[%s1764 + $0x99] sm:$0xff]
      %v2055 = vld [vmem:[%s1764 + $0xa9] sm:$0xff]
      %v2056 = vld [vmem:[%s1764 + $0xb1] sm:$0xff]
      %v2057 = vld [vmem:[%s1764 + $0xc1] sm:$0xff]
      %v2058 = vld [vmem:[%s1764 + $0xc9] sm:$0xff]
      %v2059 = vld [vmem:[%s1764 + $0xd9] sm:$0xff]
      %v2060 = vld [vmem:[%s1764 + $0xe1] sm:$0xff]
      %v2061 = vld [vmem:[%s1764 + $0xf1] sm:$0xff]
      %v2062 = vld [vmem:[%s1764 + $0xf9] sm:$0xff]
      %v2063 = vld [vmem:[%s1764 + $0x109] sm:$0xff]
      %v2064 = vld [vmem:[%s1764 + $0x111] sm:$0xff]
      %v2065 = vld [vmem:[%s1764 + $0x121] sm:$0xff]
      %v2066 = vld [vmem:[%s1764 + $0x129] sm:$0xff]
      %v2067 = vld [vmem:[%s1764 + $0x139] sm:$0xff]
      %v2068 = vld [vmem:[%s1764 + $0x141] sm:$0xff]
      %v2069 = vld [vmem:[%s1764 + $0x151] sm:$0xff]
      %v2070 = vld [vmem:[%s1764 + $0x159] sm:$0xff]
      %v2071 = vld [vmem:[%s1764 + $0x169] sm:$0xff]
      %v2072 = vld [vmem:[%s1764 + $0x171] sm:$0xff]
      %s2073 = scalar_lea.vmem %s1, 112
      %v2074 = vld [vmem:[%s2073] sm:$0xff]
      %v2075 = vld [vmem:[%s2073 + $0x8] sm:$0xff]
      %v2077 = vsel %vm240, %v2041, 0
      %v2080 = vsel %vm240, %v2042, 0
      %v2083 = vsel %vm240, %v2043, 0
      %v2086 = vsel %vm240, %v2044, 0
      %v2089 = vsel %vm240, %v2045, 0
      %v2092 = vsel %vm240, %v2046, 0
      %v2095 = vsel %vm240, %v2047, 0
      %v2098 = vsel %vm240, %v2048, 0
      %v2101 = vsel %vm240, %v2049, 0
      %v2104 = vsel %vm240, %v2050, 0
      %v2107 = vsel %vm240, %v2051, 0
      %v2110 = vsel %vm240, %v2052, 0
      %v2113 = vsel %vm240, %v2053, 0
      %v2116 = vsel %vm240, %v2054, 0
      %v2119 = vsel %vm240, %v2055, 0
      %v2122 = vsel %vm240, %v2056, 0
      %v2125 = vsel %vm240, %v2057, 0
      %v2128 = vsel %vm240, %v2058, 0
      %v2131 = vsel %vm240, %v2059, 0
      %v2134 = vsel %vm240, %v2060, 0
      %v2137 = vsel %vm240, %v2061, 0
      %v2140 = vsel %vm240, %v2062, 0
      %v2143 = vsel %vm240, %v2063, 0
      %v2146 = vsel %vm240, %v2064, 0
      %v2149 = vsel %vm240, %v2065, 0
      %v2152 = vsel %vm240, %v2066, 0
      %v2155 = vsel %vm240, %v2067, 0
      %v2158 = vsel %vm240, %v2068, 0
      %v2161 = vsel %vm240, %v2069, 0
      %v2164 = vsel %vm240, %v2070, 0
      %v2167 = vsel %vm240, %v2071, 0
      %v2170 = vsel %vm240, %v2072, 0
      %2172 = vmatpush.msra.mxu0 0.0
      %2173 = vmatpush.msra.mxu0 0.0
      %2174 = vmatpush.msra.mxu0 0.0
      %2175 = vmatpush.msra.mxu0 0.0
      %2176 = vmatpush.msra.mxu0 0.0
      %2177 = vmatpush.msra.mxu0 0.0
      %2178 = vmatpush.msra.mxu0 0.0
      %2179 = vmatpush.msra.mxu0 0.0
      %2180 = vmatpush.msra.mxu0 0.0
      %2181 = vmatpush.msra.mxu0 0.0
      %2182 = vmatpush.msra.mxu0 0.0
      %2183 = vmatpush.msra.mxu0 0.0
      %2184 = vmatpush.msra.mxu0 0.0
      %2185 = vmatpush.msra.mxu0 0.0
      %2186 = vmatpush.msra.mxu0 %v2075
      %2187 = vmatpush.msra.mxu0 %v2074
      %2188 = vmatmul.f32.gmra.mxu0 %v2077
      %v2189 = vpop.f32.mrf.mxu0
      %v2190 = vadd.f32 0.0, %v2189
      %2191 = vmatmul.f32.gmra.mxu0 %v2080
      %v2192 = vpop.f32.mrf.mxu0
      %v2193 = vadd.f32 0.0, %v2192
      %2194 = vmatmul.f32.gmra.mxu0 %v2083
      %v2195 = vpop.f32.mrf.mxu0
      %v2196 = vadd.f32 0.0, %v2195
      %2197 = vmatmul.f32.gmra.mxu0 %v2086
      %v2198 = vpop.f32.mrf.mxu0
      %v2199 = vadd.f32 0.0, %v2198
      %2200 = vmatmul.f32.gmra.mxu0 %v2089
      %v2201 = vpop.f32.mrf.mxu0
      %v2202 = vadd.f32 0.0, %v2201
      %2203 = vmatmul.f32.gmra.mxu0 %v2092
      %v2204 = vpop.f32.mrf.mxu0
      %v2205 = vadd.f32 0.0, %v2204
      %2206 = vmatmul.f32.gmra.mxu0 %v2095
      %v2207 = vpop.f32.mrf.mxu0
      %v2208 = vadd.f32 0.0, %v2207
      %2209 = vmatmul.f32.gmra.mxu0 %v2098
      %v2210 = vpop.f32.mrf.mxu0
      %v2211 = vadd.f32 0.0, %v2210
      %2212 = vmatmul.f32.gmra.mxu0 %v2101
      %v2213 = vpop.f32.mrf.mxu0
      %v2214 = vadd.f32 0.0, %v2213
      %2215 = vmatmul.f32.gmra.mxu0 %v2104
      %v2216 = vpop.f32.mrf.mxu0
      %v2217 = vadd.f32 0.0, %v2216
      %2218 = vmatmul.f32.gmra.mxu0 %v2107
      %v2219 = vpop.f32.mrf.mxu0
      %v2220 = vadd.f32 0.0, %v2219
      %2221 = vmatmul.f32.gmra.mxu0 %v2110
      %v2222 = vpop.f32.mrf.mxu0
      %v2223 = vadd.f32 0.0, %v2222
      %2224 = vmatmul.f32.gmra.mxu0 %v2113
      %v2225 = vpop.f32.mrf.mxu0
      %v2226 = vadd.f32 0.0, %v2225
      %2227 = vmatmul.f32.gmra.mxu0 %v2116
      %v2228 = vpop.f32.mrf.mxu0
      %v2229 = vadd.f32 0.0, %v2228
      %2230 = vmatmul.f32.gmra.mxu0 %v2119
      %v2231 = vpop.f32.mrf.mxu0
      %v2232 = vadd.f32 0.0, %v2231
      %2233 = vmatmul.f32.gmra.mxu0 %v2122
      %v2234 = vpop.f32.mrf.mxu0
      %v2235 = vadd.f32 0.0, %v2234
      %2236 = vmatmul.f32.gmra.mxu0 %v2125
      %v2237 = vpop.f32.mrf.mxu0
      %v2238 = vadd.f32 0.0, %v2237
      %2239 = vmatmul.f32.gmra.mxu0 %v2128
      %v2240 = vpop.f32.mrf.mxu0
      %v2241 = vadd.f32 0.0, %v2240
      %2242 = vmatmul.f32.gmra.mxu0 %v2131
      %v2243 = vpop.f32.mrf.mxu0
      %v2244 = vadd.f32 0.0, %v2243
      %2245 = vmatmul.f32.gmra.mxu0 %v2134
      %v2246 = vpop.f32.mrf.mxu0
      %v2247 = vadd.f32 0.0, %v2246
      %2248 = vmatmul.f32.gmra.mxu0 %v2137
      %v2249 = vpop.f32.mrf.mxu0
      %v2250 = vadd.f32 0.0, %v2249
      %2251 = vmatmul.f32.gmra.mxu0 %v2140
      %v2252 = vpop.f32.mrf.mxu0
      %v2253 = vadd.f32 0.0, %v2252
      %2254 = vmatmul.f32.gmra.mxu0 %v2143
      %v2255 = vpop.f32.mrf.mxu0
      %v2256 = vadd.f32 0.0, %v2255
      %2257 = vmatmul.f32.gmra.mxu0 %v2146
      %v2258 = vpop.f32.mrf.mxu0
      %v2259 = vadd.f32 0.0, %v2258
      %2260 = vmatmul.f32.gmra.mxu0 %v2149
      %v2261 = vpop.f32.mrf.mxu0
      %v2262 = vadd.f32 0.0, %v2261
      %2263 = vmatmul.f32.gmra.mxu0 %v2152
      %v2264 = vpop.f32.mrf.mxu0
      %v2265 = vadd.f32 0.0, %v2264
      %2266 = vmatmul.f32.gmra.mxu0 %v2155
      %v2267 = vpop.f32.mrf.mxu0
      %v2268 = vadd.f32 0.0, %v2267
      %2269 = vmatmul.f32.gmra.mxu0 %v2158
      %v2270 = vpop.f32.mrf.mxu0
      %v2271 = vadd.f32 0.0, %v2270
      %2272 = vmatmul.f32.gmra.mxu0 %v2161
      %v2273 = vpop.f32.mrf.mxu0
      %v2274 = vadd.f32 0.0, %v2273
      %2275 = vmatmul.f32.gmra.mxu0 %v2164
      %v2276 = vpop.f32.mrf.mxu0
      %v2277 = vadd.f32 0.0, %v2276
      %2278 = vmatmul.f32.gmra.mxu0 %v2167
      %v2279 = vpop.f32.mrf.mxu0
      %v2280 = vadd.f32 0.0, %v2279
      %2281 = vmatmul.f32.gmra.mxu0 %v2170
      %v2282 = vpop.f32.mrf.mxu0
      %v2283 = vadd.f32 0.0, %v2282
      %2284 = vdwg.mxu0
      %v2285 = vadd.f32 %v2009, %v2190
      %v2286 = vadd.f32 %v2010, %v2193
      %v2287 = vadd.f32 %v2011, %v2196
      %v2288 = vadd.f32 %v2012, %v2199
      %v2289 = vadd.f32 %v2013, %v2202
      %v2290 = vadd.f32 %v2014, %v2205
      %v2291 = vadd.f32 %v2015, %v2208
      %v2292 = vadd.f32 %v2016, %v2211
      %v2293 = vadd.f32 %v2017, %v2214
      %v2294 = vadd.f32 %v2018, %v2217
      %v2295 = vadd.f32 %v2019, %v2220
      %v2296 = vadd.f32 %v2020, %v2223
      %v2297 = vadd.f32 %v2021, %v2226
      %v2298 = vadd.f32 %v2022, %v2229
      %v2299 = vadd.f32 %v2023, %v2232
      %v2300 = vadd.f32 %v2024, %v2235
      %v2301 = vadd.f32 %v2025, %v2238
      %v2302 = vadd.f32 %v2026, %v2241
      %v2303 = vadd.f32 %v2027, %v2244
      %v2304 = vadd.f32 %v2028, %v2247
      %v2305 = vadd.f32 %v2029, %v2250
      %v2306 = vadd.f32 %v2030, %v2253
      %v2307 = vadd.f32 %v2031, %v2256
      %v2308 = vadd.f32 %v2032, %v2259
      %v2309 = vadd.f32 %v2033, %v2262
      %v2310 = vadd.f32 %v2034, %v2265
      %v2311 = vadd.f32 %v2035, %v2268
      %v2312 = vadd.f32 %v2036, %v2271
      %v2313 = vadd.f32 %v2037, %v2274
      %v2314 = vadd.f32 %v2038, %v2277
      %v2315 = vadd.f32 %v2039, %v2280
      %v2316 = vadd.f32 %v2040, %v2283
      %v2317 = vld [vmem:[%s1764 + $0x2] sm:$0xff]
      %v2318 = vld [vmem:[%s1764 + $0xa] sm:$0xff]
      %v2319 = vld [vmem:[%s1764 + $0x1a] sm:$0xff]
      %v2320 = vld [vmem:[%s1764 + $0x22] sm:$0xff]
      %v2321 = vld [vmem:[%s1764 + $0x32] sm:$0xff]
      %v2322 = vld [vmem:[%s1764 + $0x3a] sm:$0xff]
      %v2323 = vld [vmem:[%s1764 + $0x4a] sm:$0xff]
      %v2324 = vld [vmem:[%s1764 + $0x52] sm:$0xff]
      %v2325 = vld [vmem:[%s1764 + $0x62] sm:$0xff]
      %v2326 = vld [vmem:[%s1764 + $0x6a] sm:$0xff]
      %v2327 = vld [vmem:[%s1764 + $0x7a] sm:$0xff]
      %v2328 = vld [vmem:[%s1764 + $0x82] sm:$0xff]
      %v2329 = vld [vmem:[%s1764 + $0x92] sm:$0xff]
      %v2330 = vld [vmem:[%s1764 + $0x9a] sm:$0xff]
      %v2331 = vld [vmem:[%s1764 + $0xaa] sm:$0xff]
      %v2332 = vld [vmem:[%s1764 + $0xb2] sm:$0xff]
      %v2333 = vld [vmem:[%s1764 + $0xc2] sm:$0xff]
      %v2334 = vld [vmem:[%s1764 + $0xca] sm:$0xff]
      %v2335 = vld [vmem:[%s1764 + $0xda] sm:$0xff]
      %v2336 = vld [vmem:[%s1764 + $0xe2] sm:$0xff]
      %v2337 = vld [vmem:[%s1764 + $0xf2] sm:$0xff]
      %v2338 = vld [vmem:[%s1764 + $0xfa] sm:$0xff]
      %v2339 = vld [vmem:[%s1764 + $0x10a] sm:$0xff]
      %v2340 = vld [vmem:[%s1764 + $0x112] sm:$0xff]
      %v2341 = vld [vmem:[%s1764 + $0x122] sm:$0xff]
      %v2342 = vld [vmem:[%s1764 + $0x12a] sm:$0xff]
      %v2343 = vld [vmem:[%s1764 + $0x13a] sm:$0xff]
      %v2344 = vld [vmem:[%s1764 + $0x142] sm:$0xff]
      %v2345 = vld [vmem:[%s1764 + $0x152] sm:$0xff]
      %v2346 = vld [vmem:[%s1764 + $0x15a] sm:$0xff]
      %v2347 = vld [vmem:[%s1764 + $0x16a] sm:$0xff]
      %v2348 = vld [vmem:[%s1764 + $0x172] sm:$0xff]
      %s2349 = scalar_lea.vmem %s1, 128
      %v2350 = vld [vmem:[%s2349] sm:$0xff]
      %v2351 = vld [vmem:[%s2349 + $0x8] sm:$0xff]
      %v2353 = vsel %vm240, %v2317, 0
      %v2356 = vsel %vm240, %v2318, 0
      %v2359 = vsel %vm240, %v2319, 0
      %v2362 = vsel %vm240, %v2320, 0
      %v2365 = vsel %vm240, %v2321, 0
      %v2368 = vsel %vm240, %v2322, 0
      %v2371 = vsel %vm240, %v2323, 0
      %v2374 = vsel %vm240, %v2324, 0
      %v2377 = vsel %vm240, %v2325, 0
      %v2380 = vsel %vm240, %v2326, 0
      %v2383 = vsel %vm240, %v2327, 0
      %v2386 = vsel %vm240, %v2328, 0
      %v2389 = vsel %vm240, %v2329, 0
      %v2392 = vsel %vm240, %v2330, 0
      %v2395 = vsel %vm240, %v2331, 0
      %v2398 = vsel %vm240, %v2332, 0
      %v2401 = vsel %vm240, %v2333, 0
      %v2404 = vsel %vm240, %v2334, 0
      %v2407 = vsel %vm240, %v2335, 0
      %v2410 = vsel %vm240, %v2336, 0
      %v2413 = vsel %vm240, %v2337, 0
      %v2416 = vsel %vm240, %v2338, 0
      %v2419 = vsel %vm240, %v2339, 0
      %v2422 = vsel %vm240, %v2340, 0
      %v2425 = vsel %vm240, %v2341, 0
      %v2428 = vsel %vm240, %v2342, 0
      %v2431 = vsel %vm240, %v2343, 0
      %v2434 = vsel %vm240, %v2344, 0
      %v2437 = vsel %vm240, %v2345, 0
      %v2440 = vsel %vm240, %v2346, 0
      %v2443 = vsel %vm240, %v2347, 0
      %v2446 = vsel %vm240, %v2348, 0
      %2448 = vmatpush.msra.mxu0 0.0
      %2449 = vmatpush.msra.mxu0 0.0
      %2450 = vmatpush.msra.mxu0 0.0
      %2451 = vmatpush.msra.mxu0 0.0
      %2452 = vmatpush.msra.mxu0 0.0
      %2453 = vmatpush.msra.mxu0 0.0
      %2454 = vmatpush.msra.mxu0 0.0
      %2455 = vmatpush.msra.mxu0 0.0
      %2456 = vmatpush.msra.mxu0 0.0
      %2457 = vmatpush.msra.mxu0 0.0
      %2458 = vmatpush.msra.mxu0 0.0
      %2459 = vmatpush.msra.mxu0 0.0
      %2460 = vmatpush.msra.mxu0 0.0
      %2461 = vmatpush.msra.mxu0 0.0
      %2462 = vmatpush.msra.mxu0 %v2351
      %2463 = vmatpush.msra.mxu0 %v2350
      %2464 = vmatmul.f32.gmra.mxu0 %v2353
      %v2465 = vpop.f32.mrf.mxu0
      %v2466 = vadd.f32 0.0, %v2465
      %2467 = vmatmul.f32.gmra.mxu0 %v2356
      %v2468 = vpop.f32.mrf.mxu0
      %v2469 = vadd.f32 0.0, %v2468
      %2470 = vmatmul.f32.gmra.mxu0 %v2359
      %v2471 = vpop.f32.mrf.mxu0
      %v2472 = vadd.f32 0.0, %v2471
      %2473 = vmatmul.f32.gmra.mxu0 %v2362
      %v2474 = vpop.f32.mrf.mxu0
      %v2475 = vadd.f32 0.0, %v2474
      %2476 = vmatmul.f32.gmra.mxu0 %v2365
      %v2477 = vpop.f32.mrf.mxu0
      %v2478 = vadd.f32 0.0, %v2477
      %2479 = vmatmul.f32.gmra.mxu0 %v2368
      %v2480 = vpop.f32.mrf.mxu0
      %v2481 = vadd.f32 0.0, %v2480
      %2482 = vmatmul.f32.gmra.mxu0 %v2371
      %v2483 = vpop.f32.mrf.mxu0
      %v2484 = vadd.f32 0.0, %v2483
      %2485 = vmatmul.f32.gmra.mxu0 %v2374
      %v2486 = vpop.f32.mrf.mxu0
      %v2487 = vadd.f32 0.0, %v2486
      %2488 = vmatmul.f32.gmra.mxu0 %v2377
      %v2489 = vpop.f32.mrf.mxu0
      %v2490 = vadd.f32 0.0, %v2489
      %2491 = vmatmul.f32.gmra.mxu0 %v2380
      %v2492 = vpop.f32.mrf.mxu0
      %v2493 = vadd.f32 0.0, %v2492
      %2494 = vmatmul.f32.gmra.mxu0 %v2383
      %v2495 = vpop.f32.mrf.mxu0
      %v2496 = vadd.f32 0.0, %v2495
      %2497 = vmatmul.f32.gmra.mxu0 %v2386
      %v2498 = vpop.f32.mrf.mxu0
      %v2499 = vadd.f32 0.0, %v2498
      %2500 = vmatmul.f32.gmra.mxu0 %v2389
      %v2501 = vpop.f32.mrf.mxu0
      %v2502 = vadd.f32 0.0, %v2501
      %2503 = vmatmul.f32.gmra.mxu0 %v2392
      %v2504 = vpop.f32.mrf.mxu0
      %v2505 = vadd.f32 0.0, %v2504
      %2506 = vmatmul.f32.gmra.mxu0 %v2395
      %v2507 = vpop.f32.mrf.mxu0
      %v2508 = vadd.f32 0.0, %v2507
      %2509 = vmatmul.f32.gmra.mxu0 %v2398
      %v2510 = vpop.f32.mrf.mxu0
      %v2511 = vadd.f32 0.0, %v2510
      %2512 = vmatmul.f32.gmra.mxu0 %v2401
      %v2513 = vpop.f32.mrf.mxu0
      %v2514 = vadd.f32 0.0, %v2513
      %2515 = vmatmul.f32.gmra.mxu0 %v2404
      %v2516 = vpop.f32.mrf.mxu0
      %v2517 = vadd.f32 0.0, %v2516
      %2518 = vmatmul.f32.gmra.mxu0 %v2407
      %v2519 = vpop.f32.mrf.mxu0
      %v2520 = vadd.f32 0.0, %v2519
      %2521 = vmatmul.f32.gmra.mxu0 %v2410
      %v2522 = vpop.f32.mrf.mxu0
      %v2523 = vadd.f32 0.0, %v2522
      %2524 = vmatmul.f32.gmra.mxu0 %v2413
      %v2525 = vpop.f32.mrf.mxu0
      %v2526 = vadd.f32 0.0, %v2525
      %2527 = vmatmul.f32.gmra.mxu0 %v2416
      %v2528 = vpop.f32.mrf.mxu0
      %v2529 = vadd.f32 0.0, %v2528
      %2530 = vmatmul.f32.gmra.mxu0 %v2419
      %v2531 = vpop.f32.mrf.mxu0
      %v2532 = vadd.f32 0.0, %v2531
      %2533 = vmatmul.f32.gmra.mxu0 %v2422
      %v2534 = vpop.f32.mrf.mxu0
      %v2535 = vadd.f32 0.0, %v2534
      %2536 = vmatmul.f32.gmra.mxu0 %v2425
      %v2537 = vpop.f32.mrf.mxu0
      %v2538 = vadd.f32 0.0, %v2537
      %2539 = vmatmul.f32.gmra.mxu0 %v2428
      %v2540 = vpop.f32.mrf.mxu0
      %v2541 = vadd.f32 0.0, %v2540
      %2542 = vmatmul.f32.gmra.mxu0 %v2431
      %v2543 = vpop.f32.mrf.mxu0
      %v2544 = vadd.f32 0.0, %v2543
      %2545 = vmatmul.f32.gmra.mxu0 %v2434
      %v2546 = vpop.f32.mrf.mxu0
      %v2547 = vadd.f32 0.0, %v2546
      %2548 = vmatmul.f32.gmra.mxu0 %v2437
      %v2549 = vpop.f32.mrf.mxu0
      %v2550 = vadd.f32 0.0, %v2549
      %2551 = vmatmul.f32.gmra.mxu0 %v2440
      %v2552 = vpop.f32.mrf.mxu0
      %v2553 = vadd.f32 0.0, %v2552
      %2554 = vmatmul.f32.gmra.mxu0 %v2443
      %v2555 = vpop.f32.mrf.mxu0
      %v2556 = vadd.f32 0.0, %v2555
      %2557 = vmatmul.f32.gmra.mxu0 %v2446
      %v2558 = vpop.f32.mrf.mxu0
      %v2559 = vadd.f32 0.0, %v2558
      %2560 = vdwg.mxu0
      %v2561 = vadd.f32 %v2285, %v2466
      %v2562 = vadd.f32 %v2286, %v2469
      %v2563 = vadd.f32 %v2287, %v2472
      %v2564 = vadd.f32 %v2288, %v2475
      %v2565 = vadd.f32 %v2289, %v2478
      %v2566 = vadd.f32 %v2290, %v2481
      %v2567 = vadd.f32 %v2291, %v2484
      %v2568 = vadd.f32 %v2292, %v2487
      %v2569 = vadd.f32 %v2293, %v2490
      %v2570 = vadd.f32 %v2294, %v2493
      %v2571 = vadd.f32 %v2295, %v2496
      %v2572 = vadd.f32 %v2296, %v2499
      %v2573 = vadd.f32 %v2297, %v2502
      %v2574 = vadd.f32 %v2298, %v2505
      %v2575 = vadd.f32 %v2299, %v2508
      %v2576 = vadd.f32 %v2300, %v2511
      %v2577 = vadd.f32 %v2301, %v2514
      %v2578 = vadd.f32 %v2302, %v2517
      %v2579 = vadd.f32 %v2303, %v2520
      %v2580 = vadd.f32 %v2304, %v2523
      %v2581 = vadd.f32 %v2305, %v2526
      %v2582 = vadd.f32 %v2306, %v2529
      %v2583 = vadd.f32 %v2307, %v2532
      %v2584 = vadd.f32 %v2308, %v2535
      %v2585 = vadd.f32 %v2309, %v2538
      %v2586 = vadd.f32 %v2310, %v2541
      %v2587 = vadd.f32 %v2311, %v2544
      %v2588 = vadd.f32 %v2312, %v2547
      %v2589 = vadd.f32 %v2313, %v2550
      %v2590 = vadd.f32 %v2314, %v2553
      %v2591 = vadd.f32 %v2315, %v2556
      %v2592 = vadd.f32 %v2316, %v2559
      %v2593 = vld [vmem:[%s2] sm:$0x1]
      %v2595 = vperm.slane %v2593, 0
      %v2597 = vadd.f32 %v2561, %v2595
      %v2598 = vadd.f32 %v2562, %v2595
      %v2599 = vadd.f32 %v2563, %v2595
      %v2600 = vadd.f32 %v2564, %v2595
      %v2601 = vadd.f32 %v2565, %v2595
      %v2602 = vadd.f32 %v2566, %v2595
      %v2603 = vadd.f32 %v2567, %v2595
      %v2604 = vadd.f32 %v2568, %v2595
      %v2605 = vadd.f32 %v2569, %v2595
      %v2606 = vadd.f32 %v2570, %v2595
      %v2607 = vadd.f32 %v2571, %v2595
      %v2608 = vadd.f32 %v2572, %v2595
      %v2609 = vadd.f32 %v2573, %v2595
      %v2610 = vadd.f32 %v2574, %v2595
      %v2611 = vadd.f32 %v2575, %v2595
      %v2612 = vadd.f32 %v2576, %v2595
      %v2613 = vadd.f32 %v2577, %v2595
      %v2614 = vadd.f32 %v2578, %v2595
      %v2615 = vadd.f32 %v2579, %v2595
      %v2616 = vadd.f32 %v2580, %v2595
      %v2617 = vadd.f32 %v2581, %v2595
      %v2618 = vadd.f32 %v2582, %v2595
      %v2619 = vadd.f32 %v2583, %v2595
      %v2620 = vadd.f32 %v2584, %v2595
      %v2621 = vadd.f32 %v2585, %v2595
      %v2622 = vadd.f32 %v2586, %v2595
      %v2623 = vadd.f32 %v2587, %v2595
      %v2624 = vadd.f32 %v2588, %v2595
      %v2625 = vadd.f32 %v2589, %v2595
      %v2626 = vadd.f32 %v2590, %v2595
      %v2627 = vadd.f32 %v2591, %v2595
      %v2628 = vadd.f32 %v2592, %v2595
      %v2629 = vsub.f32 0.0, %v2597
      %v2630 = vsub.f32 0.0, %v2598
      %v2631 = vsub.f32 0.0, %v2599
      %v2632 = vsub.f32 0.0, %v2600
      %v2633 = vsub.f32 0.0, %v2601
      %v2634 = vsub.f32 0.0, %v2602
      %v2635 = vsub.f32 0.0, %v2603
      %v2636 = vsub.f32 0.0, %v2604
      %v2637 = vsub.f32 0.0, %v2605
      %v2638 = vsub.f32 0.0, %v2606
      %v2639 = vsub.f32 0.0, %v2607
      %v2640 = vsub.f32 0.0, %v2608
      %v2641 = vsub.f32 0.0, %v2609
      %v2642 = vsub.f32 0.0, %v2610
      %v2643 = vsub.f32 0.0, %v2611
      %v2644 = vsub.f32 0.0, %v2612
      %v2645 = vsub.f32 0.0, %v2613
      %v2646 = vsub.f32 0.0, %v2614
      %v2647 = vsub.f32 0.0, %v2615
      %v2648 = vsub.f32 0.0, %v2616
      %v2649 = vsub.f32 0.0, %v2617
      %v2650 = vsub.f32 0.0, %v2618
      %v2651 = vsub.f32 0.0, %v2619
      %v2652 = vsub.f32 0.0, %v2620
      %v2653 = vsub.f32 0.0, %v2621
      %v2654 = vsub.f32 0.0, %v2622
      %v2655 = vsub.f32 0.0, %v2623
      %v2656 = vsub.f32 0.0, %v2624
      %v2657 = vsub.f32 0.0, %v2625
      %v2658 = vsub.f32 0.0, %v2626
      %v2659 = vsub.f32 0.0, %v2627
      %v2660 = vsub.f32 0.0, %v2628
      %v2661 = vmul.f32 %v2629, 1.442695
      %v2662 = vpow.pop %v2661
      %v2663 = vmul.f32 %v2630, 1.442695
      %v2664 = vpow.pop %v2663
      %v2665 = vmul.f32 %v2631, 1.442695
      %v2666 = vpow.pop %v2665
      %v2667 = vmul.f32 %v2632, 1.442695
      %v2668 = vpow.pop %v2667
      %v2669 = vmul.f32 %v2633, 1.442695
      %v2670 = vpow.pop %v2669
      %v2671 = vmul.f32 %v2634, 1.442695
      %v2672 = vpow.pop %v2671
      %v2673 = vmul.f32 %v2635, 1.442695
      %v2674 = vpow.pop %v2673
      %v2675 = vmul.f32 %v2636, 1.442695
      %v2676 = vpow.pop %v2675
      %v2677 = vmul.f32 %v2637, 1.442695
      %v2678 = vpow.pop %v2677
      %v2679 = vmul.f32 %v2638, 1.442695
      %v2680 = vpow.pop %v2679
      %v2681 = vmul.f32 %v2639, 1.442695
      %v2682 = vpow.pop %v2681
      %v2683 = vmul.f32 %v2640, 1.442695
      %v2684 = vpow.pop %v2683
      %v2685 = vmul.f32 %v2641, 1.442695
      %v2686 = vpow.pop %v2685
      %v2687 = vmul.f32 %v2642, 1.442695
      %v2688 = vpow.pop %v2687
      %v2689 = vmul.f32 %v2643, 1.442695
      %v2690 = vpow.pop %v2689
      %v2691 = vmul.f32 %v2644, 1.442695
      %v2692 = vpow.pop %v2691
      %v2693 = vmul.f32 %v2645, 1.442695
      %v2694 = vpow.pop %v2693
      %v2695 = vmul.f32 %v2646, 1.442695
      %v2696 = vpow.pop %v2695
      %v2697 = vmul.f32 %v2647, 1.442695
      %v2698 = vpow.pop %v2697
      %v2699 = vmul.f32 %v2648, 1.442695
      %v2700 = vpow.pop %v2699
      %v2701 = vmul.f32 %v2649, 1.442695
      %v2702 = vpow.pop %v2701
      %v2703 = vmul.f32 %v2650, 1.442695
      %v2704 = vpow.pop %v2703
      %v2705 = vmul.f32 %v2651, 1.442695
      %v2706 = vpow.pop %v2705
      %v2707 = vmul.f32 %v2652, 1.442695
      %v2708 = vpow.pop %v2707
      %v2709 = vmul.f32 %v2653, 1.442695
      %v2710 = vpow.pop %v2709
      %v2711 = vmul.f32 %v2654, 1.442695
      %v2712 = vpow.pop %v2711
      %v2713 = vmul.f32 %v2655, 1.442695
      %v2714 = vpow.pop %v2713
      %v2715 = vmul.f32 %v2656, 1.442695
      %v2716 = vpow.pop %v2715
      %v2717 = vmul.f32 %v2657, 1.442695
      %v2718 = vpow.pop %v2717
      %v2719 = vmul.f32 %v2658, 1.442695
      %v2720 = vpow.pop %v2719
      %v2721 = vmul.f32 %v2659, 1.442695
      %v2722 = vpow.pop %v2721
      %v2723 = vmul.f32 %v2660, 1.442695
      %v2724 = vpow.pop %v2723
      %v2725 = vadd.f32 %v2662, 1.0
      %v2726 = vadd.f32 %v2664, 1.0
      %v2727 = vadd.f32 %v2666, 1.0
      %v2728 = vadd.f32 %v2668, 1.0
      %v2729 = vadd.f32 %v2670, 1.0
      %v2730 = vadd.f32 %v2672, 1.0
      %v2731 = vadd.f32 %v2674, 1.0
      %v2732 = vadd.f32 %v2676, 1.0
      %v2733 = vadd.f32 %v2678, 1.0
      %v2734 = vadd.f32 %v2680, 1.0
      %v2735 = vadd.f32 %v2682, 1.0
      %v2736 = vadd.f32 %v2684, 1.0
      %v2737 = vadd.f32 %v2686, 1.0
      %v2738 = vadd.f32 %v2688, 1.0
      %v2739 = vadd.f32 %v2690, 1.0
      %v2740 = vadd.f32 %v2692, 1.0
      %v2741 = vadd.f32 %v2694, 1.0
      %v2742 = vadd.f32 %v2696, 1.0
      %v2743 = vadd.f32 %v2698, 1.0
      %v2744 = vadd.f32 %v2700, 1.0
      %v2745 = vadd.f32 %v2702, 1.0
      %v2746 = vadd.f32 %v2704, 1.0
      %v2747 = vadd.f32 %v2706, 1.0
      %v2748 = vadd.f32 %v2708, 1.0
      %v2749 = vadd.f32 %v2710, 1.0
      %v2750 = vadd.f32 %v2712, 1.0
      %v2751 = vadd.f32 %v2714, 1.0
      %v2752 = vadd.f32 %v2716, 1.0
      %v2753 = vadd.f32 %v2718, 1.0
      %v2754 = vadd.f32 %v2720, 1.0
      %v2755 = vadd.f32 %v2722, 1.0
      %v2756 = vadd.f32 %v2724, 1.0
      %v2757 = vrcp.pop %v2725
      %v2758 = vmul.f32 %v2725, %v2757
      %v2759 = vsub.f32 1.0, %v2758
      %v2760 = vmul.f32 %v2757, %v2759
      %v2761 = vadd.f32 %v2757, %v2760
      %vm2762 = vweird.f32 %v2725
      %vm2763 = vweird.f32 %v2757
      %vm2764 = vmor %vm2762, %vm2763
      %v2765 = vsel %vm2764, %v2757, %v2761
      %v2766 = vand.u32 2147483647, %v2725
      %vm2767 = vcmp.eq.f32.partialorder %v2766, 8.507059e+37
      %v2768 = vand.u32 %v2725, 2147483648
      %v2769 = vor.u32 1.1754944e-38, %v2768
      %v2770 = vsel %vm2767, %v2769, %v2765
      %v2771 = vmul.f32 %v2597, %v2770
      %v2772 = vrcp.pop %v2726
      %v2773 = vmul.f32 %v2726, %v2772
      %v2774 = vsub.f32 1.0, %v2773
      %v2775 = vmul.f32 %v2772, %v2774
      %v2776 = vadd.f32 %v2772, %v2775
      %vm2777 = vweird.f32 %v2726
      %vm2778 = vweird.f32 %v2772
      %vm2779 = vmor %vm2777, %vm2778
      %v2780 = vsel %vm2779, %v2772, %v2776
      %v2781 = vand.u32 2147483647, %v2726
      %vm2782 = vcmp.eq.f32.partialorder %v2781, 8.507059e+37
      %v2783 = vand.u32 %v2726, 2147483648
      %v2784 = vor.u32 1.1754944e-38, %v2783
      %v2785 = vsel %vm2782, %v2784, %v2780
      %v2786 = vmul.f32 %v2598, %v2785
      %v2787 = vrcp.pop %v2727
      %v2788 = vmul.f32 %v2727, %v2787
      %v2789 = vsub.f32 1.0, %v2788
      %v2790 = vmul.f32 %v2787, %v2789
      %v2791 = vadd.f32 %v2787, %v2790
      %vm2792 = vweird.f32 %v2727
      %vm2793 = vweird.f32 %v2787
      %vm2794 = vmor %vm2792, %vm2793
      %v2795 = vsel %vm2794, %v2787, %v2791
      %v2796 = vand.u32 2147483647, %v2727
      %vm2797 = vcmp.eq.f32.partialorder %v2796, 8.507059e+37
      %v2798 = vand.u32 %v2727, 2147483648
      %v2799 = vor.u32 1.1754944e-38, %v2798
      %v2800 = vsel %vm2797, %v2799, %v2795
      %v2801 = vmul.f32 %v2599, %v2800
      %v2802 = vrcp.pop %v2728
      %v2803 = vmul.f32 %v2728, %v2802
      %v2804 = vsub.f32 1.0, %v2803
      %v2805 = vmul.f32 %v2802, %v2804
      %v2806 = vadd.f32 %v2802, %v2805
      %vm2807 = vweird.f32 %v2728
      %vm2808 = vweird.f32 %v2802
      %vm2809 = vmor %vm2807, %vm2808
      %v2810 = vsel %vm2809, %v2802, %v2806
      %v2811 = vand.u32 2147483647, %v2728
      %vm2812 = vcmp.eq.f32.partialorder %v2811, 8.507059e+37
      %v2813 = vand.u32 %v2728, 2147483648
      %v2814 = vor.u32 1.1754944e-38, %v2813
      %v2815 = vsel %vm2812, %v2814, %v2810
      %v2816 = vmul.f32 %v2600, %v2815
      %v2817 = vrcp.pop %v2729
      %v2818 = vmul.f32 %v2729, %v2817
      %v2819 = vsub.f32 1.0, %v2818
      %v2820 = vmul.f32 %v2817, %v2819
      %v2821 = vadd.f32 %v2817, %v2820
      %vm2822 = vweird.f32 %v2729
      %vm2823 = vweird.f32 %v2817
      %vm2824 = vmor %vm2822, %vm2823
      %v2825 = vsel %vm2824, %v2817, %v2821
      %v2826 = vand.u32 2147483647, %v2729
      %vm2827 = vcmp.eq.f32.partialorder %v2826, 8.507059e+37
      %v2828 = vand.u32 %v2729, 2147483648
      %v2829 = vor.u32 1.1754944e-38, %v2828
      %v2830 = vsel %vm2827, %v2829, %v2825
      %v2831 = vmul.f32 %v2601, %v2830
      %v2832 = vrcp.pop %v2730
      %v2833 = vmul.f32 %v2730, %v2832
      %v2834 = vsub.f32 1.0, %v2833
      %v2835 = vmul.f32 %v2832, %v2834
      %v2836 = vadd.f32 %v2832, %v2835
      %vm2837 = vweird.f32 %v2730
      %vm2838 = vweird.f32 %v2832
      %vm2839 = vmor %vm2837, %vm2838
      %v2840 = vsel %vm2839, %v2832, %v2836
      %v2841 = vand.u32 2147483647, %v2730
      %vm2842 = vcmp.eq.f32.partialorder %v2841, 8.507059e+37
      %v2843 = vand.u32 %v2730, 2147483648
      %v2844 = vor.u32 1.1754944e-38, %v2843
      %v2845 = vsel %vm2842, %v2844, %v2840
      %v2846 = vmul.f32 %v2602, %v2845
      %v2847 = vrcp.pop %v2731
      %v2848 = vmul.f32 %v2731, %v2847
      %v2849 = vsub.f32 1.0, %v2848
      %v2850 = vmul.f32 %v2847, %v2849
      %v2851 = vadd.f32 %v2847, %v2850
      %vm2852 = vweird.f32 %v2731
      %vm2853 = vweird.f32 %v2847
      %vm2854 = vmor %vm2852, %vm2853
      %v2855 = vsel %vm2854, %v2847, %v2851
      %v2856 = vand.u32 2147483647, %v2731
      %vm2857 = vcmp.eq.f32.partialorder %v2856, 8.507059e+37
      %v2858 = vand.u32 %v2731, 2147483648
      %v2859 = vor.u32 1.1754944e-38, %v2858
      %v2860 = vsel %vm2857, %v2859, %v2855
      %v2861 = vmul.f32 %v2603, %v2860
      %v2862 = vrcp.pop %v2732
      %v2863 = vmul.f32 %v2732, %v2862
      %v2864 = vsub.f32 1.0, %v2863
      %v2865 = vmul.f32 %v2862, %v2864
      %v2866 = vadd.f32 %v2862, %v2865
      %vm2867 = vweird.f32 %v2732
      %vm2868 = vweird.f32 %v2862
      %vm2869 = vmor %vm2867, %vm2868
      %v2870 = vsel %vm2869, %v2862, %v2866
      %v2871 = vand.u32 2147483647, %v2732
      %vm2872 = vcmp.eq.f32.partialorder %v2871, 8.507059e+37
      %v2873 = vand.u32 %v2732, 2147483648
      %v2874 = vor.u32 1.1754944e-38, %v2873
      %v2875 = vsel %vm2872, %v2874, %v2870
      %v2876 = vmul.f32 %v2604, %v2875
      %v2877 = vrcp.pop %v2733
      %v2878 = vmul.f32 %v2733, %v2877
      %v2879 = vsub.f32 1.0, %v2878
      %v2880 = vmul.f32 %v2877, %v2879
      %v2881 = vadd.f32 %v2877, %v2880
      %vm2882 = vweird.f32 %v2733
      %vm2883 = vweird.f32 %v2877
      %vm2884 = vmor %vm2882, %vm2883
      %v2885 = vsel %vm2884, %v2877, %v2881
      %v2886 = vand.u32 2147483647, %v2733
      %vm2887 = vcmp.eq.f32.partialorder %v2886, 8.507059e+37
      %v2888 = vand.u32 %v2733, 2147483648
      %v2889 = vor.u32 1.1754944e-38, %v2888
      %v2890 = vsel %vm2887, %v2889, %v2885
      %v2891 = vmul.f32 %v2605, %v2890
      %v2892 = vrcp.pop %v2734
      %v2893 = vmul.f32 %v2734, %v2892
      %v2894 = vsub.f32 1.0, %v2893
      %v2895 = vmul.f32 %v2892, %v2894
      %v2896 = vadd.f32 %v2892, %v2895
      %vm2897 = vweird.f32 %v2734
      %vm2898 = vweird.f32 %v2892
      %vm2899 = vmor %vm2897, %vm2898
      %v2900 = vsel %vm2899, %v2892, %v2896
      %v2901 = vand.u32 2147483647, %v2734
      %vm2902 = vcmp.eq.f32.partialorder %v2901, 8.507059e+37
      %v2903 = vand.u32 %v2734, 2147483648
      %v2904 = vor.u32 1.1754944e-38, %v2903
      %v2905 = vsel %vm2902, %v2904, %v2900
      %v2906 = vmul.f32 %v2606, %v2905
      %v2907 = vrcp.pop %v2735
      %v2908 = vmul.f32 %v2735, %v2907
      %v2909 = vsub.f32 1.0, %v2908
      %v2910 = vmul.f32 %v2907, %v2909
      %v2911 = vadd.f32 %v2907, %v2910
      %vm2912 = vweird.f32 %v2735
      %vm2913 = vweird.f32 %v2907
      %vm2914 = vmor %vm2912, %vm2913
      %v2915 = vsel %vm2914, %v2907, %v2911
      %v2916 = vand.u32 2147483647, %v2735
      %vm2917 = vcmp.eq.f32.partialorder %v2916, 8.507059e+37
      %v2918 = vand.u32 %v2735, 2147483648
      %v2919 = vor.u32 1.1754944e-38, %v2918
      %v2920 = vsel %vm2917, %v2919, %v2915
      %v2921 = vmul.f32 %v2607, %v2920
      %v2922 = vrcp.pop %v2736
      %v2923 = vmul.f32 %v2736, %v2922
      %v2924 = vsub.f32 1.0, %v2923
      %v2925 = vmul.f32 %v2922, %v2924
      %v2926 = vadd.f32 %v2922, %v2925
      %vm2927 = vweird.f32 %v2736
      %vm2928 = vweird.f32 %v2922
      %vm2929 = vmor %vm2927, %vm2928
      %v2930 = vsel %vm2929, %v2922, %v2926
      %v2931 = vand.u32 2147483647, %v2736
      %vm2932 = vcmp.eq.f32.partialorder %v2931, 8.507059e+37
      %v2933 = vand.u32 %v2736, 2147483648
      %v2934 = vor.u32 1.1754944e-38, %v2933
      %v2935 = vsel %vm2932, %v2934, %v2930
      %v2936 = vmul.f32 %v2608, %v2935
      %v2937 = vrcp.pop %v2737
      %v2938 = vmul.f32 %v2737, %v2937
      %v2939 = vsub.f32 1.0, %v2938
      %v2940 = vmul.f32 %v2937, %v2939
      %v2941 = vadd.f32 %v2937, %v2940
      %vm2942 = vweird.f32 %v2737
      %vm2943 = vweird.f32 %v2937
      %vm2944 = vmor %vm2942, %vm2943
      %v2945 = vsel %vm2944, %v2937, %v2941
      %v2946 = vand.u32 2147483647, %v2737
      %vm2947 = vcmp.eq.f32.partialorder %v2946, 8.507059e+37
      %v2948 = vand.u32 %v2737, 2147483648
      %v2949 = vor.u32 1.1754944e-38, %v2948
      %v2950 = vsel %vm2947, %v2949, %v2945
      %v2951 = vmul.f32 %v2609, %v2950
      %v2952 = vrcp.pop %v2738
      %v2953 = vmul.f32 %v2738, %v2952
      %v2954 = vsub.f32 1.0, %v2953
      %v2955 = vmul.f32 %v2952, %v2954
      %v2956 = vadd.f32 %v2952, %v2955
      %vm2957 = vweird.f32 %v2738
      %vm2958 = vweird.f32 %v2952
      %vm2959 = vmor %vm2957, %vm2958
      %v2960 = vsel %vm2959, %v2952, %v2956
      %v2961 = vand.u32 2147483647, %v2738
      %vm2962 = vcmp.eq.f32.partialorder %v2961, 8.507059e+37
      %v2963 = vand.u32 %v2738, 2147483648
      %v2964 = vor.u32 1.1754944e-38, %v2963
      %v2965 = vsel %vm2962, %v2964, %v2960
      %v2966 = vmul.f32 %v2610, %v2965
      %v2967 = vrcp.pop %v2739
      %v2968 = vmul.f32 %v2739, %v2967
      %v2969 = vsub.f32 1.0, %v2968
      %v2970 = vmul.f32 %v2967, %v2969
      %v2971 = vadd.f32 %v2967, %v2970
      %vm2972 = vweird.f32 %v2739
      %vm2973 = vweird.f32 %v2967
      %vm2974 = vmor %vm2972, %vm2973
      %v2975 = vsel %vm2974, %v2967, %v2971
      %v2976 = vand.u32 2147483647, %v2739
      %vm2977 = vcmp.eq.f32.partialorder %v2976, 8.507059e+37
      %v2978 = vand.u32 %v2739, 2147483648
      %v2979 = vor.u32 1.1754944e-38, %v2978
      %v2980 = vsel %vm2977, %v2979, %v2975
      %v2981 = vmul.f32 %v2611, %v2980
      %v2982 = vrcp.pop %v2740
      %v2983 = vmul.f32 %v2740, %v2982
      %v2984 = vsub.f32 1.0, %v2983
      %v2985 = vmul.f32 %v2982, %v2984
      %v2986 = vadd.f32 %v2982, %v2985
      %vm2987 = vweird.f32 %v2740
      %vm2988 = vweird.f32 %v2982
      %vm2989 = vmor %vm2987, %vm2988
      %v2990 = vsel %vm2989, %v2982, %v2986
      %v2991 = vand.u32 2147483647, %v2740
      %vm2992 = vcmp.eq.f32.partialorder %v2991, 8.507059e+37
      %v2993 = vand.u32 %v2740, 2147483648
      %v2994 = vor.u32 1.1754944e-38, %v2993
      %v2995 = vsel %vm2992, %v2994, %v2990
      %v2996 = vmul.f32 %v2612, %v2995
      %v2997 = vrcp.pop %v2741
      %v2998 = vmul.f32 %v2741, %v2997
      %v2999 = vsub.f32 1.0, %v2998
      %v3000 = vmul.f32 %v2997, %v2999
      %v3001 = vadd.f32 %v2997, %v3000
      %vm3002 = vweird.f32 %v2741
      %vm3003 = vweird.f32 %v2997
      %vm3004 = vmor %vm3002, %vm3003
      %v3005 = vsel %vm3004, %v2997, %v3001
      %v3006 = vand.u32 2147483647, %v2741
      %vm3007 = vcmp.eq.f32.partialorder %v3006, 8.507059e+37
      %v3008 = vand.u32 %v2741, 2147483648
      %v3009 = vor.u32 1.1754944e-38, %v3008
      %v3010 = vsel %vm3007, %v3009, %v3005
      %v3011 = vmul.f32 %v2613, %v3010
      %v3012 = vrcp.pop %v2742
      %v3013 = vmul.f32 %v2742, %v3012
      %v3014 = vsub.f32 1.0, %v3013
      %v3015 = vmul.f32 %v3012, %v3014
      %v3016 = vadd.f32 %v3012, %v3015
      %vm3017 = vweird.f32 %v2742
      %vm3018 = vweird.f32 %v3012
      %vm3019 = vmor %vm3017, %vm3018
      %v3020 = vsel %vm3019, %v3012, %v3016
      %v3021 = vand.u32 2147483647, %v2742
      %vm3022 = vcmp.eq.f32.partialorder %v3021, 8.507059e+37
      %v3023 = vand.u32 %v2742, 2147483648
      %v3024 = vor.u32 1.1754944e-38, %v3023
      %v3025 = vsel %vm3022, %v3024, %v3020
      %v3026 = vmul.f32 %v2614, %v3025
      %v3027 = vrcp.pop %v2743
      %v3028 = vmul.f32 %v2743, %v3027
      %v3029 = vsub.f32 1.0, %v3028
      %v3030 = vmul.f32 %v3027, %v3029
      %v3031 = vadd.f32 %v3027, %v3030
      %vm3032 = vweird.f32 %v2743
      %vm3033 = vweird.f32 %v3027
      %vm3034 = vmor %vm3032, %vm3033
      %v3035 = vsel %vm3034, %v3027, %v3031
      %v3036 = vand.u32 2147483647, %v2743
      %vm3037 = vcmp.eq.f32.partialorder %v3036, 8.507059e+37
      %v3038 = vand.u32 %v2743, 2147483648
      %v3039 = vor.u32 1.1754944e-38, %v3038
      %v3040 = vsel %vm3037, %v3039, %v3035
      %v3041 = vmul.f32 %v2615, %v3040
      %v3042 = vrcp.pop %v2744
      %v3043 = vmul.f32 %v2744, %v3042
      %v3044 = vsub.f32 1.0, %v3043
      %v3045 = vmul.f32 %v3042, %v3044
      %v3046 = vadd.f32 %v3042, %v3045
      %vm3047 = vweird.f32 %v2744
      %vm3048 = vweird.f32 %v3042
      %vm3049 = vmor %vm3047, %vm3048
      %v3050 = vsel %vm3049, %v3042, %v3046
      %v3051 = vand.u32 2147483647, %v2744
      %vm3052 = vcmp.eq.f32.partialorder %v3051, 8.507059e+37
      %v3053 = vand.u32 %v2744, 2147483648
      %v3054 = vor.u32 1.1754944e-38, %v3053
      %v3055 = vsel %vm3052, %v3054, %v3050
      %v3056 = vmul.f32 %v2616, %v3055
      %v3057 = vrcp.pop %v2745
      %v3058 = vmul.f32 %v2745, %v3057
      %v3059 = vsub.f32 1.0, %v3058
      %v3060 = vmul.f32 %v3057, %v3059
      %v3061 = vadd.f32 %v3057, %v3060
      %vm3062 = vweird.f32 %v2745
      %vm3063 = vweird.f32 %v3057
      %vm3064 = vmor %vm3062, %vm3063
      %v3065 = vsel %vm3064, %v3057, %v3061
      %v3066 = vand.u32 2147483647, %v2745
      %vm3067 = vcmp.eq.f32.partialorder %v3066, 8.507059e+37
      %v3068 = vand.u32 %v2745, 2147483648
      %v3069 = vor.u32 1.1754944e-38, %v3068
      %v3070 = vsel %vm3067, %v3069, %v3065
      %v3071 = vmul.f32 %v2617, %v3070
      %v3072 = vrcp.pop %v2746
      %v3073 = vmul.f32 %v2746, %v3072
      %v3074 = vsub.f32 1.0, %v3073
      %v3075 = vmul.f32 %v3072, %v3074
      %v3076 = vadd.f32 %v3072, %v3075
      %vm3077 = vweird.f32 %v2746
      %vm3078 = vweird.f32 %v3072
      %vm3079 = vmor %vm3077, %vm3078
      %v3080 = vsel %vm3079, %v3072, %v3076
      %v3081 = vand.u32 2147483647, %v2746
      %vm3082 = vcmp.eq.f32.partialorder %v3081, 8.507059e+37
      %v3083 = vand.u32 %v2746, 2147483648
      %v3084 = vor.u32 1.1754944e-38, %v3083
      %v3085 = vsel %vm3082, %v3084, %v3080
      %v3086 = vmul.f32 %v2618, %v3085
      %v3087 = vrcp.pop %v2747
      %v3088 = vmul.f32 %v2747, %v3087
      %v3089 = vsub.f32 1.0, %v3088
      %v3090 = vmul.f32 %v3087, %v3089
      %v3091 = vadd.f32 %v3087, %v3090
      %vm3092 = vweird.f32 %v2747
      %vm3093 = vweird.f32 %v3087
      %vm3094 = vmor %vm3092, %vm3093
      %v3095 = vsel %vm3094, %v3087, %v3091
      %v3096 = vand.u32 2147483647, %v2747
      %vm3097 = vcmp.eq.f32.partialorder %v3096, 8.507059e+37
      %v3098 = vand.u32 %v2747, 2147483648
      %v3099 = vor.u32 1.1754944e-38, %v3098
      %v3100 = vsel %vm3097, %v3099, %v3095
      %v3101 = vmul.f32 %v2619, %v3100
      %v3102 = vrcp.pop %v2748
      %v3103 = vmul.f32 %v2748, %v3102
      %v3104 = vsub.f32 1.0, %v3103
      %v3105 = vmul.f32 %v3102, %v3104
      %v3106 = vadd.f32 %v3102, %v3105
      %vm3107 = vweird.f32 %v2748
      %vm3108 = vweird.f32 %v3102
      %vm3109 = vmor %vm3107, %vm3108
      %v3110 = vsel %vm3109, %v3102, %v3106
      %v3111 = vand.u32 2147483647, %v2748
      %vm3112 = vcmp.eq.f32.partialorder %v3111, 8.507059e+37
      %v3113 = vand.u32 %v2748, 2147483648
      %v3114 = vor.u32 1.1754944e-38, %v3113
      %v3115 = vsel %vm3112, %v3114, %v3110
      %v3116 = vmul.f32 %v2620, %v3115
      %v3117 = vrcp.pop %v2749
      %v3118 = vmul.f32 %v2749, %v3117
      %v3119 = vsub.f32 1.0, %v3118
      %v3120 = vmul.f32 %v3117, %v3119
      %v3121 = vadd.f32 %v3117, %v3120
      %vm3122 = vweird.f32 %v2749
      %vm3123 = vweird.f32 %v3117
      %vm3124 = vmor %vm3122, %vm3123
      %v3125 = vsel %vm3124, %v3117, %v3121
      %v3126 = vand.u32 2147483647, %v2749
      %vm3127 = vcmp.eq.f32.partialorder %v3126, 8.507059e+37
      %v3128 = vand.u32 %v2749, 2147483648
      %v3129 = vor.u32 1.1754944e-38, %v3128
      %v3130 = vsel %vm3127, %v3129, %v3125
      %v3131 = vmul.f32 %v2621, %v3130
      %v3132 = vrcp.pop %v2750
      %v3133 = vmul.f32 %v2750, %v3132
      %v3134 = vsub.f32 1.0, %v3133
      %v3135 = vmul.f32 %v3132, %v3134
      %v3136 = vadd.f32 %v3132, %v3135
      %vm3137 = vweird.f32 %v2750
      %vm3138 = vweird.f32 %v3132
      %vm3139 = vmor %vm3137, %vm3138
      %v3140 = vsel %vm3139, %v3132, %v3136
      %v3141 = vand.u32 2147483647, %v2750
      %vm3142 = vcmp.eq.f32.partialorder %v3141, 8.507059e+37
      %v3143 = vand.u32 %v2750, 2147483648
      %v3144 = vor.u32 1.1754944e-38, %v3143
      %v3145 = vsel %vm3142, %v3144, %v3140
      %v3146 = vmul.f32 %v2622, %v3145
      %v3147 = vrcp.pop %v2751
      %v3148 = vmul.f32 %v2751, %v3147
      %v3149 = vsub.f32 1.0, %v3148
      %v3150 = vmul.f32 %v3147, %v3149
      %v3151 = vadd.f32 %v3147, %v3150
      %vm3152 = vweird.f32 %v2751
      %vm3153 = vweird.f32 %v3147
      %vm3154 = vmor %vm3152, %vm3153
      %v3155 = vsel %vm3154, %v3147, %v3151
      %v3156 = vand.u32 2147483647, %v2751
      %vm3157 = vcmp.eq.f32.partialorder %v3156, 8.507059e+37
      %v3158 = vand.u32 %v2751, 2147483648
      %v3159 = vor.u32 1.1754944e-38, %v3158
      %v3160 = vsel %vm3157, %v3159, %v3155
      %v3161 = vmul.f32 %v2623, %v3160
      %v3162 = vrcp.pop %v2752
      %v3163 = vmul.f32 %v2752, %v3162
      %v3164 = vsub.f32 1.0, %v3163
      %v3165 = vmul.f32 %v3162, %v3164
      %v3166 = vadd.f32 %v3162, %v3165
      %vm3167 = vweird.f32 %v2752
      %vm3168 = vweird.f32 %v3162
      %vm3169 = vmor %vm3167, %vm3168
      %v3170 = vsel %vm3169, %v3162, %v3166
      %v3171 = vand.u32 2147483647, %v2752
      %vm3172 = vcmp.eq.f32.partialorder %v3171, 8.507059e+37
      %v3173 = vand.u32 %v2752, 2147483648
      %v3174 = vor.u32 1.1754944e-38, %v3173
      %v3175 = vsel %vm3172, %v3174, %v3170
      %v3176 = vmul.f32 %v2624, %v3175
      %v3177 = vrcp.pop %v2753
      %v3178 = vmul.f32 %v2753, %v3177
      %v3179 = vsub.f32 1.0, %v3178
      %v3180 = vmul.f32 %v3177, %v3179
      %v3181 = vadd.f32 %v3177, %v3180
      %vm3182 = vweird.f32 %v2753
      %vm3183 = vweird.f32 %v3177
      %vm3184 = vmor %vm3182, %vm3183
      %v3185 = vsel %vm3184, %v3177, %v3181
      %v3186 = vand.u32 2147483647, %v2753
      %vm3187 = vcmp.eq.f32.partialorder %v3186, 8.507059e+37
      %v3188 = vand.u32 %v2753, 2147483648
      %v3189 = vor.u32 1.1754944e-38, %v3188
      %v3190 = vsel %vm3187, %v3189, %v3185
      %v3191 = vmul.f32 %v2625, %v3190
      %v3192 = vrcp.pop %v2754
      %v3193 = vmul.f32 %v2754, %v3192
      %v3194 = vsub.f32 1.0, %v3193
      %v3195 = vmul.f32 %v3192, %v3194
      %v3196 = vadd.f32 %v3192, %v3195
      %vm3197 = vweird.f32 %v2754
      %vm3198 = vweird.f32 %v3192
      %vm3199 = vmor %vm3197, %vm3198
      %v3200 = vsel %vm3199, %v3192, %v3196
      %v3201 = vand.u32 2147483647, %v2754
      %vm3202 = vcmp.eq.f32.partialorder %v3201, 8.507059e+37
      %v3203 = vand.u32 %v2754, 2147483648
      %v3204 = vor.u32 1.1754944e-38, %v3203
      %v3205 = vsel %vm3202, %v3204, %v3200
      %v3206 = vmul.f32 %v2626, %v3205
      %v3207 = vrcp.pop %v2755
      %v3208 = vmul.f32 %v2755, %v3207
      %v3209 = vsub.f32 1.0, %v3208
      %v3210 = vmul.f32 %v3207, %v3209
      %v3211 = vadd.f32 %v3207, %v3210
      %vm3212 = vweird.f32 %v2755
      %vm3213 = vweird.f32 %v3207
      %vm3214 = vmor %vm3212, %vm3213
      %v3215 = vsel %vm3214, %v3207, %v3211
      %v3216 = vand.u32 2147483647, %v2755
      %vm3217 = vcmp.eq.f32.partialorder %v3216, 8.507059e+37
      %v3218 = vand.u32 %v2755, 2147483648
      %v3219 = vor.u32 1.1754944e-38, %v3218
      %v3220 = vsel %vm3217, %v3219, %v3215
      %v3221 = vmul.f32 %v2627, %v3220
      %v3222 = vrcp.pop %v2756
      %v3223 = vmul.f32 %v2756, %v3222
      %v3224 = vsub.f32 1.0, %v3223
      %v3225 = vmul.f32 %v3222, %v3224
      %v3226 = vadd.f32 %v3222, %v3225
      %vm3227 = vweird.f32 %v2756
      %vm3228 = vweird.f32 %v3222
      %vm3229 = vmor %vm3227, %vm3228
      %v3230 = vsel %vm3229, %v3222, %v3226
      %v3231 = vand.u32 2147483647, %v2756
      %vm3232 = vcmp.eq.f32.partialorder %v3231, 8.507059e+37
      %v3233 = vand.u32 %v2756, 2147483648
      %v3234 = vor.u32 1.1754944e-38, %v3233
      %v3235 = vsel %vm3232, %v3234, %v3230
      %v3236 = vmul.f32 %v2628, %v3235
      %3237 = vst.msk [vmem:[%s170] sm:$0xff] %vm240, %v2771
      %3238 = vst.msk [vmem:[%s170 + $0x8] sm:$0xff] %vm240, %v2786
      %3239 = vst.msk [vmem:[%s170 + $0x10] sm:$0xff] %vm240, %v2801
      %3240 = vst.msk [vmem:[%s170 + $0x18] sm:$0xff] %vm240, %v2816
      %3241 = vst.msk [vmem:[%s170 + $0x20] sm:$0xff] %vm240, %v2831
      %3242 = vst.msk [vmem:[%s170 + $0x28] sm:$0xff] %vm240, %v2846
      %3243 = vst.msk [vmem:[%s170 + $0x30] sm:$0xff] %vm240, %v2861
      %3244 = vst.msk [vmem:[%s170 + $0x38] sm:$0xff] %vm240, %v2876
      %3245 = vst.msk [vmem:[%s170 + $0x40] sm:$0xff] %vm240, %v2891
      %3246 = vst.msk [vmem:[%s170 + $0x48] sm:$0xff] %vm240, %v2906
      %3247 = vst.msk [vmem:[%s170 + $0x50] sm:$0xff] %vm240, %v2921
      %3248 = vst.msk [vmem:[%s170 + $0x58] sm:$0xff] %vm240, %v2936
      %3249 = vst.msk [vmem:[%s170 + $0x60] sm:$0xff] %vm240, %v2951
      %3250 = vst.msk [vmem:[%s170 + $0x68] sm:$0xff] %vm240, %v2966
      %3251 = vst.msk [vmem:[%s170 + $0x70] sm:$0xff] %vm240, %v2981
      %3252 = vst.msk [vmem:[%s170 + $0x78] sm:$0xff] %vm240, %v2996
      %3253 = vst.msk [vmem:[%s170 + $0x80] sm:$0xff] %vm240, %v3011
      %3254 = vst.msk [vmem:[%s170 + $0x88] sm:$0xff] %vm240, %v3026
      %3255 = vst.msk [vmem:[%s170 + $0x90] sm:$0xff] %vm240, %v3041
      %3256 = vst.msk [vmem:[%s170 + $0x98] sm:$0xff] %vm240, %v3056
      %3257 = vst.msk [vmem:[%s170 + $0xa0] sm:$0xff] %vm240, %v3071
      %3258 = vst.msk [vmem:[%s170 + $0xa8] sm:$0xff] %vm240, %v3086
      %3259 = vst.msk [vmem:[%s170 + $0xb0] sm:$0xff] %vm240, %v3101
      %3260 = vst.msk [vmem:[%s170 + $0xb8] sm:$0xff] %vm240, %v3116
      %3261 = vst.msk [vmem:[%s170 + $0xc0] sm:$0xff] %vm240, %v3131
      %3262 = vst.msk [vmem:[%s170 + $0xc8] sm:$0xff] %vm240, %v3146
      %3263 = vst.msk [vmem:[%s170 + $0xd0] sm:$0xff] %vm240, %v3161
      %3264 = vst.msk [vmem:[%s170 + $0xd8] sm:$0xff] %vm240, %v3176
      %3265 = vst.msk [vmem:[%s170 + $0xe0] sm:$0xff] %vm240, %v3191
      %3266 = vst.msk [vmem:[%s170 + $0xe8] sm:$0xff] %vm240, %v3206
      %3267 = vst.msk [vmem:[%s170 + $0xf0] sm:$0xff] %vm240, %v3221
      %3268 = vst.msk [vmem:[%s170 + $0xf8] sm:$0xff] %vm240, %v3236
      %p3269 = scmp.lt.s32.totalorder %s14, 1
      %s3270 = scalar_select %p3269, %s14, 1
      %s3271 = smul.addr %s3270, 32
      %s3272 = smul.addr %s3271, 8
      %s3273 = scalar_lea.vmem %s3, %s3272
      // Predicated region
      $region33: #{csp_stage_forward.7} parent=31 // pred_check
        %p3274 = pneg %p100
      $region34: #{csp_stage_forward.7} parent=31 // pred_check_branch
        %3276 = sbr.rel (%p3274) target = $region36
      $region35: #{csp_stage_forward.7} parent=31 // pred_region
        _
      $region36: #{csp_stage_forward.7} parent=31 // pred_fallthru
        _
    $region32: #{csp_stage_forward.7} parent=5 // pred_fallthru
      _
    %p3277 = scmp.le.s32.totalorder 2, %s9
    // Predicated region
    $region37: #{csp_stage_forward.7} parent=5 // pred_check
      %p3278 = pneg %p3277
    $region38: #{csp_stage_forward.7} parent=5 // pred_check_branch
      %3280 = sbr.rel (%p3278) target = $region40
    $region39: #{csp_stage_forward.7} parent=5 // pred_region
      %s3281 = ssub.s32 %s9, 2
      // Predicated region
      $region41: #{csp_stage_forward.7} parent=39 // pred_check
        %p3282 = pneg %p106
      $region42: #{csp_stage_forward.7} parent=39 // pred_check_branch
        %3284 = sbr.rel (%p3282) target = $region44
      $region43: #{csp_stage_forward.7} parent=39 // pred_region
        %p3285 = scmp.lt.s32.totalorder %s15, 1
        %s3286 = scalar_select %p3285, %s15, 1
        %s3287 = smul.addr %s3286, 32
        %s3288 = smul.addr %s3287, 8
        %s3289 = scalar_lea.vmem %s3, %s3288
      $region44: #{csp_stage_forward.7} parent=39 // pred_fallthru
        _
    $region40: #{csp_stage_forward.7} parent=5 // pred_fallthru
      _
  $region6: #{csp_stage_forward.7} parent=0 // loop_footer
    %s13 = sadd.s32 1, %s9
  $region7: #{csp_stage_forward.7} parent=0 // loop_footer_branch
    %8 = sbr.rel target = $region3
  $region8: #{csp_stage_forward.7} parent=0 // loop_exit
    _

</llo_original>
